<compile_context>
chip_gen: v6e
topology: v6e:2x2x1
jax: 0.10.0
libtpu: 0.0.40
codegen_flags: <defaults>
</compile_context>

<pallas_src>
import functools

import jax
import jax.numpy as jnp
from jax.experimental import pallas as pl
from jax.experimental.pallas import tpu as pltpu


# ----------------------------- kernel helpers ------------------------------

def _silu(x):
    return x * jax.nn.sigmoid(x)


def _valid_pool(slab_ref, hs, ws, k):
    """Valid k x k stride-1 max pool over slab_ref[:hs, :ws, :], separable H->W."""
    ho, wo = hs - k + 1, ws - k + 1
    # H direction: shifted reads of the scratch ref (outer dim -> plain vreg maxes).
    cm = slab_ref[0:ho, 0:ws, :]
    for a in range(1, k):
        cm = jnp.maximum(cm, slab_ref[a:a + ho, 0:ws, :])
    # W direction: shifted slices of the value (sublane axis).
    out = jax.lax.slice_in_dim(cm, 0, wo, axis=1)
    for b in range(1, k):
        out = jnp.maximum(out, jax.lax.slice_in_dim(cm, b, b + wo, axis=1))
    return out


# --------------------------------- kernel ----------------------------------

def sppf_kernel(x_ref, w1_ref, b1_ref, w2_ref, b2_ref, o_ref, pad_ref, cat_ref, *, k):
    # x_ref : (1, H, W, C1) bf16    w1: (C1, Cm) bf16    b1: (1, Cm) f32
    # w2    : (4*Cm, C2)   bf16     b2: (1, C2) f32      o_ref: (1, H, W, C2)
    # pad_ref: (H+6p, W+6p, Cm) bf16 scratch; cat_ref: (H*W, 4*Cm) bf16 scratch.
    H, W, C1 = x_ref.shape[1:]
    Cm = w1_ref.shape[1]
    C2 = w2_ref.shape[1]
    p = k // 2

    # --- cv1: 1x1 conv (+ folded BN) + SiLU (MXU matmul, f32 accumulation) ---
    x = x_ref[0].reshape(H * W, C1)                                   # bf16
    h = jnp.dot(x, w1_ref[...], preferred_element_type=jnp.float32) + b1_ref[0]
    h = _silu(h).astype(jnp.bfloat16)                                 # (H*W, Cm)

    # --- one -inf pad (margin 3p), then three chained valid k x k pools -----
    pad_ref[...] = jnp.full(pad_ref.shape, -jnp.inf, pad_ref.dtype)
    pad_ref[3 * p:3 * p + H, 3 * p:3 * p + W, :] = h.reshape(H, W, Cm)

    s1 = _valid_pool(pad_ref, H + 6 * p, W + 6 * p, k)                # (H+4p, W+4p)
    pad_ref[0:H + 4 * p, 0:W + 4 * p, :] = s1
    s2 = _valid_pool(pad_ref, H + 4 * p, W + 4 * p, k)                # (H+2p, W+2p)
    pad_ref[0:H + 2 * p, 0:W + 2 * p, :] = s2
    y3 = _valid_pool(pad_ref, H + 2 * p, W + 2 * p, k)                # (H, W)
    y1 = s1[2 * p:2 * p + H, 2 * p:2 * p + W, :]
    y2 = s2[p:p + H, p:p + W, :]

    # --- cv2 on the channel concat [h, y1, y2, y3] (lane-dense K = 4*Cm) ----
    cat_ref[:, 0:Cm] = h
    cat_ref[:, Cm:2 * Cm] = y1.reshape(H * W, Cm)
    cat_ref[:, 2 * Cm:3 * Cm] = y2.reshape(H * W, Cm)
    cat_ref[:, 3 * Cm:4 * Cm] = y3.reshape(H * W, Cm)

    out = jnp.dot(cat_ref[...], w2_ref[...],
                  preferred_element_type=jnp.float32) + b2_ref[0]
    out = _silu(out)
    o_ref[0] = out.reshape(H, W, C2).astype(o_ref.dtype)


# -------------------------------- wrappers ----------------------------------

def sppf_nhwc(x, w1, b1, w2, b2, *, k=5, out_dtype=jnp.float32):
    """SPPF forward, NHWC in -> NHWC out. x bf16, weights folded/transposed."""
    B, H, W, C1 = x.shape
    Cm = w1.shape[1]
    C2 = w2.shape[1]
    p = k // 2

    kernel = functools.partial(sppf_kernel, k=k)
    return pl.pallas_call(
        kernel,
        out_shape=jax.ShapeDtypeStruct((B, H, W, C2), out_dtype),
        grid_spec=pltpu.PrefetchScalarGridSpec(
            num_scalar_prefetch=0,
            grid=(B,),
            in_specs=[
                pl.BlockSpec((1, H, W, C1), lambda b: (b, 0, 0, 0)),
                pl.BlockSpec(w1.shape, lambda b: (0, 0)),
                pl.BlockSpec(b1.shape, lambda b: (0, 0)),
                pl.BlockSpec(w2.shape, lambda b: (0, 0)),
                pl.BlockSpec(b2.shape, lambda b: (0, 0)),
            ],
            out_specs=pl.BlockSpec((1, H, W, C2), lambda b: (b, 0, 0, 0)),
            scratch_shapes=[
                pltpu.VMEM((H + 6 * p, W + 6 * p, Cm), jnp.bfloat16),  # pad slab
                pltpu.VMEM((H * W, 4 * Cm), jnp.bfloat16),             # cv2 operand
            ],
        ),
        compiler_params=pltpu.CompilerParams(
            dimension_semantics=("parallel",),
        ),
    )(x, w1, b1, w2, b2)


def sppf(x_nchw, w1, b1, w2, b2, *, k=5):
    """NCHW -> NCHW convenience wrapper (transpose fused with bf16 cast)."""
    x = jnp.transpose(x_nchw, (0, 2, 3, 1)).astype(jnp.bfloat16)
    out = sppf_nhwc(x, w1, b1, w2, b2, k=k, out_dtype=x_nchw.dtype)
    return jnp.transpose(out, (0, 3, 1, 2))


# ------------------------ host-side weight preparation ---------------------

def fold_conv_bn(conv_w_oi, gamma, beta, mean, var, eps=1e-5):
    """Fold BatchNorm into a bias-free 1x1 conv; return (Cin,Cout) bf16 W, f32 b."""
    scale = gamma * jax.lax.rsqrt(var + eps)        # (c_out,)
    w = (conv_w_oi * scale[:, None]).T              # (c_in, c_out)
    b = beta - mean * scale                         # (c_out,)
    return w.astype(jnp.bfloat16), b[None, :].astype(jnp.float32)


def bn_params(key, c):
    k1, k2, k3, k4 = jax.random.split(key, 4)
    gamma = 1.0 + 0.1 * jax.random.normal(k1, (c,), jnp.float32)
    beta = 0.1 * jax.random.normal(k2, (c,), jnp.float32)
    mean = 0.1 * jax.random.normal(k3, (c,), jnp.float32)
    var = jnp.abs(jax.random.normal(k4, (c,), jnp.float32)) + 0.5
    return gamma, beta, mean, var


# ------------------------------ pure-JAX reference -------------------------

def sppf_reference(x_nchw, w1, b1, w2, b2, k):
    x = jnp.transpose(x_nchw, (0, 2, 3, 1))
    h = jnp.einsum("bhwi,io->bhwo", x.astype(jnp.bfloat16), w1,
                   preferred_element_type=jnp.float32) + b1[0]
    h = _silu(h)

    def pool(t):
        return jax.lax.reduce_window(
            t, -jnp.inf, jax.lax.max,
            window_dimensions=(1, k, k, 1),
            window_strides=(1, 1, 1, 1),
            padding=((0, 0), (k // 2, k // 2), (k // 2, k // 2), (0, 0)))

    y1 = pool(h)
    y2 = pool(y1)
    y3 = pool(y2)
    cat = jnp.concatenate([h, y1, y2, y3], axis=-1)
    out = jnp.einsum("bhwi,io->bhwo", cat.astype(jnp.bfloat16), w2,
                     preferred_element_type=jnp.float32) + b2[0]
    out = _silu(out)
    return jnp.transpose(out, (0, 3, 1, 2))


# ----------------------------------- main -----------------------------------

if __name__ == "__main__":
    B, C1, H, W = 2, 64, 16, 16     # SPPF(c1=64, c2=128, k=5)
    C2 = 128
    K = 5
    Cm = C1 // 2                    # hidden channels c_ = c1 // 2

    root = jax.random.PRNGKey(0)
    kx, kw1, kw2, kbn1, kbn2 = jax.random.split(root, 5)

    x = jax.random.normal(kx, (B, C1, H, W), jnp.float32)

    # PyTorch-style raw parameters: conv weights (c_out, c_in) for 1x1 convs.
    conv1_w = jax.random.normal(kw1, (Cm, C1), jnp.float32) * 0.05
    conv2_w = jax.random.normal(kw2, (C2, 4 * Cm), jnp.float32) * 0.05
    bn1 = bn_params(kbn1, Cm)
    bn2 = bn_params(kbn2, C2)

    w1, b1 = fold_conv_bn(conv1_w, *bn1)
    w2, b2 = fold_conv_bn(conv2_w, *bn2)

    sppf_fn = jax.jit(functools.partial(sppf, k=K))
    out = jax.block_until_ready(sppf_fn(x, w1, b1, w2, b2))
    assert out.shape == (B, C2, H, W) and out.dtype == jnp.float32

    ref = jax.block_until_ready(sppf_reference(x, w1, b1, w2, b2, K))
    max_err = float(jnp.max(jnp.abs(out - ref)))
    assert max_err < 2e-2, f"max abs err {max_err}"

    print("KERNEL_OK")
</pallas_src>

<mosaic_0001>
module attributes {stable_mosaic.version = 11 : i64} {
  func.func @sppf_kernel(%arg0: i32, %arg1: memref<1x16x16x64xbf16, #tpu.memory_space<vmem>>, %arg2: memref<64x32xbf16, #tpu.memory_space<vmem>>, %arg3: memref<1x32xf32, #tpu.memory_space<vmem>>, %arg4: memref<128x128xbf16, #tpu.memory_space<vmem>>, %arg5: memref<1x128xf32, #tpu.memory_space<vmem>>, %arg6: memref<1x16x16x128xf32, #tpu.memory_space<vmem>>, %arg7: memref<28x28x32xbf16, #tpu.memory_space<vmem>>, %arg8: memref<256x128xbf16, #tpu.memory_space<vmem>>) attributes {dimension_semantics = [#tpu.dimension_semantics<parallel>], iteration_bounds = array<i64: 2>, scalar_prefetch = 0 : i64, scratch_operands = 2 : i64, tpu.core_type = #tpu.core_type<tc>, window_params = [{transform_indices = @transform_0, window_bounds = array<i64: 1, 16, 16, 64>}, {pipeline_mode = #tpu.pipeline_mode<synchronous>, transform_indices = @transform_1, window_bounds = array<i64: 64, 32>}, {pipeline_mode = #tpu.pipeline_mode<synchronous>, transform_indices = @transform_2, window_bounds = array<i64: 1, 32>}, {pipeline_mode = #tpu.pipeline_mode<synchronous>, transform_indices = @transform_3, window_bounds = array<i64: 128, 128>}, {pipeline_mode = #tpu.pipeline_mode<synchronous>, transform_indices = @transform_4, window_bounds = array<i64: 1, 128>}, {transform_indices = @transform_5, window_bounds = array<i64: 1, 16, 16, 128>}]} {
    %c0 = arith.constant 0 : index
    %c0_0 = arith.constant 0 : index
    %c0_1 = arith.constant 0 : index
    %c0_2 = arith.constant 0 : index
    %0 = vector.load %arg1[%c0, %c0_0, %c0_1, %c0_2] : memref<1x16x16x64xbf16, #tpu.memory_space<vmem>>, vector<1x16x16x64xbf16>
    %1 = vector.shape_cast %0 : vector<1x16x16x64xbf16> to vector<16x16x64xbf16>
    %2 = vector.shape_cast %1 : vector<16x16x64xbf16> to vector<256x64xbf16>
    %c0_3 = arith.constant 0 : index
    %c0_4 = arith.constant 0 : index
    %3 = vector.load %arg2[%c0_3, %c0_4] : memref<64x32xbf16, #tpu.memory_space<vmem>>, vector<64x32xbf16>
    %cst = arith.constant dense<0.000000e+00> : vector<256x32xf32>
    %4 = tpu.matmul %2, %3, %cst {dimension_numbers = #tpu.dot_dimension_numbers<[1], [0], [0], [1], [0, 0, 1, 1], [], []>} : vector<256x64xbf16>, vector<64x32xbf16>, vector<256x32xf32> -> vector<256x32xf32>
    %c0_5 = arith.constant 0 : index
    %c0_6 = arith.constant 0 : index
    %5 = vector.load %arg3[%c0_5, %c0_6] : memref<1x32xf32, #tpu.memory_space<vmem>>, vector<1x32xf32>
    %6 = vector.shape_cast %5 : vector<1x32xf32> to vector<32xf32>
    %7 = vector.shape_cast %6 : vector<32xf32> to vector<1x32xf32>
    %8 = vector.broadcast %7 : vector<1x32xf32> to vector<256x32xf32>
    %9 = arith.addf %4, %8 : vector<256x32xf32>
    %10 = arith.negf %9 : vector<256x32xf32>
    %11 = math.exp %10 : vector<256x32xf32>
    %cst_7 = arith.constant 1.000000e+00 : f32
    %12 = vector.broadcast %cst_7 : f32 to vector<256x32xf32>
    %13 = arith.addf %12, %11 : vector<256x32xf32>
    %14 = arith.divf %12, %13 : vector<256x32xf32>
    %15 = arith.mulf %9, %14 : vector<256x32xf32>
    %16 = arith.truncf %15 : vector<256x32xf32> to vector<256x32xbf16>
    %cst_8 = arith.constant 0xFF80 : bf16
    %17 = vector.broadcast %cst_8 : bf16 to vector<28x28x32xbf16>
    %c0_9 = arith.constant 0 : index
    %c0_10 = arith.constant 0 : index
    %c0_11 = arith.constant 0 : index
    %18 = vector.load %arg7[%c0_9, %c0_10, %c0_11] : memref<28x28x32xbf16, #tpu.memory_space<vmem>>, vector<28x28x32xbf16>
    tpu.vector_store %arg7[%c0_9, %c0_10, %c0_11], %17 {strides = array<i32>} : memref<28x28x32xbf16, #tpu.memory_space<vmem>>, vector<28x28x32xbf16>,
    %19 = vector.shape_cast %16 : vector<256x32xbf16> to vector<16x16x32xbf16>
    %c6 = arith.constant 6 : index
    %c6_12 = arith.constant 6 : index
    %c0_13 = arith.constant 0 : index
    %20 = vector.load %arg7[%c6, %c6_12, %c0_13] : memref<28x28x32xbf16, #tpu.memory_space<vmem>>, vector<16x16x32xbf16>
    tpu.vector_store %arg7[%c6, %c6_12, %c0_13], %19 {strides = array<i32>} : memref<28x28x32xbf16, #tpu.memory_space<vmem>>, vector<16x16x32xbf16>,
    %c0_14 = arith.constant 0 : index
    %c0_15 = arith.constant 0 : index
    %c0_16 = arith.constant 0 : index
    %21 = vector.load %arg7[%c0_14, %c0_15, %c0_16] : memref<28x28x32xbf16, #tpu.memory_space<vmem>>, vector<24x28x32xbf16>
    %c1 = arith.constant 1 : index
    %c0_17 = arith.constant 0 : index
    %c0_18 = arith.constant 0 : index
    %22 = vector.load %arg7[%c1, %c0_17, %c0_18] : memref<28x28x32xbf16, #tpu.memory_space<vmem>>, vector<24x28x32xbf16>
    %23 = arith.maximumf %21, %22 : vector<24x28x32xbf16>
    %c2 = arith.constant 2 : index
    %c0_19 = arith.constant 0 : index
    %c0_20 = arith.constant 0 : index
    %24 = vector.load %arg7[%c2, %c0_19, %c0_20] : memref<28x28x32xbf16, #tpu.memory_space<vmem>>, vector<24x28x32xbf16>
    %25 = arith.maximumf %23, %24 : vector<24x28x32xbf16>
    %c3 = arith.constant 3 : index
    %c0_21 = arith.constant 0 : index
    %c0_22 = arith.constant 0 : index
    %26 = vector.load %arg7[%c3, %c0_21, %c0_22] : memref<28x28x32xbf16, #tpu.memory_space<vmem>>, vector<24x28x32xbf16>
    %27 = arith.maximumf %25, %26 : vector<24x28x32xbf16>
    %c4 = arith.constant 4 : index
    %c0_23 = arith.constant 0 : index
    %c0_24 = arith.constant 0 : index
    %28 = vector.load %arg7[%c4, %c0_23, %c0_24] : memref<28x28x32xbf16, #tpu.memory_space<vmem>>, vector<24x28x32xbf16>
    %29 = arith.maximumf %27, %28 : vector<24x28x32xbf16>
    %30 = vector.extract_strided_slice %29 {offsets = [0, 0, 0], sizes = [24, 24, 32], strides = [1, 1, 1]} : vector<24x28x32xbf16> to vector<24x24x32xbf16>
    %31 = vector.extract_strided_slice %29 {offsets = [0, 1, 0], sizes = [24, 24, 32], strides = [1, 1, 1]} : vector<24x28x32xbf16> to vector<24x24x32xbf16>
    %32 = arith.maximumf %30, %31 : vector<24x24x32xbf16>
    %33 = vector.extract_strided_slice %29 {offsets = [0, 2, 0], sizes = [24, 24, 32], strides = [1, 1, 1]} : vector<24x28x32xbf16> to vector<24x24x32xbf16>
    %34 = arith.maximumf %32, %33 : vector<24x24x32xbf16>
    %35 = vector.extract_strided_slice %29 {offsets = [0, 3, 0], sizes = [24, 24, 32], strides = [1, 1, 1]} : vector<24x28x32xbf16> to vector<24x24x32xbf16>
    %36 = arith.maximumf %34, %35 : vector<24x24x32xbf16>
    %37 = vector.extract_strided_slice %29 {offsets = [0, 4, 0], sizes = [24, 24, 32], strides = [1, 1, 1]} : vector<24x28x32xbf16> to vector<24x24x32xbf16>
    %38 = arith.maximumf %36, %37 : vector<24x24x32xbf16>
    %c0_25 = arith.constant 0 : index
    %c0_26 = arith.constant 0 : index
    %c0_27 = arith.constant 0 : index
    %39 = vector.load %arg7[%c0_25, %c0_26, %c0_27] : memref<28x28x32xbf16, #tpu.memory_space<vmem>>, vector<24x24x32xbf16>
    tpu.vector_store %arg7[%c0_25, %c0_26, %c0_27], %38 {strides = array<i32>} : memref<28x28x32xbf16, #tpu.memory_space<vmem>>, vector<24x24x32xbf16>,
    %c0_28 = arith.constant 0 : index
    %c0_29 = arith.constant 0 : index
    %c0_30 = arith.constant 0 : index
    %40 = vector.load %arg7[%c0_28, %c0_29, %c0_30] : memref<28x28x32xbf16, #tpu.memory_space<vmem>>, vector<20x24x32xbf16>
    %c1_31 = arith.constant 1 : index
    %c0_32 = arith.constant 0 : index
    %c0_33 = arith.constant 0 : index
    %41 = vector.load %arg7[%c1_31, %c0_32, %c0_33] : memref<28x28x32xbf16, #tpu.memory_space<vmem>>, vector<20x24x32xbf16>
    %42 = arith.maximumf %40, %41 : vector<20x24x32xbf16>
    %c2_34 = arith.constant 2 : index
    %c0_35 = arith.constant 0 : index
    %c0_36 = arith.constant 0 : index
    %43 = vector.load %arg7[%c2_34, %c0_35, %c0_36] : memref<28x28x32xbf16, #tpu.memory_space<vmem>>, vector<20x24x32xbf16>
    %44 = arith.maximumf %42, %43 : vector<20x24x32xbf16>
    %c3_37 = arith.constant 3 : index
    %c0_38 = arith.constant 0 : index
    %c0_39 = arith.constant 0 : index
    %45 = vector.load %arg7[%c3_37, %c0_38, %c0_39] : memref<28x28x32xbf16, #tpu.memory_space<vmem>>, vector<20x24x32xbf16>
    %46 = arith.maximumf %44, %45 : vector<20x24x32xbf16>
    %c4_40 = arith.constant 4 : index
    %c0_41 = arith.constant 0 : index
    %c0_42 = arith.constant 0 : index
    %47 = vector.load %arg7[%c4_40, %c0_41, %c0_42] : memref<28x28x32xbf16, #tpu.memory_space<vmem>>, vector<20x24x32xbf16>
    %48 = arith.maximumf %46, %47 : vector<20x24x32xbf16>
    %49 = vector.extract_strided_slice %48 {offsets = [0, 0, 0], sizes = [20, 20, 32], strides = [1, 1, 1]} : vector<20x24x32xbf16> to vector<20x20x32xbf16>
    %50 = vector.extract_strided_slice %48 {offsets = [0, 1, 0], sizes = [20, 20, 32], strides = [1, 1, 1]} : vector<20x24x32xbf16> to vector<20x20x32xbf16>
    %51 = arith.maximumf %49, %50 : vector<20x20x32xbf16>
    %52 = vector.extract_strided_slice %48 {offsets = [0, 2, 0], sizes = [20, 20, 32], strides = [1, 1, 1]} : vector<20x24x32xbf16> to vector<20x20x32xbf16>
    %53 = arith.maximumf %51, %52 : vector<20x20x32xbf16>
    %54 = vector.extract_strided_slice %48 {offsets = [0, 3, 0], sizes = [20, 20, 32], strides = [1, 1, 1]} : vector<20x24x32xbf16> to vector<20x20x32xbf16>
    %55 = arith.maximumf %53, %54 : vector<20x20x32xbf16>
    %56 = vector.extract_strided_slice %48 {offsets = [0, 4, 0], sizes = [20, 20, 32], strides = [1, 1, 1]} : vector<20x24x32xbf16> to vector<20x20x32xbf16>
    %57 = arith.maximumf %55, %56 : vector<20x20x32xbf16>
    %c0_43 = arith.constant 0 : index
    %c0_44 = arith.constant 0 : index
    %c0_45 = arith.constant 0 : index
    %58 = vector.load %arg7[%c0_43, %c0_44, %c0_45] : memref<28x28x32xbf16, #tpu.memory_space<vmem>>, vector<20x20x32xbf16>
    tpu.vector_store %arg7[%c0_43, %c0_44, %c0_45], %57 {strides = array<i32>} : memref<28x28x32xbf16, #tpu.memory_space<vmem>>, vector<20x20x32xbf16>,
    %c0_46 = arith.constant 0 : index
    %c0_47 = arith.constant 0 : index
    %c0_48 = arith.constant 0 : index
    %59 = vector.load %arg7[%c0_46, %c0_47, %c0_48] : memref<28x28x32xbf16, #tpu.memory_space<vmem>>, vector<16x20x32xbf16>
    %c1_49 = arith.constant 1 : index
    %c0_50 = arith.constant 0 : index
    %c0_51 = arith.constant 0 : index
    %60 = vector.load %arg7[%c1_49, %c0_50, %c0_51] : memref<28x28x32xbf16, #tpu.memory_space<vmem>>, vector<16x20x32xbf16>
    %61 = arith.maximumf %59, %60 : vector<16x20x32xbf16>
    %c2_52 = arith.constant 2 : index
    %c0_53 = arith.constant 0 : index
    %c0_54 = arith.constant 0 : index
    %62 = vector.load %arg7[%c2_52, %c0_53, %c0_54] : memref<28x28x32xbf16, #tpu.memory_space<vmem>>, vector<16x20x32xbf16>
    %63 = arith.maximumf %61, %62 : vector<16x20x32xbf16>
    %c3_55 = arith.constant 3 : index
    %c0_56 = arith.constant 0 : index
    %c0_57 = arith.constant 0 : index
    %64 = vector.load %arg7[%c3_55, %c0_56, %c0_57] : memref<28x28x32xbf16, #tpu.memory_space<vmem>>, vector<16x20x32xbf16>
    %65 = arith.maximumf %63, %64 : vector<16x20x32xbf16>
    %c4_58 = arith.constant 4 : index
    %c0_59 = arith.constant 0 : index
    %c0_60 = arith.constant 0 : index
    %66 = vector.load %arg7[%c4_58, %c0_59, %c0_60] : memref<28x28x32xbf16, #tpu.memory_space<vmem>>, vector<16x20x32xbf16>
    %67 = arith.maximumf %65, %66 : vector<16x20x32xbf16>
    %68 = vector.extract_strided_slice %67 {offsets = [0, 0, 0], sizes = [16, 16, 32], strides = [1, 1, 1]} : vector<16x20x32xbf16> to vector<16x16x32xbf16>
    %69 = vector.extract_strided_slice %67 {offsets = [0, 1, 0], sizes = [16, 16, 32], strides = [1, 1, 1]} : vector<16x20x32xbf16> to vector<16x16x32xbf16>
    %70 = arith.maximumf %68, %69 : vector<16x16x32xbf16>
    %71 = vector.extract_strided_slice %67 {offsets = [0, 2, 0], sizes = [16, 16, 32], strides = [1, 1, 1]} : vector<16x20x32xbf16> to vector<16x16x32xbf16>
    %72 = arith.maximumf %70, %71 : vector<16x16x32xbf16>
    %73 = vector.extract_strided_slice %67 {offsets = [0, 3, 0], sizes = [16, 16, 32], strides = [1, 1, 1]} : vector<16x20x32xbf16> to vector<16x16x32xbf16>
    %74 = arith.maximumf %72, %73 : vector<16x16x32xbf16>
    %75 = vector.extract_strided_slice %67 {offsets = [0, 4, 0], sizes = [16, 16, 32], strides = [1, 1, 1]} : vector<16x20x32xbf16> to vector<16x16x32xbf16>
    %76 = arith.maximumf %74, %75 : vector<16x16x32xbf16>
    %77 = vector.extract_strided_slice %38 {offsets = [4, 4, 0], sizes = [16, 16, 32], strides = [1, 1, 1]} : vector<24x24x32xbf16> to vector<16x16x32xbf16>
    %78 = vector.extract_strided_slice %57 {offsets = [2, 2, 0], sizes = [16, 16, 32], strides = [1, 1, 1]} : vector<20x20x32xbf16> to vector<16x16x32xbf16>
    %c0_61 = arith.constant 0 : index
    %c0_62 = arith.constant 0 : index
    %79 = vector.load %arg8[%c0_61, %c0_62] : memref<256x128xbf16, #tpu.memory_space<vmem>>, vector<256x32xbf16>
    tpu.vector_store %arg8[%c0_61, %c0_62], %16 {strides = array<i32>} : memref<256x128xbf16, #tpu.memory_space<vmem>>, vector<256x32xbf16>,
    %80 = vector.shape_cast %77 : vector<16x16x32xbf16> to vector<256x32xbf16>
    %c0_63 = arith.constant 0 : index
    %c32 = arith.constant 32 : index
    %81 = vector.load %arg8[%c0_63, %c32] : memref<256x128xbf16, #tpu.memory_space<vmem>>, vector<256x32xbf16>
    tpu.vector_store %arg8[%c0_63, %c32], %80 {strides = array<i32>} : memref<256x128xbf16, #tpu.memory_space<vmem>>, vector<256x32xbf16>,
    %82 = vector.shape_cast %78 : vector<16x16x32xbf16> to vector<256x32xbf16>
    %c0_64 = arith.constant 0 : index
    %c64 = arith.constant 64 : index
    %83 = vector.load %arg8[%c0_64, %c64] : memref<256x128xbf16, #tpu.memory_space<vmem>>, vector<256x32xbf16>
    tpu.vector_store %arg8[%c0_64, %c64], %82 {strides = array<i32>} : memref<256x128xbf16, #tpu.memory_space<vmem>>, vector<256x32xbf16>,
    %84 = vector.shape_cast %76 : vector<16x16x32xbf16> to vector<256x32xbf16>
    %c0_65 = arith.constant 0 : index
    %c96 = arith.constant 96 : index
    %85 = vector.load %arg8[%c0_65, %c96] : memref<256x128xbf16, #tpu.memory_space<vmem>>, vector<256x32xbf16>
    tpu.vector_store %arg8[%c0_65, %c96], %84 {strides = array<i32>} : memref<256x128xbf16, #tpu.memory_space<vmem>>, vector<256x32xbf16>,
    %c0_66 = arith.constant 0 : index
    %c0_67 = arith.constant 0 : index
    %86 = vector.load %arg8[%c0_66, %c0_67] : memref<256x128xbf16, #tpu.memory_space<vmem>>, vector<256x128xbf16>
    %c0_68 = arith.constant 0 : index
    %c0_69 = arith.constant 0 : index
    %87 = vector.load %arg4[%c0_68, %c0_69] : memref<128x128xbf16, #tpu.memory_space<vmem>>, vector<128x128xbf16>
    %cst_70 = arith.constant dense<0.000000e+00> : vector<256x128xf32>
    %88 = tpu.matmul %86, %87, %cst_70 {dimension_numbers = #tpu.dot_dimension_numbers<[1], [0], [0], [1], [0, 0, 1, 1], [], []>} : vector<256x128xbf16>, vector<128x128xbf16>, vector<256x128xf32> -> vector<256x128xf32>
    %c0_71 = arith.constant 0 : index
    %c0_72 = arith.constant 0 : index
    %89 = vector.load %arg5[%c0_71, %c0_72] : memref<1x128xf32, #tpu.memory_space<vmem>>, vector<1x128xf32>
    %90 = vector.shape_cast %89 : vector<1x128xf32> to vector<128xf32>
    %91 = vector.shape_cast %90 : vector<128xf32> to vector<1x128xf32>
    %92 = vector.broadcast %91 : vector<1x128xf32> to vector<256x128xf32>
    %93 = arith.addf %88, %92 : vector<256x128xf32>
    %94 = arith.negf %93 : vector<256x128xf32>
    %95 = math.exp %94 : vector<256x128xf32>
    %cst_73 = arith.constant 1.000000e+00 : f32
    %96 = vector.broadcast %cst_73 : f32 to vector<256x128xf32>
    %97 = arith.addf %96, %95 : vector<256x128xf32>
    %98 = arith.divf %96, %97 : vector<256x128xf32>
    %99 = arith.mulf %93, %98 : vector<256x128xf32>
    %100 = vector.shape_cast %99 : vector<256x128xf32> to vector<16x16x128xf32>
    %c0_74 = arith.constant 0 : index
    %c0_75 = arith.constant 0 : index
    %c0_76 = arith.constant 0 : index
    %c0_77 = arith.constant 0 : index
    %101 = vector.load %arg6[%c0_74, %c0_75, %c0_76, %c0_77] : memref<1x16x16x128xf32, #tpu.memory_space<vmem>>, vector<1x16x16x128xf32>
    %102 = vector.shape_cast %101 : vector<1x16x16x128xf32> to vector<16x16x128xf32>
    %103 = vector.shape_cast %100 : vector<16x16x128xf32> to vector<1x16x16x128xf32>
    tpu.vector_store %arg6[%c0_74, %c0_75, %c0_76, %c0_77], %103 {strides = array<i32>} : memref<1x16x16x128xf32, #tpu.memory_space<vmem>>, vector<1x16x16x128xf32>,
    return
  }
  func.func @transform_0(%arg0: i32) -> (i32, i32, i32, i32) {
    %c0_i32 = arith.constant 0 : i32
    %c0_i32_0 = arith.constant 0 : i32
    %c0_i32_1 = arith.constant 0 : i32
    %c0_i32_2 = arith.constant 0 : i32
    return %arg0, %c0_i32, %c0_i32_0, %c0_i32_1 : i32, i32, i32, i32
  }
  func.func @transform_1(%arg0: i32) -> (i32, i32) {
    %c0_i32 = arith.constant 0 : i32
    %c0_i32_0 = arith.constant 0 : i32
    %c0_i32_1 = arith.constant 0 : i32
    return %c0_i32, %c0_i32_0 : i32, i32
  }
  func.func @transform_2(%arg0: i32) -> (i32, i32) {
    %c0_i32 = arith.constant 0 : i32
    %c0_i32_0 = arith.constant 0 : i32
    %c0_i32_1 = arith.constant 0 : i32
    return %c0_i32, %c0_i32_0 : i32, i32
  }
  func.func @transform_3(%arg0: i32) -> (i32, i32) {
    %c0_i32 = arith.constant 0 : i32
    %c0_i32_0 = arith.constant 0 : i32
    %c0_i32_1 = arith.constant 0 : i32
    return %c0_i32, %c0_i32_0 : i32, i32
  }
  func.func @transform_4(%arg0: i32) -> (i32, i32) {
    %c0_i32 = arith.constant 0 : i32
    %c0_i32_0 = arith.constant 0 : i32
    %c0_i32_1 = arith.constant 0 : i32
    return %c0_i32, %c0_i32_0 : i32, i32
  }
  func.func @transform_5(%arg0: i32) -> (i32, i32, i32, i32) {
    %c0_i32 = arith.constant 0 : i32
    %c0_i32_0 = arith.constant 0 : i32
    %c0_i32_1 = arith.constant 0 : i32
    %c0_i32_2 = arith.constant 0 : i32
    return %arg0, %c0_i32, %c0_i32_0, %c0_i32_1 : i32, i32, i32, i32
  }
}

</mosaic_0001>

<llo_original>
// kernel: sppf.1
$region0: #{sppf.1}
  #allocation0 [shape = 'u32[]', space=smem, size = 0x4, offset = 0x4, fixed_abs, tag = 'smem constant byte address 0x4 - core index']
  #allocation1 [shape = 'u32[144,128]{1,0:T(1,128)}', space=vmem, size = 0x12000, scoped, tag = 'internal scratch']
  #allocation2 [shape = 'bf16[28,28,32]{2,1,0:T(8,128)(2,1)}', space=vmem, size = 0x38000, scoped, tag = 'scratch operand']
  #allocation3 [shape = 'bf16[256,128]{1,0:T(8,128)(2,1)}', space=vmem, size = 0x10000, scoped, tag = 'scratch operand']
  %s0 = inlined_call_operand.vmem [shape: bf16[2,16,16,64], index: 0, kind: input, shape index: {}]
  %s1 = inlined_call_operand.vmem [shape: bf16[64,32], index: 1, kind: input, shape index: {}]
  %s2 = inlined_call_operand.vmem [shape: f32[1,32], index: 2, kind: input, shape index: {}]
  %s3 = inlined_call_operand.vmem [shape: bf16[128,128], index: 3, kind: input, shape index: {}]
  %s4 = inlined_call_operand.vmem [shape: f32[1,128], index: 4, kind: input, shape index: {}]
  %s5 = inlined_call_operand.hbm [shape: f32[2,16,16,128], index: 5, kind: output, shape index: {}]
  %s6 = sld [smem:[#allocation0]]
  $region53: #{sppf.1} parent=0
    _
  %s8 = ssub.s32 1, %s6
  %s9 = scalar_select 0, %s8, %s6
  $region1: #{sppf.1} parent=0
    #allocation4 [shape = 'u8[262144]{0}', space=vmem, size = 0x40000, scoped, tag = 'output window, operand 0']
    #allocation5 [shape = 's32[2]{0}', space=sflag, size = 0x8, scoped, tag = 'scoped memory for sppf.1']
    %10 = vsyncpa [#allocation5], 0
    %s11 = scalar_lea.sflag [#allocation5], 1
    %12 = vsyncpa %s11, 0
    loop: start=0, step=1, limit=4
    $region2: #{sppf.1} parent=1 // loop_pre_header
      _
    $region3: #{sppf.1} parent=1 // loop_header
      %s14 = sphi 0, %s18
      %p15 = scmp.ge.s32.totalorder %s14, 4
      %s24 = sphi 0, %s26
      %s27 = sphi 0, %s24
      %s28 = sphi 0, %s27
      %s44 = sphi 0, %s28
      %s48 = sphi 0, %s48
      %s50 = sphi 0, %s48
      %s51 = sphi 0, %s50
      %s65 = sphi 0, %s51
      %s69 = sphi 0, %s69
      %s71 = sphi 0, %s69
      %s72 = sphi 0, %s71
      %s86 = sphi 0, %s72
      %s90 = sphi 0, %s90
      %s92 = sphi 0, %s90
      %s93 = sphi 0, %s92
      %s107 = sphi 0, %s93
      %s111 = sphi 0, %s111
      %s113 = sphi 0, %s111
      %s114 = sphi 0, %s113
      %s128 = sphi 0, %s114
      %s134 = sphi 0, %s136
      %s137 = sphi 0, %s134
      %s138 = sphi 0, %s137
      %s154 = sphi 0, %s138
    $region4: #{sppf.1} parent=1 // loop_header_branch
      %17 = sbr.rel (%p15) target = $region8
    $region5: #{sppf.1} parent=1 // loop_body
      %s19 = ssub.s32 %s14, 1
      %s20 = ssub.s32 %s14, 2
      %s21 = sadd.s32 %s14, 1
      %s22 = ssub.s32 %s14, %s21
      %p23 = scmp.eq.s32.totalorder %s22, 0
      %s25 = sadd.s32 %s24, 1
      %s26 = scalar_select %p23, %s24, %s25
      %p29 = pneg %p23
      %p30 = scmp.eq.s32.totalorder %s14, 1
      %p31 = por %p29, %p30
      %p32 = scmp.ne.s32.totalorder %s24, %s27
      %p33 = scmp.eq.s32.totalorder %s14, 0
      %p34 = por %p32, %p33
      %p35 = scmp.ne.s32.totalorder %s24, %s27
      %p36 = scmp.eq.s32.totalorder %s19, 1
      %p37 = por %p35, %p36
      %p38 = scmp.ne.s32.totalorder %s27, %s28
      %p39 = scmp.eq.s32.totalorder %s19, 0
      %p40 = por %p38, %p39
      %p41 = scmp.ne.s32.totalorder %s27, %s28
      %p42 = scmp.eq.s32.totalorder %s20, 1
      %p43 = por %p41, %p42
      %p45 = scmp.ne.s32.totalorder %s28, %s44
      %p46 = scmp.eq.s32.totalorder %s20, 0
      %p47 = por %p45, %p46
      %s49 = sadd.s32 %s48, 1
      %p52 = scmp.eq.s32.totalorder %s14, 1
      %p53 = scmp.ne.s32.totalorder %s48, %s50
      %p54 = scmp.eq.s32.totalorder %s14, 0
      %p55 = por %p53, %p54
      %p56 = scmp.ne.s32.totalorder %s48, %s50
      %p57 = scmp.eq.s32.totalorder %s19, 1
      %p58 = por %p56, %p57
      %p59 = scmp.ne.s32.totalorder %s50, %s51
      %p60 = scmp.eq.s32.totalorder %s19, 0
      %p61 = por %p59, %p60
      %p62 = scmp.ne.s32.totalorder %s50, %s51
      %p63 = scmp.eq.s32.totalorder %s20, 1
      %p64 = por %p62, %p63
      %p66 = scmp.ne.s32.totalorder %s51, %s65
      %p67 = scmp.eq.s32.totalorder %s20, 0
      %p68 = por %p66, %p67
      %s70 = sadd.s32 %s69, 1
      %p73 = scmp.eq.s32.totalorder %s14, 1
      %p74 = scmp.ne.s32.totalorder %s69, %s71
      %p75 = scmp.eq.s32.totalorder %s14, 0
      %p76 = por %p74, %p75
      %p77 = scmp.ne.s32.totalorder %s69, %s71
      %p78 = scmp.eq.s32.totalorder %s19, 1
      %p79 = por %p77, %p78
      %p80 = scmp.ne.s32.totalorder %s71, %s72
      %p81 = scmp.eq.s32.totalorder %s19, 0
      %p82 = por %p80, %p81
      %p83 = scmp.ne.s32.totalorder %s71, %s72
      %p84 = scmp.eq.s32.totalorder %s20, 1
      %p85 = por %p83, %p84
      %p87 = scmp.ne.s32.totalorder %s72, %s86
      %p88 = scmp.eq.s32.totalorder %s20, 0
      %p89 = por %p87, %p88
      %s91 = sadd.s32 %s90, 1
      %p94 = scmp.eq.s32.totalorder %s14, 1
      %p95 = scmp.ne.s32.totalorder %s90, %s92
      %p96 = scmp.eq.s32.totalorder %s14, 0
      %p97 = por %p95, %p96
      %p98 = scmp.ne.s32.totalorder %s90, %s92
      %p99 = scmp.eq.s32.totalorder %s19, 1
      %p100 = por %p98, %p99
      %p101 = scmp.ne.s32.totalorder %s92, %s93
      %p102 = scmp.eq.s32.totalorder %s19, 0
      %p103 = por %p101, %p102
      %p104 = scmp.ne.s32.totalorder %s92, %s93
      %p105 = scmp.eq.s32.totalorder %s20, 1
      %p106 = por %p104, %p105
      %p108 = scmp.ne.s32.totalorder %s93, %s107
      %p109 = scmp.eq.s32.totalorder %s20, 0
      %p110 = por %p108, %p109
      %s112 = sadd.s32 %s111, 1
      %p115 = scmp.eq.s32.totalorder %s14, 1
      %p116 = scmp.ne.s32.totalorder %s111, %s113
      %p117 = scmp.eq.s32.totalorder %s14, 0
      %p118 = por %p116, %p117
      %p119 = scmp.ne.s32.totalorder %s111, %s113
      %p120 = scmp.eq.s32.totalorder %s19, 1
      %p121 = por %p119, %p120
      %p122 = scmp.ne.s32.totalorder %s113, %s114
      %p123 = scmp.eq.s32.totalorder %s19, 0
      %p124 = por %p122, %p123
      %p125 = scmp.ne.s32.totalorder %s113, %s114
      %p126 = scmp.eq.s32.totalorder %s20, 1
      %p127 = por %p125, %p126
      %p129 = scmp.ne.s32.totalorder %s114, %s128
      %p130 = scmp.eq.s32.totalorder %s20, 0
      %p131 = por %p129, %p130
      %s132 = ssub.s32 %s14, %s21
      %p133 = scmp.eq.s32.totalorder %s132, 0
      %s135 = sadd.s32 %s134, 1
      %s136 = scalar_select %p133, %s134, %s135
      %p139 = pneg %p133
      %p140 = scmp.eq.s32.totalorder %s14, 1
      %p141 = por %p139, %p140
      %p142 = scmp.ne.s32.totalorder %s134, %s137
      %p143 = scmp.eq.s32.totalorder %s14, 0
      %p144 = por %p142, %p143
      %p145 = scmp.ne.s32.totalorder %s134, %s137
      %p146 = scmp.eq.s32.totalorder %s19, 1
      %p147 = por %p145, %p146
      %p148 = scmp.ne.s32.totalorder %s137, %s138
      %p149 = scmp.eq.s32.totalorder %s19, 0
      %p150 = por %p148, %p149
      %p151 = scmp.ne.s32.totalorder %s137, %s138
      %p152 = scmp.eq.s32.totalorder %s20, 1
      %p153 = por %p151, %p152
      %p155 = scmp.ne.s32.totalorder %s138, %s154
      %p156 = scmp.eq.s32.totalorder %s20, 0
      %p157 = por %p155, %p156
      %p158 = scmp.le.s32.totalorder 1, %s14
      %p159 = scmp.lt.s32.totalorder %s14, 3
      %p160 = pnand %p158, %p159
      %p161 = pneg %p160
      // Predicated region
      $region9: #{sppf.1} parent=5 // pred_check
        _
      $region10: #{sppf.1} parent=5 // pred_check_branch
        %163 = sbr.rel (%p160) target = $region12
      $region11: #{sppf.1} parent=5 // pred_region
        %s164 = ssub.s32 %s14, 1
        // Predicated region
        $region13: #{sppf.1} parent=11 // pred_check
          %p165 = pneg %p61
        $region14: #{sppf.1} parent=11 // pred_check_branch
          %167 = sbr.rel (%p165) target = $region16
        $region15: #{sppf.1} parent=11 // pred_region
          _
        $region16: #{sppf.1} parent=11 // pred_fallthru
          _
        // Predicated region
        $region17: #{sppf.1} parent=11 // pred_check
          %p168 = pneg %p82
        $region18: #{sppf.1} parent=11 // pred_check_branch
          %170 = sbr.rel (%p168) target = $region20
        $region19: #{sppf.1} parent=11 // pred_region
          _
        $region20: #{sppf.1} parent=11 // pred_fallthru
          _
        // Predicated region
        $region21: #{sppf.1} parent=11 // pred_check
          %p171 = pneg %p103
        $region22: #{sppf.1} parent=11 // pred_check_branch
          %173 = sbr.rel (%p171) target = $region24
        $region23: #{sppf.1} parent=11 // pred_region
          _
        $region24: #{sppf.1} parent=11 // pred_fallthru
          _
        // Predicated region
        $region25: #{sppf.1} parent=11 // pred_check
          %p174 = pneg %p124
        $region26: #{sppf.1} parent=11 // pred_check_branch
          %176 = sbr.rel (%p174) target = $region28
        $region27: #{sppf.1} parent=11 // pred_region
          _
        $region28: #{sppf.1} parent=11 // pred_fallthru
          _
      $region12: #{sppf.1} parent=5 // pred_fallthru
        _
      %p177 = scmp.lt.s32.totalorder %s14, 2
      // Predicated region
      $region29: #{sppf.1} parent=5 // pred_check
        %p178 = pneg %p177
      $region30: #{sppf.1} parent=5 // pred_check_branch
        %180 = sbr.rel (%p178) target = $region32
      $region31: #{sppf.1} parent=5 // pred_region
        // Predicated region
        $region33: #{sppf.1} parent=31 // pred_check
          %p181 = pneg %p34
        $region34: #{sppf.1} parent=31 // pred_check_branch
          %183 = sbr.rel (%p181) target = $region36
        $region35: #{sppf.1} parent=31 // pred_region
          %p184 = scmp.lt.s32.totalorder %s14, 1
          %s185 = scalar_select %p184, %s14, 1
          %s186 = smul.addr %s185, 32
          %s187 = smul.addr %s186, 4
          %s188 = scalar_lea.vmem %s0, %s187
        $region36: #{sppf.1} parent=31 // pred_fallthru
          _
      $region32: #{sppf.1} parent=5 // pred_fallthru
        _
      %p189 = scmp.le.s32.totalorder 1, %s14
      %p190 = scmp.lt.s32.totalorder %s14, 3
      %p191 = pnand %p189, %p190
      %p192 = pneg %p191
      // Predicated region
      $region37: #{sppf.1} parent=5 // pred_check
        _
      $region38: #{sppf.1} parent=5 // pred_check_branch
        %194 = sbr.rel (%p191) target = $region40
      $region39: #{sppf.1} parent=5 // pred_region
        %s195 = ssub.s32 %s14, 1
        %p196 = scmp.lt.s32.totalorder %s19, 1
        %s197 = scalar_select %p196, %s19, 1
        %s198 = smul.addr %s197, 32
        %s199 = smul.addr %s198, 4
        %s200 = scalar_lea.vmem %s0, %s199
        %p201 = pneg %p40
        %p202 = pneg %p37
        %p203 = pneg %p61
        %p204 = pneg %p58
        %p205 = pneg %p82
        %p206 = pneg %p79
        %p207 = pneg %p103
        %p208 = pneg %p100
        %p209 = pneg %p124
        %p210 = pneg %p121
        %p211 = pneg %p150
        %p212 = pneg %p147
        %s213 = sand.u32 %s137, 1
        %s214 = scalar_lea.sflag [#allocation5], %s213
        %s215 = sand.u32 %s137, 1
        %s216 = smul.addr %s215, 256
        %s217 = scalar_lea.vmem [#allocation4], %s216
        %p218 = scmp.lt.s32.totalorder %s19, 1
        %s219 = scalar_select %p218, %s19, 1
        %s220 = smul.addr %s219, 32
        %s221 = smul.addr %s220, 4
        %s222 = scalar_lea.vmem %s0, %s221
        %v225 = vld [vmem:[%s222] sm:$0xf]
        %v226 = vld [vmem:[%s222 + $0x4] sm:$0xf]
        %v227 = vld [vmem:[%s222 + $0x8] sm:$0xf]
        %v228 = vld [vmem:[%s222 + $0xc] sm:$0xf]
        %v229 = vld [vmem:[%s222 + $0x10] sm:$0xf]
        %v230 = vld [vmem:[%s222 + $0x14] sm:$0xf]
        %v231 = vld [vmem:[%s222 + $0x18] sm:$0xf]
        %v232 = vld [vmem:[%s222 + $0x1c] sm:$0xf]
        %v233 = vld [vmem:[%s222 + $0x20] sm:$0xf]
        %v234 = vld [vmem:[%s222 + $0x24] sm:$0xf]
        %v235 = vld [vmem:[%s222 + $0x28] sm:$0xf]
        %v236 = vld [vmem:[%s222 + $0x2c] sm:$0xf]
        %v237 = vld [vmem:[%s222 + $0x30] sm:$0xf]
        %v238 = vld [vmem:[%s222 + $0x34] sm:$0xf]
        %v239 = vld [vmem:[%s222 + $0x38] sm:$0xf]
        %v240 = vld [vmem:[%s222 + $0x3c] sm:$0xf]
        %v241 = vld [vmem:[%s222 + $0x40] sm:$0xf]
        %v242 = vld [vmem:[%s222 + $0x44] sm:$0xf]
        %v243 = vld [vmem:[%s222 + $0x48] sm:$0xf]
        %v244 = vld [vmem:[%s222 + $0x4c] sm:$0xf]
        %v245 = vld [vmem:[%s222 + $0x50] sm:$0xf]
        %v246 = vld [vmem:[%s222 + $0x54] sm:$0xf]
        %v247 = vld [vmem:[%s222 + $0x58] sm:$0xf]
        %v248 = vld [vmem:[%s222 + $0x5c] sm:$0xf]
        %v249 = vld [vmem:[%s222 + $0x60] sm:$0xf]
        %v250 = vld [vmem:[%s222 + $0x64] sm:$0xf]
        %v251 = vld [vmem:[%s222 + $0x68] sm:$0xf]
        %v252 = vld [vmem:[%s222 + $0x6c] sm:$0xf]
        %v253 = vld [vmem:[%s222 + $0x70] sm:$0xf]
        %v254 = vld [vmem:[%s222 + $0x74] sm:$0xf]
        %v255 = vld [vmem:[%s222 + $0x78] sm:$0xf]
        %v256 = vld [vmem:[%s222 + $0x7c] sm:$0xf]
        %v257 = vld [vmem:[%s1] sm:$0xf]
        %v258 = vld [vmem:[%s1 + $0x4] sm:$0xf]
        %v259 = vld [vmem:[%s1 + $0x8] sm:$0xf]
        %v260 = vld [vmem:[%s1 + $0xc] sm:$0xf]
        %v261 = vld [vmem:[%s1 + $0x10] sm:$0xf]
        %v262 = vld [vmem:[%s1 + $0x14] sm:$0xf]
        %v263 = vld [vmem:[%s1 + $0x18] sm:$0xf]
        %v264 = vld [vmem:[%s1 + $0x1c] sm:$0xf]
        %v265 = vld [vmem:[%s2] sm:$0x1]
        %v267 = vlaneseq
        %v268 = vshrl.u32 %v267, 7
        %v269 = vsub.s32 0, %v268
        %v270 = vrot.slane %v265, %v269
        %v304 = vunpack.c.l.b16 %v225
        %v305 = vunpack.c.l.b16 %v226
        %v306 = vunpack.c.l.b16 %v227
        %v307 = vunpack.c.l.b16 %v228
        %v308 = vunpack.c.l.b16 %v229
        %v309 = vunpack.c.l.b16 %v230
        %v310 = vunpack.c.l.b16 %v231
        %v311 = vunpack.c.l.b16 %v232
        %v312 = vunpack.c.l.b16 %v233
        %v313 = vunpack.c.l.b16 %v234
        %v314 = vunpack.c.l.b16 %v235
        %v315 = vunpack.c.l.b16 %v236
        %v316 = vunpack.c.l.b16 %v237
        %v317 = vunpack.c.l.b16 %v238
        %v318 = vunpack.c.l.b16 %v239
        %v319 = vunpack.c.l.b16 %v240
        %v320 = vunpack.c.l.b16 %v241
        %v321 = vunpack.c.l.b16 %v242
        %v322 = vunpack.c.l.b16 %v243
        %v323 = vunpack.c.l.b16 %v244
        %v324 = vunpack.c.l.b16 %v245
        %v325 = vunpack.c.l.b16 %v246
        %v326 = vunpack.c.l.b16 %v247
        %v327 = vunpack.c.l.b16 %v248
        %v328 = vunpack.c.l.b16 %v249
        %v329 = vunpack.c.l.b16 %v250
        %v330 = vunpack.c.l.b16 %v251
        %v331 = vunpack.c.l.b16 %v252
        %v332 = vunpack.c.l.b16 %v253
        %v333 = vunpack.c.l.b16 %v254
        %v334 = vunpack.c.l.b16 %v255
        %v335 = vunpack.c.l.b16 %v256
        %v336 = vpack.c.b16 %v305, %v304
        %v337 = vpack.c.b16 %v307, %v306
        %v338 = vpack.c.b16 %v309, %v308
        %v339 = vpack.c.b16 %v311, %v310
        %v340 = vpack.c.b16 %v313, %v312
        %v341 = vpack.c.b16 %v315, %v314
        %v342 = vpack.c.b16 %v317, %v316
        %v343 = vpack.c.b16 %v319, %v318
        %v344 = vpack.c.b16 %v321, %v320
        %v345 = vpack.c.b16 %v323, %v322
        %v346 = vpack.c.b16 %v325, %v324
        %v347 = vpack.c.b16 %v327, %v326
        %v348 = vpack.c.b16 %v329, %v328
        %v349 = vpack.c.b16 %v331, %v330
        %v350 = vpack.c.b16 %v333, %v332
        %v351 = vpack.c.b16 %v335, %v334
        %v360 = vunpack.c.l.b16 %v257
        %v361 = vunpack.c.l.b16 %v258
        %v362 = vunpack.c.l.b16 %v259
        %v363 = vunpack.c.l.b16 %v260
        %v364 = vunpack.c.l.b16 %v261
        %v365 = vunpack.c.l.b16 %v262
        %v366 = vunpack.c.l.b16 %v263
        %v367 = vunpack.c.l.b16 %v264
        %v368 = vpack.c.b16 %v361, %v360
        %v369 = vpack.c.b16 %v363, %v362
        %v370 = vpack.c.b16 %v365, %v364
        %v371 = vpack.c.b16 %v367, %v366
        %vm376 = vcmask 523264
        %v378 = vsel %vm376, %v336, 0
        %v381 = vsel %vm376, %v337, 0
        %v384 = vsel %vm376, %v338, 0
        %v387 = vsel %vm376, %v339, 0
        %v390 = vsel %vm376, %v340, 0
        %v393 = vsel %vm376, %v341, 0
        %v396 = vsel %vm376, %v342, 0
        %v399 = vsel %vm376, %v343, 0
        %v402 = vsel %vm376, %v344, 0
        %v405 = vsel %vm376, %v345, 0
        %v408 = vsel %vm376, %v346, 0
        %v411 = vsel %vm376, %v347, 0
        %v414 = vsel %vm376, %v348, 0
        %v417 = vsel %vm376, %v349, 0
        %v420 = vsel %vm376, %v350, 0
        %v423 = vsel %vm376, %v351, 0
        %425 = vmatprep.subr.bf16.mxu0 0
        %426 = vmatpush1.bf16.msra.mxu0 0
        %427 = vmatprep.subr.bf16.mxu0 0
        %428 = vmatpush1.bf16.msra.mxu0 0
        %429 = vmatprep.subr.bf16.mxu0 0
        %430 = vmatpush1.bf16.msra.mxu0 0
        %431 = vmatprep.subr.bf16.mxu0 0
        %432 = vmatpush1.bf16.msra.mxu0 0
        %433 = vmatprep.subr.bf16.mxu0 0
        %434 = vmatpush1.bf16.msra.mxu0 %v371
        %435 = vmatprep.subr.bf16.mxu0 0
        %436 = vmatpush1.bf16.msra.mxu0 %v370
        %437 = vmatprep.subr.bf16.mxu0 0
        %438 = vmatpush1.bf16.msra.mxu0 %v369
        %439 = vmatprep.subr.bf16.mxu0 0
        %440 = vmatpush1.bf16.msra.mxu0 %v368
        %441 = vmatprep.subr.bf16.mxu0 0
        %442 = vmatpush2.bf16.msra.mxu0 0
        %443 = vmatprep.subr.bf16.mxu0 0
        %444 = vmatpush2.bf16.msra.mxu0 0
        %445 = vmatprep.subr.bf16.mxu0 0
        %446 = vmatpush2.bf16.msra.mxu0 0
        %447 = vmatprep.subr.bf16.mxu0 0
        %448 = vmatpush2.bf16.msra.mxu0 0
        %449 = vmatprep.subr.bf16.mxu0 0
        %450 = vmatpush2.bf16.msra.mxu0 0
        %451 = vmatprep.subr.bf16.mxu0 0
        %452 = vmatpush2.bf16.msra.mxu0 0
        %453 = vmatprep.subr.bf16.mxu0 0
        %454 = vmatpush2.bf16.msra.mxu0 0
        %455 = vmatprep.subr.bf16.mxu0 0
        %456 = vmatpush2.bf16.msra.mxu0 0
        %457 = vmatprep.mubr.bf16.mxu0 0
        %458 = vmatmul.mubr.bf16.gmra.mxu0 %v378
        %v459 = vpop.f32.mrf.mxu0
        %v460 = vadd.f32 %v270, %v459
        %v461 = vpop.f32.mrf.mxu0
        %v462 = vpop.f32.mrf.mxu0
        %v463 = vadd.f32 %v270, %v462
        %v464 = vpop.f32.mrf.mxu0
        %465 = vmatprep.mubr.bf16.mxu0 0
        %466 = vmatmul.mubr.bf16.gmra.mxu0 %v381
        %v467 = vpop.f32.mrf.mxu0
        %v468 = vadd.f32 %v270, %v467
        %v469 = vpop.f32.mrf.mxu0
        %v470 = vpop.f32.mrf.mxu0
        %v471 = vadd.f32 %v270, %v470
        %v472 = vpop.f32.mrf.mxu0
        %473 = vmatprep.mubr.bf16.mxu0 0
        %474 = vmatmul.mubr.bf16.gmra.mxu0 %v384
        %v475 = vpop.f32.mrf.mxu0
        %v476 = vadd.f32 %v270, %v475
        %v477 = vpop.f32.mrf.mxu0
        %v478 = vpop.f32.mrf.mxu0
        %v479 = vadd.f32 %v270, %v478
        %v480 = vpop.f32.mrf.mxu0
        %481 = vmatprep.mubr.bf16.mxu0 0
        %482 = vmatmul.mubr.bf16.gmra.mxu0 %v387
        %v483 = vpop.f32.mrf.mxu0
        %v484 = vadd.f32 %v270, %v483
        %v485 = vpop.f32.mrf.mxu0
        %v486 = vpop.f32.mrf.mxu0
        %v487 = vadd.f32 %v270, %v486
        %v488 = vpop.f32.mrf.mxu0
        %489 = vmatprep.mubr.bf16.mxu0 0
        %490 = vmatmul.mubr.bf16.gmra.mxu0 %v390
        %v491 = vpop.f32.mrf.mxu0
        %v492 = vadd.f32 %v270, %v491
        %v493 = vpop.f32.mrf.mxu0
        %v494 = vpop.f32.mrf.mxu0
        %v495 = vadd.f32 %v270, %v494
        %v496 = vpop.f32.mrf.mxu0
        %497 = vmatprep.mubr.bf16.mxu0 0
        %498 = vmatmul.mubr.bf16.gmra.mxu0 %v393
        %v499 = vpop.f32.mrf.mxu0
        %v500 = vadd.f32 %v270, %v499
        %v501 = vpop.f32.mrf.mxu0
        %v502 = vpop.f32.mrf.mxu0
        %v503 = vadd.f32 %v270, %v502
        %v504 = vpop.f32.mrf.mxu0
        %505 = vmatprep.mubr.bf16.mxu0 0
        %506 = vmatmul.mubr.bf16.gmra.mxu0 %v396
        %v507 = vpop.f32.mrf.mxu0
        %v508 = vadd.f32 %v270, %v507
        %v509 = vpop.f32.mrf.mxu0
        %v510 = vpop.f32.mrf.mxu0
        %v511 = vadd.f32 %v270, %v510
        %v512 = vpop.f32.mrf.mxu0
        %513 = vmatprep.mubr.bf16.mxu0 0
        %514 = vmatmul.mubr.bf16.gmra.mxu0 %v399
        %v515 = vpop.f32.mrf.mxu0
        %v516 = vadd.f32 %v270, %v515
        %v517 = vpop.f32.mrf.mxu0
        %v518 = vpop.f32.mrf.mxu0
        %v519 = vadd.f32 %v270, %v518
        %v520 = vpop.f32.mrf.mxu0
        %521 = vmatprep.mubr.bf16.mxu0 0
        %522 = vmatmul.mubr.bf16.gmra.mxu0 %v402
        %v523 = vpop.f32.mrf.mxu0
        %v524 = vadd.f32 %v270, %v523
        %v525 = vpop.f32.mrf.mxu0
        %v526 = vpop.f32.mrf.mxu0
        %v527 = vadd.f32 %v270, %v526
        %v528 = vpop.f32.mrf.mxu0
        %529 = vmatprep.mubr.bf16.mxu0 0
        %530 = vmatmul.mubr.bf16.gmra.mxu0 %v405
        %v531 = vpop.f32.mrf.mxu0
        %v532 = vadd.f32 %v270, %v531
        %v533 = vpop.f32.mrf.mxu0
        %v534 = vpop.f32.mrf.mxu0
        %v535 = vadd.f32 %v270, %v534
        %v536 = vpop.f32.mrf.mxu0
        %537 = vmatprep.mubr.bf16.mxu0 0
        %538 = vmatmul.mubr.bf16.gmra.mxu0 %v408
        %v539 = vpop.f32.mrf.mxu0
        %v540 = vadd.f32 %v270, %v539
        %v541 = vpop.f32.mrf.mxu0
        %v542 = vpop.f32.mrf.mxu0
        %v543 = vadd.f32 %v270, %v542
        %v544 = vpop.f32.mrf.mxu0
        %545 = vmatprep.mubr.bf16.mxu0 0
        %546 = vmatmul.mubr.bf16.gmra.mxu0 %v411
        %v547 = vpop.f32.mrf.mxu0
        %v548 = vadd.f32 %v270, %v547
        %v549 = vpop.f32.mrf.mxu0
        %v550 = vpop.f32.mrf.mxu0
        %v551 = vadd.f32 %v270, %v550
        %v552 = vpop.f32.mrf.mxu0
        %553 = vmatprep.mubr.bf16.mxu0 0
        %554 = vmatmul.mubr.bf16.gmra.mxu0 %v414
        %v555 = vpop.f32.mrf.mxu0
        %v556 = vadd.f32 %v270, %v555
        %v557 = vpop.f32.mrf.mxu0
        %v558 = vpop.f32.mrf.mxu0
        %v559 = vadd.f32 %v270, %v558
        %v560 = vpop.f32.mrf.mxu0
        %561 = vmatprep.mubr.bf16.mxu0 0
        %562 = vmatmul.mubr.bf16.gmra.mxu0 %v417
        %v563 = vpop.f32.mrf.mxu0
        %v564 = vadd.f32 %v270, %v563
        %v565 = vpop.f32.mrf.mxu0
        %v566 = vpop.f32.mrf.mxu0
        %v567 = vadd.f32 %v270, %v566
        %v568 = vpop.f32.mrf.mxu0
        %569 = vmatprep.mubr.bf16.mxu0 0
        %570 = vmatmul.mubr.bf16.gmra.mxu0 %v420
        %v571 = vpop.f32.mrf.mxu0
        %v572 = vadd.f32 %v270, %v571
        %v573 = vpop.f32.mrf.mxu0
        %v574 = vpop.f32.mrf.mxu0
        %v575 = vadd.f32 %v270, %v574
        %v576 = vpop.f32.mrf.mxu0
        %577 = vmatprep.mubr.bf16.mxu0 0
        %578 = vmatmul.mubr.bf16.gmra.mxu0 %v423
        %v579 = vpop.f32.mrf.mxu0
        %v580 = vadd.f32 %v270, %v579
        %v581 = vpop.f32.mrf.mxu0
        %v582 = vpop.f32.mrf.mxu0
        %v583 = vadd.f32 %v270, %v582
        %v584 = vpop.f32.mrf.mxu0
        %585 = vdwg.mxu0
        %v586 = vxor.u32 %v460, 2147483648
        %v587 = vxor.u32 %v463, 2147483648
        %v588 = vxor.u32 %v468, 2147483648
        %v589 = vxor.u32 %v471, 2147483648
        %v590 = vxor.u32 %v476, 2147483648
        %v591 = vxor.u32 %v479, 2147483648
        %v592 = vxor.u32 %v484, 2147483648
        %v593 = vxor.u32 %v487, 2147483648
        %v594 = vxor.u32 %v492, 2147483648
        %v595 = vxor.u32 %v495, 2147483648
        %v596 = vxor.u32 %v500, 2147483648
        %v597 = vxor.u32 %v503, 2147483648
        %v598 = vxor.u32 %v508, 2147483648
        %v599 = vxor.u32 %v511, 2147483648
        %v600 = vxor.u32 %v516, 2147483648
        %v601 = vxor.u32 %v519, 2147483648
        %v602 = vxor.u32 %v524, 2147483648
        %v603 = vxor.u32 %v527, 2147483648
        %v604 = vxor.u32 %v532, 2147483648
        %v605 = vxor.u32 %v535, 2147483648
        %v606 = vxor.u32 %v540, 2147483648
        %v607 = vxor.u32 %v543, 2147483648
        %v608 = vxor.u32 %v548, 2147483648
        %v609 = vxor.u32 %v551, 2147483648
        %v610 = vxor.u32 %v556, 2147483648
        %v611 = vxor.u32 %v559, 2147483648
        %v612 = vxor.u32 %v564, 2147483648
        %v613 = vxor.u32 %v567, 2147483648
        %v614 = vxor.u32 %v572, 2147483648
        %v615 = vxor.u32 %v575, 2147483648
        %v616 = vxor.u32 %v580, 2147483648
        %v617 = vxor.u32 %v583, 2147483648
        %v618 = vmul.f32 %v586, 1.442695
        %v619 = vpow.pop %v618
        %v620 = vmul.f32 %v587, 1.442695
        %v621 = vpow.pop %v620
        %v622 = vmul.f32 %v588, 1.442695
        %v623 = vpow.pop %v622
        %v624 = vmul.f32 %v589, 1.442695
        %v625 = vpow.pop %v624
        %v626 = vmul.f32 %v590, 1.442695
        %v627 = vpow.pop %v626
        %v628 = vmul.f32 %v591, 1.442695
        %v629 = vpow.pop %v628
        %v630 = vmul.f32 %v592, 1.442695
        %v631 = vpow.pop %v630
        %v632 = vmul.f32 %v593, 1.442695
        %v633 = vpow.pop %v632
        %v634 = vmul.f32 %v594, 1.442695
        %v635 = vpow.pop %v634
        %v636 = vmul.f32 %v595, 1.442695
        %v637 = vpow.pop %v636
        %v638 = vmul.f32 %v596, 1.442695
        %v639 = vpow.pop %v638
        %v640 = vmul.f32 %v597, 1.442695
        %v641 = vpow.pop %v640
        %v642 = vmul.f32 %v598, 1.442695
        %v643 = vpow.pop %v642
        %v644 = vmul.f32 %v599, 1.442695
        %v645 = vpow.pop %v644
        %v646 = vmul.f32 %v600, 1.442695
        %v647 = vpow.pop %v646
        %v648 = vmul.f32 %v601, 1.442695
        %v649 = vpow.pop %v648
        %v650 = vmul.f32 %v602, 1.442695
        %v651 = vpow.pop %v650
        %v652 = vmul.f32 %v603, 1.442695
        %v653 = vpow.pop %v652
        %v654 = vmul.f32 %v604, 1.442695
        %v655 = vpow.pop %v654
        %v656 = vmul.f32 %v605, 1.442695
        %v657 = vpow.pop %v656
        %v658 = vmul.f32 %v606, 1.442695
        %v659 = vpow.pop %v658
        %v660 = vmul.f32 %v607, 1.442695
        %v661 = vpow.pop %v660
        %v662 = vmul.f32 %v608, 1.442695
        %v663 = vpow.pop %v662
        %v664 = vmul.f32 %v609, 1.442695
        %v665 = vpow.pop %v664
        %v666 = vmul.f32 %v610, 1.442695
        %v667 = vpow.pop %v666
        %v668 = vmul.f32 %v611, 1.442695
        %v669 = vpow.pop %v668
        %v670 = vmul.f32 %v612, 1.442695
        %v671 = vpow.pop %v670
        %v672 = vmul.f32 %v613, 1.442695
        %v673 = vpow.pop %v672
        %v674 = vmul.f32 %v614, 1.442695
        %v675 = vpow.pop %v674
        %v676 = vmul.f32 %v615, 1.442695
        %v677 = vpow.pop %v676
        %v678 = vmul.f32 %v616, 1.442695
        %v679 = vpow.pop %v678
        %v680 = vmul.f32 %v617, 1.442695
        %v681 = vpow.pop %v680
        %v682 = vadd.f32 %v619, 1.0
        %v683 = vadd.f32 %v621, 1.0
        %v684 = vadd.f32 %v623, 1.0
        %v685 = vadd.f32 %v625, 1.0
        %v686 = vadd.f32 %v627, 1.0
        %v687 = vadd.f32 %v629, 1.0
        %v688 = vadd.f32 %v631, 1.0
        %v689 = vadd.f32 %v633, 1.0
        %v690 = vadd.f32 %v635, 1.0
        %v691 = vadd.f32 %v637, 1.0
        %v692 = vadd.f32 %v639, 1.0
        %v693 = vadd.f32 %v641, 1.0
        %v694 = vadd.f32 %v643, 1.0
        %v695 = vadd.f32 %v645, 1.0
        %v696 = vadd.f32 %v647, 1.0
        %v697 = vadd.f32 %v649, 1.0
        %v698 = vadd.f32 %v651, 1.0
        %v699 = vadd.f32 %v653, 1.0
        %v700 = vadd.f32 %v655, 1.0
        %v701 = vadd.f32 %v657, 1.0
        %v702 = vadd.f32 %v659, 1.0
        %v703 = vadd.f32 %v661, 1.0
        %v704 = vadd.f32 %v663, 1.0
        %v705 = vadd.f32 %v665, 1.0
        %v706 = vadd.f32 %v667, 1.0
        %v707 = vadd.f32 %v669, 1.0
        %v708 = vadd.f32 %v671, 1.0
        %v709 = vadd.f32 %v673, 1.0
        %v710 = vadd.f32 %v675, 1.0
        %v711 = vadd.f32 %v677, 1.0
        %v712 = vadd.f32 %v679, 1.0
        %v713 = vadd.f32 %v681, 1.0
        %v714 = vrcp.pop %v682
        %v715 = vmul.f32 1.0, %v714
        %v716 = vrcp.pop %v683
        %v717 = vmul.f32 1.0, %v716
        %v718 = vrcp.pop %v684
        %v719 = vmul.f32 1.0, %v718
        %v720 = vrcp.pop %v685
        %v721 = vmul.f32 1.0, %v720
        %v722 = vrcp.pop %v686
        %v723 = vmul.f32 1.0, %v722
        %v724 = vrcp.pop %v687
        %v725 = vmul.f32 1.0, %v724
        %v726 = vrcp.pop %v688
        %v727 = vmul.f32 1.0, %v726
        %v728 = vrcp.pop %v689
        %v729 = vmul.f32 1.0, %v728
        %v730 = vrcp.pop %v690
        %v731 = vmul.f32 1.0, %v730
        %v732 = vrcp.pop %v691
        %v733 = vmul.f32 1.0, %v732
        %v734 = vrcp.pop %v692
        %v735 = vmul.f32 1.0, %v734
        %v736 = vrcp.pop %v693
        %v737 = vmul.f32 1.0, %v736
        %v738 = vrcp.pop %v694
        %v739 = vmul.f32 1.0, %v738
        %v740 = vrcp.pop %v695
        %v741 = vmul.f32 1.0, %v740
        %v742 = vrcp.pop %v696
        %v743 = vmul.f32 1.0, %v742
        %v744 = vrcp.pop %v697
        %v745 = vmul.f32 1.0, %v744
        %v746 = vrcp.pop %v698
        %v747 = vmul.f32 1.0, %v746
        %v748 = vrcp.pop %v699
        %v749 = vmul.f32 1.0, %v748
        %v750 = vrcp.pop %v700
        %v751 = vmul.f32 1.0, %v750
        %v752 = vrcp.pop %v701
        %v753 = vmul.f32 1.0, %v752
        %v754 = vrcp.pop %v702
        %v755 = vmul.f32 1.0, %v754
        %v756 = vrcp.pop %v703
        %v757 = vmul.f32 1.0, %v756
        %v758 = vrcp.pop %v704
        %v759 = vmul.f32 1.0, %v758
        %v760 = vrcp.pop %v705
        %v761 = vmul.f32 1.0, %v760
        %v762 = vrcp.pop %v706
        %v763 = vmul.f32 1.0, %v762
        %v764 = vrcp.pop %v707
        %v765 = vmul.f32 1.0, %v764
        %v766 = vrcp.pop %v708
        %v767 = vmul.f32 1.0, %v766
        %v768 = vrcp.pop %v709
        %v769 = vmul.f32 1.0, %v768
        %v770 = vrcp.pop %v710
        %v771 = vmul.f32 1.0, %v770
        %v772 = vrcp.pop %v711
        %v773 = vmul.f32 1.0, %v772
        %v774 = vrcp.pop %v712
        %v775 = vmul.f32 1.0, %v774
        %v776 = vrcp.pop %v713
        %v777 = vmul.f32 1.0, %v776
        %v778 = vmul.f32 %v460, %v715
        %v779 = vmul.f32 %v463, %v717
        %v780 = vmul.f32 %v468, %v719
        %v781 = vmul.f32 %v471, %v721
        %v782 = vmul.f32 %v476, %v723
        %v783 = vmul.f32 %v479, %v725
        %v784 = vmul.f32 %v484, %v727
        %v785 = vmul.f32 %v487, %v729
        %v786 = vmul.f32 %v492, %v731
        %v787 = vmul.f32 %v495, %v733
        %v788 = vmul.f32 %v500, %v735
        %v789 = vmul.f32 %v503, %v737
        %v790 = vmul.f32 %v508, %v739
        %v791 = vmul.f32 %v511, %v741
        %v792 = vmul.f32 %v516, %v743
        %v793 = vmul.f32 %v519, %v745
        %v794 = vmul.f32 %v524, %v747
        %v795 = vmul.f32 %v527, %v749
        %v796 = vmul.f32 %v532, %v751
        %v797 = vmul.f32 %v535, %v753
        %v798 = vmul.f32 %v540, %v755
        %v799 = vmul.f32 %v543, %v757
        %v800 = vmul.f32 %v548, %v759
        %v801 = vmul.f32 %v551, %v761
        %v802 = vmul.f32 %v556, %v763
        %v803 = vmul.f32 %v559, %v765
        %v804 = vmul.f32 %v564, %v767
        %v805 = vmul.f32 %v567, %v769
        %v806 = vmul.f32 %v572, %v771
        %v807 = vmul.f32 %v575, %v773
        %v808 = vmul.f32 %v580, %v775
        %v809 = vmul.f32 %v583, %v777
        %v810 = vpack.c.bf16 %v779, %v778
        %v811 = vpack.c.bf16 %v781, %v780
        %v812 = vpack.c.bf16 %v783, %v782
        %v813 = vpack.c.bf16 %v785, %v784
        %v814 = vpack.c.bf16 %v787, %v786
        %v815 = vpack.c.bf16 %v789, %v788
        %v816 = vpack.c.bf16 %v791, %v790
        %v817 = vpack.c.bf16 %v793, %v792
        %v818 = vpack.c.bf16 %v795, %v794
        %v819 = vpack.c.bf16 %v797, %v796
        %v820 = vpack.c.bf16 %v799, %v798
        %v821 = vpack.c.bf16 %v801, %v800
        %v822 = vpack.c.bf16 %v803, %v802
        %v823 = vpack.c.bf16 %v805, %v804
        %v824 = vpack.c.bf16 %v807, %v806
        %v825 = vpack.c.bf16 %v809, %v808
        %vm826 = vcmask 257024
        %827 = vst.msk [vmem:[#allocation2] sm:$0xf] %vm826, 4286644096
        %828 = vst.msk [vmem:[#allocation2 + $0x4] sm:$0xf] %vm826, 4286644096
        %829 = vst.msk [vmem:[#allocation2 + $0x8] sm:$0xf] %vm826, 4286644096
        %vm830 = vcmask 254976
        %831 = vst.msk [vmem:[#allocation2 + $0xc] sm:$0x3] %vm830, 4286644096
        %832 = vst.msk [vmem:[#allocation2 + $0x10] sm:$0xf] %vm826, 4286644096
        %833 = vst.msk [vmem:[#allocation2 + $0x14] sm:$0xf] %vm826, 4286644096
        %834 = vst.msk [vmem:[#allocation2 + $0x18] sm:$0xf] %vm826, 4286644096
        %835 = vst.msk [vmem:[#allocation2 + $0x1c] sm:$0x3] %vm830, 4286644096
        %836 = vst.msk [vmem:[#allocation2 + $0x20] sm:$0xf] %vm826, 4286644096
        %837 = vst.msk [vmem:[#allocation2 + $0x24] sm:$0xf] %vm826, 4286644096
        %838 = vst.msk [vmem:[#allocation2 + $0x28] sm:$0xf] %vm826, 4286644096
        %839 = vst.msk [vmem:[#allocation2 + $0x2c] sm:$0x3] %vm830, 4286644096
        %840 = vst.msk [vmem:[#allocation2 + $0x30] sm:$0xf] %vm826, 4286644096
        %841 = vst.msk [vmem:[#allocation2 + $0x34] sm:$0xf] %vm826, 4286644096
        %842 = vst.msk [vmem:[#allocation2 + $0x38] sm:$0xf] %vm826, 4286644096
        %843 = vst.msk [vmem:[#allocation2 + $0x3c] sm:$0x3] %vm830, 4286644096
        %844 = vst.msk [vmem:[#allocation2 + $0x40] sm:$0xf] %vm826, 4286644096
        %845 = vst.msk [vmem:[#allocation2 + $0x44] sm:$0xf] %vm826, 4286644096
        %846 = vst.msk [vmem:[#allocation2 + $0x48] sm:$0xf] %vm826, 4286644096
        %847 = vst.msk [vmem:[#allocation2 + $0x4c] sm:$0x3] %vm830, 4286644096
        %848 = vst.msk [vmem:[#allocation2 + $0x50] sm:$0xf] %vm826, 4286644096
        %849 = vst.msk [vmem:[#allocation2 + $0x54] sm:$0xf] %vm826, 4286644096
        %850 = vst.msk [vmem:[#allocation2 + $0x58] sm:$0xf] %vm826, 4286644096
        %851 = vst.msk [vmem:[#allocation2 + $0x5c] sm:$0x3] %vm830, 4286644096
        %852 = vst.msk [vmem:[#allocation2 + $0x60] sm:$0xf] %vm826, 4286644096
        %853 = vst.msk [vmem:[#allocation2 + $0x64] sm:$0xf] %vm826, 4286644096
        %854 = vst.msk [vmem:[#allocation2 + $0x68] sm:$0xf] %vm826, 4286644096
        %855 = vst.msk [vmem:[#allocation2 + $0x6c] sm:$0x3] %vm830, 4286644096
        %856 = vst.msk [vmem:[#allocation2 + $0x70] sm:$0xf] %vm826, 4286644096
        %857 = vst.msk [vmem:[#allocation2 + $0x74] sm:$0xf] %vm826, 4286644096
        %858 = vst.msk [vmem:[#allocation2 + $0x78] sm:$0xf] %vm826, 4286644096
        %859 = vst.msk [vmem:[#allocation2 + $0x7c] sm:$0x3] %vm830, 4286644096
        %860 = vst.msk [vmem:[#allocation2 + $0x80] sm:$0xf] %vm826, 4286644096
        %861 = vst.msk [vmem:[#allocation2 + $0x84] sm:$0xf] %vm826, 4286644096
        %862 = vst.msk [vmem:[#allocation2 + $0x88] sm:$0xf] %vm826, 4286644096
        %863 = vst.msk [vmem:[#allocation2 + $0x8c] sm:$0x3] %vm830, 4286644096
        %864 = vst.msk [vmem:[#allocation2 + $0x90] sm:$0xf] %vm826, 4286644096
        %865 = vst.msk [vmem:[#allocation2 + $0x94] sm:$0xf] %vm826, 4286644096
        %866 = vst.msk [vmem:[#allocation2 + $0x98] sm:$0xf] %vm826, 4286644096
        %867 = vst.msk [vmem:[#allocation2 + $0x9c] sm:$0x3] %vm830, 4286644096
        %868 = vst.msk [vmem:[#allocation2 + $0xa0] sm:$0xf] %vm826, 4286644096
        %869 = vst.msk [vmem:[#allocation2 + $0xa4] sm:$0xf] %vm826, 4286644096
        %870 = vst.msk [vmem:[#allocation2 + $0xa8] sm:$0xf] %vm826, 4286644096
        %871 = vst.msk [vmem:[#allocation2 + $0xac] sm:$0x3] %vm830, 4286644096
        %872 = vst.msk [vmem:[#allocation2 + $0xb0] sm:$0xf] %vm826, 4286644096
        %873 = vst.msk [vmem:[#allocation2 + $0xb4] sm:$0xf] %vm826, 4286644096
        %874 = vst.msk [vmem:[#allocation2 + $0xb8] sm:$0xf] %vm826, 4286644096
        %875 = vst.msk [vmem:[#allocation2 + $0xbc] sm:$0x3] %vm830, 4286644096
        %876 = vst.msk [vmem:[#allocation2 + $0xc0] sm:$0xf] %vm826, 4286644096
        %877 = vst.msk [vmem:[#allocation2 + $0xc4] sm:$0xf] %vm826, 4286644096
        %878 = vst.msk [vmem:[#allocation2 + $0xc8] sm:$0xf] %vm826, 4286644096
        %879 = vst.msk [vmem:[#allocation2 + $0xcc] sm:$0x3] %vm830, 4286644096
        %880 = vst.msk [vmem:[#allocation2 + $0xd0] sm:$0xf] %vm826, 4286644096
        %881 = vst.msk [vmem:[#allocation2 + $0xd4] sm:$0xf] %vm826, 4286644096
        %882 = vst.msk [vmem:[#allocation2 + $0xd8] sm:$0xf] %vm826, 4286644096
        %883 = vst.msk [vmem:[#allocation2 + $0xdc] sm:$0x3] %vm830, 4286644096
        %884 = vst.msk [vmem:[#allocation2 + $0xe0] sm:$0xf] %vm826, 4286644096
        %885 = vst.msk [vmem:[#allocation2 + $0xe4] sm:$0xf] %vm826, 4286644096
        %886 = vst.msk [vmem:[#allocation2 + $0xe8] sm:$0xf] %vm826, 4286644096
        %887 = vst.msk [vmem:[#allocation2 + $0xec] sm:$0x3] %vm830, 4286644096
        %888 = vst.msk [vmem:[#allocation2 + $0xf0] sm:$0xf] %vm826, 4286644096
        %889 = vst.msk [vmem:[#allocation2 + $0xf4] sm:$0xf] %vm826, 4286644096
        %890 = vst.msk [vmem:[#allocation2 + $0xf8] sm:$0xf] %vm826, 4286644096
        %891 = vst.msk [vmem:[#allocation2 + $0xfc] sm:$0x3] %vm830, 4286644096
        %892 = vst.msk [vmem:[#allocation2 + $0x100] sm:$0xf] %vm826, 4286644096
        %893 = vst.msk [vmem:[#allocation2 + $0x104] sm:$0xf] %vm826, 4286644096
        %894 = vst.msk [vmem:[#allocation2 + $0x108] sm:$0xf] %vm826, 4286644096
        %895 = vst.msk [vmem:[#allocation2 + $0x10c] sm:$0x3] %vm830, 4286644096
        %896 = vst.msk [vmem:[#allocation2 + $0x110] sm:$0xf] %vm826, 4286644096
        %897 = vst.msk [vmem:[#allocation2 + $0x114] sm:$0xf] %vm826, 4286644096
        %898 = vst.msk [vmem:[#allocation2 + $0x118] sm:$0xf] %vm826, 4286644096
        %899 = vst.msk [vmem:[#allocation2 + $0x11c] sm:$0x3] %vm830, 4286644096
        %900 = vst.msk [vmem:[#allocation2 + $0x120] sm:$0xf] %vm826, 4286644096
        %901 = vst.msk [vmem:[#allocation2 + $0x124] sm:$0xf] %vm826, 4286644096
        %902 = vst.msk [vmem:[#allocation2 + $0x128] sm:$0xf] %vm826, 4286644096
        %903 = vst.msk [vmem:[#allocation2 + $0x12c] sm:$0x3] %vm830, 4286644096
        %904 = vst.msk [vmem:[#allocation2 + $0x130] sm:$0xf] %vm826, 4286644096
        %905 = vst.msk [vmem:[#allocation2 + $0x134] sm:$0xf] %vm826, 4286644096
        %906 = vst.msk [vmem:[#allocation2 + $0x138] sm:$0xf] %vm826, 4286644096
        %907 = vst.msk [vmem:[#allocation2 + $0x13c] sm:$0x3] %vm830, 4286644096
        %908 = vst.msk [vmem:[#allocation2 + $0x140] sm:$0xf] %vm826, 4286644096
        %909 = vst.msk [vmem:[#allocation2 + $0x144] sm:$0xf] %vm826, 4286644096
        %910 = vst.msk [vmem:[#allocation2 + $0x148] sm:$0xf] %vm826, 4286644096
        %911 = vst.msk [vmem:[#allocation2 + $0x14c] sm:$0x3] %vm830, 4286644096
        %912 = vst.msk [vmem:[#allocation2 + $0x150] sm:$0xf] %vm826, 4286644096
        %913 = vst.msk [vmem:[#allocation2 + $0x154] sm:$0xf] %vm826, 4286644096
        %914 = vst.msk [vmem:[#allocation2 + $0x158] sm:$0xf] %vm826, 4286644096
        %915 = vst.msk [vmem:[#allocation2 + $0x15c] sm:$0x3] %vm830, 4286644096
        %916 = vst.msk [vmem:[#allocation2 + $0x160] sm:$0xf] %vm826, 4286644096
        %917 = vst.msk [vmem:[#allocation2 + $0x164] sm:$0xf] %vm826, 4286644096
        %918 = vst.msk [vmem:[#allocation2 + $0x168] sm:$0xf] %vm826, 4286644096
        %919 = vst.msk [vmem:[#allocation2 + $0x16c] sm:$0x3] %vm830, 4286644096
        %920 = vst.msk [vmem:[#allocation2 + $0x170] sm:$0xf] %vm826, 4286644096
        %921 = vst.msk [vmem:[#allocation2 + $0x174] sm:$0xf] %vm826, 4286644096
        %922 = vst.msk [vmem:[#allocation2 + $0x178] sm:$0xf] %vm826, 4286644096
        %923 = vst.msk [vmem:[#allocation2 + $0x17c] sm:$0x3] %vm830, 4286644096
        %924 = vst.msk [vmem:[#allocation2 + $0x180] sm:$0xf] %vm826, 4286644096
        %925 = vst.msk [vmem:[#allocation2 + $0x184] sm:$0xf] %vm826, 4286644096
        %926 = vst.msk [vmem:[#allocation2 + $0x188] sm:$0xf] %vm826, 4286644096
        %927 = vst.msk [vmem:[#allocation2 + $0x18c] sm:$0x3] %vm830, 4286644096
        %928 = vst.msk [vmem:[#allocation2 + $0x190] sm:$0xf] %vm826, 4286644096
        %929 = vst.msk [vmem:[#allocation2 + $0x194] sm:$0xf] %vm826, 4286644096
        %930 = vst.msk [vmem:[#allocation2 + $0x198] sm:$0xf] %vm826, 4286644096
        %931 = vst.msk [vmem:[#allocation2 + $0x19c] sm:$0x3] %vm830, 4286644096
        %932 = vst.msk [vmem:[#allocation2 + $0x1a0] sm:$0xf] %vm826, 4286644096
        %933 = vst.msk [vmem:[#allocation2 + $0x1a4] sm:$0xf] %vm826, 4286644096
        %934 = vst.msk [vmem:[#allocation2 + $0x1a8] sm:$0xf] %vm826, 4286644096
        %935 = vst.msk [vmem:[#allocation2 + $0x1ac] sm:$0x3] %vm830, 4286644096
        %936 = vst.msk [vmem:[#allocation2 + $0x1b0] sm:$0xf] %vm826, 4286644096
        %937 = vst.msk [vmem:[#allocation2 + $0x1b4] sm:$0xf] %vm826, 4286644096
        %938 = vst.msk [vmem:[#allocation2 + $0x1b8] sm:$0xf] %vm826, 4286644096
        %939 = vst.msk [vmem:[#allocation2 + $0x1bc] sm:$0x3] %vm830, 4286644096
        %v956 = vunpack.c.l.b16 %v810
        %v957 = vunpack.c.h.b16 %v810
        %v958 = vunpack.c.l.b16 %v811
        %v959 = vunpack.c.h.b16 %v811
        %v960 = vunpack.c.l.b16 %v812
        %v961 = vunpack.c.h.b16 %v812
        %v962 = vunpack.c.l.b16 %v813
        %v963 = vunpack.c.h.b16 %v813
        %v964 = vunpack.c.l.b16 %v814
        %v965 = vunpack.c.h.b16 %v814
        %v966 = vunpack.c.l.b16 %v815
        %v967 = vunpack.c.h.b16 %v815
        %v968 = vunpack.c.l.b16 %v816
        %v969 = vunpack.c.h.b16 %v816
        %v970 = vunpack.c.l.b16 %v817
        %v971 = vunpack.c.h.b16 %v817
        %v972 = vunpack.c.l.b16 %v818
        %v973 = vunpack.c.h.b16 %v818
        %v974 = vunpack.c.l.b16 %v819
        %v975 = vunpack.c.h.b16 %v819
        %v976 = vunpack.c.l.b16 %v820
        %v977 = vunpack.c.h.b16 %v820
        %v978 = vunpack.c.l.b16 %v821
        %v979 = vunpack.c.h.b16 %v821
        %v980 = vunpack.c.l.b16 %v822
        %v981 = vunpack.c.h.b16 %v822
        %v982 = vunpack.c.l.b16 %v823
        %v983 = vunpack.c.h.b16 %v823
        %v984 = vunpack.c.l.b16 %v824
        %v985 = vunpack.c.h.b16 %v824
        %v986 = vunpack.c.l.b16 %v825
        %v987 = vunpack.c.h.b16 %v825
        %v988 = vpack.c.b16 %v956, %v956
        %v989 = vpack.c.b16 %v957, %v957
        %v990 = vpack.c.b16 %v958, %v958
        %v991 = vpack.c.b16 %v959, %v959
        %v992 = vpack.c.b16 %v960, %v960
        %v993 = vpack.c.b16 %v961, %v961
        %v994 = vpack.c.b16 %v962, %v962
        %v995 = vpack.c.b16 %v963, %v963
        %v996 = vpack.c.b16 %v964, %v964
        %v997 = vpack.c.b16 %v965, %v965
        %v998 = vpack.c.b16 %v966, %v966
        %v999 = vpack.c.b16 %v967, %v967
        %v1000 = vpack.c.b16 %v968, %v968
        %v1001 = vpack.c.b16 %v969, %v969
        %v1002 = vpack.c.b16 %v970, %v970
        %v1003 = vpack.c.b16 %v971, %v971
        %v1004 = vpack.c.b16 %v972, %v972
        %v1005 = vpack.c.b16 %v973, %v973
        %v1006 = vpack.c.b16 %v974, %v974
        %v1007 = vpack.c.b16 %v975, %v975
        %v1008 = vpack.c.b16 %v976, %v976
        %v1009 = vpack.c.b16 %v977, %v977
        %v1010 = vpack.c.b16 %v978, %v978
        %v1011 = vpack.c.b16 %v979, %v979
        %v1012 = vpack.c.b16 %v980, %v980
        %v1013 = vpack.c.b16 %v981, %v981
        %v1014 = vpack.c.b16 %v982, %v982
        %v1015 = vpack.c.b16 %v983, %v983
        %v1016 = vpack.c.b16 %v984, %v984
        %v1017 = vpack.c.b16 %v985, %v985
        %v1018 = vpack.c.b16 %v986, %v986
        %v1019 = vpack.c.b16 %v987, %v987
        %vm1020 = vcmask 1042432
        %vm1021 = vcmask 1046532
        %vm1022 = vmor %vm1020, %vm1021
        %v1023 = vrot.slane %v988, 5
        %v1024 = vrot.slane %v1023, 4
        %v1025 = vrot.slane %v989, 5
        %v1026 = vsel %vm1022, %v1024, %v1025
        %v1027 = vrot.slane %v1025, 4
        %v1028 = vrot.slane %v990, 5
        %v1029 = vrot.slane %v1028, 4
        %v1030 = vrot.slane %v991, 5
        %v1031 = vsel %vm1022, %v1029, %v1030
        %v1032 = vrot.slane %v1030, 4
        %v1033 = vrot.slane %v992, 5
        %v1034 = vrot.slane %v1033, 4
        %v1035 = vrot.slane %v993, 5
        %v1036 = vsel %vm1022, %v1034, %v1035
        %v1037 = vrot.slane %v1035, 4
        %v1038 = vrot.slane %v994, 5
        %v1039 = vrot.slane %v1038, 4
        %v1040 = vrot.slane %v995, 5
        %v1041 = vsel %vm1022, %v1039, %v1040
        %v1042 = vrot.slane %v1040, 4
        %v1043 = vrot.slane %v996, 5
        %v1044 = vrot.slane %v1043, 4
        %v1045 = vrot.slane %v997, 5
        %v1046 = vsel %vm1022, %v1044, %v1045
        %v1047 = vrot.slane %v1045, 4
        %v1048 = vrot.slane %v998, 5
        %v1049 = vrot.slane %v1048, 4
        %v1050 = vrot.slane %v999, 5
        %v1051 = vsel %vm1022, %v1049, %v1050
        %v1052 = vrot.slane %v1050, 4
        %v1053 = vrot.slane %v1000, 5
        %v1054 = vrot.slane %v1053, 4
        %v1055 = vrot.slane %v1001, 5
        %v1056 = vsel %vm1022, %v1054, %v1055
        %v1057 = vrot.slane %v1055, 4
        %v1058 = vrot.slane %v1002, 5
        %v1059 = vrot.slane %v1058, 4
        %v1060 = vrot.slane %v1003, 5
        %v1061 = vsel %vm1022, %v1059, %v1060
        %v1062 = vrot.slane %v1060, 4
        %v1063 = vrot.slane %v1004, 5
        %v1064 = vrot.slane %v1063, 4
        %v1065 = vrot.slane %v1005, 5
        %v1066 = vsel %vm1022, %v1064, %v1065
        %v1067 = vrot.slane %v1065, 4
        %v1068 = vrot.slane %v1006, 5
        %v1069 = vrot.slane %v1068, 4
        %v1070 = vrot.slane %v1007, 5
        %v1071 = vsel %vm1022, %v1069, %v1070
        %v1072 = vrot.slane %v1070, 4
        %v1073 = vrot.slane %v1008, 5
        %v1074 = vrot.slane %v1073, 4
        %v1075 = vrot.slane %v1009, 5
        %v1076 = vsel %vm1022, %v1074, %v1075
        %v1077 = vrot.slane %v1075, 4
        %v1078 = vrot.slane %v1010, 5
        %v1079 = vrot.slane %v1078, 4
        %v1080 = vrot.slane %v1011, 5
        %v1081 = vsel %vm1022, %v1079, %v1080
        %v1082 = vrot.slane %v1080, 4
        %v1083 = vrot.slane %v1012, 5
        %v1084 = vrot.slane %v1083, 4
        %v1085 = vrot.slane %v1013, 5
        %v1086 = vsel %vm1022, %v1084, %v1085
        %v1087 = vrot.slane %v1085, 4
        %v1088 = vrot.slane %v1014, 5
        %v1089 = vrot.slane %v1088, 4
        %v1090 = vrot.slane %v1015, 5
        %v1091 = vsel %vm1022, %v1089, %v1090
        %v1092 = vrot.slane %v1090, 4
        %v1093 = vrot.slane %v1016, 5
        %v1094 = vrot.slane %v1093, 4
        %v1095 = vrot.slane %v1017, 5
        %v1096 = vsel %vm1022, %v1094, %v1095
        %v1097 = vrot.slane %v1095, 4
        %v1098 = vrot.slane %v1018, 5
        %v1099 = vrot.slane %v1098, 4
        %v1100 = vrot.slane %v1019, 5
        %v1101 = vsel %vm1022, %v1099, %v1100
        %v1102 = vrot.slane %v1100, 4
        %s1151 = scalar_lea.vmem [#allocation2], 96
        %vm1152 = vcmask 257027
        %1153 = vst.msk [vmem:[%s1151] sm:$0x8] %vm1152, %v1023
        %1154 = vst.msk [vmem:[%s1151 + $0x4] sm:$0xf] %vm826, %v1026
        %vm1155 = vcmask 256000
        %1156 = vst.msk [vmem:[%s1151 + $0x8] sm:$0x7] %vm1155, %v1027
        %1157 = vst.msk [vmem:[%s1151 + $0x10] sm:$0x8] %vm1152, %v1028
        %1158 = vst.msk [vmem:[%s1151 + $0x14] sm:$0xf] %vm826, %v1031
        %1159 = vst.msk [vmem:[%s1151 + $0x18] sm:$0x7] %vm1155, %v1032
        %1160 = vst.msk [vmem:[%s1151 + $0x20] sm:$0x8] %vm1152, %v1033
        %1161 = vst.msk [vmem:[%s1151 + $0x24] sm:$0xf] %vm826, %v1036
        %1162 = vst.msk [vmem:[%s1151 + $0x28] sm:$0x7] %vm1155, %v1037
        %1163 = vst.msk [vmem:[%s1151 + $0x30] sm:$0x8] %vm1152, %v1038
        %1164 = vst.msk [vmem:[%s1151 + $0x34] sm:$0xf] %vm826, %v1041
        %1165 = vst.msk [vmem:[%s1151 + $0x38] sm:$0x7] %vm1155, %v1042
        %1166 = vst.msk [vmem:[%s1151 + $0x40] sm:$0x8] %vm1152, %v1043
        %1167 = vst.msk [vmem:[%s1151 + $0x44] sm:$0xf] %vm826, %v1046
        %1168 = vst.msk [vmem:[%s1151 + $0x48] sm:$0x7] %vm1155, %v1047
        %1169 = vst.msk [vmem:[%s1151 + $0x50] sm:$0x8] %vm1152, %v1048
        %1170 = vst.msk [vmem:[%s1151 + $0x54] sm:$0xf] %vm826, %v1051
        %1171 = vst.msk [vmem:[%s1151 + $0x58] sm:$0x7] %vm1155, %v1052
        %1172 = vst.msk [vmem:[%s1151 + $0x60] sm:$0x8] %vm1152, %v1053
        %1173 = vst.msk [vmem:[%s1151 + $0x64] sm:$0xf] %vm826, %v1056
        %1174 = vst.msk [vmem:[%s1151 + $0x68] sm:$0x7] %vm1155, %v1057
        %1175 = vst.msk [vmem:[%s1151 + $0x70] sm:$0x8] %vm1152, %v1058
        %1176 = vst.msk [vmem:[%s1151 + $0x74] sm:$0xf] %vm826, %v1061
        %1177 = vst.msk [vmem:[%s1151 + $0x78] sm:$0x7] %vm1155, %v1062
        %1178 = vst.msk [vmem:[%s1151 + $0x80] sm:$0x8] %vm1152, %v1063
        %1179 = vst.msk [vmem:[%s1151 + $0x84] sm:$0xf] %vm826, %v1066
        %1180 = vst.msk [vmem:[%s1151 + $0x88] sm:$0x7] %vm1155, %v1067
        %1181 = vst.msk [vmem:[%s1151 + $0x90] sm:$0x8] %vm1152, %v1068
        %1182 = vst.msk [vmem:[%s1151 + $0x94] sm:$0xf] %vm826, %v1071
        %1183 = vst.msk [vmem:[%s1151 + $0x98] sm:$0x7] %vm1155, %v1072
        %1184 = vst.msk [vmem:[%s1151 + $0xa0] sm:$0x8] %vm1152, %v1073
        %1185 = vst.msk [vmem:[%s1151 + $0xa4] sm:$0xf] %vm826, %v1076
        %1186 = vst.msk [vmem:[%s1151 + $0xa8] sm:$0x7] %vm1155, %v1077
        %1187 = vst.msk [vmem:[%s1151 + $0xb0] sm:$0x8] %vm1152, %v1078
        %1188 = vst.msk [vmem:[%s1151 + $0xb4] sm:$0xf] %vm826, %v1081
        %1189 = vst.msk [vmem:[%s1151 + $0xb8] sm:$0x7] %vm1155, %v1082
        %1190 = vst.msk [vmem:[%s1151 + $0xc0] sm:$0x8] %vm1152, %v1083
        %1191 = vst.msk [vmem:[%s1151 + $0xc4] sm:$0xf] %vm826, %v1086
        %1192 = vst.msk [vmem:[%s1151 + $0xc8] sm:$0x7] %vm1155, %v1087
        %1193 = vst.msk [vmem:[%s1151 + $0xd0] sm:$0x8] %vm1152, %v1088
        %1194 = vst.msk [vmem:[%s1151 + $0xd4] sm:$0xf] %vm826, %v1091
        %1195 = vst.msk [vmem:[%s1151 + $0xd8] sm:$0x7] %vm1155, %v1092
        %1196 = vst.msk [vmem:[%s1151 + $0xe0] sm:$0x8] %vm1152, %v1093
        %1197 = vst.msk [vmem:[%s1151 + $0xe4] sm:$0xf] %vm826, %v1096
        %1198 = vst.msk [vmem:[%s1151 + $0xe8] sm:$0x7] %vm1155, %v1097
        %1199 = vst.msk [vmem:[%s1151 + $0xf0] sm:$0x8] %vm1152, %v1098
        %1200 = vst.msk [vmem:[%s1151 + $0xf4] sm:$0xf] %vm826, %v1101
        %1201 = vst.msk [vmem:[%s1151 + $0xf8] sm:$0x7] %vm1155, %v1102
        %v1202 = vld [vmem:[#allocation2] sm:$0xf]
        %v1203 = vld [vmem:[#allocation2 + $0x4] sm:$0xf]
        %v1204 = vld [vmem:[#allocation2 + $0x8] sm:$0xf]
        %v1205 = vld [vmem:[#allocation2 + $0xc] sm:$0x3]
        %v1206 = vld [vmem:[#allocation2 + $0x10] sm:$0xf]
        %v1207 = vld [vmem:[#allocation2 + $0x14] sm:$0xf]
        %v1208 = vld [vmem:[#allocation2 + $0x18] sm:$0xf]
        %v1209 = vld [vmem:[#allocation2 + $0x1c] sm:$0x3]
        %v1210 = vld [vmem:[#allocation2 + $0x20] sm:$0xf]
        %v1211 = vld [vmem:[#allocation2 + $0x24] sm:$0xf]
        %v1212 = vld [vmem:[#allocation2 + $0x28] sm:$0xf]
        %v1213 = vld [vmem:[#allocation2 + $0x2c] sm:$0x3]
        %v1214 = vld [vmem:[#allocation2 + $0x30] sm:$0xf]
        %v1215 = vld [vmem:[#allocation2 + $0x34] sm:$0xf]
        %v1216 = vld [vmem:[#allocation2 + $0x38] sm:$0xf]
        %v1217 = vld [vmem:[#allocation2 + $0x3c] sm:$0x3]
        %v1218 = vld [vmem:[#allocation2 + $0x40] sm:$0xf]
        %v1219 = vld [vmem:[#allocation2 + $0x44] sm:$0xf]
        %v1220 = vld [vmem:[#allocation2 + $0x48] sm:$0xf]
        %v1221 = vld [vmem:[#allocation2 + $0x4c] sm:$0x3]
        %v1222 = vld [vmem:[#allocation2 + $0x50] sm:$0xf]
        %v1223 = vld [vmem:[#allocation2 + $0x54] sm:$0xf]
        %v1224 = vld [vmem:[#allocation2 + $0x58] sm:$0xf]
        %v1225 = vld [vmem:[#allocation2 + $0x5c] sm:$0x3]
        %v1226 = vld [vmem:[#allocation2 + $0x60] sm:$0xf]
        %v1227 = vld [vmem:[#allocation2 + $0x64] sm:$0xf]
        %v1228 = vld [vmem:[#allocation2 + $0x68] sm:$0xf]
        %v1229 = vld [vmem:[#allocation2 + $0x6c] sm:$0x3]
        %v1230 = vld [vmem:[#allocation2 + $0x70] sm:$0xf]
        %v1231 = vld [vmem:[#allocation2 + $0x74] sm:$0xf]
        %v1232 = vld [vmem:[#allocation2 + $0x78] sm:$0xf]
        %v1233 = vld [vmem:[#allocation2 + $0x7c] sm:$0x3]
        %v1234 = vld [vmem:[#allocation2 + $0x80] sm:$0xf]
        %v1235 = vld [vmem:[#allocation2 + $0x84] sm:$0xf]
        %v1236 = vld [vmem:[#allocation2 + $0x88] sm:$0xf]
        %v1237 = vld [vmem:[#allocation2 + $0x8c] sm:$0x3]
        %v1238 = vld [vmem:[#allocation2 + $0x90] sm:$0xf]
        %v1239 = vld [vmem:[#allocation2 + $0x94] sm:$0xf]
        %v1240 = vld [vmem:[#allocation2 + $0x98] sm:$0xf]
        %v1241 = vld [vmem:[#allocation2 + $0x9c] sm:$0x3]
        %v1242 = vld [vmem:[#allocation2 + $0xa0] sm:$0xf]
        %v1243 = vld [vmem:[#allocation2 + $0xa4] sm:$0xf]
        %v1244 = vld [vmem:[#allocation2 + $0xa8] sm:$0xf]
        %v1245 = vld [vmem:[#allocation2 + $0xac] sm:$0x3]
        %v1246 = vld [vmem:[#allocation2 + $0xb0] sm:$0xf]
        %v1247 = vld [vmem:[#allocation2 + $0xb4] sm:$0xf]
        %v1248 = vld [vmem:[#allocation2 + $0xb8] sm:$0xf]
        %v1249 = vld [vmem:[#allocation2 + $0xbc] sm:$0x3]
        %v1250 = vld [vmem:[#allocation2 + $0xc0] sm:$0xf]
        %v1251 = vld [vmem:[#allocation2 + $0xc4] sm:$0xf]
        %v1252 = vld [vmem:[#allocation2 + $0xc8] sm:$0xf]
        %v1253 = vld [vmem:[#allocation2 + $0xcc] sm:$0x3]
        %v1254 = vld [vmem:[#allocation2 + $0xd0] sm:$0xf]
        %v1255 = vld [vmem:[#allocation2 + $0xd4] sm:$0xf]
        %v1256 = vld [vmem:[#allocation2 + $0xd8] sm:$0xf]
        %v1257 = vld [vmem:[#allocation2 + $0xdc] sm:$0x3]
        %v1258 = vld [vmem:[#allocation2 + $0xe0] sm:$0xf]
        %v1259 = vld [vmem:[#allocation2 + $0xe4] sm:$0xf]
        %v1260 = vld [vmem:[#allocation2 + $0xe8] sm:$0xf]
        %v1261 = vld [vmem:[#allocation2 + $0xec] sm:$0x3]
        %v1262 = vld [vmem:[#allocation2 + $0xf0] sm:$0xf]
        %v1263 = vld [vmem:[#allocation2 + $0xf4] sm:$0xf]
        %v1264 = vld [vmem:[#allocation2 + $0xf8] sm:$0xf]
        %v1265 = vld [vmem:[#allocation2 + $0xfc] sm:$0x3]
        %v1266 = vld [vmem:[#allocation2 + $0x100] sm:$0xf]
        %v1267 = vld [vmem:[#allocation2 + $0x104] sm:$0xf]
        %v1268 = vld [vmem:[#allocation2 + $0x108] sm:$0xf]
        %v1269 = vld [vmem:[#allocation2 + $0x10c] sm:$0x3]
        %v1270 = vld [vmem:[#allocation2 + $0x110] sm:$0xf]
        %v1271 = vld [vmem:[#allocation2 + $0x114] sm:$0xf]
        %v1272 = vld [vmem:[#allocation2 + $0x118] sm:$0xf]
        %v1273 = vld [vmem:[#allocation2 + $0x11c] sm:$0x3]
        %v1274 = vld [vmem:[#allocation2 + $0x120] sm:$0xf]
        %v1275 = vld [vmem:[#allocation2 + $0x124] sm:$0xf]
        %v1276 = vld [vmem:[#allocation2 + $0x128] sm:$0xf]
        %v1277 = vld [vmem:[#allocation2 + $0x12c] sm:$0x3]
        %v1278 = vld [vmem:[#allocation2 + $0x130] sm:$0xf]
        %v1279 = vld [vmem:[#allocation2 + $0x134] sm:$0xf]
        %v1280 = vld [vmem:[#allocation2 + $0x138] sm:$0xf]
        %v1281 = vld [vmem:[#allocation2 + $0x13c] sm:$0x3]
        %v1282 = vld [vmem:[#allocation2 + $0x140] sm:$0xf]
        %v1283 = vld [vmem:[#allocation2 + $0x144] sm:$0xf]
        %v1284 = vld [vmem:[#allocation2 + $0x148] sm:$0xf]
        %v1285 = vld [vmem:[#allocation2 + $0x14c] sm:$0x3]
        %v1286 = vld [vmem:[#allocation2 + $0x150] sm:$0xf]
        %v1287 = vld [vmem:[#allocation2 + $0x154] sm:$0xf]
        %v1288 = vld [vmem:[#allocation2 + $0x158] sm:$0xf]
        %v1289 = vld [vmem:[#allocation2 + $0x15c] sm:$0x3]
        %v1290 = vld [vmem:[#allocation2 + $0x160] sm:$0xf]
        %v1291 = vld [vmem:[#allocation2 + $0x164] sm:$0xf]
        %v1292 = vld [vmem:[#allocation2 + $0x168] sm:$0xf]
        %v1293 = vld [vmem:[#allocation2 + $0x16c] sm:$0x3]
        %v1294 = vld [vmem:[#allocation2 + $0x170] sm:$0xf]
        %v1295 = vld [vmem:[#allocation2 + $0x174] sm:$0xf]
        %v1296 = vld [vmem:[#allocation2 + $0x178] sm:$0xf]
        %v1297 = vld [vmem:[#allocation2 + $0x17c] sm:$0x3]
        %s1298 = scalar_lea.vmem [#allocation2], 16
        %v1299 = vld [vmem:[%s1298] sm:$0xf]
        %v1300 = vld [vmem:[%s1298 + $0x4] sm:$0xf]
        %v1301 = vld [vmem:[%s1298 + $0x8] sm:$0xf]
        %v1302 = vld [vmem:[%s1298 + $0xc] sm:$0x3]
        %v1303 = vld [vmem:[%s1298 + $0x10] sm:$0xf]
        %v1304 = vld [vmem:[%s1298 + $0x14] sm:$0xf]
        %v1305 = vld [vmem:[%s1298 + $0x18] sm:$0xf]
        %v1306 = vld [vmem:[%s1298 + $0x1c] sm:$0x3]
        %v1307 = vld [vmem:[%s1298 + $0x20] sm:$0xf]
        %v1308 = vld [vmem:[%s1298 + $0x24] sm:$0xf]
        %v1309 = vld [vmem:[%s1298 + $0x28] sm:$0xf]
        %v1310 = vld [vmem:[%s1298 + $0x2c] sm:$0x3]
        %v1311 = vld [vmem:[%s1298 + $0x30] sm:$0xf]
        %v1312 = vld [vmem:[%s1298 + $0x34] sm:$0xf]
        %v1313 = vld [vmem:[%s1298 + $0x38] sm:$0xf]
        %v1314 = vld [vmem:[%s1298 + $0x3c] sm:$0x3]
        %v1315 = vld [vmem:[%s1298 + $0x40] sm:$0xf]
        %v1316 = vld [vmem:[%s1298 + $0x44] sm:$0xf]
        %v1317 = vld [vmem:[%s1298 + $0x48] sm:$0xf]
        %v1318 = vld [vmem:[%s1298 + $0x4c] sm:$0x3]
        %v1319 = vld [vmem:[%s1298 + $0x50] sm:$0xf]
        %v1320 = vld [vmem:[%s1298 + $0x54] sm:$0xf]
        %v1321 = vld [vmem:[%s1298 + $0x58] sm:$0xf]
        %v1322 = vld [vmem:[%s1298 + $0x5c] sm:$0x3]
        %v1323 = vld [vmem:[%s1298 + $0x60] sm:$0xf]
        %v1324 = vld [vmem:[%s1298 + $0x64] sm:$0xf]
        %v1325 = vld [vmem:[%s1298 + $0x68] sm:$0xf]
        %v1326 = vld [vmem:[%s1298 + $0x6c] sm:$0x3]
        %v1327 = vld [vmem:[%s1298 + $0x70] sm:$0xf]
        %v1328 = vld [vmem:[%s1298 + $0x74] sm:$0xf]
        %v1329 = vld [vmem:[%s1298 + $0x78] sm:$0xf]
        %v1330 = vld [vmem:[%s1298 + $0x7c] sm:$0x3]
        %v1331 = vld [vmem:[%s1298 + $0x80] sm:$0xf]
        %v1332 = vld [vmem:[%s1298 + $0x84] sm:$0xf]
        %v1333 = vld [vmem:[%s1298 + $0x88] sm:$0xf]
        %v1334 = vld [vmem:[%s1298 + $0x8c] sm:$0x3]
        %v1335 = vld [vmem:[%s1298 + $0x90] sm:$0xf]
        %v1336 = vld [vmem:[%s1298 + $0x94] sm:$0xf]
        %v1337 = vld [vmem:[%s1298 + $0x98] sm:$0xf]
        %v1338 = vld [vmem:[%s1298 + $0x9c] sm:$0x3]
        %v1339 = vld [vmem:[%s1298 + $0xa0] sm:$0xf]
        %v1340 = vld [vmem:[%s1298 + $0xa4] sm:$0xf]
        %v1341 = vld [vmem:[%s1298 + $0xa8] sm:$0xf]
        %v1342 = vld [vmem:[%s1298 + $0xac] sm:$0x3]
        %v1343 = vld [vmem:[%s1298 + $0xb0] sm:$0xf]
        %v1344 = vld [vmem:[%s1298 + $0xb4] sm:$0xf]
        %v1345 = vld [vmem:[%s1298 + $0xb8] sm:$0xf]
        %v1346 = vld [vmem:[%s1298 + $0xbc] sm:$0x3]
        %v1347 = vld [vmem:[%s1298 + $0xc0] sm:$0xf]
        %v1348 = vld [vmem:[%s1298 + $0xc4] sm:$0xf]
        %v1349 = vld [vmem:[%s1298 + $0xc8] sm:$0xf]
        %v1350 = vld [vmem:[%s1298 + $0xcc] sm:$0x3]
        %v1351 = vld [vmem:[%s1298 + $0xd0] sm:$0xf]
        %v1352 = vld [vmem:[%s1298 + $0xd4] sm:$0xf]
        %v1353 = vld [vmem:[%s1298 + $0xd8] sm:$0xf]
        %v1354 = vld [vmem:[%s1298 + $0xdc] sm:$0x3]
        %v1355 = vld [vmem:[%s1298 + $0xe0] sm:$0xf]
        %v1356 = vld [vmem:[%s1298 + $0xe4] sm:$0xf]
        %v1357 = vld [vmem:[%s1298 + $0xe8] sm:$0xf]
        %v1358 = vld [vmem:[%s1298 + $0xec] sm:$0x3]
        %v1359 = vld [vmem:[%s1298 + $0xf0] sm:$0xf]
        %v1360 = vld [vmem:[%s1298 + $0xf4] sm:$0xf]
        %v1361 = vld [vmem:[%s1298 + $0xf8] sm:$0xf]
        %v1362 = vld [vmem:[%s1298 + $0xfc] sm:$0x3]
        %v1363 = vld [vmem:[%s1298 + $0x100] sm:$0xf]
        %v1364 = vld [vmem:[%s1298 + $0x104] sm:$0xf]
        %v1365 = vld [vmem:[%s1298 + $0x108] sm:$0xf]
        %v1366 = vld [vmem:[%s1298 + $0x10c] sm:$0x3]
        %v1367 = vld [vmem:[%s1298 + $0x110] sm:$0xf]
        %v1368 = vld [vmem:[%s1298 + $0x114] sm:$0xf]
        %v1369 = vld [vmem:[%s1298 + $0x118] sm:$0xf]
        %v1370 = vld [vmem:[%s1298 + $0x11c] sm:$0x3]
        %v1371 = vld [vmem:[%s1298 + $0x120] sm:$0xf]
        %v1372 = vld [vmem:[%s1298 + $0x124] sm:$0xf]
        %v1373 = vld [vmem:[%s1298 + $0x128] sm:$0xf]
        %v1374 = vld [vmem:[%s1298 + $0x12c] sm:$0x3]
        %v1375 = vld [vmem:[%s1298 + $0x130] sm:$0xf]
        %v1376 = vld [vmem:[%s1298 + $0x134] sm:$0xf]
        %v1377 = vld [vmem:[%s1298 + $0x138] sm:$0xf]
        %v1378 = vld [vmem:[%s1298 + $0x13c] sm:$0x3]
        %v1379 = vld [vmem:[%s1298 + $0x140] sm:$0xf]
        %v1380 = vld [vmem:[%s1298 + $0x144] sm:$0xf]
        %v1381 = vld [vmem:[%s1298 + $0x148] sm:$0xf]
        %v1382 = vld [vmem:[%s1298 + $0x14c] sm:$0x3]
        %v1383 = vld [vmem:[%s1298 + $0x150] sm:$0xf]
        %v1384 = vld [vmem:[%s1298 + $0x154] sm:$0xf]
        %v1385 = vld [vmem:[%s1298 + $0x158] sm:$0xf]
        %v1386 = vld [vmem:[%s1298 + $0x15c] sm:$0x3]
        %v1387 = vld [vmem:[%s1298 + $0x160] sm:$0xf]
        %v1388 = vld [vmem:[%s1298 + $0x164] sm:$0xf]
        %v1389 = vld [vmem:[%s1298 + $0x168] sm:$0xf]
        %v1390 = vld [vmem:[%s1298 + $0x16c] sm:$0x3]
        %v1391 = vld [vmem:[%s1298 + $0x170] sm:$0xf]
        %v1392 = vld [vmem:[%s1298 + $0x174] sm:$0xf]
        %v1393 = vld [vmem:[%s1298 + $0x178] sm:$0xf]
        %v1394 = vld [vmem:[%s1298 + $0x17c] sm:$0x3]
        %v1395 = vmax.bf16 %v1202, %v1299
        %v1396 = vmax.bf16 %v1203, %v1300
        %v1397 = vmax.bf16 %v1204, %v1301
        %v1398 = vmax.bf16 %v1205, %v1302
        %v1399 = vmax.bf16 %v1206, %v1303
        %v1400 = vmax.bf16 %v1207, %v1304
        %v1401 = vmax.bf16 %v1208, %v1305
        %v1402 = vmax.bf16 %v1209, %v1306
        %v1403 = vmax.bf16 %v1210, %v1307
        %v1404 = vmax.bf16 %v1211, %v1308
        %v1405 = vmax.bf16 %v1212, %v1309
        %v1406 = vmax.bf16 %v1213, %v1310
        %v1407 = vmax.bf16 %v1214, %v1311
        %v1408 = vmax.bf16 %v1215, %v1312
        %v1409 = vmax.bf16 %v1216, %v1313
        %v1410 = vmax.bf16 %v1217, %v1314
        %v1411 = vmax.bf16 %v1218, %v1315
        %v1412 = vmax.bf16 %v1219, %v1316
        %v1413 = vmax.bf16 %v1220, %v1317
        %v1414 = vmax.bf16 %v1221, %v1318
        %v1415 = vmax.bf16 %v1222, %v1319
        %v1416 = vmax.bf16 %v1223, %v1320
        %v1417 = vmax.bf16 %v1224, %v1321
        %v1418 = vmax.bf16 %v1225, %v1322
        %v1419 = vmax.bf16 %v1226, %v1323
        %v1420 = vmax.bf16 %v1227, %v1324
        %v1421 = vmax.bf16 %v1228, %v1325
        %v1422 = vmax.bf16 %v1229, %v1326
        %v1423 = vmax.bf16 %v1230, %v1327
        %v1424 = vmax.bf16 %v1231, %v1328
        %v1425 = vmax.bf16 %v1232, %v1329
        %v1426 = vmax.bf16 %v1233, %v1330
        %v1427 = vmax.bf16 %v1234, %v1331
        %v1428 = vmax.bf16 %v1235, %v1332
        %v1429 = vmax.bf16 %v1236, %v1333
        %v1430 = vmax.bf16 %v1237, %v1334
        %v1431 = vmax.bf16 %v1238, %v1335
        %v1432 = vmax.bf16 %v1239, %v1336
        %v1433 = vmax.bf16 %v1240, %v1337
        %v1434 = vmax.bf16 %v1241, %v1338
        %v1435 = vmax.bf16 %v1242, %v1339
        %v1436 = vmax.bf16 %v1243, %v1340
        %v1437 = vmax.bf16 %v1244, %v1341
        %v1438 = vmax.bf16 %v1245, %v1342
        %v1439 = vmax.bf16 %v1246, %v1343
        %v1440 = vmax.bf16 %v1247, %v1344
        %v1441 = vmax.bf16 %v1248, %v1345
        %v1442 = vmax.bf16 %v1249, %v1346
        %v1443 = vmax.bf16 %v1250, %v1347
        %v1444 = vmax.bf16 %v1251, %v1348
        %v1445 = vmax.bf16 %v1252, %v1349
        %v1446 = vmax.bf16 %v1253, %v1350
        %v1447 = vmax.bf16 %v1254, %v1351
        %v1448 = vmax.bf16 %v1255, %v1352
        %v1449 = vmax.bf16 %v1256, %v1353
        %v1450 = vmax.bf16 %v1257, %v1354
        %v1451 = vmax.bf16 %v1258, %v1355
        %v1452 = vmax.bf16 %v1259, %v1356
        %v1453 = vmax.bf16 %v1260, %v1357
        %v1454 = vmax.bf16 %v1261, %v1358
        %v1455 = vmax.bf16 %v1262, %v1359
        %v1456 = vmax.bf16 %v1263, %v1360
        %v1457 = vmax.bf16 %v1264, %v1361
        %v1458 = vmax.bf16 %v1265, %v1362
        %v1459 = vmax.bf16 %v1266, %v1363
        %v1460 = vmax.bf16 %v1267, %v1364
        %v1461 = vmax.bf16 %v1268, %v1365
        %v1462 = vmax.bf16 %v1269, %v1366
        %v1463 = vmax.bf16 %v1270, %v1367
        %v1464 = vmax.bf16 %v1271, %v1368
        %v1465 = vmax.bf16 %v1272, %v1369
        %v1466 = vmax.bf16 %v1273, %v1370
        %v1467 = vmax.bf16 %v1274, %v1371
        %v1468 = vmax.bf16 %v1275, %v1372
        %v1469 = vmax.bf16 %v1276, %v1373
        %v1470 = vmax.bf16 %v1277, %v1374
        %v1471 = vmax.bf16 %v1278, %v1375
        %v1472 = vmax.bf16 %v1279, %v1376
        %v1473 = vmax.bf16 %v1280, %v1377
        %v1474 = vmax.bf16 %v1281, %v1378
        %v1475 = vmax.bf16 %v1282, %v1379
        %v1476 = vmax.bf16 %v1283, %v1380
        %v1477 = vmax.bf16 %v1284, %v1381
        %v1478 = vmax.bf16 %v1285, %v1382
        %v1479 = vmax.bf16 %v1286, %v1383
        %v1480 = vmax.bf16 %v1287, %v1384
        %v1481 = vmax.bf16 %v1288, %v1385
        %v1482 = vmax.bf16 %v1289, %v1386
        %v1483 = vmax.bf16 %v1290, %v1387
        %v1484 = vmax.bf16 %v1291, %v1388
        %v1485 = vmax.bf16 %v1292, %v1389
        %v1486 = vmax.bf16 %v1293, %v1390
        %v1487 = vmax.bf16 %v1294, %v1391
        %v1488 = vmax.bf16 %v1295, %v1392
        %v1489 = vmax.bf16 %v1296, %v1393
        %v1490 = vmax.bf16 %v1297, %v1394
        %s1491 = scalar_lea.vmem [#allocation2], 32
        %v1492 = vld [vmem:[%s1491] sm:$0xf]
        %v1493 = vld [vmem:[%s1491 + $0x4] sm:$0xf]
        %v1494 = vld [vmem:[%s1491 + $0x8] sm:$0xf]
        %v1495 = vld [vmem:[%s1491 + $0xc] sm:$0x3]
        %v1496 = vld [vmem:[%s1491 + $0x10] sm:$0xf]
        %v1497 = vld [vmem:[%s1491 + $0x14] sm:$0xf]
        %v1498 = vld [vmem:[%s1491 + $0x18] sm:$0xf]
        %v1499 = vld [vmem:[%s1491 + $0x1c] sm:$0x3]
        %v1500 = vld [vmem:[%s1491 + $0x20] sm:$0xf]
        %v1501 = vld [vmem:[%s1491 + $0x24] sm:$0xf]
        %v1502 = vld [vmem:[%s1491 + $0x28] sm:$0xf]
        %v1503 = vld [vmem:[%s1491 + $0x2c] sm:$0x3]
        %v1504 = vld [vmem:[%s1491 + $0x30] sm:$0xf]
        %v1505 = vld [vmem:[%s1491 + $0x34] sm:$0xf]
        %v1506 = vld [vmem:[%s1491 + $0x38] sm:$0xf]
        %v1507 = vld [vmem:[%s1491 + $0x3c] sm:$0x3]
        %v1508 = vld [vmem:[%s1491 + $0x40] sm:$0xf]
        %v1509 = vld [vmem:[%s1491 + $0x44] sm:$0xf]
        %v1510 = vld [vmem:[%s1491 + $0x48] sm:$0xf]
        %v1511 = vld [vmem:[%s1491 + $0x4c] sm:$0x3]
        %v1512 = vld [vmem:[%s1491 + $0x50] sm:$0xf]
        %v1513 = vld [vmem:[%s1491 + $0x54] sm:$0xf]
        %v1514 = vld [vmem:[%s1491 + $0x58] sm:$0xf]
        %v1515 = vld [vmem:[%s1491 + $0x5c] sm:$0x3]
        %v1516 = vld [vmem:[%s1491 + $0x60] sm:$0xf]
        %v1517 = vld [vmem:[%s1491 + $0x64] sm:$0xf]
        %v1518 = vld [vmem:[%s1491 + $0x68] sm:$0xf]
        %v1519 = vld [vmem:[%s1491 + $0x6c] sm:$0x3]
        %v1520 = vld [vmem:[%s1491 + $0x70] sm:$0xf]
        %v1521 = vld [vmem:[%s1491 + $0x74] sm:$0xf]
        %v1522 = vld [vmem:[%s1491 + $0x78] sm:$0xf]
        %v1523 = vld [vmem:[%s1491 + $0x7c] sm:$0x3]
        %v1524 = vld [vmem:[%s1491 + $0x80] sm:$0xf]
        %v1525 = vld [vmem:[%s1491 + $0x84] sm:$0xf]
        %v1526 = vld [vmem:[%s1491 + $0x88] sm:$0xf]
        %v1527 = vld [vmem:[%s1491 + $0x8c] sm:$0x3]
        %v1528 = vld [vmem:[%s1491 + $0x90] sm:$0xf]
        %v1529 = vld [vmem:[%s1491 + $0x94] sm:$0xf]
        %v1530 = vld [vmem:[%s1491 + $0x98] sm:$0xf]
        %v1531 = vld [vmem:[%s1491 + $0x9c] sm:$0x3]
        %v1532 = vld [vmem:[%s1491 + $0xa0] sm:$0xf]
        %v1533 = vld [vmem:[%s1491 + $0xa4] sm:$0xf]
        %v1534 = vld [vmem:[%s1491 + $0xa8] sm:$0xf]
        %v1535 = vld [vmem:[%s1491 + $0xac] sm:$0x3]
        %v1536 = vld [vmem:[%s1491 + $0xb0] sm:$0xf]
        %v1537 = vld [vmem:[%s1491 + $0xb4] sm:$0xf]
        %v1538 = vld [vmem:[%s1491 + $0xb8] sm:$0xf]
        %v1539 = vld [vmem:[%s1491 + $0xbc] sm:$0x3]
        %v1540 = vld [vmem:[%s1491 + $0xc0] sm:$0xf]
        %v1541 = vld [vmem:[%s1491 + $0xc4] sm:$0xf]
        %v1542 = vld [vmem:[%s1491 + $0xc8] sm:$0xf]
        %v1543 = vld [vmem:[%s1491 + $0xcc] sm:$0x3]
        %v1544 = vld [vmem:[%s1491 + $0xd0] sm:$0xf]
        %v1545 = vld [vmem:[%s1491 + $0xd4] sm:$0xf]
        %v1546 = vld [vmem:[%s1491 + $0xd8] sm:$0xf]
        %v1547 = vld [vmem:[%s1491 + $0xdc] sm:$0x3]
        %v1548 = vld [vmem:[%s1491 + $0xe0] sm:$0xf]
        %v1549 = vld [vmem:[%s1491 + $0xe4] sm:$0xf]
        %v1550 = vld [vmem:[%s1491 + $0xe8] sm:$0xf]
        %v1551 = vld [vmem:[%s1491 + $0xec] sm:$0x3]
        %v1552 = vld [vmem:[%s1491 + $0xf0] sm:$0xf]
        %v1553 = vld [vmem:[%s1491 + $0xf4] sm:$0xf]
        %v1554 = vld [vmem:[%s1491 + $0xf8] sm:$0xf]
        %v1555 = vld [vmem:[%s1491 + $0xfc] sm:$0x3]
        %v1556 = vld [vmem:[%s1491 + $0x100] sm:$0xf]
        %v1557 = vld [vmem:[%s1491 + $0x104] sm:$0xf]
        %v1558 = vld [vmem:[%s1491 + $0x108] sm:$0xf]
        %v1559 = vld [vmem:[%s1491 + $0x10c] sm:$0x3]
        %v1560 = vld [vmem:[%s1491 + $0x110] sm:$0xf]
        %v1561 = vld [vmem:[%s1491 + $0x114] sm:$0xf]
        %v1562 = vld [vmem:[%s1491 + $0x118] sm:$0xf]
        %v1563 = vld [vmem:[%s1491 + $0x11c] sm:$0x3]
        %v1564 = vld [vmem:[%s1491 + $0x120] sm:$0xf]
        %v1565 = vld [vmem:[%s1491 + $0x124] sm:$0xf]
        %v1566 = vld [vmem:[%s1491 + $0x128] sm:$0xf]
        %v1567 = vld [vmem:[%s1491 + $0x12c] sm:$0x3]
        %v1568 = vld [vmem:[%s1491 + $0x130] sm:$0xf]
        %v1569 = vld [vmem:[%s1491 + $0x134] sm:$0xf]
        %v1570 = vld [vmem:[%s1491 + $0x138] sm:$0xf]
        %v1571 = vld [vmem:[%s1491 + $0x13c] sm:$0x3]
        %v1572 = vld [vmem:[%s1491 + $0x140] sm:$0xf]
        %v1573 = vld [vmem:[%s1491 + $0x144] sm:$0xf]
        %v1574 = vld [vmem:[%s1491 + $0x148] sm:$0xf]
        %v1575 = vld [vmem:[%s1491 + $0x14c] sm:$0x3]
        %v1576 = vld [vmem:[%s1491 + $0x150] sm:$0xf]
        %v1577 = vld [vmem:[%s1491 + $0x154] sm:$0xf]
        %v1578 = vld [vmem:[%s1491 + $0x158] sm:$0xf]
        %v1579 = vld [vmem:[%s1491 + $0x15c] sm:$0x3]
        %v1580 = vld [vmem:[%s1491 + $0x160] sm:$0xf]
        %v1581 = vld [vmem:[%s1491 + $0x164] sm:$0xf]
        %v1582 = vld [vmem:[%s1491 + $0x168] sm:$0xf]
        %v1583 = vld [vmem:[%s1491 + $0x16c] sm:$0x3]
        %v1584 = vld [vmem:[%s1491 + $0x170] sm:$0xf]
        %v1585 = vld [vmem:[%s1491 + $0x174] sm:$0xf]
        %v1586 = vld [vmem:[%s1491 + $0x178] sm:$0xf]
        %v1587 = vld [vmem:[%s1491 + $0x17c] sm:$0x3]
        %v1588 = vmax.bf16 %v1395, %v1492
        %v1589 = vmax.bf16 %v1396, %v1493
        %v1590 = vmax.bf16 %v1397, %v1494
        %v1591 = vmax.bf16 %v1398, %v1495
        %v1592 = vmax.bf16 %v1399, %v1496
        %v1593 = vmax.bf16 %v1400, %v1497
        %v1594 = vmax.bf16 %v1401, %v1498
        %v1595 = vmax.bf16 %v1402, %v1499
        %v1596 = vmax.bf16 %v1403, %v1500
        %v1597 = vmax.bf16 %v1404, %v1501
        %v1598 = vmax.bf16 %v1405, %v1502
        %v1599 = vmax.bf16 %v1406, %v1503
        %v1600 = vmax.bf16 %v1407, %v1504
        %v1601 = vmax.bf16 %v1408, %v1505
        %v1602 = vmax.bf16 %v1409, %v1506
        %v1603 = vmax.bf16 %v1410, %v1507
        %v1604 = vmax.bf16 %v1411, %v1508
        %v1605 = vmax.bf16 %v1412, %v1509
        %v1606 = vmax.bf16 %v1413, %v1510
        %v1607 = vmax.bf16 %v1414, %v1511
        %v1608 = vmax.bf16 %v1415, %v1512
        %v1609 = vmax.bf16 %v1416, %v1513
        %v1610 = vmax.bf16 %v1417, %v1514
        %v1611 = vmax.bf16 %v1418, %v1515
        %v1612 = vmax.bf16 %v1419, %v1516
        %v1613 = vmax.bf16 %v1420, %v1517
        %v1614 = vmax.bf16 %v1421, %v1518
        %v1615 = vmax.bf16 %v1422, %v1519
        %v1616 = vmax.bf16 %v1423, %v1520
        %v1617 = vmax.bf16 %v1424, %v1521
        %v1618 = vmax.bf16 %v1425, %v1522
        %v1619 = vmax.bf16 %v1426, %v1523
        %v1620 = vmax.bf16 %v1427, %v1524
        %v1621 = vmax.bf16 %v1428, %v1525
        %v1622 = vmax.bf16 %v1429, %v1526
        %v1623 = vmax.bf16 %v1430, %v1527
        %v1624 = vmax.bf16 %v1431, %v1528
        %v1625 = vmax.bf16 %v1432, %v1529
        %v1626 = vmax.bf16 %v1433, %v1530
        %v1627 = vmax.bf16 %v1434, %v1531
        %v1628 = vmax.bf16 %v1435, %v1532
        %v1629 = vmax.bf16 %v1436, %v1533
        %v1630 = vmax.bf16 %v1437, %v1534
        %v1631 = vmax.bf16 %v1438, %v1535
        %v1632 = vmax.bf16 %v1439, %v1536
        %v1633 = vmax.bf16 %v1440, %v1537
        %v1634 = vmax.bf16 %v1441, %v1538
        %v1635 = vmax.bf16 %v1442, %v1539
        %v1636 = vmax.bf16 %v1443, %v1540
        %v1637 = vmax.bf16 %v1444, %v1541
        %v1638 = vmax.bf16 %v1445, %v1542
        %v1639 = vmax.bf16 %v1446, %v1543
        %v1640 = vmax.bf16 %v1447, %v1544
        %v1641 = vmax.bf16 %v1448, %v1545
        %v1642 = vmax.bf16 %v1449, %v1546
        %v1643 = vmax.bf16 %v1450, %v1547
        %v1644 = vmax.bf16 %v1451, %v1548
        %v1645 = vmax.bf16 %v1452, %v1549
        %v1646 = vmax.bf16 %v1453, %v1550
        %v1647 = vmax.bf16 %v1454, %v1551
        %v1648 = vmax.bf16 %v1455, %v1552
        %v1649 = vmax.bf16 %v1456, %v1553
        %v1650 = vmax.bf16 %v1457, %v1554
        %v1651 = vmax.bf16 %v1458, %v1555
        %v1652 = vmax.bf16 %v1459, %v1556
        %v1653 = vmax.bf16 %v1460, %v1557
        %v1654 = vmax.bf16 %v1461, %v1558
        %v1655 = vmax.bf16 %v1462, %v1559
        %v1656 = vmax.bf16 %v1463, %v1560
        %v1657 = vmax.bf16 %v1464, %v1561
        %v1658 = vmax.bf16 %v1465, %v1562
        %v1659 = vmax.bf16 %v1466, %v1563
        %v1660 = vmax.bf16 %v1467, %v1564
        %v1661 = vmax.bf16 %v1468, %v1565
        %v1662 = vmax.bf16 %v1469, %v1566
        %v1663 = vmax.bf16 %v1470, %v1567
        %v1664 = vmax.bf16 %v1471, %v1568
        %v1665 = vmax.bf16 %v1472, %v1569
        %v1666 = vmax.bf16 %v1473, %v1570
        %v1667 = vmax.bf16 %v1474, %v1571
        %v1668 = vmax.bf16 %v1475, %v1572
        %v1669 = vmax.bf16 %v1476, %v1573
        %v1670 = vmax.bf16 %v1477, %v1574
        %v1671 = vmax.bf16 %v1478, %v1575
        %v1672 = vmax.bf16 %v1479, %v1576
        %v1673 = vmax.bf16 %v1480, %v1577
        %v1674 = vmax.bf16 %v1481, %v1578
        %v1675 = vmax.bf16 %v1482, %v1579
        %v1676 = vmax.bf16 %v1483, %v1580
        %v1677 = vmax.bf16 %v1484, %v1581
        %v1678 = vmax.bf16 %v1485, %v1582
        %v1679 = vmax.bf16 %v1486, %v1583
        %v1680 = vmax.bf16 %v1487, %v1584
        %v1681 = vmax.bf16 %v1488, %v1585
        %v1682 = vmax.bf16 %v1489, %v1586
        %v1683 = vmax.bf16 %v1490, %v1587
        %s1684 = scalar_lea.vmem [#allocation2], 48
        %v1685 = vld [vmem:[%s1684] sm:$0xf]
        %v1686 = vld [vmem:[%s1684 + $0x4] sm:$0xf]
        %v1687 = vld [vmem:[%s1684 + $0x8] sm:$0xf]
        %v1688 = vld [vmem:[%s1684 + $0xc] sm:$0x3]
        %v1689 = vld [vmem:[%s1684 + $0x10] sm:$0xf]
        %v1690 = vld [vmem:[%s1684 + $0x14] sm:$0xf]
        %v1691 = vld [vmem:[%s1684 + $0x18] sm:$0xf]
        %v1692 = vld [vmem:[%s1684 + $0x1c] sm:$0x3]
        %v1693 = vld [vmem:[%s1684 + $0x20] sm:$0xf]
        %v1694 = vld [vmem:[%s1684 + $0x24] sm:$0xf]
        %v1695 = vld [vmem:[%s1684 + $0x28] sm:$0xf]
        %v1696 = vld [vmem:[%s1684 + $0x2c] sm:$0x3]
        %v1697 = vld [vmem:[%s1684 + $0x30] sm:$0xf]
        %v1698 = vld [vmem:[%s1684 + $0x34] sm:$0xf]
        %v1699 = vld [vmem:[%s1684 + $0x38] sm:$0xf]
        %v1700 = vld [vmem:[%s1684 + $0x3c] sm:$0x3]
        %v1701 = vld [vmem:[%s1684 + $0x40] sm:$0xf]
        %v1702 = vld [vmem:[%s1684 + $0x44] sm:$0xf]
        %v1703 = vld [vmem:[%s1684 + $0x48] sm:$0xf]
        %v1704 = vld [vmem:[%s1684 + $0x4c] sm:$0x3]
        %v1705 = vld [vmem:[%s1684 + $0x50] sm:$0xf]
        %v1706 = vld [vmem:[%s1684 + $0x54] sm:$0xf]
        %v1707 = vld [vmem:[%s1684 + $0x58] sm:$0xf]
        %v1708 = vld [vmem:[%s1684 + $0x5c] sm:$0x3]
        %v1709 = vld [vmem:[%s1684 + $0x60] sm:$0xf]
        %v1710 = vld [vmem:[%s1684 + $0x64] sm:$0xf]
        %v1711 = vld [vmem:[%s1684 + $0x68] sm:$0xf]
        %v1712 = vld [vmem:[%s1684 + $0x6c] sm:$0x3]
        %v1713 = vld [vmem:[%s1684 + $0x70] sm:$0xf]
        %v1714 = vld [vmem:[%s1684 + $0x74] sm:$0xf]
        %v1715 = vld [vmem:[%s1684 + $0x78] sm:$0xf]
        %v1716 = vld [vmem:[%s1684 + $0x7c] sm:$0x3]
        %v1717 = vld [vmem:[%s1684 + $0x80] sm:$0xf]
        %v1718 = vld [vmem:[%s1684 + $0x84] sm:$0xf]
        %v1719 = vld [vmem:[%s1684 + $0x88] sm:$0xf]
        %v1720 = vld [vmem:[%s1684 + $0x8c] sm:$0x3]
        %v1721 = vld [vmem:[%s1684 + $0x90] sm:$0xf]
        %v1722 = vld [vmem:[%s1684 + $0x94] sm:$0xf]
        %v1723 = vld [vmem:[%s1684 + $0x98] sm:$0xf]
        %v1724 = vld [vmem:[%s1684 + $0x9c] sm:$0x3]
        %v1725 = vld [vmem:[%s1684 + $0xa0] sm:$0xf]
        %v1726 = vld [vmem:[%s1684 + $0xa4] sm:$0xf]
        %v1727 = vld [vmem:[%s1684 + $0xa8] sm:$0xf]
        %v1728 = vld [vmem:[%s1684 + $0xac] sm:$0x3]
        %v1729 = vld [vmem:[%s1684 + $0xb0] sm:$0xf]
        %v1730 = vld [vmem:[%s1684 + $0xb4] sm:$0xf]
        %v1731 = vld [vmem:[%s1684 + $0xb8] sm:$0xf]
        %v1732 = vld [vmem:[%s1684 + $0xbc] sm:$0x3]
        %v1733 = vld [vmem:[%s1684 + $0xc0] sm:$0xf]
        %v1734 = vld [vmem:[%s1684 + $0xc4] sm:$0xf]
        %v1735 = vld [vmem:[%s1684 + $0xc8] sm:$0xf]
        %v1736 = vld [vmem:[%s1684 + $0xcc] sm:$0x3]
        %v1737 = vld [vmem:[%s1684 + $0xd0] sm:$0xf]
        %v1738 = vld [vmem:[%s1684 + $0xd4] sm:$0xf]
        %v1739 = vld [vmem:[%s1684 + $0xd8] sm:$0xf]
        %v1740 = vld [vmem:[%s1684 + $0xdc] sm:$0x3]
        %v1741 = vld [vmem:[%s1684 + $0xe0] sm:$0xf]
        %v1742 = vld [vmem:[%s1684 + $0xe4] sm:$0xf]
        %v1743 = vld [vmem:[%s1684 + $0xe8] sm:$0xf]
        %v1744 = vld [vmem:[%s1684 + $0xec] sm:$0x3]
        %v1745 = vld [vmem:[%s1684 + $0xf0] sm:$0xf]
        %v1746 = vld [vmem:[%s1684 + $0xf4] sm:$0xf]
        %v1747 = vld [vmem:[%s1684 + $0xf8] sm:$0xf]
        %v1748 = vld [vmem:[%s1684 + $0xfc] sm:$0x3]
        %v1749 = vld [vmem:[%s1684 + $0x100] sm:$0xf]
        %v1750 = vld [vmem:[%s1684 + $0x104] sm:$0xf]
        %v1751 = vld [vmem:[%s1684 + $0x108] sm:$0xf]
        %v1752 = vld [vmem:[%s1684 + $0x10c] sm:$0x3]
        %v1753 = vld [vmem:[%s1684 + $0x110] sm:$0xf]
        %v1754 = vld [vmem:[%s1684 + $0x114] sm:$0xf]
        %v1755 = vld [vmem:[%s1684 + $0x118] sm:$0xf]
        %v1756 = vld [vmem:[%s1684 + $0x11c] sm:$0x3]
        %v1757 = vld [vmem:[%s1684 + $0x120] sm:$0xf]
        %v1758 = vld [vmem:[%s1684 + $0x124] sm:$0xf]
        %v1759 = vld [vmem:[%s1684 + $0x128] sm:$0xf]
        %v1760 = vld [vmem:[%s1684 + $0x12c] sm:$0x3]
        %v1761 = vld [vmem:[%s1684 + $0x130] sm:$0xf]
        %v1762 = vld [vmem:[%s1684 + $0x134] sm:$0xf]
        %v1763 = vld [vmem:[%s1684 + $0x138] sm:$0xf]
        %v1764 = vld [vmem:[%s1684 + $0x13c] sm:$0x3]
        %v1765 = vld [vmem:[%s1684 + $0x140] sm:$0xf]
        %v1766 = vld [vmem:[%s1684 + $0x144] sm:$0xf]
        %v1767 = vld [vmem:[%s1684 + $0x148] sm:$0xf]
        %v1768 = vld [vmem:[%s1684 + $0x14c] sm:$0x3]
        %v1769 = vld [vmem:[%s1684 + $0x150] sm:$0xf]
        %v1770 = vld [vmem:[%s1684 + $0x154] sm:$0xf]
        %v1771 = vld [vmem:[%s1684 + $0x158] sm:$0xf]
        %v1772 = vld [vmem:[%s1684 + $0x15c] sm:$0x3]
        %v1773 = vld [vmem:[%s1684 + $0x160] sm:$0xf]
        %v1774 = vld [vmem:[%s1684 + $0x164] sm:$0xf]
        %v1775 = vld [vmem:[%s1684 + $0x168] sm:$0xf]
        %v1776 = vld [vmem:[%s1684 + $0x16c] sm:$0x3]
        %v1777 = vld [vmem:[%s1684 + $0x170] sm:$0xf]
        %v1778 = vld [vmem:[%s1684 + $0x174] sm:$0xf]
        %v1779 = vld [vmem:[%s1684 + $0x178] sm:$0xf]
        %v1780 = vld [vmem:[%s1684 + $0x17c] sm:$0x3]
        %v1781 = vmax.bf16 %v1588, %v1685
        %v1782 = vmax.bf16 %v1589, %v1686
        %v1783 = vmax.bf16 %v1590, %v1687
        %v1784 = vmax.bf16 %v1591, %v1688
        %v1785 = vmax.bf16 %v1592, %v1689
        %v1786 = vmax.bf16 %v1593, %v1690
        %v1787 = vmax.bf16 %v1594, %v1691
        %v1788 = vmax.bf16 %v1595, %v1692
        %v1789 = vmax.bf16 %v1596, %v1693
        %v1790 = vmax.bf16 %v1597, %v1694
        %v1791 = vmax.bf16 %v1598, %v1695
        %v1792 = vmax.bf16 %v1599, %v1696
        %v1793 = vmax.bf16 %v1600, %v1697
        %v1794 = vmax.bf16 %v1601, %v1698
        %v1795 = vmax.bf16 %v1602, %v1699
        %v1796 = vmax.bf16 %v1603, %v1700
        %v1797 = vmax.bf16 %v1604, %v1701
        %v1798 = vmax.bf16 %v1605, %v1702
        %v1799 = vmax.bf16 %v1606, %v1703
        %v1800 = vmax.bf16 %v1607, %v1704
        %v1801 = vmax.bf16 %v1608, %v1705
        %v1802 = vmax.bf16 %v1609, %v1706
        %v1803 = vmax.bf16 %v1610, %v1707
        %v1804 = vmax.bf16 %v1611, %v1708
        %v1805 = vmax.bf16 %v1612, %v1709
        %v1806 = vmax.bf16 %v1613, %v1710
        %v1807 = vmax.bf16 %v1614, %v1711
        %v1808 = vmax.bf16 %v1615, %v1712
        %v1809 = vmax.bf16 %v1616, %v1713
        %v1810 = vmax.bf16 %v1617, %v1714
        %v1811 = vmax.bf16 %v1618, %v1715
        %v1812 = vmax.bf16 %v1619, %v1716
        %v1813 = vmax.bf16 %v1620, %v1717
        %v1814 = vmax.bf16 %v1621, %v1718
        %v1815 = vmax.bf16 %v1622, %v1719
        %v1816 = vmax.bf16 %v1623, %v1720
        %v1817 = vmax.bf16 %v1624, %v1721
        %v1818 = vmax.bf16 %v1625, %v1722
        %v1819 = vmax.bf16 %v1626, %v1723
        %v1820 = vmax.bf16 %v1627, %v1724
        %v1821 = vmax.bf16 %v1628, %v1725
        %v1822 = vmax.bf16 %v1629, %v1726
        %v1823 = vmax.bf16 %v1630, %v1727
        %v1824 = vmax.bf16 %v1631, %v1728
        %v1825 = vmax.bf16 %v1632, %v1729
        %v1826 = vmax.bf16 %v1633, %v1730
        %v1827 = vmax.bf16 %v1634, %v1731
        %v1828 = vmax.bf16 %v1635, %v1732
        %v1829 = vmax.bf16 %v1636, %v1733
        %v1830 = vmax.bf16 %v1637, %v1734
        %v1831 = vmax.bf16 %v1638, %v1735
        %v1832 = vmax.bf16 %v1639, %v1736
        %v1833 = vmax.bf16 %v1640, %v1737
        %v1834 = vmax.bf16 %v1641, %v1738
        %v1835 = vmax.bf16 %v1642, %v1739
        %v1836 = vmax.bf16 %v1643, %v1740
        %v1837 = vmax.bf16 %v1644, %v1741
        %v1838 = vmax.bf16 %v1645, %v1742
        %v1839 = vmax.bf16 %v1646, %v1743
        %v1840 = vmax.bf16 %v1647, %v1744
        %v1841 = vmax.bf16 %v1648, %v1745
        %v1842 = vmax.bf16 %v1649, %v1746
        %v1843 = vmax.bf16 %v1650, %v1747
        %v1844 = vmax.bf16 %v1651, %v1748
        %v1845 = vmax.bf16 %v1652, %v1749
        %v1846 = vmax.bf16 %v1653, %v1750
        %v1847 = vmax.bf16 %v1654, %v1751
        %v1848 = vmax.bf16 %v1655, %v1752
        %v1849 = vmax.bf16 %v1656, %v1753
        %v1850 = vmax.bf16 %v1657, %v1754
        %v1851 = vmax.bf16 %v1658, %v1755
        %v1852 = vmax.bf16 %v1659, %v1756
        %v1853 = vmax.bf16 %v1660, %v1757
        %v1854 = vmax.bf16 %v1661, %v1758
        %v1855 = vmax.bf16 %v1662, %v1759
        %v1856 = vmax.bf16 %v1663, %v1760
        %v1857 = vmax.bf16 %v1664, %v1761
        %v1858 = vmax.bf16 %v1665, %v1762
        %v1859 = vmax.bf16 %v1666, %v1763
        %v1860 = vmax.bf16 %v1667, %v1764
        %v1861 = vmax.bf16 %v1668, %v1765
        %v1862 = vmax.bf16 %v1669, %v1766
        %v1863 = vmax.bf16 %v1670, %v1767
        %v1864 = vmax.bf16 %v1671, %v1768
        %v1865 = vmax.bf16 %v1672, %v1769
        %v1866 = vmax.bf16 %v1673, %v1770
        %v1867 = vmax.bf16 %v1674, %v1771
        %v1868 = vmax.bf16 %v1675, %v1772
        %v1869 = vmax.bf16 %v1676, %v1773
        %v1870 = vmax.bf16 %v1677, %v1774
        %v1871 = vmax.bf16 %v1678, %v1775
        %v1872 = vmax.bf16 %v1679, %v1776
        %v1873 = vmax.bf16 %v1680, %v1777
        %v1874 = vmax.bf16 %v1681, %v1778
        %v1875 = vmax.bf16 %v1682, %v1779
        %v1876 = vmax.bf16 %v1683, %v1780
        %s1877 = scalar_lea.vmem [#allocation2], 64
        %v1878 = vld [vmem:[%s1877] sm:$0xf]
        %v1879 = vld [vmem:[%s1877 + $0x4] sm:$0xf]
        %v1880 = vld [vmem:[%s1877 + $0x8] sm:$0xf]
        %v1881 = vld [vmem:[%s1877 + $0xc] sm:$0x3]
        %v1882 = vld [vmem:[%s1877 + $0x10] sm:$0xf]
        %v1883 = vld [vmem:[%s1877 + $0x14] sm:$0xf]
        %v1884 = vld [vmem:[%s1877 + $0x18] sm:$0xf]
        %v1885 = vld [vmem:[%s1877 + $0x1c] sm:$0x3]
        %v1886 = vld [vmem:[%s1877 + $0x20] sm:$0xf]
        %v1887 = vld [vmem:[%s1877 + $0x24] sm:$0xf]
        %v1888 = vld [vmem:[%s1877 + $0x28] sm:$0xf]
        %v1889 = vld [vmem:[%s1877 + $0x2c] sm:$0x3]
        %v1890 = vld [vmem:[%s1877 + $0x30] sm:$0xf]
        %v1891 = vld [vmem:[%s1877 + $0x34] sm:$0xf]
        %v1892 = vld [vmem:[%s1877 + $0x38] sm:$0xf]
        %v1893 = vld [vmem:[%s1877 + $0x3c] sm:$0x3]
        %v1894 = vld [vmem:[%s1877 + $0x40] sm:$0xf]
        %v1895 = vld [vmem:[%s1877 + $0x44] sm:$0xf]
        %v1896 = vld [vmem:[%s1877 + $0x48] sm:$0xf]
        %v1897 = vld [vmem:[%s1877 + $0x4c] sm:$0x3]
        %v1898 = vld [vmem:[%s1877 + $0x50] sm:$0xf]
        %v1899 = vld [vmem:[%s1877 + $0x54] sm:$0xf]
        %v1900 = vld [vmem:[%s1877 + $0x58] sm:$0xf]
        %v1901 = vld [vmem:[%s1877 + $0x5c] sm:$0x3]
        %v1902 = vld [vmem:[%s1877 + $0x60] sm:$0xf]
        %v1903 = vld [vmem:[%s1877 + $0x64] sm:$0xf]
        %v1904 = vld [vmem:[%s1877 + $0x68] sm:$0xf]
        %v1905 = vld [vmem:[%s1877 + $0x6c] sm:$0x3]
        %v1906 = vld [vmem:[%s1877 + $0x70] sm:$0xf]
        %v1907 = vld [vmem:[%s1877 + $0x74] sm:$0xf]
        %v1908 = vld [vmem:[%s1877 + $0x78] sm:$0xf]
        %v1909 = vld [vmem:[%s1877 + $0x7c] sm:$0x3]
        %v1910 = vld [vmem:[%s1877 + $0x80] sm:$0xf]
        %v1911 = vld [vmem:[%s1877 + $0x84] sm:$0xf]
        %v1912 = vld [vmem:[%s1877 + $0x88] sm:$0xf]
        %v1913 = vld [vmem:[%s1877 + $0x8c] sm:$0x3]
        %v1914 = vld [vmem:[%s1877 + $0x90] sm:$0xf]
        %v1915 = vld [vmem:[%s1877 + $0x94] sm:$0xf]
        %v1916 = vld [vmem:[%s1877 + $0x98] sm:$0xf]
        %v1917 = vld [vmem:[%s1877 + $0x9c] sm:$0x3]
        %v1918 = vld [vmem:[%s1877 + $0xa0] sm:$0xf]
        %v1919 = vld [vmem:[%s1877 + $0xa4] sm:$0xf]
        %v1920 = vld [vmem:[%s1877 + $0xa8] sm:$0xf]
        %v1921 = vld [vmem:[%s1877 + $0xac] sm:$0x3]
        %v1922 = vld [vmem:[%s1877 + $0xb0] sm:$0xf]
        %v1923 = vld [vmem:[%s1877 + $0xb4] sm:$0xf]
        %v1924 = vld [vmem:[%s1877 + $0xb8] sm:$0xf]
        %v1925 = vld [vmem:[%s1877 + $0xbc] sm:$0x3]
        %v1926 = vld [vmem:[%s1877 + $0xc0] sm:$0xf]
        %v1927 = vld [vmem:[%s1877 + $0xc4] sm:$0xf]
        %v1928 = vld [vmem:[%s1877 + $0xc8] sm:$0xf]
        %v1929 = vld [vmem:[%s1877 + $0xcc] sm:$0x3]
        %v1930 = vld [vmem:[%s1877 + $0xd0] sm:$0xf]
        %v1931 = vld [vmem:[%s1877 + $0xd4] sm:$0xf]
        %v1932 = vld [vmem:[%s1877 + $0xd8] sm:$0xf]
        %v1933 = vld [vmem:[%s1877 + $0xdc] sm:$0x3]
        %v1934 = vld [vmem:[%s1877 + $0xe0] sm:$0xf]
        %v1935 = vld [vmem:[%s1877 + $0xe4] sm:$0xf]
        %v1936 = vld [vmem:[%s1877 + $0xe8] sm:$0xf]
        %v1937 = vld [vmem:[%s1877 + $0xec] sm:$0x3]
        %v1938 = vld [vmem:[%s1877 + $0xf0] sm:$0xf]
        %v1939 = vld [vmem:[%s1877 + $0xf4] sm:$0xf]
        %v1940 = vld [vmem:[%s1877 + $0xf8] sm:$0xf]
        %v1941 = vld [vmem:[%s1877 + $0xfc] sm:$0x3]
        %v1942 = vld [vmem:[%s1877 + $0x100] sm:$0xf]
        %v1943 = vld [vmem:[%s1877 + $0x104] sm:$0xf]
        %v1944 = vld [vmem:[%s1877 + $0x108] sm:$0xf]
        %v1945 = vld [vmem:[%s1877 + $0x10c] sm:$0x3]
        %v1946 = vld [vmem:[%s1877 + $0x110] sm:$0xf]
        %v1947 = vld [vmem:[%s1877 + $0x114] sm:$0xf]
        %v1948 = vld [vmem:[%s1877 + $0x118] sm:$0xf]
        %v1949 = vld [vmem:[%s1877 + $0x11c] sm:$0x3]
        %v1950 = vld [vmem:[%s1877 + $0x120] sm:$0xf]
        %v1951 = vld [vmem:[%s1877 + $0x124] sm:$0xf]
        %v1952 = vld [vmem:[%s1877 + $0x128] sm:$0xf]
        %v1953 = vld [vmem:[%s1877 + $0x12c] sm:$0x3]
        %v1954 = vld [vmem:[%s1877 + $0x130] sm:$0xf]
        %v1955 = vld [vmem:[%s1877 + $0x134] sm:$0xf]
        %v1956 = vld [vmem:[%s1877 + $0x138] sm:$0xf]
        %v1957 = vld [vmem:[%s1877 + $0x13c] sm:$0x3]
        %v1958 = vld [vmem:[%s1877 + $0x140] sm:$0xf]
        %v1959 = vld [vmem:[%s1877 + $0x144] sm:$0xf]
        %v1960 = vld [vmem:[%s1877 + $0x148] sm:$0xf]
        %v1961 = vld [vmem:[%s1877 + $0x14c] sm:$0x3]
        %v1962 = vld [vmem:[%s1877 + $0x150] sm:$0xf]
        %v1963 = vld [vmem:[%s1877 + $0x154] sm:$0xf]
        %v1964 = vld [vmem:[%s1877 + $0x158] sm:$0xf]
        %v1965 = vld [vmem:[%s1877 + $0x15c] sm:$0x3]
        %v1966 = vld [vmem:[%s1877 + $0x160] sm:$0xf]
        %v1967 = vld [vmem:[%s1877 + $0x164] sm:$0xf]
        %v1968 = vld [vmem:[%s1877 + $0x168] sm:$0xf]
        %v1969 = vld [vmem:[%s1877 + $0x16c] sm:$0x3]
        %v1970 = vld [vmem:[%s1877 + $0x170] sm:$0xf]
        %v1971 = vld [vmem:[%s1877 + $0x174] sm:$0xf]
        %v1972 = vld [vmem:[%s1877 + $0x178] sm:$0xf]
        %v1973 = vld [vmem:[%s1877 + $0x17c] sm:$0x3]
        %v1974 = vmax.bf16 %v1781, %v1878
        %v1975 = vmax.bf16 %v1782, %v1879
        %v1976 = vmax.bf16 %v1783, %v1880
        %v1977 = vmax.bf16 %v1784, %v1881
        %v1978 = vmax.bf16 %v1785, %v1882
        %v1979 = vmax.bf16 %v1786, %v1883
        %v1980 = vmax.bf16 %v1787, %v1884
        %v1981 = vmax.bf16 %v1788, %v1885
        %v1982 = vmax.bf16 %v1789, %v1886
        %v1983 = vmax.bf16 %v1790, %v1887
        %v1984 = vmax.bf16 %v1791, %v1888
        %v1985 = vmax.bf16 %v1792, %v1889
        %v1986 = vmax.bf16 %v1793, %v1890
        %v1987 = vmax.bf16 %v1794, %v1891
        %v1988 = vmax.bf16 %v1795, %v1892
        %v1989 = vmax.bf16 %v1796, %v1893
        %v1990 = vmax.bf16 %v1797, %v1894
        %v1991 = vmax.bf16 %v1798, %v1895
        %v1992 = vmax.bf16 %v1799, %v1896
        %v1993 = vmax.bf16 %v1800, %v1897
        %v1994 = vmax.bf16 %v1801, %v1898
        %v1995 = vmax.bf16 %v1802, %v1899
        %v1996 = vmax.bf16 %v1803, %v1900
        %v1997 = vmax.bf16 %v1804, %v1901
        %v1998 = vmax.bf16 %v1805, %v1902
        %v1999 = vmax.bf16 %v1806, %v1903
        %v2000 = vmax.bf16 %v1807, %v1904
        %v2001 = vmax.bf16 %v1808, %v1905
        %v2002 = vmax.bf16 %v1809, %v1906
        %v2003 = vmax.bf16 %v1810, %v1907
        %v2004 = vmax.bf16 %v1811, %v1908
        %v2005 = vmax.bf16 %v1812, %v1909
        %v2006 = vmax.bf16 %v1813, %v1910
        %v2007 = vmax.bf16 %v1814, %v1911
        %v2008 = vmax.bf16 %v1815, %v1912
        %v2009 = vmax.bf16 %v1816, %v1913
        %v2010 = vmax.bf16 %v1817, %v1914
        %v2011 = vmax.bf16 %v1818, %v1915
        %v2012 = vmax.bf16 %v1819, %v1916
        %v2013 = vmax.bf16 %v1820, %v1917
        %v2014 = vmax.bf16 %v1821, %v1918
        %v2015 = vmax.bf16 %v1822, %v1919
        %v2016 = vmax.bf16 %v1823, %v1920
        %v2017 = vmax.bf16 %v1824, %v1921
        %v2018 = vmax.bf16 %v1825, %v1922
        %v2019 = vmax.bf16 %v1826, %v1923
        %v2020 = vmax.bf16 %v1827, %v1924
        %v2021 = vmax.bf16 %v1828, %v1925
        %v2022 = vmax.bf16 %v1829, %v1926
        %v2023 = vmax.bf16 %v1830, %v1927
        %v2024 = vmax.bf16 %v1831, %v1928
        %v2025 = vmax.bf16 %v1832, %v1929
        %v2026 = vmax.bf16 %v1833, %v1930
        %v2027 = vmax.bf16 %v1834, %v1931
        %v2028 = vmax.bf16 %v1835, %v1932
        %v2029 = vmax.bf16 %v1836, %v1933
        %v2030 = vmax.bf16 %v1837, %v1934
        %v2031 = vmax.bf16 %v1838, %v1935
        %v2032 = vmax.bf16 %v1839, %v1936
        %v2033 = vmax.bf16 %v1840, %v1937
        %v2034 = vmax.bf16 %v1841, %v1938
        %v2035 = vmax.bf16 %v1842, %v1939
        %v2036 = vmax.bf16 %v1843, %v1940
        %v2037 = vmax.bf16 %v1844, %v1941
        %v2038 = vmax.bf16 %v1845, %v1942
        %v2039 = vmax.bf16 %v1846, %v1943
        %v2040 = vmax.bf16 %v1847, %v1944
        %v2041 = vmax.bf16 %v1848, %v1945
        %v2042 = vmax.bf16 %v1849, %v1946
        %v2043 = vmax.bf16 %v1850, %v1947
        %v2044 = vmax.bf16 %v1851, %v1948
        %v2045 = vmax.bf16 %v1852, %v1949
        %v2046 = vmax.bf16 %v1853, %v1950
        %v2047 = vmax.bf16 %v1854, %v1951
        %v2048 = vmax.bf16 %v1855, %v1952
        %v2049 = vmax.bf16 %v1856, %v1953
        %v2050 = vmax.bf16 %v1857, %v1954
        %v2051 = vmax.bf16 %v1858, %v1955
        %v2052 = vmax.bf16 %v1859, %v1956
        %v2053 = vmax.bf16 %v1860, %v1957
        %v2054 = vmax.bf16 %v1861, %v1958
        %v2055 = vmax.bf16 %v1862, %v1959
        %v2056 = vmax.bf16 %v1863, %v1960
        %v2057 = vmax.bf16 %v1864, %v1961
        %v2058 = vmax.bf16 %v1865, %v1962
        %v2059 = vmax.bf16 %v1866, %v1963
        %v2060 = vmax.bf16 %v1867, %v1964
        %v2061 = vmax.bf16 %v1868, %v1965
        %v2062 = vmax.bf16 %v1869, %v1966
        %v2063 = vmax.bf16 %v1870, %v1967
        %v2064 = vmax.bf16 %v1871, %v1968
        %v2065 = vmax.bf16 %v1872, %v1969
        %v2066 = vmax.bf16 %v1873, %v1970
        %v2067 = vmax.bf16 %v1874, %v1971
        %v2068 = vmax.bf16 %v1875, %v1972
        %v2069 = vmax.bf16 %v1876, %v1973
        %vm2070 = vsmask.f32 3328
        %vm2071 = vsmask.f32 7440
        %vm2072 = vmor %vm2070, %vm2071
        %v2074 = vshrl.u32 %v1974, 16
        %v2076 = vrot.slane %v2074, 4
        %v2077 = vshll.u32 %v1974, 16
        %v2079 = vrot.slane %v2077, 5
        %v2080 = vor.u32 %v2076, %v2079
        %v2081 = vrot.slane %v2080, 4
        %v2083 = vshll.u32 %v1975, 16
        %v2085 = vrot.slane %v2083, 5
        %v2086 = vsel %vm2072, %v2081, %v2085
        %v2087 = vshrl.u32 %v1975, 16
        %v2089 = vrot.slane %v2087, 4
        %v2090 = vor.u32 %v2089, %v2085
        %v2091 = vrot.slane %v2090, 4
        %v2093 = vshll.u32 %v1976, 16
        %v2095 = vrot.slane %v2093, 5
        %v2096 = vsel %vm2072, %v2091, %v2095
        %v2097 = vshrl.u32 %v1976, 16
        %v2099 = vrot.slane %v2097, 4
        %v2100 = vor.u32 %v2099, %v2095
        %v2101 = vrot.slane %v2100, 4
        %v2103 = vshll.u32 %v1977, 16
        %v2105 = vrot.slane %v2103, 5
        %v2106 = vsel %vm2072, %v2101, %v2105
        %v2108 = vshrl.u32 %v1978, 16
        %v2110 = vrot.slane %v2108, 4
        %v2111 = vshll.u32 %v1978, 16
        %v2113 = vrot.slane %v2111, 5
        %v2114 = vor.u32 %v2110, %v2113
        %v2115 = vrot.slane %v2114, 4
        %v2117 = vshll.u32 %v1979, 16
        %v2119 = vrot.slane %v2117, 5
        %v2120 = vsel %vm2072, %v2115, %v2119
        %v2121 = vshrl.u32 %v1979, 16
        %v2123 = vrot.slane %v2121, 4
        %v2124 = vor.u32 %v2123, %v2119
        %v2125 = vrot.slane %v2124, 4
        %v2127 = vshll.u32 %v1980, 16
        %v2129 = vrot.slane %v2127, 5
        %v2130 = vsel %vm2072, %v2125, %v2129
        %v2131 = vshrl.u32 %v1980, 16
        %v2133 = vrot.slane %v2131, 4
        %v2134 = vor.u32 %v2133, %v2129
        %v2135 = vrot.slane %v2134, 4
        %v2137 = vshll.u32 %v1981, 16
        %v2139 = vrot.slane %v2137, 5
        %v2140 = vsel %vm2072, %v2135, %v2139
        %v2142 = vshrl.u32 %v1982, 16
        %v2144 = vrot.slane %v2142, 4
        %v2145 = vshll.u32 %v1982, 16
        %v2147 = vrot.slane %v2145, 5
        %v2148 = vor.u32 %v2144, %v2147
        %v2149 = vrot.slane %v2148, 4
        %v2151 = vshll.u32 %v1983, 16
        %v2153 = vrot.slane %v2151, 5
        %v2154 = vsel %vm2072, %v2149, %v2153
        %v2155 = vshrl.u32 %v1983, 16
        %v2157 = vrot.slane %v2155, 4
        %v2158 = vor.u32 %v2157, %v2153
        %v2159 = vrot.slane %v2158, 4
        %v2161 = vshll.u32 %v1984, 16
        %v2163 = vrot.slane %v2161, 5
        %v2164 = vsel %vm2072, %v2159, %v2163
        %v2165 = vshrl.u32 %v1984, 16
        %v2167 = vrot.slane %v2165, 4
        %v2168 = vor.u32 %v2167, %v2163
        %v2169 = vrot.slane %v2168, 4
        %v2171 = vshll.u32 %v1985, 16
        %v2173 = vrot.slane %v2171, 5
        %v2174 = vsel %vm2072, %v2169, %v2173
        %v2176 = vshrl.u32 %v1986, 16
        %v2178 = vrot.slane %v2176, 4
        %v2179 = vshll.u32 %v1986, 16
        %v2181 = vrot.slane %v2179, 5
        %v2182 = vor.u32 %v2178, %v2181
        %v2183 = vrot.slane %v2182, 4
        %v2185 = vshll.u32 %v1987, 16
        %v2187 = vrot.slane %v2185, 5
        %v2188 = vsel %vm2072, %v2183, %v2187
        %v2189 = vshrl.u32 %v1987, 16
        %v2191 = vrot.slane %v2189, 4
        %v2192 = vor.u32 %v2191, %v2187
        %v2193 = vrot.slane %v2192, 4
        %v2195 = vshll.u32 %v1988, 16
        %v2197 = vrot.slane %v2195, 5
        %v2198 = vsel %vm2072, %v2193, %v2197
        %v2199 = vshrl.u32 %v1988, 16
        %v2201 = vrot.slane %v2199, 4
        %v2202 = vor.u32 %v2201, %v2197
        %v2203 = vrot.slane %v2202, 4
        %v2205 = vshll.u32 %v1989, 16
        %v2207 = vrot.slane %v2205, 5
        %v2208 = vsel %vm2072, %v2203, %v2207
        %v2210 = vshrl.u32 %v1990, 16
        %v2212 = vrot.slane %v2210, 4
        %v2213 = vshll.u32 %v1990, 16
        %v2215 = vrot.slane %v2213, 5
        %v2216 = vor.u32 %v2212, %v2215
        %v2217 = vrot.slane %v2216, 4
        %v2219 = vshll.u32 %v1991, 16
        %v2221 = vrot.slane %v2219, 5
        %v2222 = vsel %vm2072, %v2217, %v2221
        %v2223 = vshrl.u32 %v1991, 16
        %v2225 = vrot.slane %v2223, 4
        %v2226 = vor.u32 %v2225, %v2221
        %v2227 = vrot.slane %v2226, 4
        %v2229 = vshll.u32 %v1992, 16
        %v2231 = vrot.slane %v2229, 5
        %v2232 = vsel %vm2072, %v2227, %v2231
        %v2233 = vshrl.u32 %v1992, 16
        %v2235 = vrot.slane %v2233, 4
        %v2236 = vor.u32 %v2235, %v2231
        %v2237 = vrot.slane %v2236, 4
        %v2239 = vshll.u32 %v1993, 16
        %v2241 = vrot.slane %v2239, 5
        %v2242 = vsel %vm2072, %v2237, %v2241
        %v2244 = vshrl.u32 %v1994, 16
        %v2246 = vrot.slane %v2244, 4
        %v2247 = vshll.u32 %v1994, 16
        %v2249 = vrot.slane %v2247, 5
        %v2250 = vor.u32 %v2246, %v2249
        %v2251 = vrot.slane %v2250, 4
        %v2253 = vshll.u32 %v1995, 16
        %v2255 = vrot.slane %v2253, 5
        %v2256 = vsel %vm2072, %v2251, %v2255
        %v2257 = vshrl.u32 %v1995, 16
        %v2259 = vrot.slane %v2257, 4
        %v2260 = vor.u32 %v2259, %v2255
        %v2261 = vrot.slane %v2260, 4
        %v2263 = vshll.u32 %v1996, 16
        %v2265 = vrot.slane %v2263, 5
        %v2266 = vsel %vm2072, %v2261, %v2265
        %v2267 = vshrl.u32 %v1996, 16
        %v2269 = vrot.slane %v2267, 4
        %v2270 = vor.u32 %v2269, %v2265
        %v2271 = vrot.slane %v2270, 4
        %v2273 = vshll.u32 %v1997, 16
        %v2275 = vrot.slane %v2273, 5
        %v2276 = vsel %vm2072, %v2271, %v2275
        %v2278 = vshrl.u32 %v1998, 16
        %v2280 = vrot.slane %v2278, 4
        %v2281 = vshll.u32 %v1998, 16
        %v2283 = vrot.slane %v2281, 5
        %v2284 = vor.u32 %v2280, %v2283
        %v2285 = vrot.slane %v2284, 4
        %v2287 = vshll.u32 %v1999, 16
        %v2289 = vrot.slane %v2287, 5
        %v2290 = vsel %vm2072, %v2285, %v2289
        %v2291 = vshrl.u32 %v1999, 16
        %v2293 = vrot.slane %v2291, 4
        %v2294 = vor.u32 %v2293, %v2289
        %v2295 = vrot.slane %v2294, 4
        %v2297 = vshll.u32 %v2000, 16
        %v2299 = vrot.slane %v2297, 5
        %v2300 = vsel %vm2072, %v2295, %v2299
        %v2301 = vshrl.u32 %v2000, 16
        %v2303 = vrot.slane %v2301, 4
        %v2304 = vor.u32 %v2303, %v2299
        %v2305 = vrot.slane %v2304, 4
        %v2307 = vshll.u32 %v2001, 16
        %v2309 = vrot.slane %v2307, 5
        %v2310 = vsel %vm2072, %v2305, %v2309
        %v2312 = vshrl.u32 %v2002, 16
        %v2314 = vrot.slane %v2312, 4
        %v2315 = vshll.u32 %v2002, 16
        %v2317 = vrot.slane %v2315, 5
        %v2318 = vor.u32 %v2314, %v2317
        %v2319 = vrot.slane %v2318, 4
        %v2321 = vshll.u32 %v2003, 16
        %v2323 = vrot.slane %v2321, 5
        %v2324 = vsel %vm2072, %v2319, %v2323
        %v2325 = vshrl.u32 %v2003, 16
        %v2327 = vrot.slane %v2325, 4
        %v2328 = vor.u32 %v2327, %v2323
        %v2329 = vrot.slane %v2328, 4
        %v2331 = vshll.u32 %v2004, 16
        %v2333 = vrot.slane %v2331, 5
        %v2334 = vsel %vm2072, %v2329, %v2333
        %v2335 = vshrl.u32 %v2004, 16
        %v2337 = vrot.slane %v2335, 4
        %v2338 = vor.u32 %v2337, %v2333
        %v2339 = vrot.slane %v2338, 4
        %v2341 = vshll.u32 %v2005, 16
        %v2343 = vrot.slane %v2341, 5
        %v2344 = vsel %vm2072, %v2339, %v2343
        %v2346 = vshrl.u32 %v2006, 16
        %v2348 = vrot.slane %v2346, 4
        %v2349 = vshll.u32 %v2006, 16
        %v2351 = vrot.slane %v2349, 5
        %v2352 = vor.u32 %v2348, %v2351
        %v2353 = vrot.slane %v2352, 4
        %v2355 = vshll.u32 %v2007, 16
        %v2357 = vrot.slane %v2355, 5
        %v2358 = vsel %vm2072, %v2353, %v2357
        %v2359 = vshrl.u32 %v2007, 16
        %v2361 = vrot.slane %v2359, 4
        %v2362 = vor.u32 %v2361, %v2357
        %v2363 = vrot.slane %v2362, 4
        %v2365 = vshll.u32 %v2008, 16
        %v2367 = vrot.slane %v2365, 5
        %v2368 = vsel %vm2072, %v2363, %v2367
        %v2369 = vshrl.u32 %v2008, 16
        %v2371 = vrot.slane %v2369, 4
        %v2372 = vor.u32 %v2371, %v2367
        %v2373 = vrot.slane %v2372, 4
        %v2375 = vshll.u32 %v2009, 16
        %v2377 = vrot.slane %v2375, 5
        %v2378 = vsel %vm2072, %v2373, %v2377
        %v2380 = vshrl.u32 %v2010, 16
        %v2382 = vrot.slane %v2380, 4
        %v2383 = vshll.u32 %v2010, 16
        %v2385 = vrot.slane %v2383, 5
        %v2386 = vor.u32 %v2382, %v2385
        %v2387 = vrot.slane %v2386, 4
        %v2389 = vshll.u32 %v2011, 16
        %v2391 = vrot.slane %v2389, 5
        %v2392 = vsel %vm2072, %v2387, %v2391
        %v2393 = vshrl.u32 %v2011, 16
        %v2395 = vrot.slane %v2393, 4
        %v2396 = vor.u32 %v2395, %v2391
        %v2397 = vrot.slane %v2396, 4
        %v2399 = vshll.u32 %v2012, 16
        %v2401 = vrot.slane %v2399, 5
        %v2402 = vsel %vm2072, %v2397, %v2401
        %v2403 = vshrl.u32 %v2012, 16
        %v2405 = vrot.slane %v2403, 4
        %v2406 = vor.u32 %v2405, %v2401
        %v2407 = vrot.slane %v2406, 4
        %v2409 = vshll.u32 %v2013, 16
        %v2411 = vrot.slane %v2409, 5
        %v2412 = vsel %vm2072, %v2407, %v2411
        %v2414 = vshrl.u32 %v2014, 16
        %v2416 = vrot.slane %v2414, 4
        %v2417 = vshll.u32 %v2014, 16
        %v2419 = vrot.slane %v2417, 5
        %v2420 = vor.u32 %v2416, %v2419
        %v2421 = vrot.slane %v2420, 4
        %v2423 = vshll.u32 %v2015, 16
        %v2425 = vrot.slane %v2423, 5
        %v2426 = vsel %vm2072, %v2421, %v2425
        %v2427 = vshrl.u32 %v2015, 16
        %v2429 = vrot.slane %v2427, 4
        %v2430 = vor.u32 %v2429, %v2425
        %v2431 = vrot.slane %v2430, 4
        %v2433 = vshll.u32 %v2016, 16
        %v2435 = vrot.slane %v2433, 5
        %v2436 = vsel %vm2072, %v2431, %v2435
        %v2437 = vshrl.u32 %v2016, 16
        %v2439 = vrot.slane %v2437, 4
        %v2440 = vor.u32 %v2439, %v2435
        %v2441 = vrot.slane %v2440, 4
        %v2443 = vshll.u32 %v2017, 16
        %v2445 = vrot.slane %v2443, 5
        %v2446 = vsel %vm2072, %v2441, %v2445
        %v2448 = vshrl.u32 %v2018, 16
        %v2450 = vrot.slane %v2448, 4
        %v2451 = vshll.u32 %v2018, 16
        %v2453 = vrot.slane %v2451, 5
        %v2454 = vor.u32 %v2450, %v2453
        %v2455 = vrot.slane %v2454, 4
        %v2457 = vshll.u32 %v2019, 16
        %v2459 = vrot.slane %v2457, 5
        %v2460 = vsel %vm2072, %v2455, %v2459
        %v2461 = vshrl.u32 %v2019, 16
        %v2463 = vrot.slane %v2461, 4
        %v2464 = vor.u32 %v2463, %v2459
        %v2465 = vrot.slane %v2464, 4
        %v2467 = vshll.u32 %v2020, 16
        %v2469 = vrot.slane %v2467, 5
        %v2470 = vsel %vm2072, %v2465, %v2469
        %v2471 = vshrl.u32 %v2020, 16
        %v2473 = vrot.slane %v2471, 4
        %v2474 = vor.u32 %v2473, %v2469
        %v2475 = vrot.slane %v2474, 4
        %v2477 = vshll.u32 %v2021, 16
        %v2479 = vrot.slane %v2477, 5
        %v2480 = vsel %vm2072, %v2475, %v2479
        %v2482 = vshrl.u32 %v2022, 16
        %v2484 = vrot.slane %v2482, 4
        %v2485 = vshll.u32 %v2022, 16
        %v2487 = vrot.slane %v2485, 5
        %v2488 = vor.u32 %v2484, %v2487
        %v2489 = vrot.slane %v2488, 4
        %v2491 = vshll.u32 %v2023, 16
        %v2493 = vrot.slane %v2491, 5
        %v2494 = vsel %vm2072, %v2489, %v2493
        %v2495 = vshrl.u32 %v2023, 16
        %v2497 = vrot.slane %v2495, 4
        %v2498 = vor.u32 %v2497, %v2493
        %v2499 = vrot.slane %v2498, 4
        %v2501 = vshll.u32 %v2024, 16
        %v2503 = vrot.slane %v2501, 5
        %v2504 = vsel %vm2072, %v2499, %v2503
        %v2505 = vshrl.u32 %v2024, 16
        %v2507 = vrot.slane %v2505, 4
        %v2508 = vor.u32 %v2507, %v2503
        %v2509 = vrot.slane %v2508, 4
        %v2511 = vshll.u32 %v2025, 16
        %v2513 = vrot.slane %v2511, 5
        %v2514 = vsel %vm2072, %v2509, %v2513
        %v2516 = vshrl.u32 %v2026, 16
        %v2518 = vrot.slane %v2516, 4
        %v2519 = vshll.u32 %v2026, 16
        %v2521 = vrot.slane %v2519, 5
        %v2522 = vor.u32 %v2518, %v2521
        %v2523 = vrot.slane %v2522, 4
        %v2525 = vshll.u32 %v2027, 16
        %v2527 = vrot.slane %v2525, 5
        %v2528 = vsel %vm2072, %v2523, %v2527
        %v2529 = vshrl.u32 %v2027, 16
        %v2531 = vrot.slane %v2529, 4
        %v2532 = vor.u32 %v2531, %v2527
        %v2533 = vrot.slane %v2532, 4
        %v2535 = vshll.u32 %v2028, 16
        %v2537 = vrot.slane %v2535, 5
        %v2538 = vsel %vm2072, %v2533, %v2537
        %v2539 = vshrl.u32 %v2028, 16
        %v2541 = vrot.slane %v2539, 4
        %v2542 = vor.u32 %v2541, %v2537
        %v2543 = vrot.slane %v2542, 4
        %v2545 = vshll.u32 %v2029, 16
        %v2547 = vrot.slane %v2545, 5
        %v2548 = vsel %vm2072, %v2543, %v2547
        %v2550 = vshrl.u32 %v2030, 16
        %v2552 = vrot.slane %v2550, 4
        %v2553 = vshll.u32 %v2030, 16
        %v2555 = vrot.slane %v2553, 5
        %v2556 = vor.u32 %v2552, %v2555
        %v2557 = vrot.slane %v2556, 4
        %v2559 = vshll.u32 %v2031, 16
        %v2561 = vrot.slane %v2559, 5
        %v2562 = vsel %vm2072, %v2557, %v2561
        %v2563 = vshrl.u32 %v2031, 16
        %v2565 = vrot.slane %v2563, 4
        %v2566 = vor.u32 %v2565, %v2561
        %v2567 = vrot.slane %v2566, 4
        %v2569 = vshll.u32 %v2032, 16
        %v2571 = vrot.slane %v2569, 5
        %v2572 = vsel %vm2072, %v2567, %v2571
        %v2573 = vshrl.u32 %v2032, 16
        %v2575 = vrot.slane %v2573, 4
        %v2576 = vor.u32 %v2575, %v2571
        %v2577 = vrot.slane %v2576, 4
        %v2579 = vshll.u32 %v2033, 16
        %v2581 = vrot.slane %v2579, 5
        %v2582 = vsel %vm2072, %v2577, %v2581
        %v2584 = vshrl.u32 %v2034, 16
        %v2586 = vrot.slane %v2584, 4
        %v2587 = vshll.u32 %v2034, 16
        %v2589 = vrot.slane %v2587, 5
        %v2590 = vor.u32 %v2586, %v2589
        %v2591 = vrot.slane %v2590, 4
        %v2593 = vshll.u32 %v2035, 16
        %v2595 = vrot.slane %v2593, 5
        %v2596 = vsel %vm2072, %v2591, %v2595
        %v2597 = vshrl.u32 %v2035, 16
        %v2599 = vrot.slane %v2597, 4
        %v2600 = vor.u32 %v2599, %v2595
        %v2601 = vrot.slane %v2600, 4
        %v2603 = vshll.u32 %v2036, 16
        %v2605 = vrot.slane %v2603, 5
        %v2606 = vsel %vm2072, %v2601, %v2605
        %v2607 = vshrl.u32 %v2036, 16
        %v2609 = vrot.slane %v2607, 4
        %v2610 = vor.u32 %v2609, %v2605
        %v2611 = vrot.slane %v2610, 4
        %v2613 = vshll.u32 %v2037, 16
        %v2615 = vrot.slane %v2613, 5
        %v2616 = vsel %vm2072, %v2611, %v2615
        %v2618 = vshrl.u32 %v2038, 16
        %v2620 = vrot.slane %v2618, 4
        %v2621 = vshll.u32 %v2038, 16
        %v2623 = vrot.slane %v2621, 5
        %v2624 = vor.u32 %v2620, %v2623
        %v2625 = vrot.slane %v2624, 4
        %v2627 = vshll.u32 %v2039, 16
        %v2629 = vrot.slane %v2627, 5
        %v2630 = vsel %vm2072, %v2625, %v2629
        %v2631 = vshrl.u32 %v2039, 16
        %v2633 = vrot.slane %v2631, 4
        %v2634 = vor.u32 %v2633, %v2629
        %v2635 = vrot.slane %v2634, 4
        %v2637 = vshll.u32 %v2040, 16
        %v2639 = vrot.slane %v2637, 5
        %v2640 = vsel %vm2072, %v2635, %v2639
        %v2641 = vshrl.u32 %v2040, 16
        %v2643 = vrot.slane %v2641, 4
        %v2644 = vor.u32 %v2643, %v2639
        %v2645 = vrot.slane %v2644, 4
        %v2647 = vshll.u32 %v2041, 16
        %v2649 = vrot.slane %v2647, 5
        %v2650 = vsel %vm2072, %v2645, %v2649
        %v2652 = vshrl.u32 %v2042, 16
        %v2654 = vrot.slane %v2652, 4
        %v2655 = vshll.u32 %v2042, 16
        %v2657 = vrot.slane %v2655, 5
        %v2658 = vor.u32 %v2654, %v2657
        %v2659 = vrot.slane %v2658, 4
        %v2661 = vshll.u32 %v2043, 16
        %v2663 = vrot.slane %v2661, 5
        %v2664 = vsel %vm2072, %v2659, %v2663
        %v2665 = vshrl.u32 %v2043, 16
        %v2667 = vrot.slane %v2665, 4
        %v2668 = vor.u32 %v2667, %v2663
        %v2669 = vrot.slane %v2668, 4
        %v2671 = vshll.u32 %v2044, 16
        %v2673 = vrot.slane %v2671, 5
        %v2674 = vsel %vm2072, %v2669, %v2673
        %v2675 = vshrl.u32 %v2044, 16
        %v2677 = vrot.slane %v2675, 4
        %v2678 = vor.u32 %v2677, %v2673
        %v2679 = vrot.slane %v2678, 4
        %v2681 = vshll.u32 %v2045, 16
        %v2683 = vrot.slane %v2681, 5
        %v2684 = vsel %vm2072, %v2679, %v2683
        %v2686 = vshrl.u32 %v2046, 16
        %v2688 = vrot.slane %v2686, 4
        %v2689 = vshll.u32 %v2046, 16
        %v2691 = vrot.slane %v2689, 5
        %v2692 = vor.u32 %v2688, %v2691
        %v2693 = vrot.slane %v2692, 4
        %v2695 = vshll.u32 %v2047, 16
        %v2697 = vrot.slane %v2695, 5
        %v2698 = vsel %vm2072, %v2693, %v2697
        %v2699 = vshrl.u32 %v2047, 16
        %v2701 = vrot.slane %v2699, 4
        %v2702 = vor.u32 %v2701, %v2697
        %v2703 = vrot.slane %v2702, 4
        %v2705 = vshll.u32 %v2048, 16
        %v2707 = vrot.slane %v2705, 5
        %v2708 = vsel %vm2072, %v2703, %v2707
        %v2709 = vshrl.u32 %v2048, 16
        %v2711 = vrot.slane %v2709, 4
        %v2712 = vor.u32 %v2711, %v2707
        %v2713 = vrot.slane %v2712, 4
        %v2715 = vshll.u32 %v2049, 16
        %v2717 = vrot.slane %v2715, 5
        %v2718 = vsel %vm2072, %v2713, %v2717
        %v2720 = vshrl.u32 %v2050, 16
        %v2722 = vrot.slane %v2720, 4
        %v2723 = vshll.u32 %v2050, 16
        %v2725 = vrot.slane %v2723, 5
        %v2726 = vor.u32 %v2722, %v2725
        %v2727 = vrot.slane %v2726, 4
        %v2729 = vshll.u32 %v2051, 16
        %v2731 = vrot.slane %v2729, 5
        %v2732 = vsel %vm2072, %v2727, %v2731
        %v2733 = vshrl.u32 %v2051, 16
        %v2735 = vrot.slane %v2733, 4
        %v2736 = vor.u32 %v2735, %v2731
        %v2737 = vrot.slane %v2736, 4
        %v2739 = vshll.u32 %v2052, 16
        %v2741 = vrot.slane %v2739, 5
        %v2742 = vsel %vm2072, %v2737, %v2741
        %v2743 = vshrl.u32 %v2052, 16
        %v2745 = vrot.slane %v2743, 4
        %v2746 = vor.u32 %v2745, %v2741
        %v2747 = vrot.slane %v2746, 4
        %v2749 = vshll.u32 %v2053, 16
        %v2751 = vrot.slane %v2749, 5
        %v2752 = vsel %vm2072, %v2747, %v2751
        %v2754 = vshrl.u32 %v2054, 16
        %v2756 = vrot.slane %v2754, 4
        %v2757 = vshll.u32 %v2054, 16
        %v2759 = vrot.slane %v2757, 5
        %v2760 = vor.u32 %v2756, %v2759
        %v2761 = vrot.slane %v2760, 4
        %v2763 = vshll.u32 %v2055, 16
        %v2765 = vrot.slane %v2763, 5
        %v2766 = vsel %vm2072, %v2761, %v2765
        %v2767 = vshrl.u32 %v2055, 16
        %v2769 = vrot.slane %v2767, 4
        %v2770 = vor.u32 %v2769, %v2765
        %v2771 = vrot.slane %v2770, 4
        %v2773 = vshll.u32 %v2056, 16
        %v2775 = vrot.slane %v2773, 5
        %v2776 = vsel %vm2072, %v2771, %v2775
        %v2777 = vshrl.u32 %v2056, 16
        %v2779 = vrot.slane %v2777, 4
        %v2780 = vor.u32 %v2779, %v2775
        %v2781 = vrot.slane %v2780, 4
        %v2783 = vshll.u32 %v2057, 16
        %v2785 = vrot.slane %v2783, 5
        %v2786 = vsel %vm2072, %v2781, %v2785
        %v2788 = vshrl.u32 %v2058, 16
        %v2790 = vrot.slane %v2788, 4
        %v2791 = vshll.u32 %v2058, 16
        %v2793 = vrot.slane %v2791, 5
        %v2794 = vor.u32 %v2790, %v2793
        %v2795 = vrot.slane %v2794, 4
        %v2797 = vshll.u32 %v2059, 16
        %v2799 = vrot.slane %v2797, 5
        %v2800 = vsel %vm2072, %v2795, %v2799
        %v2801 = vshrl.u32 %v2059, 16
        %v2803 = vrot.slane %v2801, 4
        %v2804 = vor.u32 %v2803, %v2799
        %v2805 = vrot.slane %v2804, 4
        %v2807 = vshll.u32 %v2060, 16
        %v2809 = vrot.slane %v2807, 5
        %v2810 = vsel %vm2072, %v2805, %v2809
        %v2811 = vshrl.u32 %v2060, 16
        %v2813 = vrot.slane %v2811, 4
        %v2814 = vor.u32 %v2813, %v2809
        %v2815 = vrot.slane %v2814, 4
        %v2817 = vshll.u32 %v2061, 16
        %v2819 = vrot.slane %v2817, 5
        %v2820 = vsel %vm2072, %v2815, %v2819
        %v2822 = vshrl.u32 %v2062, 16
        %v2824 = vrot.slane %v2822, 4
        %v2825 = vshll.u32 %v2062, 16
        %v2827 = vrot.slane %v2825, 5
        %v2828 = vor.u32 %v2824, %v2827
        %v2829 = vrot.slane %v2828, 4
        %v2831 = vshll.u32 %v2063, 16
        %v2833 = vrot.slane %v2831, 5
        %v2834 = vsel %vm2072, %v2829, %v2833
        %v2835 = vshrl.u32 %v2063, 16
        %v2837 = vrot.slane %v2835, 4
        %v2838 = vor.u32 %v2837, %v2833
        %v2839 = vrot.slane %v2838, 4
        %v2841 = vshll.u32 %v2064, 16
        %v2843 = vrot.slane %v2841, 5
        %v2844 = vsel %vm2072, %v2839, %v2843
        %v2845 = vshrl.u32 %v2064, 16
        %v2847 = vrot.slane %v2845, 4
        %v2848 = vor.u32 %v2847, %v2843
        %v2849 = vrot.slane %v2848, 4
        %v2851 = vshll.u32 %v2065, 16
        %v2853 = vrot.slane %v2851, 5
        %v2854 = vsel %vm2072, %v2849, %v2853
        %v2856 = vshrl.u32 %v2066, 16
        %v2858 = vrot.slane %v2856, 4
        %v2859 = vshll.u32 %v2066, 16
        %v2861 = vrot.slane %v2859, 5
        %v2862 = vor.u32 %v2858, %v2861
        %v2863 = vrot.slane %v2862, 4
        %v2865 = vshll.u32 %v2067, 16
        %v2867 = vrot.slane %v2865, 5
        %v2868 = vsel %vm2072, %v2863, %v2867
        %v2869 = vshrl.u32 %v2067, 16
        %v2871 = vrot.slane %v2869, 4
        %v2872 = vor.u32 %v2871, %v2867
        %v2873 = vrot.slane %v2872, 4
        %v2875 = vshll.u32 %v2068, 16
        %v2877 = vrot.slane %v2875, 5
        %v2878 = vsel %vm2072, %v2873, %v2877
        %v2879 = vshrl.u32 %v2068, 16
        %v2881 = vrot.slane %v2879, 4
        %v2882 = vor.u32 %v2881, %v2877
        %v2883 = vrot.slane %v2882, 4
        %v2885 = vshll.u32 %v2069, 16
        %v2887 = vrot.slane %v2885, 5
        %v2888 = vsel %vm2072, %v2883, %v2887
        %v2961 = vmax.bf16 %v1974, %v2086
        %v2962 = vmax.bf16 %v1975, %v2096
        %v2963 = vmax.bf16 %v1976, %v2106
        %v2964 = vmax.bf16 %v1978, %v2120
        %v2965 = vmax.bf16 %v1979, %v2130
        %v2966 = vmax.bf16 %v1980, %v2140
        %v2967 = vmax.bf16 %v1982, %v2154
        %v2968 = vmax.bf16 %v1983, %v2164
        %v2969 = vmax.bf16 %v1984, %v2174
        %v2970 = vmax.bf16 %v1986, %v2188
        %v2971 = vmax.bf16 %v1987, %v2198
        %v2972 = vmax.bf16 %v1988, %v2208
        %v2973 = vmax.bf16 %v1990, %v2222
        %v2974 = vmax.bf16 %v1991, %v2232
        %v2975 = vmax.bf16 %v1992, %v2242
        %v2976 = vmax.bf16 %v1994, %v2256
        %v2977 = vmax.bf16 %v1995, %v2266
        %v2978 = vmax.bf16 %v1996, %v2276
        %v2979 = vmax.bf16 %v1998, %v2290
        %v2980 = vmax.bf16 %v1999, %v2300
        %v2981 = vmax.bf16 %v2000, %v2310
        %v2982 = vmax.bf16 %v2002, %v2324
        %v2983 = vmax.bf16 %v2003, %v2334
        %v2984 = vmax.bf16 %v2004, %v2344
        %v2985 = vmax.bf16 %v2006, %v2358
        %v2986 = vmax.bf16 %v2007, %v2368
        %v2987 = vmax.bf16 %v2008, %v2378
        %v2988 = vmax.bf16 %v2010, %v2392
        %v2989 = vmax.bf16 %v2011, %v2402
        %v2990 = vmax.bf16 %v2012, %v2412
        %v2991 = vmax.bf16 %v2014, %v2426
        %v2992 = vmax.bf16 %v2015, %v2436
        %v2993 = vmax.bf16 %v2016, %v2446
        %v2994 = vmax.bf16 %v2018, %v2460
        %v2995 = vmax.bf16 %v2019, %v2470
        %v2996 = vmax.bf16 %v2020, %v2480
        %v2997 = vmax.bf16 %v2022, %v2494
        %v2998 = vmax.bf16 %v2023, %v2504
        %v2999 = vmax.bf16 %v2024, %v2514
        %v3000 = vmax.bf16 %v2026, %v2528
        %v3001 = vmax.bf16 %v2027, %v2538
        %v3002 = vmax.bf16 %v2028, %v2548
        %v3003 = vmax.bf16 %v2030, %v2562
        %v3004 = vmax.bf16 %v2031, %v2572
        %v3005 = vmax.bf16 %v2032, %v2582
        %v3006 = vmax.bf16 %v2034, %v2596
        %v3007 = vmax.bf16 %v2035, %v2606
        %v3008 = vmax.bf16 %v2036, %v2616
        %v3009 = vmax.bf16 %v2038, %v2630
        %v3010 = vmax.bf16 %v2039, %v2640
        %v3011 = vmax.bf16 %v2040, %v2650
        %v3012 = vmax.bf16 %v2042, %v2664
        %v3013 = vmax.bf16 %v2043, %v2674
        %v3014 = vmax.bf16 %v2044, %v2684
        %v3015 = vmax.bf16 %v2046, %v2698
        %v3016 = vmax.bf16 %v2047, %v2708
        %v3017 = vmax.bf16 %v2048, %v2718
        %v3018 = vmax.bf16 %v2050, %v2732
        %v3019 = vmax.bf16 %v2051, %v2742
        %v3020 = vmax.bf16 %v2052, %v2752
        %v3021 = vmax.bf16 %v2054, %v2766
        %v3022 = vmax.bf16 %v2055, %v2776
        %v3023 = vmax.bf16 %v2056, %v2786
        %v3024 = vmax.bf16 %v2058, %v2800
        %v3025 = vmax.bf16 %v2059, %v2810
        %v3026 = vmax.bf16 %v2060, %v2820
        %v3027 = vmax.bf16 %v2062, %v2834
        %v3028 = vmax.bf16 %v2063, %v2844
        %v3029 = vmax.bf16 %v2064, %v2854
        %v3030 = vmax.bf16 %v2066, %v2868
        %v3031 = vmax.bf16 %v2067, %v2878
        %v3032 = vmax.bf16 %v2068, %v2888
        %v3129 = vrot.slane %v1974, 5
        %v3130 = vrot.slane %v3129, 4
        %v3131 = vrot.slane %v1975, 5
        %v3132 = vsel %vm1022, %v3130, %v3131
        %v3133 = vrot.slane %v3131, 4
        %v3134 = vrot.slane %v1976, 5
        %v3135 = vsel %vm1022, %v3133, %v3134
        %v3136 = vrot.slane %v3134, 4
        %v3137 = vrot.slane %v1977, 5
        %v3138 = vsel %vm1022, %v3136, %v3137
        %v3139 = vrot.slane %v1978, 5
        %v3140 = vrot.slane %v3139, 4
        %v3141 = vrot.slane %v1979, 5
        %v3142 = vsel %vm1022, %v3140, %v3141
        %v3143 = vrot.slane %v3141, 4
        %v3144 = vrot.slane %v1980, 5
        %v3145 = vsel %vm1022, %v3143, %v3144
        %v3146 = vrot.slane %v3144, 4
        %v3147 = vrot.slane %v1981, 5
        %v3148 = vsel %vm1022, %v3146, %v3147
        %v3149 = vrot.slane %v1982, 5
        %v3150 = vrot.slane %v3149, 4
        %v3151 = vrot.slane %v1983, 5
        %v3152 = vsel %vm1022, %v3150, %v3151
        %v3153 = vrot.slane %v3151, 4
        %v3154 = vrot.slane %v1984, 5
        %v3155 = vsel %vm1022, %v3153, %v3154
        %v3156 = vrot.slane %v3154, 4
        %v3157 = vrot.slane %v1985, 5
        %v3158 = vsel %vm1022, %v3156, %v3157
        %v3159 = vrot.slane %v1986, 5
        %v3160 = vrot.slane %v3159, 4
        %v3161 = vrot.slane %v1987, 5
        %v3162 = vsel %vm1022, %v3160, %v3161
        %v3163 = vrot.slane %v3161, 4
        %v3164 = vrot.slane %v1988, 5
        %v3165 = vsel %vm1022, %v3163, %v3164
        %v3166 = vrot.slane %v3164, 4
        %v3167 = vrot.slane %v1989, 5
        %v3168 = vsel %vm1022, %v3166, %v3167
        %v3169 = vrot.slane %v1990, 5
        %v3170 = vrot.slane %v3169, 4
        %v3171 = vrot.slane %v1991, 5
        %v3172 = vsel %vm1022, %v3170, %v3171
        %v3173 = vrot.slane %v3171, 4
        %v3174 = vrot.slane %v1992, 5
        %v3175 = vsel %vm1022, %v3173, %v3174
        %v3176 = vrot.slane %v3174, 4
        %v3177 = vrot.slane %v1993, 5
        %v3178 = vsel %vm1022, %v3176, %v3177
        %v3179 = vrot.slane %v1994, 5
        %v3180 = vrot.slane %v3179, 4
        %v3181 = vrot.slane %v1995, 5
        %v3182 = vsel %vm1022, %v3180, %v3181
        %v3183 = vrot.slane %v3181, 4
        %v3184 = vrot.slane %v1996, 5
        %v3185 = vsel %vm1022, %v3183, %v3184
        %v3186 = vrot.slane %v3184, 4
        %v3187 = vrot.slane %v1997, 5
        %v3188 = vsel %vm1022, %v3186, %v3187
        %v3189 = vrot.slane %v1998, 5
        %v3190 = vrot.slane %v3189, 4
        %v3191 = vrot.slane %v1999, 5
        %v3192 = vsel %vm1022, %v3190, %v3191
        %v3193 = vrot.slane %v3191, 4
        %v3194 = vrot.slane %v2000, 5
        %v3195 = vsel %vm1022, %v3193, %v3194
        %v3196 = vrot.slane %v3194, 4
        %v3197 = vrot.slane %v2001, 5
        %v3198 = vsel %vm1022, %v3196, %v3197
        %v3199 = vrot.slane %v2002, 5
        %v3200 = vrot.slane %v3199, 4
        %v3201 = vrot.slane %v2003, 5
        %v3202 = vsel %vm1022, %v3200, %v3201
        %v3203 = vrot.slane %v3201, 4
        %v3204 = vrot.slane %v2004, 5
        %v3205 = vsel %vm1022, %v3203, %v3204
        %v3206 = vrot.slane %v3204, 4
        %v3207 = vrot.slane %v2005, 5
        %v3208 = vsel %vm1022, %v3206, %v3207
        %v3209 = vrot.slane %v2006, 5
        %v3210 = vrot.slane %v3209, 4
        %v3211 = vrot.slane %v2007, 5
        %v3212 = vsel %vm1022, %v3210, %v3211
        %v3213 = vrot.slane %v3211, 4
        %v3214 = vrot.slane %v2008, 5
        %v3215 = vsel %vm1022, %v3213, %v3214
        %v3216 = vrot.slane %v3214, 4
        %v3217 = vrot.slane %v2009, 5
        %v3218 = vsel %vm1022, %v3216, %v3217
        %v3219 = vrot.slane %v2010, 5
        %v3220 = vrot.slane %v3219, 4
        %v3221 = vrot.slane %v2011, 5
        %v3222 = vsel %vm1022, %v3220, %v3221
        %v3223 = vrot.slane %v3221, 4
        %v3224 = vrot.slane %v2012, 5
        %v3225 = vsel %vm1022, %v3223, %v3224
        %v3226 = vrot.slane %v3224, 4
        %v3227 = vrot.slane %v2013, 5
        %v3228 = vsel %vm1022, %v3226, %v3227
        %v3229 = vrot.slane %v2014, 5
        %v3230 = vrot.slane %v3229, 4
        %v3231 = vrot.slane %v2015, 5
        %v3232 = vsel %vm1022, %v3230, %v3231
        %v3233 = vrot.slane %v3231, 4
        %v3234 = vrot.slane %v2016, 5
        %v3235 = vsel %vm1022, %v3233, %v3234
        %v3236 = vrot.slane %v3234, 4
        %v3237 = vrot.slane %v2017, 5
        %v3238 = vsel %vm1022, %v3236, %v3237
        %v3239 = vrot.slane %v2018, 5
        %v3240 = vrot.slane %v3239, 4
        %v3241 = vrot.slane %v2019, 5
        %v3242 = vsel %vm1022, %v3240, %v3241
        %v3243 = vrot.slane %v3241, 4
        %v3244 = vrot.slane %v2020, 5
        %v3245 = vsel %vm1022, %v3243, %v3244
        %v3246 = vrot.slane %v3244, 4
        %v3247 = vrot.slane %v2021, 5
        %v3248 = vsel %vm1022, %v3246, %v3247
        %v3249 = vrot.slane %v2022, 5
        %v3250 = vrot.slane %v3249, 4
        %v3251 = vrot.slane %v2023, 5
        %v3252 = vsel %vm1022, %v3250, %v3251
        %v3253 = vrot.slane %v3251, 4
        %v3254 = vrot.slane %v2024, 5
        %v3255 = vsel %vm1022, %v3253, %v3254
        %v3256 = vrot.slane %v3254, 4
        %v3257 = vrot.slane %v2025, 5
        %v3258 = vsel %vm1022, %v3256, %v3257
        %v3259 = vrot.slane %v2026, 5
        %v3260 = vrot.slane %v3259, 4
        %v3261 = vrot.slane %v2027, 5
        %v3262 = vsel %vm1022, %v3260, %v3261
        %v3263 = vrot.slane %v3261, 4
        %v3264 = vrot.slane %v2028, 5
        %v3265 = vsel %vm1022, %v3263, %v3264
        %v3266 = vrot.slane %v3264, 4
        %v3267 = vrot.slane %v2029, 5
        %v3268 = vsel %vm1022, %v3266, %v3267
        %v3269 = vrot.slane %v2030, 5
        %v3270 = vrot.slane %v3269, 4
        %v3271 = vrot.slane %v2031, 5
        %v3272 = vsel %vm1022, %v3270, %v3271
        %v3273 = vrot.slane %v3271, 4
        %v3274 = vrot.slane %v2032, 5
        %v3275 = vsel %vm1022, %v3273, %v3274
        %v3276 = vrot.slane %v3274, 4
        %v3277 = vrot.slane %v2033, 5
        %v3278 = vsel %vm1022, %v3276, %v3277
        %v3279 = vrot.slane %v2034, 5
        %v3280 = vrot.slane %v3279, 4
        %v3281 = vrot.slane %v2035, 5
        %v3282 = vsel %vm1022, %v3280, %v3281
        %v3283 = vrot.slane %v3281, 4
        %v3284 = vrot.slane %v2036, 5
        %v3285 = vsel %vm1022, %v3283, %v3284
        %v3286 = vrot.slane %v3284, 4
        %v3287 = vrot.slane %v2037, 5
        %v3288 = vsel %vm1022, %v3286, %v3287
        %v3289 = vrot.slane %v2038, 5
        %v3290 = vrot.slane %v3289, 4
        %v3291 = vrot.slane %v2039, 5
        %v3292 = vsel %vm1022, %v3290, %v3291
        %v3293 = vrot.slane %v3291, 4
        %v3294 = vrot.slane %v2040, 5
        %v3295 = vsel %vm1022, %v3293, %v3294
        %v3296 = vrot.slane %v3294, 4
        %v3297 = vrot.slane %v2041, 5
        %v3298 = vsel %vm1022, %v3296, %v3297
        %v3299 = vrot.slane %v2042, 5
        %v3300 = vrot.slane %v3299, 4
        %v3301 = vrot.slane %v2043, 5
        %v3302 = vsel %vm1022, %v3300, %v3301
        %v3303 = vrot.slane %v3301, 4
        %v3304 = vrot.slane %v2044, 5
        %v3305 = vsel %vm1022, %v3303, %v3304
        %v3306 = vrot.slane %v3304, 4
        %v3307 = vrot.slane %v2045, 5
        %v3308 = vsel %vm1022, %v3306, %v3307
        %v3309 = vrot.slane %v2046, 5
        %v3310 = vrot.slane %v3309, 4
        %v3311 = vrot.slane %v2047, 5
        %v3312 = vsel %vm1022, %v3310, %v3311
        %v3313 = vrot.slane %v3311, 4
        %v3314 = vrot.slane %v2048, 5
        %v3315 = vsel %vm1022, %v3313, %v3314
        %v3316 = vrot.slane %v3314, 4
        %v3317 = vrot.slane %v2049, 5
        %v3318 = vsel %vm1022, %v3316, %v3317
        %v3319 = vrot.slane %v2050, 5
        %v3320 = vrot.slane %v3319, 4
        %v3321 = vrot.slane %v2051, 5
        %v3322 = vsel %vm1022, %v3320, %v3321
        %v3323 = vrot.slane %v3321, 4
        %v3324 = vrot.slane %v2052, 5
        %v3325 = vsel %vm1022, %v3323, %v3324
        %v3326 = vrot.slane %v3324, 4
        %v3327 = vrot.slane %v2053, 5
        %v3328 = vsel %vm1022, %v3326, %v3327
        %v3329 = vrot.slane %v2054, 5
        %v3330 = vrot.slane %v3329, 4
        %v3331 = vrot.slane %v2055, 5
        %v3332 = vsel %vm1022, %v3330, %v3331
        %v3333 = vrot.slane %v3331, 4
        %v3334 = vrot.slane %v2056, 5
        %v3335 = vsel %vm1022, %v3333, %v3334
        %v3336 = vrot.slane %v3334, 4
        %v3337 = vrot.slane %v2057, 5
        %v3338 = vsel %vm1022, %v3336, %v3337
        %v3339 = vrot.slane %v2058, 5
        %v3340 = vrot.slane %v3339, 4
        %v3341 = vrot.slane %v2059, 5
        %v3342 = vsel %vm1022, %v3340, %v3341
        %v3343 = vrot.slane %v3341, 4
        %v3344 = vrot.slane %v2060, 5
        %v3345 = vsel %vm1022, %v3343, %v3344
        %v3346 = vrot.slane %v3344, 4
        %v3347 = vrot.slane %v2061, 5
        %v3348 = vsel %vm1022, %v3346, %v3347
        %v3349 = vrot.slane %v2062, 5
        %v3350 = vrot.slane %v3349, 4
        %v3351 = vrot.slane %v2063, 5
        %v3352 = vsel %vm1022, %v3350, %v3351
        %v3353 = vrot.slane %v3351, 4
        %v3354 = vrot.slane %v2064, 5
        %v3355 = vsel %vm1022, %v3353, %v3354
        %v3356 = vrot.slane %v3354, 4
        %v3357 = vrot.slane %v2065, 5
        %v3358 = vsel %vm1022, %v3356, %v3357
        %v3359 = vrot.slane %v2066, 5
        %v3360 = vrot.slane %v3359, 4
        %v3361 = vrot.slane %v2067, 5
        %v3362 = vsel %vm1022, %v3360, %v3361
        %v3363 = vrot.slane %v3361, 4
        %v3364 = vrot.slane %v2068, 5
        %v3365 = vsel %vm1022, %v3363, %v3364
        %v3366 = vrot.slane %v3364, 4
        %v3367 = vrot.slane %v2069, 5
        %v3368 = vsel %vm1022, %v3366, %v3367
        %v3441 = vmax.bf16 %v2961, %v3132
        %v3442 = vmax.bf16 %v2962, %v3135
        %v3443 = vmax.bf16 %v2963, %v3138
        %v3444 = vmax.bf16 %v2964, %v3142
        %v3445 = vmax.bf16 %v2965, %v3145
        %v3446 = vmax.bf16 %v2966, %v3148
        %v3447 = vmax.bf16 %v2967, %v3152
        %v3448 = vmax.bf16 %v2968, %v3155
        %v3449 = vmax.bf16 %v2969, %v3158
        %v3450 = vmax.bf16 %v2970, %v3162
        %v3451 = vmax.bf16 %v2971, %v3165
        %v3452 = vmax.bf16 %v2972, %v3168
        %v3453 = vmax.bf16 %v2973, %v3172
        %v3454 = vmax.bf16 %v2974, %v3175
        %v3455 = vmax.bf16 %v2975, %v3178
        %v3456 = vmax.bf16 %v2976, %v3182
        %v3457 = vmax.bf16 %v2977, %v3185
        %v3458 = vmax.bf16 %v2978, %v3188
        %v3459 = vmax.bf16 %v2979, %v3192
        %v3460 = vmax.bf16 %v2980, %v3195
        %v3461 = vmax.bf16 %v2981, %v3198
        %v3462 = vmax.bf16 %v2982, %v3202
        %v3463 = vmax.bf16 %v2983, %v3205
        %v3464 = vmax.bf16 %v2984, %v3208
        %v3465 = vmax.bf16 %v2985, %v3212
        %v3466 = vmax.bf16 %v2986, %v3215
        %v3467 = vmax.bf16 %v2987, %v3218
        %v3468 = vmax.bf16 %v2988, %v3222
        %v3469 = vmax.bf16 %v2989, %v3225
        %v3470 = vmax.bf16 %v2990, %v3228
        %v3471 = vmax.bf16 %v2991, %v3232
        %v3472 = vmax.bf16 %v2992, %v3235
        %v3473 = vmax.bf16 %v2993, %v3238
        %v3474 = vmax.bf16 %v2994, %v3242
        %v3475 = vmax.bf16 %v2995, %v3245
        %v3476 = vmax.bf16 %v2996, %v3248
        %v3477 = vmax.bf16 %v2997, %v3252
        %v3478 = vmax.bf16 %v2998, %v3255
        %v3479 = vmax.bf16 %v2999, %v3258
        %v3480 = vmax.bf16 %v3000, %v3262
        %v3481 = vmax.bf16 %v3001, %v3265
        %v3482 = vmax.bf16 %v3002, %v3268
        %v3483 = vmax.bf16 %v3003, %v3272
        %v3484 = vmax.bf16 %v3004, %v3275
        %v3485 = vmax.bf16 %v3005, %v3278
        %v3486 = vmax.bf16 %v3006, %v3282
        %v3487 = vmax.bf16 %v3007, %v3285
        %v3488 = vmax.bf16 %v3008, %v3288
        %v3489 = vmax.bf16 %v3009, %v3292
        %v3490 = vmax.bf16 %v3010, %v3295
        %v3491 = vmax.bf16 %v3011, %v3298
        %v3492 = vmax.bf16 %v3012, %v3302
        %v3493 = vmax.bf16 %v3013, %v3305
        %v3494 = vmax.bf16 %v3014, %v3308
        %v3495 = vmax.bf16 %v3015, %v3312
        %v3496 = vmax.bf16 %v3016, %v3315
        %v3497 = vmax.bf16 %v3017, %v3318
        %v3498 = vmax.bf16 %v3018, %v3322
        %v3499 = vmax.bf16 %v3019, %v3325
        %v3500 = vmax.bf16 %v3020, %v3328
        %v3501 = vmax.bf16 %v3021, %v3332
        %v3502 = vmax.bf16 %v3022, %v3335
        %v3503 = vmax.bf16 %v3023, %v3338
        %v3504 = vmax.bf16 %v3024, %v3342
        %v3505 = vmax.bf16 %v3025, %v3345
        %v3506 = vmax.bf16 %v3026, %v3348
        %v3507 = vmax.bf16 %v3027, %v3352
        %v3508 = vmax.bf16 %v3028, %v3355
        %v3509 = vmax.bf16 %v3029, %v3358
        %v3510 = vmax.bf16 %v3030, %v3362
        %v3511 = vmax.bf16 %v3031, %v3365
        %v3512 = vmax.bf16 %v3032, %v3368
        %vm3513 = vsmask.f32 2304
        %vm3514 = vsmask.f32 6416
        %vm3515 = vmor %vm3513, %vm3514
        %v3516 = vrot.slane %v2074, 5
        %v3517 = vrot.slane %v2077, 6
        %v3518 = vor.u32 %v3516, %v3517
        %v3519 = vrot.slane %v3518, 4
        %v3520 = vrot.slane %v2087, 5
        %v3521 = vrot.slane %v2083, 6
        %v3522 = vor.u32 %v3520, %v3521
        %v3523 = vsel %vm3515, %v3519, %v3522
        %v3524 = vrot.slane %v3522, 4
        %v3525 = vrot.slane %v2097, 5
        %v3526 = vrot.slane %v2093, 6
        %v3527 = vor.u32 %v3525, %v3526
        %v3528 = vsel %vm3515, %v3524, %v3527
        %v3529 = vrot.slane %v3527, 4
        %v3530 = vshrl.u32 %v1977, 16
        %v3532 = vrot.slane %v3530, 5
        %v3533 = vrot.slane %v2103, 6
        %v3534 = vor.u32 %v3532, %v3533
        %v3535 = vsel %vm3515, %v3529, %v3534
        %v3536 = vrot.slane %v2108, 5
        %v3537 = vrot.slane %v2111, 6
        %v3538 = vor.u32 %v3536, %v3537
        %v3539 = vrot.slane %v3538, 4
        %v3540 = vrot.slane %v2121, 5
        %v3541 = vrot.slane %v2117, 6
        %v3542 = vor.u32 %v3540, %v3541
        %v3543 = vsel %vm3515, %v3539, %v3542
        %v3544 = vrot.slane %v3542, 4
        %v3545 = vrot.slane %v2131, 5
        %v3546 = vrot.slane %v2127, 6
        %v3547 = vor.u32 %v3545, %v3546
        %v3548 = vsel %vm3515, %v3544, %v3547
        %v3549 = vrot.slane %v3547, 4
        %v3550 = vshrl.u32 %v1981, 16
        %v3552 = vrot.slane %v3550, 5
        %v3553 = vrot.slane %v2137, 6
        %v3554 = vor.u32 %v3552, %v3553
        %v3555 = vsel %vm3515, %v3549, %v3554
        %v3556 = vrot.slane %v2142, 5
        %v3557 = vrot.slane %v2145, 6
        %v3558 = vor.u32 %v3556, %v3557
        %v3559 = vrot.slane %v3558, 4
        %v3560 = vrot.slane %v2155, 5
        %v3561 = vrot.slane %v2151, 6
        %v3562 = vor.u32 %v3560, %v3561
        %v3563 = vsel %vm3515, %v3559, %v3562
        %v3564 = vrot.slane %v3562, 4
        %v3565 = vrot.slane %v2165, 5
        %v3566 = vrot.slane %v2161, 6
        %v3567 = vor.u32 %v3565, %v3566
        %v3568 = vsel %vm3515, %v3564, %v3567
        %v3569 = vrot.slane %v3567, 4
        %v3570 = vshrl.u32 %v1985, 16
        %v3572 = vrot.slane %v3570, 5
        %v3573 = vrot.slane %v2171, 6
        %v3574 = vor.u32 %v3572, %v3573
        %v3575 = vsel %vm3515, %v3569, %v3574
        %v3576 = vrot.slane %v2176, 5
        %v3577 = vrot.slane %v2179, 6
        %v3578 = vor.u32 %v3576, %v3577
        %v3579 = vrot.slane %v3578, 4
        %v3580 = vrot.slane %v2189, 5
        %v3581 = vrot.slane %v2185, 6
        %v3582 = vor.u32 %v3580, %v3581
        %v3583 = vsel %vm3515, %v3579, %v3582
        %v3584 = vrot.slane %v3582, 4
        %v3585 = vrot.slane %v2199, 5
        %v3586 = vrot.slane %v2195, 6
        %v3587 = vor.u32 %v3585, %v3586
        %v3588 = vsel %vm3515, %v3584, %v3587
        %v3589 = vrot.slane %v3587, 4
        %v3590 = vshrl.u32 %v1989, 16
        %v3592 = vrot.slane %v3590, 5
        %v3593 = vrot.slane %v2205, 6
        %v3594 = vor.u32 %v3592, %v3593
        %v3595 = vsel %vm3515, %v3589, %v3594
        %v3596 = vrot.slane %v2210, 5
        %v3597 = vrot.slane %v2213, 6
        %v3598 = vor.u32 %v3596, %v3597
        %v3599 = vrot.slane %v3598, 4
        %v3600 = vrot.slane %v2223, 5
        %v3601 = vrot.slane %v2219, 6
        %v3602 = vor.u32 %v3600, %v3601
        %v3603 = vsel %vm3515, %v3599, %v3602
        %v3604 = vrot.slane %v3602, 4
        %v3605 = vrot.slane %v2233, 5
        %v3606 = vrot.slane %v2229, 6
        %v3607 = vor.u32 %v3605, %v3606
        %v3608 = vsel %vm3515, %v3604, %v3607
        %v3609 = vrot.slane %v3607, 4
        %v3610 = vshrl.u32 %v1993, 16
        %v3612 = vrot.slane %v3610, 5
        %v3613 = vrot.slane %v2239, 6
        %v3614 = vor.u32 %v3612, %v3613
        %v3615 = vsel %vm3515, %v3609, %v3614
        %v3616 = vrot.slane %v2244, 5
        %v3617 = vrot.slane %v2247, 6
        %v3618 = vor.u32 %v3616, %v3617
        %v3619 = vrot.slane %v3618, 4
        %v3620 = vrot.slane %v2257, 5
        %v3621 = vrot.slane %v2253, 6
        %v3622 = vor.u32 %v3620, %v3621
        %v3623 = vsel %vm3515, %v3619, %v3622
        %v3624 = vrot.slane %v3622, 4
        %v3625 = vrot.slane %v2267, 5
        %v3626 = vrot.slane %v2263, 6
        %v3627 = vor.u32 %v3625, %v3626
        %v3628 = vsel %vm3515, %v3624, %v3627
        %v3629 = vrot.slane %v3627, 4
        %v3630 = vshrl.u32 %v1997, 16
        %v3632 = vrot.slane %v3630, 5
        %v3633 = vrot.slane %v2273, 6
        %v3634 = vor.u32 %v3632, %v3633
        %v3635 = vsel %vm3515, %v3629, %v3634
        %v3636 = vrot.slane %v2278, 5
        %v3637 = vrot.slane %v2281, 6
        %v3638 = vor.u32 %v3636, %v3637
        %v3639 = vrot.slane %v3638, 4
        %v3640 = vrot.slane %v2291, 5
        %v3641 = vrot.slane %v2287, 6
        %v3642 = vor.u32 %v3640, %v3641
        %v3643 = vsel %vm3515, %v3639, %v3642
        %v3644 = vrot.slane %v3642, 4
        %v3645 = vrot.slane %v2301, 5
        %v3646 = vrot.slane %v2297, 6
        %v3647 = vor.u32 %v3645, %v3646
        %v3648 = vsel %vm3515, %v3644, %v3647
        %v3649 = vrot.slane %v3647, 4
        %v3650 = vshrl.u32 %v2001, 16
        %v3652 = vrot.slane %v3650, 5
        %v3653 = vrot.slane %v2307, 6
        %v3654 = vor.u32 %v3652, %v3653
        %v3655 = vsel %vm3515, %v3649, %v3654
        %v3656 = vrot.slane %v2312, 5
        %v3657 = vrot.slane %v2315, 6
        %v3658 = vor.u32 %v3656, %v3657
        %v3659 = vrot.slane %v3658, 4
        %v3660 = vrot.slane %v2325, 5
        %v3661 = vrot.slane %v2321, 6
        %v3662 = vor.u32 %v3660, %v3661
        %v3663 = vsel %vm3515, %v3659, %v3662
        %v3664 = vrot.slane %v3662, 4
        %v3665 = vrot.slane %v2335, 5
        %v3666 = vrot.slane %v2331, 6
        %v3667 = vor.u32 %v3665, %v3666
        %v3668 = vsel %vm3515, %v3664, %v3667
        %v3669 = vrot.slane %v3667, 4
        %v3670 = vshrl.u32 %v2005, 16
        %v3672 = vrot.slane %v3670, 5
        %v3673 = vrot.slane %v2341, 6
        %v3674 = vor.u32 %v3672, %v3673
        %v3675 = vsel %vm3515, %v3669, %v3674
        %v3676 = vrot.slane %v2346, 5
        %v3677 = vrot.slane %v2349, 6
        %v3678 = vor.u32 %v3676, %v3677
        %v3679 = vrot.slane %v3678, 4
        %v3680 = vrot.slane %v2359, 5
        %v3681 = vrot.slane %v2355, 6
        %v3682 = vor.u32 %v3680, %v3681
        %v3683 = vsel %vm3515, %v3679, %v3682
        %v3684 = vrot.slane %v3682, 4
        %v3685 = vrot.slane %v2369, 5
        %v3686 = vrot.slane %v2365, 6
        %v3687 = vor.u32 %v3685, %v3686
        %v3688 = vsel %vm3515, %v3684, %v3687
        %v3689 = vrot.slane %v3687, 4
        %v3690 = vshrl.u32 %v2009, 16
        %v3692 = vrot.slane %v3690, 5
        %v3693 = vrot.slane %v2375, 6
        %v3694 = vor.u32 %v3692, %v3693
        %v3695 = vsel %vm3515, %v3689, %v3694
        %v3696 = vrot.slane %v2380, 5
        %v3697 = vrot.slane %v2383, 6
        %v3698 = vor.u32 %v3696, %v3697
        %v3699 = vrot.slane %v3698, 4
        %v3700 = vrot.slane %v2393, 5
        %v3701 = vrot.slane %v2389, 6
        %v3702 = vor.u32 %v3700, %v3701
        %v3703 = vsel %vm3515, %v3699, %v3702
        %v3704 = vrot.slane %v3702, 4
        %v3705 = vrot.slane %v2403, 5
        %v3706 = vrot.slane %v2399, 6
        %v3707 = vor.u32 %v3705, %v3706
        %v3708 = vsel %vm3515, %v3704, %v3707
        %v3709 = vrot.slane %v3707, 4
        %v3710 = vshrl.u32 %v2013, 16
        %v3712 = vrot.slane %v3710, 5
        %v3713 = vrot.slane %v2409, 6
        %v3714 = vor.u32 %v3712, %v3713
        %v3715 = vsel %vm3515, %v3709, %v3714
        %v3716 = vrot.slane %v2414, 5
        %v3717 = vrot.slane %v2417, 6
        %v3718 = vor.u32 %v3716, %v3717
        %v3719 = vrot.slane %v3718, 4
        %v3720 = vrot.slane %v2427, 5
        %v3721 = vrot.slane %v2423, 6
        %v3722 = vor.u32 %v3720, %v3721
        %v3723 = vsel %vm3515, %v3719, %v3722
        %v3724 = vrot.slane %v3722, 4
        %v3725 = vrot.slane %v2437, 5
        %v3726 = vrot.slane %v2433, 6
        %v3727 = vor.u32 %v3725, %v3726
        %v3728 = vsel %vm3515, %v3724, %v3727
        %v3729 = vrot.slane %v3727, 4
        %v3730 = vshrl.u32 %v2017, 16
        %v3732 = vrot.slane %v3730, 5
        %v3733 = vrot.slane %v2443, 6
        %v3734 = vor.u32 %v3732, %v3733
        %v3735 = vsel %vm3515, %v3729, %v3734
        %v3736 = vrot.slane %v2448, 5
        %v3737 = vrot.slane %v2451, 6
        %v3738 = vor.u32 %v3736, %v3737
        %v3739 = vrot.slane %v3738, 4
        %v3740 = vrot.slane %v2461, 5
        %v3741 = vrot.slane %v2457, 6
        %v3742 = vor.u32 %v3740, %v3741
        %v3743 = vsel %vm3515, %v3739, %v3742
        %v3744 = vrot.slane %v3742, 4
        %v3745 = vrot.slane %v2471, 5
        %v3746 = vrot.slane %v2467, 6
        %v3747 = vor.u32 %v3745, %v3746
        %v3748 = vsel %vm3515, %v3744, %v3747
        %v3749 = vrot.slane %v3747, 4
        %v3750 = vshrl.u32 %v2021, 16
        %v3752 = vrot.slane %v3750, 5
        %v3753 = vrot.slane %v2477, 6
        %v3754 = vor.u32 %v3752, %v3753
        %v3755 = vsel %vm3515, %v3749, %v3754
        %v3756 = vrot.slane %v2482, 5
        %v3757 = vrot.slane %v2485, 6
        %v3758 = vor.u32 %v3756, %v3757
        %v3759 = vrot.slane %v3758, 4
        %v3760 = vrot.slane %v2495, 5
        %v3761 = vrot.slane %v2491, 6
        %v3762 = vor.u32 %v3760, %v3761
        %v3763 = vsel %vm3515, %v3759, %v3762
        %v3764 = vrot.slane %v3762, 4
        %v3765 = vrot.slane %v2505, 5
        %v3766 = vrot.slane %v2501, 6
        %v3767 = vor.u32 %v3765, %v3766
        %v3768 = vsel %vm3515, %v3764, %v3767
        %v3769 = vrot.slane %v3767, 4
        %v3770 = vshrl.u32 %v2025, 16
        %v3772 = vrot.slane %v3770, 5
        %v3773 = vrot.slane %v2511, 6
        %v3774 = vor.u32 %v3772, %v3773
        %v3775 = vsel %vm3515, %v3769, %v3774
        %v3776 = vrot.slane %v2516, 5
        %v3777 = vrot.slane %v2519, 6
        %v3778 = vor.u32 %v3776, %v3777
        %v3779 = vrot.slane %v3778, 4
        %v3780 = vrot.slane %v2529, 5
        %v3781 = vrot.slane %v2525, 6
        %v3782 = vor.u32 %v3780, %v3781
        %v3783 = vsel %vm3515, %v3779, %v3782
        %v3784 = vrot.slane %v3782, 4
        %v3785 = vrot.slane %v2539, 5
        %v3786 = vrot.slane %v2535, 6
        %v3787 = vor.u32 %v3785, %v3786
        %v3788 = vsel %vm3515, %v3784, %v3787
        %v3789 = vrot.slane %v3787, 4
        %v3790 = vshrl.u32 %v2029, 16
        %v3792 = vrot.slane %v3790, 5
        %v3793 = vrot.slane %v2545, 6
        %v3794 = vor.u32 %v3792, %v3793
        %v3795 = vsel %vm3515, %v3789, %v3794
        %v3796 = vrot.slane %v2550, 5
        %v3797 = vrot.slane %v2553, 6
        %v3798 = vor.u32 %v3796, %v3797
        %v3799 = vrot.slane %v3798, 4
        %v3800 = vrot.slane %v2563, 5
        %v3801 = vrot.slane %v2559, 6
        %v3802 = vor.u32 %v3800, %v3801
        %v3803 = vsel %vm3515, %v3799, %v3802
        %v3804 = vrot.slane %v3802, 4
        %v3805 = vrot.slane %v2573, 5
        %v3806 = vrot.slane %v2569, 6
        %v3807 = vor.u32 %v3805, %v3806
        %v3808 = vsel %vm3515, %v3804, %v3807
        %v3809 = vrot.slane %v3807, 4
        %v3810 = vshrl.u32 %v2033, 16
        %v3812 = vrot.slane %v3810, 5
        %v3813 = vrot.slane %v2579, 6
        %v3814 = vor.u32 %v3812, %v3813
        %v3815 = vsel %vm3515, %v3809, %v3814
        %v3816 = vrot.slane %v2584, 5
        %v3817 = vrot.slane %v2587, 6
        %v3818 = vor.u32 %v3816, %v3817
        %v3819 = vrot.slane %v3818, 4
        %v3820 = vrot.slane %v2597, 5
        %v3821 = vrot.slane %v2593, 6
        %v3822 = vor.u32 %v3820, %v3821
        %v3823 = vsel %vm3515, %v3819, %v3822
        %v3824 = vrot.slane %v3822, 4
        %v3825 = vrot.slane %v2607, 5
        %v3826 = vrot.slane %v2603, 6
        %v3827 = vor.u32 %v3825, %v3826
        %v3828 = vsel %vm3515, %v3824, %v3827
        %v3829 = vrot.slane %v3827, 4
        %v3830 = vshrl.u32 %v2037, 16
        %v3832 = vrot.slane %v3830, 5
        %v3833 = vrot.slane %v2613, 6
        %v3834 = vor.u32 %v3832, %v3833
        %v3835 = vsel %vm3515, %v3829, %v3834
        %v3836 = vrot.slane %v2618, 5
        %v3837 = vrot.slane %v2621, 6
        %v3838 = vor.u32 %v3836, %v3837
        %v3839 = vrot.slane %v3838, 4
        %v3840 = vrot.slane %v2631, 5
        %v3841 = vrot.slane %v2627, 6
        %v3842 = vor.u32 %v3840, %v3841
        %v3843 = vsel %vm3515, %v3839, %v3842
        %v3844 = vrot.slane %v3842, 4
        %v3845 = vrot.slane %v2641, 5
        %v3846 = vrot.slane %v2637, 6
        %v3847 = vor.u32 %v3845, %v3846
        %v3848 = vsel %vm3515, %v3844, %v3847
        %v3849 = vrot.slane %v3847, 4
        %v3850 = vshrl.u32 %v2041, 16
        %v3852 = vrot.slane %v3850, 5
        %v3853 = vrot.slane %v2647, 6
        %v3854 = vor.u32 %v3852, %v3853
        %v3855 = vsel %vm3515, %v3849, %v3854
        %v3856 = vrot.slane %v2652, 5
        %v3857 = vrot.slane %v2655, 6
        %v3858 = vor.u32 %v3856, %v3857
        %v3859 = vrot.slane %v3858, 4
        %v3860 = vrot.slane %v2665, 5
        %v3861 = vrot.slane %v2661, 6
        %v3862 = vor.u32 %v3860, %v3861
        %v3863 = vsel %vm3515, %v3859, %v3862
        %v3864 = vrot.slane %v3862, 4
        %v3865 = vrot.slane %v2675, 5
        %v3866 = vrot.slane %v2671, 6
        %v3867 = vor.u32 %v3865, %v3866
        %v3868 = vsel %vm3515, %v3864, %v3867
        %v3869 = vrot.slane %v3867, 4
        %v3870 = vshrl.u32 %v2045, 16
        %v3872 = vrot.slane %v3870, 5
        %v3873 = vrot.slane %v2681, 6
        %v3874 = vor.u32 %v3872, %v3873
        %v3875 = vsel %vm3515, %v3869, %v3874
        %v3876 = vrot.slane %v2686, 5
        %v3877 = vrot.slane %v2689, 6
        %v3878 = vor.u32 %v3876, %v3877
        %v3879 = vrot.slane %v3878, 4
        %v3880 = vrot.slane %v2699, 5
        %v3881 = vrot.slane %v2695, 6
        %v3882 = vor.u32 %v3880, %v3881
        %v3883 = vsel %vm3515, %v3879, %v3882
        %v3884 = vrot.slane %v3882, 4
        %v3885 = vrot.slane %v2709, 5
        %v3886 = vrot.slane %v2705, 6
        %v3887 = vor.u32 %v3885, %v3886
        %v3888 = vsel %vm3515, %v3884, %v3887
        %v3889 = vrot.slane %v3887, 4
        %v3890 = vshrl.u32 %v2049, 16
        %v3892 = vrot.slane %v3890, 5
        %v3893 = vrot.slane %v2715, 6
        %v3894 = vor.u32 %v3892, %v3893
        %v3895 = vsel %vm3515, %v3889, %v3894
        %v3896 = vrot.slane %v2720, 5
        %v3897 = vrot.slane %v2723, 6
        %v3898 = vor.u32 %v3896, %v3897
        %v3899 = vrot.slane %v3898, 4
        %v3900 = vrot.slane %v2733, 5
        %v3901 = vrot.slane %v2729, 6
        %v3902 = vor.u32 %v3900, %v3901
        %v3903 = vsel %vm3515, %v3899, %v3902
        %v3904 = vrot.slane %v3902, 4
        %v3905 = vrot.slane %v2743, 5
        %v3906 = vrot.slane %v2739, 6
        %v3907 = vor.u32 %v3905, %v3906
        %v3908 = vsel %vm3515, %v3904, %v3907
        %v3909 = vrot.slane %v3907, 4
        %v3910 = vshrl.u32 %v2053, 16
        %v3912 = vrot.slane %v3910, 5
        %v3913 = vrot.slane %v2749, 6
        %v3914 = vor.u32 %v3912, %v3913
        %v3915 = vsel %vm3515, %v3909, %v3914
        %v3916 = vrot.slane %v2754, 5
        %v3917 = vrot.slane %v2757, 6
        %v3918 = vor.u32 %v3916, %v3917
        %v3919 = vrot.slane %v3918, 4
        %v3920 = vrot.slane %v2767, 5
        %v3921 = vrot.slane %v2763, 6
        %v3922 = vor.u32 %v3920, %v3921
        %v3923 = vsel %vm3515, %v3919, %v3922
        %v3924 = vrot.slane %v3922, 4
        %v3925 = vrot.slane %v2777, 5
        %v3926 = vrot.slane %v2773, 6
        %v3927 = vor.u32 %v3925, %v3926
        %v3928 = vsel %vm3515, %v3924, %v3927
        %v3929 = vrot.slane %v3927, 4
        %v3930 = vshrl.u32 %v2057, 16
        %v3932 = vrot.slane %v3930, 5
        %v3933 = vrot.slane %v2783, 6
        %v3934 = vor.u32 %v3932, %v3933
        %v3935 = vsel %vm3515, %v3929, %v3934
        %v3936 = vrot.slane %v2788, 5
        %v3937 = vrot.slane %v2791, 6
        %v3938 = vor.u32 %v3936, %v3937
        %v3939 = vrot.slane %v3938, 4
        %v3940 = vrot.slane %v2801, 5
        %v3941 = vrot.slane %v2797, 6
        %v3942 = vor.u32 %v3940, %v3941
        %v3943 = vsel %vm3515, %v3939, %v3942
        %v3944 = vrot.slane %v3942, 4
        %v3945 = vrot.slane %v2811, 5
        %v3946 = vrot.slane %v2807, 6
        %v3947 = vor.u32 %v3945, %v3946
        %v3948 = vsel %vm3515, %v3944, %v3947
        %v3949 = vrot.slane %v3947, 4
        %v3950 = vshrl.u32 %v2061, 16
        %v3952 = vrot.slane %v3950, 5
        %v3953 = vrot.slane %v2817, 6
        %v3954 = vor.u32 %v3952, %v3953
        %v3955 = vsel %vm3515, %v3949, %v3954
        %v3956 = vrot.slane %v2822, 5
        %v3957 = vrot.slane %v2825, 6
        %v3958 = vor.u32 %v3956, %v3957
        %v3959 = vrot.slane %v3958, 4
        %v3960 = vrot.slane %v2835, 5
        %v3961 = vrot.slane %v2831, 6
        %v3962 = vor.u32 %v3960, %v3961
        %v3963 = vsel %vm3515, %v3959, %v3962
        %v3964 = vrot.slane %v3962, 4
        %v3965 = vrot.slane %v2845, 5
        %v3966 = vrot.slane %v2841, 6
        %v3967 = vor.u32 %v3965, %v3966
        %v3968 = vsel %vm3515, %v3964, %v3967
        %v3969 = vrot.slane %v3967, 4
        %v3970 = vshrl.u32 %v2065, 16
        %v3972 = vrot.slane %v3970, 5
        %v3973 = vrot.slane %v2851, 6
        %v3974 = vor.u32 %v3972, %v3973
        %v3975 = vsel %vm3515, %v3969, %v3974
        %v3976 = vrot.slane %v2856, 5
        %v3977 = vrot.slane %v2859, 6
        %v3978 = vor.u32 %v3976, %v3977
        %v3979 = vrot.slane %v3978, 4
        %v3980 = vrot.slane %v2869, 5
        %v3981 = vrot.slane %v2865, 6
        %v3982 = vor.u32 %v3980, %v3981
        %v3983 = vsel %vm3515, %v3979, %v3982
        %v3984 = vrot.slane %v3982, 4
        %v3985 = vrot.slane %v2879, 5
        %v3986 = vrot.slane %v2875, 6
        %v3987 = vor.u32 %v3985, %v3986
        %v3988 = vsel %vm3515, %v3984, %v3987
        %v3989 = vrot.slane %v3987, 4
        %v3990 = vshrl.u32 %v2069, 16
        %v3992 = vrot.slane %v3990, 5
        %v3993 = vrot.slane %v2885, 6
        %v3994 = vor.u32 %v3992, %v3993
        %v3995 = vsel %vm3515, %v3989, %v3994
        %v4068 = vmax.bf16 %v3441, %v3523
        %v4069 = vmax.bf16 %v3442, %v3528
        %v4070 = vmax.bf16 %v3443, %v3535
        %v4071 = vmax.bf16 %v3444, %v3543
        %v4072 = vmax.bf16 %v3445, %v3548
        %v4073 = vmax.bf16 %v3446, %v3555
        %v4074 = vmax.bf16 %v3447, %v3563
        %v4075 = vmax.bf16 %v3448, %v3568
        %v4076 = vmax.bf16 %v3449, %v3575
        %v4077 = vmax.bf16 %v3450, %v3583
        %v4078 = vmax.bf16 %v3451, %v3588
        %v4079 = vmax.bf16 %v3452, %v3595
        %v4080 = vmax.bf16 %v3453, %v3603
        %v4081 = vmax.bf16 %v3454, %v3608
        %v4082 = vmax.bf16 %v3455, %v3615
        %v4083 = vmax.bf16 %v3456, %v3623
        %v4084 = vmax.bf16 %v3457, %v3628
        %v4085 = vmax.bf16 %v3458, %v3635
        %v4086 = vmax.bf16 %v3459, %v3643
        %v4087 = vmax.bf16 %v3460, %v3648
        %v4088 = vmax.bf16 %v3461, %v3655
        %v4089 = vmax.bf16 %v3462, %v3663
        %v4090 = vmax.bf16 %v3463, %v3668
        %v4091 = vmax.bf16 %v3464, %v3675
        %v4092 = vmax.bf16 %v3465, %v3683
        %v4093 = vmax.bf16 %v3466, %v3688
        %v4094 = vmax.bf16 %v3467, %v3695
        %v4095 = vmax.bf16 %v3468, %v3703
        %v4096 = vmax.bf16 %v3469, %v3708
        %v4097 = vmax.bf16 %v3470, %v3715
        %v4098 = vmax.bf16 %v3471, %v3723
        %v4099 = vmax.bf16 %v3472, %v3728
        %v4100 = vmax.bf16 %v3473, %v3735
        %v4101 = vmax.bf16 %v3474, %v3743
        %v4102 = vmax.bf16 %v3475, %v3748
        %v4103 = vmax.bf16 %v3476, %v3755
        %v4104 = vmax.bf16 %v3477, %v3763
        %v4105 = vmax.bf16 %v3478, %v3768
        %v4106 = vmax.bf16 %v3479, %v3775
        %v4107 = vmax.bf16 %v3480, %v3783
        %v4108 = vmax.bf16 %v3481, %v3788
        %v4109 = vmax.bf16 %v3482, %v3795
        %v4110 = vmax.bf16 %v3483, %v3803
        %v4111 = vmax.bf16 %v3484, %v3808
        %v4112 = vmax.bf16 %v3485, %v3815
        %v4113 = vmax.bf16 %v3486, %v3823
        %v4114 = vmax.bf16 %v3487, %v3828
        %v4115 = vmax.bf16 %v3488, %v3835
        %v4116 = vmax.bf16 %v3489, %v3843
        %v4117 = vmax.bf16 %v3490, %v3848
        %v4118 = vmax.bf16 %v3491, %v3855
        %v4119 = vmax.bf16 %v3492, %v3863
        %v4120 = vmax.bf16 %v3493, %v3868
        %v4121 = vmax.bf16 %v3494, %v3875
        %v4122 = vmax.bf16 %v3495, %v3883
        %v4123 = vmax.bf16 %v3496, %v3888
        %v4124 = vmax.bf16 %v3497, %v3895
        %v4125 = vmax.bf16 %v3498, %v3903
        %v4126 = vmax.bf16 %v3499, %v3908
        %v4127 = vmax.bf16 %v3500, %v3915
        %v4128 = vmax.bf16 %v3501, %v3923
        %v4129 = vmax.bf16 %v3502, %v3928
        %v4130 = vmax.bf16 %v3503, %v3935
        %v4131 = vmax.bf16 %v3504, %v3943
        %v4132 = vmax.bf16 %v3505, %v3948
        %v4133 = vmax.bf16 %v3506, %v3955
        %v4134 = vmax.bf16 %v3507, %v3963
        %v4135 = vmax.bf16 %v3508, %v3968
        %v4136 = vmax.bf16 %v3509, %v3975
        %v4137 = vmax.bf16 %v3510, %v3983
        %v4138 = vmax.bf16 %v3511, %v3988
        %v4139 = vmax.bf16 %v3512, %v3995
        %vm4140 = vcmask 1041408
        %vm4141 = vcmask 1045508
        %vm4142 = vmor %vm4140, %vm4141
        %v4143 = vrot.slane %v1974, 6
        %v4144 = vrot.slane %v4143, 4
        %v4145 = vrot.slane %v1975, 6
        %v4146 = vsel %vm4142, %v4144, %v4145
        %v4147 = vrot.slane %v4145, 4
        %v4148 = vrot.slane %v1976, 6
        %v4149 = vsel %vm4142, %v4147, %v4148
        %v4150 = vrot.slane %v4148, 4
        %v4151 = vrot.slane %v1977, 6
        %v4152 = vsel %vm4142, %v4150, %v4151
        %v4153 = vrot.slane %v1978, 6
        %v4154 = vrot.slane %v4153, 4
        %v4155 = vrot.slane %v1979, 6
        %v4156 = vsel %vm4142, %v4154, %v4155
        %v4157 = vrot.slane %v4155, 4
        %v4158 = vrot.slane %v1980, 6
        %v4159 = vsel %vm4142, %v4157, %v4158
        %v4160 = vrot.slane %v4158, 4
        %v4161 = vrot.slane %v1981, 6
        %v4162 = vsel %vm4142, %v4160, %v4161
        %v4163 = vrot.slane %v1982, 6
        %v4164 = vrot.slane %v4163, 4
        %v4165 = vrot.slane %v1983, 6
        %v4166 = vsel %vm4142, %v4164, %v4165
        %v4167 = vrot.slane %v4165, 4
        %v4168 = vrot.slane %v1984, 6
        %v4169 = vsel %vm4142, %v4167, %v4168
        %v4170 = vrot.slane %v4168, 4
        %v4171 = vrot.slane %v1985, 6
        %v4172 = vsel %vm4142, %v4170, %v4171
        %v4173 = vrot.slane %v1986, 6
        %v4174 = vrot.slane %v4173, 4
        %v4175 = vrot.slane %v1987, 6
        %v4176 = vsel %vm4142, %v4174, %v4175
        %v4177 = vrot.slane %v4175, 4
        %v4178 = vrot.slane %v1988, 6
        %v4179 = vsel %vm4142, %v4177, %v4178
        %v4180 = vrot.slane %v4178, 4
        %v4181 = vrot.slane %v1989, 6
        %v4182 = vsel %vm4142, %v4180, %v4181
        %v4183 = vrot.slane %v1990, 6
        %v4184 = vrot.slane %v4183, 4
        %v4185 = vrot.slane %v1991, 6
        %v4186 = vsel %vm4142, %v4184, %v4185
        %v4187 = vrot.slane %v4185, 4
        %v4188 = vrot.slane %v1992, 6
        %v4189 = vsel %vm4142, %v4187, %v4188
        %v4190 = vrot.slane %v4188, 4
        %v4191 = vrot.slane %v1993, 6
        %v4192 = vsel %vm4142, %v4190, %v4191
        %v4193 = vrot.slane %v1994, 6
        %v4194 = vrot.slane %v4193, 4
        %v4195 = vrot.slane %v1995, 6
        %v4196 = vsel %vm4142, %v4194, %v4195
        %v4197 = vrot.slane %v4195, 4
        %v4198 = vrot.slane %v1996, 6
        %v4199 = vsel %vm4142, %v4197, %v4198
        %v4200 = vrot.slane %v4198, 4
        %v4201 = vrot.slane %v1997, 6
        %v4202 = vsel %vm4142, %v4200, %v4201
        %v4203 = vrot.slane %v1998, 6
        %v4204 = vrot.slane %v4203, 4
        %v4205 = vrot.slane %v1999, 6
        %v4206 = vsel %vm4142, %v4204, %v4205
        %v4207 = vrot.slane %v4205, 4
        %v4208 = vrot.slane %v2000, 6
        %v4209 = vsel %vm4142, %v4207, %v4208
        %v4210 = vrot.slane %v4208, 4
        %v4211 = vrot.slane %v2001, 6
        %v4212 = vsel %vm4142, %v4210, %v4211
        %v4213 = vrot.slane %v2002, 6
        %v4214 = vrot.slane %v4213, 4
        %v4215 = vrot.slane %v2003, 6
        %v4216 = vsel %vm4142, %v4214, %v4215
        %v4217 = vrot.slane %v4215, 4
        %v4218 = vrot.slane %v2004, 6
        %v4219 = vsel %vm4142, %v4217, %v4218
        %v4220 = vrot.slane %v4218, 4
        %v4221 = vrot.slane %v2005, 6
        %v4222 = vsel %vm4142, %v4220, %v4221
        %v4223 = vrot.slane %v2006, 6
        %v4224 = vrot.slane %v4223, 4
        %v4225 = vrot.slane %v2007, 6
        %v4226 = vsel %vm4142, %v4224, %v4225
        %v4227 = vrot.slane %v4225, 4
        %v4228 = vrot.slane %v2008, 6
        %v4229 = vsel %vm4142, %v4227, %v4228
        %v4230 = vrot.slane %v4228, 4
        %v4231 = vrot.slane %v2009, 6
        %v4232 = vsel %vm4142, %v4230, %v4231
        %v4233 = vrot.slane %v2010, 6
        %v4234 = vrot.slane %v4233, 4
        %v4235 = vrot.slane %v2011, 6
        %v4236 = vsel %vm4142, %v4234, %v4235
        %v4237 = vrot.slane %v4235, 4
        %v4238 = vrot.slane %v2012, 6
        %v4239 = vsel %vm4142, %v4237, %v4238
        %v4240 = vrot.slane %v4238, 4
        %v4241 = vrot.slane %v2013, 6
        %v4242 = vsel %vm4142, %v4240, %v4241
        %v4243 = vrot.slane %v2014, 6
        %v4244 = vrot.slane %v4243, 4
        %v4245 = vrot.slane %v2015, 6
        %v4246 = vsel %vm4142, %v4244, %v4245
        %v4247 = vrot.slane %v4245, 4
        %v4248 = vrot.slane %v2016, 6
        %v4249 = vsel %vm4142, %v4247, %v4248
        %v4250 = vrot.slane %v4248, 4
        %v4251 = vrot.slane %v2017, 6
        %v4252 = vsel %vm4142, %v4250, %v4251
        %v4253 = vrot.slane %v2018, 6
        %v4254 = vrot.slane %v4253, 4
        %v4255 = vrot.slane %v2019, 6
        %v4256 = vsel %vm4142, %v4254, %v4255
        %v4257 = vrot.slane %v4255, 4
        %v4258 = vrot.slane %v2020, 6
        %v4259 = vsel %vm4142, %v4257, %v4258
        %v4260 = vrot.slane %v4258, 4
        %v4261 = vrot.slane %v2021, 6
        %v4262 = vsel %vm4142, %v4260, %v4261
        %v4263 = vrot.slane %v2022, 6
        %v4264 = vrot.slane %v4263, 4
        %v4265 = vrot.slane %v2023, 6
        %v4266 = vsel %vm4142, %v4264, %v4265
        %v4267 = vrot.slane %v4265, 4
        %v4268 = vrot.slane %v2024, 6
        %v4269 = vsel %vm4142, %v4267, %v4268
        %v4270 = vrot.slane %v4268, 4
        %v4271 = vrot.slane %v2025, 6
        %v4272 = vsel %vm4142, %v4270, %v4271
        %v4273 = vrot.slane %v2026, 6
        %v4274 = vrot.slane %v4273, 4
        %v4275 = vrot.slane %v2027, 6
        %v4276 = vsel %vm4142, %v4274, %v4275
        %v4277 = vrot.slane %v4275, 4
        %v4278 = vrot.slane %v2028, 6
        %v4279 = vsel %vm4142, %v4277, %v4278
        %v4280 = vrot.slane %v4278, 4
        %v4281 = vrot.slane %v2029, 6
        %v4282 = vsel %vm4142, %v4280, %v4281
        %v4283 = vrot.slane %v2030, 6
        %v4284 = vrot.slane %v4283, 4
        %v4285 = vrot.slane %v2031, 6
        %v4286 = vsel %vm4142, %v4284, %v4285
        %v4287 = vrot.slane %v4285, 4
        %v4288 = vrot.slane %v2032, 6
        %v4289 = vsel %vm4142, %v4287, %v4288
        %v4290 = vrot.slane %v4288, 4
        %v4291 = vrot.slane %v2033, 6
        %v4292 = vsel %vm4142, %v4290, %v4291
        %v4293 = vrot.slane %v2034, 6
        %v4294 = vrot.slane %v4293, 4
        %v4295 = vrot.slane %v2035, 6
        %v4296 = vsel %vm4142, %v4294, %v4295
        %v4297 = vrot.slane %v4295, 4
        %v4298 = vrot.slane %v2036, 6
        %v4299 = vsel %vm4142, %v4297, %v4298
        %v4300 = vrot.slane %v4298, 4
        %v4301 = vrot.slane %v2037, 6
        %v4302 = vsel %vm4142, %v4300, %v4301
        %v4303 = vrot.slane %v2038, 6
        %v4304 = vrot.slane %v4303, 4
        %v4305 = vrot.slane %v2039, 6
        %v4306 = vsel %vm4142, %v4304, %v4305
        %v4307 = vrot.slane %v4305, 4
        %v4308 = vrot.slane %v2040, 6
        %v4309 = vsel %vm4142, %v4307, %v4308
        %v4310 = vrot.slane %v4308, 4
        %v4311 = vrot.slane %v2041, 6
        %v4312 = vsel %vm4142, %v4310, %v4311
        %v4313 = vrot.slane %v2042, 6
        %v4314 = vrot.slane %v4313, 4
        %v4315 = vrot.slane %v2043, 6
        %v4316 = vsel %vm4142, %v4314, %v4315
        %v4317 = vrot.slane %v4315, 4
        %v4318 = vrot.slane %v2044, 6
        %v4319 = vsel %vm4142, %v4317, %v4318
        %v4320 = vrot.slane %v4318, 4
        %v4321 = vrot.slane %v2045, 6
        %v4322 = vsel %vm4142, %v4320, %v4321
        %v4323 = vrot.slane %v2046, 6
        %v4324 = vrot.slane %v4323, 4
        %v4325 = vrot.slane %v2047, 6
        %v4326 = vsel %vm4142, %v4324, %v4325
        %v4327 = vrot.slane %v4325, 4
        %v4328 = vrot.slane %v2048, 6
        %v4329 = vsel %vm4142, %v4327, %v4328
        %v4330 = vrot.slane %v4328, 4
        %v4331 = vrot.slane %v2049, 6
        %v4332 = vsel %vm4142, %v4330, %v4331
        %v4333 = vrot.slane %v2050, 6
        %v4334 = vrot.slane %v4333, 4
        %v4335 = vrot.slane %v2051, 6
        %v4336 = vsel %vm4142, %v4334, %v4335
        %v4337 = vrot.slane %v4335, 4
        %v4338 = vrot.slane %v2052, 6
        %v4339 = vsel %vm4142, %v4337, %v4338
        %v4340 = vrot.slane %v4338, 4
        %v4341 = vrot.slane %v2053, 6
        %v4342 = vsel %vm4142, %v4340, %v4341
        %v4343 = vrot.slane %v2054, 6
        %v4344 = vrot.slane %v4343, 4
        %v4345 = vrot.slane %v2055, 6
        %v4346 = vsel %vm4142, %v4344, %v4345
        %v4347 = vrot.slane %v4345, 4
        %v4348 = vrot.slane %v2056, 6
        %v4349 = vsel %vm4142, %v4347, %v4348
        %v4350 = vrot.slane %v4348, 4
        %v4351 = vrot.slane %v2057, 6
        %v4352 = vsel %vm4142, %v4350, %v4351
        %v4353 = vrot.slane %v2058, 6
        %v4354 = vrot.slane %v4353, 4
        %v4355 = vrot.slane %v2059, 6
        %v4356 = vsel %vm4142, %v4354, %v4355
        %v4357 = vrot.slane %v4355, 4
        %v4358 = vrot.slane %v2060, 6
        %v4359 = vsel %vm4142, %v4357, %v4358
        %v4360 = vrot.slane %v4358, 4
        %v4361 = vrot.slane %v2061, 6
        %v4362 = vsel %vm4142, %v4360, %v4361
        %v4363 = vrot.slane %v2062, 6
        %v4364 = vrot.slane %v4363, 4
        %v4365 = vrot.slane %v2063, 6
        %v4366 = vsel %vm4142, %v4364, %v4365
        %v4367 = vrot.slane %v4365, 4
        %v4368 = vrot.slane %v2064, 6
        %v4369 = vsel %vm4142, %v4367, %v4368
        %v4370 = vrot.slane %v4368, 4
        %v4371 = vrot.slane %v2065, 6
        %v4372 = vsel %vm4142, %v4370, %v4371
        %v4373 = vrot.slane %v2066, 6
        %v4374 = vrot.slane %v4373, 4
        %v4375 = vrot.slane %v2067, 6
        %v4376 = vsel %vm4142, %v4374, %v4375
        %v4377 = vrot.slane %v4375, 4
        %v4378 = vrot.slane %v2068, 6
        %v4379 = vsel %vm4142, %v4377, %v4378
        %v4380 = vrot.slane %v4378, 4
        %v4381 = vrot.slane %v2069, 6
        %v4382 = vsel %vm4142, %v4380, %v4381
        %v4455 = vmax.bf16 %v4068, %v4146
        %v4456 = vmax.bf16 %v4069, %v4149
        %v4457 = vmax.bf16 %v4070, %v4152
        %v4458 = vmax.bf16 %v4071, %v4156
        %v4459 = vmax.bf16 %v4072, %v4159
        %v4460 = vmax.bf16 %v4073, %v4162
        %v4461 = vmax.bf16 %v4074, %v4166
        %v4462 = vmax.bf16 %v4075, %v4169
        %v4463 = vmax.bf16 %v4076, %v4172
        %v4464 = vmax.bf16 %v4077, %v4176
        %v4465 = vmax.bf16 %v4078, %v4179
        %v4466 = vmax.bf16 %v4079, %v4182
        %v4467 = vmax.bf16 %v4080, %v4186
        %v4468 = vmax.bf16 %v4081, %v4189
        %v4469 = vmax.bf16 %v4082, %v4192
        %v4470 = vmax.bf16 %v4083, %v4196
        %v4471 = vmax.bf16 %v4084, %v4199
        %v4472 = vmax.bf16 %v4085, %v4202
        %v4473 = vmax.bf16 %v4086, %v4206
        %v4474 = vmax.bf16 %v4087, %v4209
        %v4475 = vmax.bf16 %v4088, %v4212
        %v4476 = vmax.bf16 %v4089, %v4216
        %v4477 = vmax.bf16 %v4090, %v4219
        %v4478 = vmax.bf16 %v4091, %v4222
        %v4479 = vmax.bf16 %v4092, %v4226
        %v4480 = vmax.bf16 %v4093, %v4229
        %v4481 = vmax.bf16 %v4094, %v4232
        %v4482 = vmax.bf16 %v4095, %v4236
        %v4483 = vmax.bf16 %v4096, %v4239
        %v4484 = vmax.bf16 %v4097, %v4242
        %v4485 = vmax.bf16 %v4098, %v4246
        %v4486 = vmax.bf16 %v4099, %v4249
        %v4487 = vmax.bf16 %v4100, %v4252
        %v4488 = vmax.bf16 %v4101, %v4256
        %v4489 = vmax.bf16 %v4102, %v4259
        %v4490 = vmax.bf16 %v4103, %v4262
        %v4491 = vmax.bf16 %v4104, %v4266
        %v4492 = vmax.bf16 %v4105, %v4269
        %v4493 = vmax.bf16 %v4106, %v4272
        %v4494 = vmax.bf16 %v4107, %v4276
        %v4495 = vmax.bf16 %v4108, %v4279
        %v4496 = vmax.bf16 %v4109, %v4282
        %v4497 = vmax.bf16 %v4110, %v4286
        %v4498 = vmax.bf16 %v4111, %v4289
        %v4499 = vmax.bf16 %v4112, %v4292
        %v4500 = vmax.bf16 %v4113, %v4296
        %v4501 = vmax.bf16 %v4114, %v4299
        %v4502 = vmax.bf16 %v4115, %v4302
        %v4503 = vmax.bf16 %v4116, %v4306
        %v4504 = vmax.bf16 %v4117, %v4309
        %v4505 = vmax.bf16 %v4118, %v4312
        %v4506 = vmax.bf16 %v4119, %v4316
        %v4507 = vmax.bf16 %v4120, %v4319
        %v4508 = vmax.bf16 %v4121, %v4322
        %v4509 = vmax.bf16 %v4122, %v4326
        %v4510 = vmax.bf16 %v4123, %v4329
        %v4511 = vmax.bf16 %v4124, %v4332
        %v4512 = vmax.bf16 %v4125, %v4336
        %v4513 = vmax.bf16 %v4126, %v4339
        %v4514 = vmax.bf16 %v4127, %v4342
        %v4515 = vmax.bf16 %v4128, %v4346
        %v4516 = vmax.bf16 %v4129, %v4349
        %v4517 = vmax.bf16 %v4130, %v4352
        %v4518 = vmax.bf16 %v4131, %v4356
        %v4519 = vmax.bf16 %v4132, %v4359
        %v4520 = vmax.bf16 %v4133, %v4362
        %v4521 = vmax.bf16 %v4134, %v4366
        %v4522 = vmax.bf16 %v4135, %v4369
        %v4523 = vmax.bf16 %v4136, %v4372
        %v4524 = vmax.bf16 %v4137, %v4376
        %v4525 = vmax.bf16 %v4138, %v4379
        %v4526 = vmax.bf16 %v4139, %v4382
        %4527 = vst.msk [vmem:[#allocation2] sm:$0xf] %vm826, %v4455
        %4528 = vst.msk [vmem:[#allocation2 + $0x4] sm:$0xf] %vm826, %v4456
        %4529 = vst.msk [vmem:[#allocation2 + $0x8] sm:$0xf] %vm826, %v4457
        %4530 = vst.msk [vmem:[#allocation2 + $0x10] sm:$0xf] %vm826, %v4458
        %4531 = vst.msk [vmem:[#allocation2 + $0x14] sm:$0xf] %vm826, %v4459
        %4532 = vst.msk [vmem:[#allocation2 + $0x18] sm:$0xf] %vm826, %v4460
        %4533 = vst.msk [vmem:[#allocation2 + $0x20] sm:$0xf] %vm826, %v4461
        %4534 = vst.msk [vmem:[#allocation2 + $0x24] sm:$0xf] %vm826, %v4462
        %4535 = vst.msk [vmem:[#allocation2 + $0x28] sm:$0xf] %vm826, %v4463
        %4536 = vst.msk [vmem:[#allocation2 + $0x30] sm:$0xf] %vm826, %v4464
        %4537 = vst.msk [vmem:[#allocation2 + $0x34] sm:$0xf] %vm826, %v4465
        %4538 = vst.msk [vmem:[#allocation2 + $0x38] sm:$0xf] %vm826, %v4466
        %4539 = vst.msk [vmem:[#allocation2 + $0x40] sm:$0xf] %vm826, %v4467
        %4540 = vst.msk [vmem:[#allocation2 + $0x44] sm:$0xf] %vm826, %v4468
        %4541 = vst.msk [vmem:[#allocation2 + $0x48] sm:$0xf] %vm826, %v4469
        %4542 = vst.msk [vmem:[#allocation2 + $0x50] sm:$0xf] %vm826, %v4470
        %4543 = vst.msk [vmem:[#allocation2 + $0x54] sm:$0xf] %vm826, %v4471
        %4544 = vst.msk [vmem:[#allocation2 + $0x58] sm:$0xf] %vm826, %v4472
        %4545 = vst.msk [vmem:[#allocation2 + $0x60] sm:$0xf] %vm826, %v4473
        %4546 = vst.msk [vmem:[#allocation2 + $0x64] sm:$0xf] %vm826, %v4474
        %4547 = vst.msk [vmem:[#allocation2 + $0x68] sm:$0xf] %vm826, %v4475
        %4548 = vst.msk [vmem:[#allocation2 + $0x70] sm:$0xf] %vm826, %v4476
        %4549 = vst.msk [vmem:[#allocation2 + $0x74] sm:$0xf] %vm826, %v4477
        %4550 = vst.msk [vmem:[#allocation2 + $0x78] sm:$0xf] %vm826, %v4478
        %4551 = vst.msk [vmem:[#allocation2 + $0x80] sm:$0xf] %vm826, %v4479
        %4552 = vst.msk [vmem:[#allocation2 + $0x84] sm:$0xf] %vm826, %v4480
        %4553 = vst.msk [vmem:[#allocation2 + $0x88] sm:$0xf] %vm826, %v4481
        %4554 = vst.msk [vmem:[#allocation2 + $0x90] sm:$0xf] %vm826, %v4482
        %4555 = vst.msk [vmem:[#allocation2 + $0x94] sm:$0xf] %vm826, %v4483
        %4556 = vst.msk [vmem:[#allocation2 + $0x98] sm:$0xf] %vm826, %v4484
        %4557 = vst.msk [vmem:[#allocation2 + $0xa0] sm:$0xf] %vm826, %v4485
        %4558 = vst.msk [vmem:[#allocation2 + $0xa4] sm:$0xf] %vm826, %v4486
        %4559 = vst.msk [vmem:[#allocation2 + $0xa8] sm:$0xf] %vm826, %v4487
        %4560 = vst.msk [vmem:[#allocation2 + $0xb0] sm:$0xf] %vm826, %v4488
        %4561 = vst.msk [vmem:[#allocation2 + $0xb4] sm:$0xf] %vm826, %v4489
        %4562 = vst.msk [vmem:[#allocation2 + $0xb8] sm:$0xf] %vm826, %v4490
        %4563 = vst.msk [vmem:[#allocation2 + $0xc0] sm:$0xf] %vm826, %v4491
        %4564 = vst.msk [vmem:[#allocation2 + $0xc4] sm:$0xf] %vm826, %v4492
        %4565 = vst.msk [vmem:[#allocation2 + $0xc8] sm:$0xf] %vm826, %v4493
        %4566 = vst.msk [vmem:[#allocation2 + $0xd0] sm:$0xf] %vm826, %v4494
        %4567 = vst.msk [vmem:[#allocation2 + $0xd4] sm:$0xf] %vm826, %v4495
        %4568 = vst.msk [vmem:[#allocation2 + $0xd8] sm:$0xf] %vm826, %v4496
        %4569 = vst.msk [vmem:[#allocation2 + $0xe0] sm:$0xf] %vm826, %v4497
        %4570 = vst.msk [vmem:[#allocation2 + $0xe4] sm:$0xf] %vm826, %v4498
        %4571 = vst.msk [vmem:[#allocation2 + $0xe8] sm:$0xf] %vm826, %v4499
        %4572 = vst.msk [vmem:[#allocation2 + $0xf0] sm:$0xf] %vm826, %v4500
        %4573 = vst.msk [vmem:[#allocation2 + $0xf4] sm:$0xf] %vm826, %v4501
        %4574 = vst.msk [vmem:[#allocation2 + $0xf8] sm:$0xf] %vm826, %v4502
        %4575 = vst.msk [vmem:[#allocation2 + $0x100] sm:$0xf] %vm826, %v4503
        %4576 = vst.msk [vmem:[#allocation2 + $0x104] sm:$0xf] %vm826, %v4504
        %4577 = vst.msk [vmem:[#allocation2 + $0x108] sm:$0xf] %vm826, %v4505
        %4578 = vst.msk [vmem:[#allocation2 + $0x110] sm:$0xf] %vm826, %v4506
        %4579 = vst.msk [vmem:[#allocation2 + $0x114] sm:$0xf] %vm826, %v4507
        %4580 = vst.msk [vmem:[#allocation2 + $0x118] sm:$0xf] %vm826, %v4508
        %4581 = vst.msk [vmem:[#allocation2 + $0x120] sm:$0xf] %vm826, %v4509
        %4582 = vst.msk [vmem:[#allocation2 + $0x124] sm:$0xf] %vm826, %v4510
        %4583 = vst.msk [vmem:[#allocation2 + $0x128] sm:$0xf] %vm826, %v4511
        %4584 = vst.msk [vmem:[#allocation2 + $0x130] sm:$0xf] %vm826, %v4512
        %4585 = vst.msk [vmem:[#allocation2 + $0x134] sm:$0xf] %vm826, %v4513
        %4586 = vst.msk [vmem:[#allocation2 + $0x138] sm:$0xf] %vm826, %v4514
        %4587 = vst.msk [vmem:[#allocation2 + $0x140] sm:$0xf] %vm826, %v4515
        %4588 = vst.msk [vmem:[#allocation2 + $0x144] sm:$0xf] %vm826, %v4516
        %4589 = vst.msk [vmem:[#allocation2 + $0x148] sm:$0xf] %vm826, %v4517
        %4590 = vst.msk [vmem:[#allocation2 + $0x150] sm:$0xf] %vm826, %v4518
        %4591 = vst.msk [vmem:[#allocation2 + $0x154] sm:$0xf] %vm826, %v4519
        %4592 = vst.msk [vmem:[#allocation2 + $0x158] sm:$0xf] %vm826, %v4520
        %4593 = vst.msk [vmem:[#allocation2 + $0x160] sm:$0xf] %vm826, %v4521
        %4594 = vst.msk [vmem:[#allocation2 + $0x164] sm:$0xf] %vm826, %v4522
        %4595 = vst.msk [vmem:[#allocation2 + $0x168] sm:$0xf] %vm826, %v4523
        %4596 = vst.msk [vmem:[#allocation2 + $0x170] sm:$0xf] %vm826, %v4524
        %4597 = vst.msk [vmem:[#allocation2 + $0x174] sm:$0xf] %vm826, %v4525
        %4598 = vst.msk [vmem:[#allocation2 + $0x178] sm:$0xf] %vm826, %v4526
        %v4599 = vld [vmem:[#allocation2] sm:$0xf]
        %v4600 = vld [vmem:[#allocation2 + $0x4] sm:$0xf]
        %v4601 = vld [vmem:[#allocation2 + $0x8] sm:$0xf]
        %v4602 = vld [vmem:[#allocation2 + $0x10] sm:$0xf]
        %v4603 = vld [vmem:[#allocation2 + $0x14] sm:$0xf]
        %v4604 = vld [vmem:[#allocation2 + $0x18] sm:$0xf]
        %v4605 = vld [vmem:[#allocation2 + $0x20] sm:$0xf]
        %v4606 = vld [vmem:[#allocation2 + $0x24] sm:$0xf]
        %v4607 = vld [vmem:[#allocation2 + $0x28] sm:$0xf]
        %v4608 = vld [vmem:[#allocation2 + $0x30] sm:$0xf]
        %v4609 = vld [vmem:[#allocation2 + $0x34] sm:$0xf]
        %v4610 = vld [vmem:[#allocation2 + $0x38] sm:$0xf]
        %v4611 = vld [vmem:[#allocation2 + $0x40] sm:$0xf]
        %v4612 = vld [vmem:[#allocation2 + $0x44] sm:$0xf]
        %v4613 = vld [vmem:[#allocation2 + $0x48] sm:$0xf]
        %v4614 = vld [vmem:[#allocation2 + $0x50] sm:$0xf]
        %v4615 = vld [vmem:[#allocation2 + $0x54] sm:$0xf]
        %v4616 = vld [vmem:[#allocation2 + $0x58] sm:$0xf]
        %v4617 = vld [vmem:[#allocation2 + $0x60] sm:$0xf]
        %v4618 = vld [vmem:[#allocation2 + $0x64] sm:$0xf]
        %v4619 = vld [vmem:[#allocation2 + $0x68] sm:$0xf]
        %v4620 = vld [vmem:[#allocation2 + $0x70] sm:$0xf]
        %v4621 = vld [vmem:[#allocation2 + $0x74] sm:$0xf]
        %v4622 = vld [vmem:[#allocation2 + $0x78] sm:$0xf]
        %v4623 = vld [vmem:[#allocation2 + $0x80] sm:$0xf]
        %v4624 = vld [vmem:[#allocation2 + $0x84] sm:$0xf]
        %v4625 = vld [vmem:[#allocation2 + $0x88] sm:$0xf]
        %v4626 = vld [vmem:[#allocation2 + $0x90] sm:$0xf]
        %v4627 = vld [vmem:[#allocation2 + $0x94] sm:$0xf]
        %v4628 = vld [vmem:[#allocation2 + $0x98] sm:$0xf]
        %v4629 = vld [vmem:[#allocation2 + $0xa0] sm:$0xf]
        %v4630 = vld [vmem:[#allocation2 + $0xa4] sm:$0xf]
        %v4631 = vld [vmem:[#allocation2 + $0xa8] sm:$0xf]
        %v4632 = vld [vmem:[#allocation2 + $0xb0] sm:$0xf]
        %v4633 = vld [vmem:[#allocation2 + $0xb4] sm:$0xf]
        %v4634 = vld [vmem:[#allocation2 + $0xb8] sm:$0xf]
        %v4635 = vld [vmem:[#allocation2 + $0xc0] sm:$0xf]
        %v4636 = vld [vmem:[#allocation2 + $0xc4] sm:$0xf]
        %v4637 = vld [vmem:[#allocation2 + $0xc8] sm:$0xf]
        %v4638 = vld [vmem:[#allocation2 + $0xd0] sm:$0xf]
        %v4639 = vld [vmem:[#allocation2 + $0xd4] sm:$0xf]
        %v4640 = vld [vmem:[#allocation2 + $0xd8] sm:$0xf]
        %v4641 = vld [vmem:[#allocation2 + $0xe0] sm:$0xf]
        %v4642 = vld [vmem:[#allocation2 + $0xe4] sm:$0xf]
        %v4643 = vld [vmem:[#allocation2 + $0xe8] sm:$0xf]
        %v4644 = vld [vmem:[#allocation2 + $0xf0] sm:$0xf]
        %v4645 = vld [vmem:[#allocation2 + $0xf4] sm:$0xf]
        %v4646 = vld [vmem:[#allocation2 + $0xf8] sm:$0xf]
        %v4647 = vld [vmem:[#allocation2 + $0x100] sm:$0xf]
        %v4648 = vld [vmem:[#allocation2 + $0x104] sm:$0xf]
        %v4649 = vld [vmem:[#allocation2 + $0x108] sm:$0xf]
        %v4650 = vld [vmem:[#allocation2 + $0x110] sm:$0xf]
        %v4651 = vld [vmem:[#allocation2 + $0x114] sm:$0xf]
        %v4652 = vld [vmem:[#allocation2 + $0x118] sm:$0xf]
        %v4653 = vld [vmem:[#allocation2 + $0x120] sm:$0xf]
        %v4654 = vld [vmem:[#allocation2 + $0x124] sm:$0xf]
        %v4655 = vld [vmem:[#allocation2 + $0x128] sm:$0xf]
        %v4656 = vld [vmem:[#allocation2 + $0x130] sm:$0xf]
        %v4657 = vld [vmem:[#allocation2 + $0x134] sm:$0xf]
        %v4658 = vld [vmem:[#allocation2 + $0x138] sm:$0xf]
        %v4659 = vld [vmem:[%s1298] sm:$0xf]
        %v4660 = vld [vmem:[%s1298 + $0x4] sm:$0xf]
        %v4661 = vld [vmem:[%s1298 + $0x8] sm:$0xf]
        %v4662 = vld [vmem:[%s1298 + $0x10] sm:$0xf]
        %v4663 = vld [vmem:[%s1298 + $0x14] sm:$0xf]
        %v4664 = vld [vmem:[%s1298 + $0x18] sm:$0xf]
        %v4665 = vld [vmem:[%s1298 + $0x20] sm:$0xf]
        %v4666 = vld [vmem:[%s1298 + $0x24] sm:$0xf]
        %v4667 = vld [vmem:[%s1298 + $0x28] sm:$0xf]
        %v4668 = vld [vmem:[%s1298 + $0x30] sm:$0xf]
        %v4669 = vld [vmem:[%s1298 + $0x34] sm:$0xf]
        %v4670 = vld [vmem:[%s1298 + $0x38] sm:$0xf]
        %v4671 = vld [vmem:[%s1298 + $0x40] sm:$0xf]
        %v4672 = vld [vmem:[%s1298 + $0x44] sm:$0xf]
        %v4673 = vld [vmem:[%s1298 + $0x48] sm:$0xf]
        %v4674 = vld [vmem:[%s1298 + $0x50] sm:$0xf]
        %v4675 = vld [vmem:[%s1298 + $0x54] sm:$0xf]
        %v4676 = vld [vmem:[%s1298 + $0x58] sm:$0xf]
        %v4677 = vld [vmem:[%s1298 + $0x60] sm:$0xf]
        %v4678 = vld [vmem:[%s1298 + $0x64] sm:$0xf]
        %v4679 = vld [vmem:[%s1298 + $0x68] sm:$0xf]
        %v4680 = vld [vmem:[%s1298 + $0x70] sm:$0xf]
        %v4681 = vld [vmem:[%s1298 + $0x74] sm:$0xf]
        %v4682 = vld [vmem:[%s1298 + $0x78] sm:$0xf]
        %v4683 = vld [vmem:[%s1298 + $0x80] sm:$0xf]
        %v4684 = vld [vmem:[%s1298 + $0x84] sm:$0xf]
        %v4685 = vld [vmem:[%s1298 + $0x88] sm:$0xf]
        %v4686 = vld [vmem:[%s1298 + $0x90] sm:$0xf]
        %v4687 = vld [vmem:[%s1298 + $0x94] sm:$0xf]
        %v4688 = vld [vmem:[%s1298 + $0x98] sm:$0xf]
        %v4689 = vld [vmem:[%s1298 + $0xa0] sm:$0xf]
        %v4690 = vld [vmem:[%s1298 + $0xa4] sm:$0xf]
        %v4691 = vld [vmem:[%s1298 + $0xa8] sm:$0xf]
        %v4692 = vld [vmem:[%s1298 + $0xb0] sm:$0xf]
        %v4693 = vld [vmem:[%s1298 + $0xb4] sm:$0xf]
        %v4694 = vld [vmem:[%s1298 + $0xb8] sm:$0xf]
        %v4695 = vld [vmem:[%s1298 + $0xc0] sm:$0xf]
        %v4696 = vld [vmem:[%s1298 + $0xc4] sm:$0xf]
        %v4697 = vld [vmem:[%s1298 + $0xc8] sm:$0xf]
        %v4698 = vld [vmem:[%s1298 + $0xd0] sm:$0xf]
        %v4699 = vld [vmem:[%s1298 + $0xd4] sm:$0xf]
        %v4700 = vld [vmem:[%s1298 + $0xd8] sm:$0xf]
        %v4701 = vld [vmem:[%s1298 + $0xe0] sm:$0xf]
        %v4702 = vld [vmem:[%s1298 + $0xe4] sm:$0xf]
        %v4703 = vld [vmem:[%s1298 + $0xe8] sm:$0xf]
        %v4704 = vld [vmem:[%s1298 + $0xf0] sm:$0xf]
        %v4705 = vld [vmem:[%s1298 + $0xf4] sm:$0xf]
        %v4706 = vld [vmem:[%s1298 + $0xf8] sm:$0xf]
        %v4707 = vld [vmem:[%s1298 + $0x100] sm:$0xf]
        %v4708 = vld [vmem:[%s1298 + $0x104] sm:$0xf]
        %v4709 = vld [vmem:[%s1298 + $0x108] sm:$0xf]
        %v4710 = vld [vmem:[%s1298 + $0x110] sm:$0xf]
        %v4711 = vld [vmem:[%s1298 + $0x114] sm:$0xf]
        %v4712 = vld [vmem:[%s1298 + $0x118] sm:$0xf]
        %v4713 = vld [vmem:[%s1298 + $0x120] sm:$0xf]
        %v4714 = vld [vmem:[%s1298 + $0x124] sm:$0xf]
        %v4715 = vld [vmem:[%s1298 + $0x128] sm:$0xf]
        %v4716 = vld [vmem:[%s1298 + $0x130] sm:$0xf]
        %v4717 = vld [vmem:[%s1298 + $0x134] sm:$0xf]
        %v4718 = vld [vmem:[%s1298 + $0x138] sm:$0xf]
        %v4719 = vmax.bf16 %v4599, %v4659
        %v4720 = vmax.bf16 %v4600, %v4660
        %v4721 = vmax.bf16 %v4601, %v4661
        %v4722 = vmax.bf16 %v4602, %v4662
        %v4723 = vmax.bf16 %v4603, %v4663
        %v4724 = vmax.bf16 %v4604, %v4664
        %v4725 = vmax.bf16 %v4605, %v4665
        %v4726 = vmax.bf16 %v4606, %v4666
        %v4727 = vmax.bf16 %v4607, %v4667
        %v4728 = vmax.bf16 %v4608, %v4668
        %v4729 = vmax.bf16 %v4609, %v4669
        %v4730 = vmax.bf16 %v4610, %v4670
        %v4731 = vmax.bf16 %v4611, %v4671
        %v4732 = vmax.bf16 %v4612, %v4672
        %v4733 = vmax.bf16 %v4613, %v4673
        %v4734 = vmax.bf16 %v4614, %v4674
        %v4735 = vmax.bf16 %v4615, %v4675
        %v4736 = vmax.bf16 %v4616, %v4676
        %v4737 = vmax.bf16 %v4617, %v4677
        %v4738 = vmax.bf16 %v4618, %v4678
        %v4739 = vmax.bf16 %v4619, %v4679
        %v4740 = vmax.bf16 %v4620, %v4680
        %v4741 = vmax.bf16 %v4621, %v4681
        %v4742 = vmax.bf16 %v4622, %v4682
        %v4743 = vmax.bf16 %v4623, %v4683
        %v4744 = vmax.bf16 %v4624, %v4684
        %v4745 = vmax.bf16 %v4625, %v4685
        %v4746 = vmax.bf16 %v4626, %v4686
        %v4747 = vmax.bf16 %v4627, %v4687
        %v4748 = vmax.bf16 %v4628, %v4688
        %v4749 = vmax.bf16 %v4629, %v4689
        %v4750 = vmax.bf16 %v4630, %v4690
        %v4751 = vmax.bf16 %v4631, %v4691
        %v4752 = vmax.bf16 %v4632, %v4692
        %v4753 = vmax.bf16 %v4633, %v4693
        %v4754 = vmax.bf16 %v4634, %v4694
        %v4755 = vmax.bf16 %v4635, %v4695
        %v4756 = vmax.bf16 %v4636, %v4696
        %v4757 = vmax.bf16 %v4637, %v4697
        %v4758 = vmax.bf16 %v4638, %v4698
        %v4759 = vmax.bf16 %v4639, %v4699
        %v4760 = vmax.bf16 %v4640, %v4700
        %v4761 = vmax.bf16 %v4641, %v4701
        %v4762 = vmax.bf16 %v4642, %v4702
        %v4763 = vmax.bf16 %v4643, %v4703
        %v4764 = vmax.bf16 %v4644, %v4704
        %v4765 = vmax.bf16 %v4645, %v4705
        %v4766 = vmax.bf16 %v4646, %v4706
        %v4767 = vmax.bf16 %v4647, %v4707
        %v4768 = vmax.bf16 %v4648, %v4708
        %v4769 = vmax.bf16 %v4649, %v4709
        %v4770 = vmax.bf16 %v4650, %v4710
        %v4771 = vmax.bf16 %v4651, %v4711
        %v4772 = vmax.bf16 %v4652, %v4712
        %v4773 = vmax.bf16 %v4653, %v4713
        %v4774 = vmax.bf16 %v4654, %v4714
        %v4775 = vmax.bf16 %v4655, %v4715
        %v4776 = vmax.bf16 %v4656, %v4716
        %v4777 = vmax.bf16 %v4657, %v4717
        %v4778 = vmax.bf16 %v4658, %v4718
        %v4779 = vld [vmem:[%s1491] sm:$0xf]
        %v4780 = vld [vmem:[%s1491 + $0x4] sm:$0xf]
        %v4781 = vld [vmem:[%s1491 + $0x8] sm:$0xf]
        %v4782 = vld [vmem:[%s1491 + $0x10] sm:$0xf]
        %v4783 = vld [vmem:[%s1491 + $0x14] sm:$0xf]
        %v4784 = vld [vmem:[%s1491 + $0x18] sm:$0xf]
        %v4785 = vld [vmem:[%s1491 + $0x20] sm:$0xf]
        %v4786 = vld [vmem:[%s1491 + $0x24] sm:$0xf]
        %v4787 = vld [vmem:[%s1491 + $0x28] sm:$0xf]
        %v4788 = vld [vmem:[%s1491 + $0x30] sm:$0xf]
        %v4789 = vld [vmem:[%s1491 + $0x34] sm:$0xf]
        %v4790 = vld [vmem:[%s1491 + $0x38] sm:$0xf]
        %v4791 = vld [vmem:[%s1491 + $0x40] sm:$0xf]
        %v4792 = vld [vmem:[%s1491 + $0x44] sm:$0xf]
        %v4793 = vld [vmem:[%s1491 + $0x48] sm:$0xf]
        %v4794 = vld [vmem:[%s1491 + $0x50] sm:$0xf]
        %v4795 = vld [vmem:[%s1491 + $0x54] sm:$0xf]
        %v4796 = vld [vmem:[%s1491 + $0x58] sm:$0xf]
        %v4797 = vld [vmem:[%s1491 + $0x60] sm:$0xf]
        %v4798 = vld [vmem:[%s1491 + $0x64] sm:$0xf]
        %v4799 = vld [vmem:[%s1491 + $0x68] sm:$0xf]
        %v4800 = vld [vmem:[%s1491 + $0x70] sm:$0xf]
        %v4801 = vld [vmem:[%s1491 + $0x74] sm:$0xf]
        %v4802 = vld [vmem:[%s1491 + $0x78] sm:$0xf]
        %v4803 = vld [vmem:[%s1491 + $0x80] sm:$0xf]
        %v4804 = vld [vmem:[%s1491 + $0x84] sm:$0xf]
        %v4805 = vld [vmem:[%s1491 + $0x88] sm:$0xf]
        %v4806 = vld [vmem:[%s1491 + $0x90] sm:$0xf]
        %v4807 = vld [vmem:[%s1491 + $0x94] sm:$0xf]
        %v4808 = vld [vmem:[%s1491 + $0x98] sm:$0xf]
        %v4809 = vld [vmem:[%s1491 + $0xa0] sm:$0xf]
        %v4810 = vld [vmem:[%s1491 + $0xa4] sm:$0xf]
        %v4811 = vld [vmem:[%s1491 + $0xa8] sm:$0xf]
        %v4812 = vld [vmem:[%s1491 + $0xb0] sm:$0xf]
        %v4813 = vld [vmem:[%s1491 + $0xb4] sm:$0xf]
        %v4814 = vld [vmem:[%s1491 + $0xb8] sm:$0xf]
        %v4815 = vld [vmem:[%s1491 + $0xc0] sm:$0xf]
        %v4816 = vld [vmem:[%s1491 + $0xc4] sm:$0xf]
        %v4817 = vld [vmem:[%s1491 + $0xc8] sm:$0xf]
        %v4818 = vld [vmem:[%s1491 + $0xd0] sm:$0xf]
        %v4819 = vld [vmem:[%s1491 + $0xd4] sm:$0xf]
        %v4820 = vld [vmem:[%s1491 + $0xd8] sm:$0xf]
        %v4821 = vld [vmem:[%s1491 + $0xe0] sm:$0xf]
        %v4822 = vld [vmem:[%s1491 + $0xe4] sm:$0xf]
        %v4823 = vld [vmem:[%s1491 + $0xe8] sm:$0xf]
        %v4824 = vld [vmem:[%s1491 + $0xf0] sm:$0xf]
        %v4825 = vld [vmem:[%s1491 + $0xf4] sm:$0xf]
        %v4826 = vld [vmem:[%s1491 + $0xf8] sm:$0xf]
        %v4827 = vld [vmem:[%s1491 + $0x100] sm:$0xf]
        %v4828 = vld [vmem:[%s1491 + $0x104] sm:$0xf]
        %v4829 = vld [vmem:[%s1491 + $0x108] sm:$0xf]
        %v4830 = vld [vmem:[%s1491 + $0x110] sm:$0xf]
        %v4831 = vld [vmem:[%s1491 + $0x114] sm:$0xf]
        %v4832 = vld [vmem:[%s1491 + $0x118] sm:$0xf]
        %v4833 = vld [vmem:[%s1491 + $0x120] sm:$0xf]
        %v4834 = vld [vmem:[%s1491 + $0x124] sm:$0xf]
        %v4835 = vld [vmem:[%s1491 + $0x128] sm:$0xf]
        %v4836 = vld [vmem:[%s1491 + $0x130] sm:$0xf]
        %v4837 = vld [vmem:[%s1491 + $0x134] sm:$0xf]
        %v4838 = vld [vmem:[%s1491 + $0x138] sm:$0xf]
        %v4839 = vmax.bf16 %v4719, %v4779
        %v4840 = vmax.bf16 %v4720, %v4780
        %v4841 = vmax.bf16 %v4721, %v4781
        %v4842 = vmax.bf16 %v4722, %v4782
        %v4843 = vmax.bf16 %v4723, %v4783
        %v4844 = vmax.bf16 %v4724, %v4784
        %v4845 = vmax.bf16 %v4725, %v4785
        %v4846 = vmax.bf16 %v4726, %v4786
        %v4847 = vmax.bf16 %v4727, %v4787
        %v4848 = vmax.bf16 %v4728, %v4788
        %v4849 = vmax.bf16 %v4729, %v4789
        %v4850 = vmax.bf16 %v4730, %v4790
        %v4851 = vmax.bf16 %v4731, %v4791
        %v4852 = vmax.bf16 %v4732, %v4792
        %v4853 = vmax.bf16 %v4733, %v4793
        %v4854 = vmax.bf16 %v4734, %v4794
        %v4855 = vmax.bf16 %v4735, %v4795
        %v4856 = vmax.bf16 %v4736, %v4796
        %v4857 = vmax.bf16 %v4737, %v4797
        %v4858 = vmax.bf16 %v4738, %v4798
        %v4859 = vmax.bf16 %v4739, %v4799
        %v4860 = vmax.bf16 %v4740, %v4800
        %v4861 = vmax.bf16 %v4741, %v4801
        %v4862 = vmax.bf16 %v4742, %v4802
        %v4863 = vmax.bf16 %v4743, %v4803
        %v4864 = vmax.bf16 %v4744, %v4804
        %v4865 = vmax.bf16 %v4745, %v4805
        %v4866 = vmax.bf16 %v4746, %v4806
        %v4867 = vmax.bf16 %v4747, %v4807
        %v4868 = vmax.bf16 %v4748, %v4808
        %v4869 = vmax.bf16 %v4749, %v4809
        %v4870 = vmax.bf16 %v4750, %v4810
        %v4871 = vmax.bf16 %v4751, %v4811
        %v4872 = vmax.bf16 %v4752, %v4812
        %v4873 = vmax.bf16 %v4753, %v4813
        %v4874 = vmax.bf16 %v4754, %v4814
        %v4875 = vmax.bf16 %v4755, %v4815
        %v4876 = vmax.bf16 %v4756, %v4816
        %v4877 = vmax.bf16 %v4757, %v4817
        %v4878 = vmax.bf16 %v4758, %v4818
        %v4879 = vmax.bf16 %v4759, %v4819
        %v4880 = vmax.bf16 %v4760, %v4820
        %v4881 = vmax.bf16 %v4761, %v4821
        %v4882 = vmax.bf16 %v4762, %v4822
        %v4883 = vmax.bf16 %v4763, %v4823
        %v4884 = vmax.bf16 %v4764, %v4824
        %v4885 = vmax.bf16 %v4765, %v4825
        %v4886 = vmax.bf16 %v4766, %v4826
        %v4887 = vmax.bf16 %v4767, %v4827
        %v4888 = vmax.bf16 %v4768, %v4828
        %v4889 = vmax.bf16 %v4769, %v4829
        %v4890 = vmax.bf16 %v4770, %v4830
        %v4891 = vmax.bf16 %v4771, %v4831
        %v4892 = vmax.bf16 %v4772, %v4832
        %v4893 = vmax.bf16 %v4773, %v4833
        %v4894 = vmax.bf16 %v4774, %v4834
        %v4895 = vmax.bf16 %v4775, %v4835
        %v4896 = vmax.bf16 %v4776, %v4836
        %v4897 = vmax.bf16 %v4777, %v4837
        %v4898 = vmax.bf16 %v4778, %v4838
        %v4899 = vld [vmem:[%s1684] sm:$0xf]
        %v4900 = vld [vmem:[%s1684 + $0x4] sm:$0xf]
        %v4901 = vld [vmem:[%s1684 + $0x8] sm:$0xf]
        %v4902 = vld [vmem:[%s1684 + $0x10] sm:$0xf]
        %v4903 = vld [vmem:[%s1684 + $0x14] sm:$0xf]
        %v4904 = vld [vmem:[%s1684 + $0x18] sm:$0xf]
        %v4905 = vld [vmem:[%s1684 + $0x20] sm:$0xf]
        %v4906 = vld [vmem:[%s1684 + $0x24] sm:$0xf]
        %v4907 = vld [vmem:[%s1684 + $0x28] sm:$0xf]
        %v4908 = vld [vmem:[%s1684 + $0x30] sm:$0xf]
        %v4909 = vld [vmem:[%s1684 + $0x34] sm:$0xf]
        %v4910 = vld [vmem:[%s1684 + $0x38] sm:$0xf]
        %v4911 = vld [vmem:[%s1684 + $0x40] sm:$0xf]
        %v4912 = vld [vmem:[%s1684 + $0x44] sm:$0xf]
        %v4913 = vld [vmem:[%s1684 + $0x48] sm:$0xf]
        %v4914 = vld [vmem:[%s1684 + $0x50] sm:$0xf]
        %v4915 = vld [vmem:[%s1684 + $0x54] sm:$0xf]
        %v4916 = vld [vmem:[%s1684 + $0x58] sm:$0xf]
        %v4917 = vld [vmem:[%s1684 + $0x60] sm:$0xf]
        %v4918 = vld [vmem:[%s1684 + $0x64] sm:$0xf]
        %v4919 = vld [vmem:[%s1684 + $0x68] sm:$0xf]
        %v4920 = vld [vmem:[%s1684 + $0x70] sm:$0xf]
        %v4921 = vld [vmem:[%s1684 + $0x74] sm:$0xf]
        %v4922 = vld [vmem:[%s1684 + $0x78] sm:$0xf]
        %v4923 = vld [vmem:[%s1684 + $0x80] sm:$0xf]
        %v4924 = vld [vmem:[%s1684 + $0x84] sm:$0xf]
        %v4925 = vld [vmem:[%s1684 + $0x88] sm:$0xf]
        %v4926 = vld [vmem:[%s1684 + $0x90] sm:$0xf]
        %v4927 = vld [vmem:[%s1684 + $0x94] sm:$0xf]
        %v4928 = vld [vmem:[%s1684 + $0x98] sm:$0xf]
        %v4929 = vld [vmem:[%s1684 + $0xa0] sm:$0xf]
        %v4930 = vld [vmem:[%s1684 + $0xa4] sm:$0xf]
        %v4931 = vld [vmem:[%s1684 + $0xa8] sm:$0xf]
        %v4932 = vld [vmem:[%s1684 + $0xb0] sm:$0xf]
        %v4933 = vld [vmem:[%s1684 + $0xb4] sm:$0xf]
        %v4934 = vld [vmem:[%s1684 + $0xb8] sm:$0xf]
        %v4935 = vld [vmem:[%s1684 + $0xc0] sm:$0xf]
        %v4936 = vld [vmem:[%s1684 + $0xc4] sm:$0xf]
        %v4937 = vld [vmem:[%s1684 + $0xc8] sm:$0xf]
        %v4938 = vld [vmem:[%s1684 + $0xd0] sm:$0xf]
        %v4939 = vld [vmem:[%s1684 + $0xd4] sm:$0xf]
        %v4940 = vld [vmem:[%s1684 + $0xd8] sm:$0xf]
        %v4941 = vld [vmem:[%s1684 + $0xe0] sm:$0xf]
        %v4942 = vld [vmem:[%s1684 + $0xe4] sm:$0xf]
        %v4943 = vld [vmem:[%s1684 + $0xe8] sm:$0xf]
        %v4944 = vld [vmem:[%s1684 + $0xf0] sm:$0xf]
        %v4945 = vld [vmem:[%s1684 + $0xf4] sm:$0xf]
        %v4946 = vld [vmem:[%s1684 + $0xf8] sm:$0xf]
        %v4947 = vld [vmem:[%s1684 + $0x100] sm:$0xf]
        %v4948 = vld [vmem:[%s1684 + $0x104] sm:$0xf]
        %v4949 = vld [vmem:[%s1684 + $0x108] sm:$0xf]
        %v4950 = vld [vmem:[%s1684 + $0x110] sm:$0xf]
        %v4951 = vld [vmem:[%s1684 + $0x114] sm:$0xf]
        %v4952 = vld [vmem:[%s1684 + $0x118] sm:$0xf]
        %v4953 = vld [vmem:[%s1684 + $0x120] sm:$0xf]
        %v4954 = vld [vmem:[%s1684 + $0x124] sm:$0xf]
        %v4955 = vld [vmem:[%s1684 + $0x128] sm:$0xf]
        %v4956 = vld [vmem:[%s1684 + $0x130] sm:$0xf]
        %v4957 = vld [vmem:[%s1684 + $0x134] sm:$0xf]
        %v4958 = vld [vmem:[%s1684 + $0x138] sm:$0xf]
        %v4959 = vmax.bf16 %v4839, %v4899
        %v4960 = vmax.bf16 %v4840, %v4900
        %v4961 = vmax.bf16 %v4841, %v4901
        %v4962 = vmax.bf16 %v4842, %v4902
        %v4963 = vmax.bf16 %v4843, %v4903
        %v4964 = vmax.bf16 %v4844, %v4904
        %v4965 = vmax.bf16 %v4845, %v4905
        %v4966 = vmax.bf16 %v4846, %v4906
        %v4967 = vmax.bf16 %v4847, %v4907
        %v4968 = vmax.bf16 %v4848, %v4908
        %v4969 = vmax.bf16 %v4849, %v4909
        %v4970 = vmax.bf16 %v4850, %v4910
        %v4971 = vmax.bf16 %v4851, %v4911
        %v4972 = vmax.bf16 %v4852, %v4912
        %v4973 = vmax.bf16 %v4853, %v4913
        %v4974 = vmax.bf16 %v4854, %v4914
        %v4975 = vmax.bf16 %v4855, %v4915
        %v4976 = vmax.bf16 %v4856, %v4916
        %v4977 = vmax.bf16 %v4857, %v4917
        %v4978 = vmax.bf16 %v4858, %v4918
        %v4979 = vmax.bf16 %v4859, %v4919
        %v4980 = vmax.bf16 %v4860, %v4920
        %v4981 = vmax.bf16 %v4861, %v4921
        %v4982 = vmax.bf16 %v4862, %v4922
        %v4983 = vmax.bf16 %v4863, %v4923
        %v4984 = vmax.bf16 %v4864, %v4924
        %v4985 = vmax.bf16 %v4865, %v4925
        %v4986 = vmax.bf16 %v4866, %v4926
        %v4987 = vmax.bf16 %v4867, %v4927
        %v4988 = vmax.bf16 %v4868, %v4928
        %v4989 = vmax.bf16 %v4869, %v4929
        %v4990 = vmax.bf16 %v4870, %v4930
        %v4991 = vmax.bf16 %v4871, %v4931
        %v4992 = vmax.bf16 %v4872, %v4932
        %v4993 = vmax.bf16 %v4873, %v4933
        %v4994 = vmax.bf16 %v4874, %v4934
        %v4995 = vmax.bf16 %v4875, %v4935
        %v4996 = vmax.bf16 %v4876, %v4936
        %v4997 = vmax.bf16 %v4877, %v4937
        %v4998 = vmax.bf16 %v4878, %v4938
        %v4999 = vmax.bf16 %v4879, %v4939
        %v5000 = vmax.bf16 %v4880, %v4940
        %v5001 = vmax.bf16 %v4881, %v4941
        %v5002 = vmax.bf16 %v4882, %v4942
        %v5003 = vmax.bf16 %v4883, %v4943
        %v5004 = vmax.bf16 %v4884, %v4944
        %v5005 = vmax.bf16 %v4885, %v4945
        %v5006 = vmax.bf16 %v4886, %v4946
        %v5007 = vmax.bf16 %v4887, %v4947
        %v5008 = vmax.bf16 %v4888, %v4948
        %v5009 = vmax.bf16 %v4889, %v4949
        %v5010 = vmax.bf16 %v4890, %v4950
        %v5011 = vmax.bf16 %v4891, %v4951
        %v5012 = vmax.bf16 %v4892, %v4952
        %v5013 = vmax.bf16 %v4893, %v4953
        %v5014 = vmax.bf16 %v4894, %v4954
        %v5015 = vmax.bf16 %v4895, %v4955
        %v5016 = vmax.bf16 %v4896, %v4956
        %v5017 = vmax.bf16 %v4897, %v4957
        %v5018 = vmax.bf16 %v4898, %v4958
        %v5019 = vld [vmem:[%s1877] sm:$0xf]
        %v5020 = vld [vmem:[%s1877 + $0x4] sm:$0xf]
        %v5021 = vld [vmem:[%s1877 + $0x8] sm:$0xf]
        %v5022 = vld [vmem:[%s1877 + $0x10] sm:$0xf]
        %v5023 = vld [vmem:[%s1877 + $0x14] sm:$0xf]
        %v5024 = vld [vmem:[%s1877 + $0x18] sm:$0xf]
        %v5025 = vld [vmem:[%s1877 + $0x20] sm:$0xf]
        %v5026 = vld [vmem:[%s1877 + $0x24] sm:$0xf]
        %v5027 = vld [vmem:[%s1877 + $0x28] sm:$0xf]
        %v5028 = vld [vmem:[%s1877 + $0x30] sm:$0xf]
        %v5029 = vld [vmem:[%s1877 + $0x34] sm:$0xf]
        %v5030 = vld [vmem:[%s1877 + $0x38] sm:$0xf]
        %v5031 = vld [vmem:[%s1877 + $0x40] sm:$0xf]
        %v5032 = vld [vmem:[%s1877 + $0x44] sm:$0xf]
        %v5033 = vld [vmem:[%s1877 + $0x48] sm:$0xf]
        %v5034 = vld [vmem:[%s1877 + $0x50] sm:$0xf]
        %v5035 = vld [vmem:[%s1877 + $0x54] sm:$0xf]
        %v5036 = vld [vmem:[%s1877 + $0x58] sm:$0xf]
        %v5037 = vld [vmem:[%s1877 + $0x60] sm:$0xf]
        %v5038 = vld [vmem:[%s1877 + $0x64] sm:$0xf]
        %v5039 = vld [vmem:[%s1877 + $0x68] sm:$0xf]
        %v5040 = vld [vmem:[%s1877 + $0x70] sm:$0xf]
        %v5041 = vld [vmem:[%s1877 + $0x74] sm:$0xf]
        %v5042 = vld [vmem:[%s1877 + $0x78] sm:$0xf]
        %v5043 = vld [vmem:[%s1877 + $0x80] sm:$0xf]
        %v5044 = vld [vmem:[%s1877 + $0x84] sm:$0xf]
        %v5045 = vld [vmem:[%s1877 + $0x88] sm:$0xf]
        %v5046 = vld [vmem:[%s1877 + $0x90] sm:$0xf]
        %v5047 = vld [vmem:[%s1877 + $0x94] sm:$0xf]
        %v5048 = vld [vmem:[%s1877 + $0x98] sm:$0xf]
        %v5049 = vld [vmem:[%s1877 + $0xa0] sm:$0xf]
        %v5050 = vld [vmem:[%s1877 + $0xa4] sm:$0xf]
        %v5051 = vld [vmem:[%s1877 + $0xa8] sm:$0xf]
        %v5052 = vld [vmem:[%s1877 + $0xb0] sm:$0xf]
        %v5053 = vld [vmem:[%s1877 + $0xb4] sm:$0xf]
        %v5054 = vld [vmem:[%s1877 + $0xb8] sm:$0xf]
        %v5055 = vld [vmem:[%s1877 + $0xc0] sm:$0xf]
        %v5056 = vld [vmem:[%s1877 + $0xc4] sm:$0xf]
        %v5057 = vld [vmem:[%s1877 + $0xc8] sm:$0xf]
        %v5058 = vld [vmem:[%s1877 + $0xd0] sm:$0xf]
        %v5059 = vld [vmem:[%s1877 + $0xd4] sm:$0xf]
        %v5060 = vld [vmem:[%s1877 + $0xd8] sm:$0xf]
        %v5061 = vld [vmem:[%s1877 + $0xe0] sm:$0xf]
        %v5062 = vld [vmem:[%s1877 + $0xe4] sm:$0xf]
        %v5063 = vld [vmem:[%s1877 + $0xe8] sm:$0xf]
        %v5064 = vld [vmem:[%s1877 + $0xf0] sm:$0xf]
        %v5065 = vld [vmem:[%s1877 + $0xf4] sm:$0xf]
        %v5066 = vld [vmem:[%s1877 + $0xf8] sm:$0xf]
        %v5067 = vld [vmem:[%s1877 + $0x100] sm:$0xf]
        %v5068 = vld [vmem:[%s1877 + $0x104] sm:$0xf]
        %v5069 = vld [vmem:[%s1877 + $0x108] sm:$0xf]
        %v5070 = vld [vmem:[%s1877 + $0x110] sm:$0xf]
        %v5071 = vld [vmem:[%s1877 + $0x114] sm:$0xf]
        %v5072 = vld [vmem:[%s1877 + $0x118] sm:$0xf]
        %v5073 = vld [vmem:[%s1877 + $0x120] sm:$0xf]
        %v5074 = vld [vmem:[%s1877 + $0x124] sm:$0xf]
        %v5075 = vld [vmem:[%s1877 + $0x128] sm:$0xf]
        %v5076 = vld [vmem:[%s1877 + $0x130] sm:$0xf]
        %v5077 = vld [vmem:[%s1877 + $0x134] sm:$0xf]
        %v5078 = vld [vmem:[%s1877 + $0x138] sm:$0xf]
        %v5079 = vmax.bf16 %v4959, %v5019
        %v5080 = vmax.bf16 %v4960, %v5020
        %v5081 = vmax.bf16 %v4961, %v5021
        %v5082 = vmax.bf16 %v4962, %v5022
        %v5083 = vmax.bf16 %v4963, %v5023
        %v5084 = vmax.bf16 %v4964, %v5024
        %v5085 = vmax.bf16 %v4965, %v5025
        %v5086 = vmax.bf16 %v4966, %v5026
        %v5087 = vmax.bf16 %v4967, %v5027
        %v5088 = vmax.bf16 %v4968, %v5028
        %v5089 = vmax.bf16 %v4969, %v5029
        %v5090 = vmax.bf16 %v4970, %v5030
        %v5091 = vmax.bf16 %v4971, %v5031
        %v5092 = vmax.bf16 %v4972, %v5032
        %v5093 = vmax.bf16 %v4973, %v5033
        %v5094 = vmax.bf16 %v4974, %v5034
        %v5095 = vmax.bf16 %v4975, %v5035
        %v5096 = vmax.bf16 %v4976, %v5036
        %v5097 = vmax.bf16 %v4977, %v5037
        %v5098 = vmax.bf16 %v4978, %v5038
        %v5099 = vmax.bf16 %v4979, %v5039
        %v5100 = vmax.bf16 %v4980, %v5040
        %v5101 = vmax.bf16 %v4981, %v5041
        %v5102 = vmax.bf16 %v4982, %v5042
        %v5103 = vmax.bf16 %v4983, %v5043
        %v5104 = vmax.bf16 %v4984, %v5044
        %v5105 = vmax.bf16 %v4985, %v5045
        %v5106 = vmax.bf16 %v4986, %v5046
        %v5107 = vmax.bf16 %v4987, %v5047
        %v5108 = vmax.bf16 %v4988, %v5048
        %v5109 = vmax.bf16 %v4989, %v5049
        %v5110 = vmax.bf16 %v4990, %v5050
        %v5111 = vmax.bf16 %v4991, %v5051
        %v5112 = vmax.bf16 %v4992, %v5052
        %v5113 = vmax.bf16 %v4993, %v5053
        %v5114 = vmax.bf16 %v4994, %v5054
        %v5115 = vmax.bf16 %v4995, %v5055
        %v5116 = vmax.bf16 %v4996, %v5056
        %v5117 = vmax.bf16 %v4997, %v5057
        %v5118 = vmax.bf16 %v4998, %v5058
        %v5119 = vmax.bf16 %v4999, %v5059
        %v5120 = vmax.bf16 %v5000, %v5060
        %v5121 = vmax.bf16 %v5001, %v5061
        %v5122 = vmax.bf16 %v5002, %v5062
        %v5123 = vmax.bf16 %v5003, %v5063
        %v5124 = vmax.bf16 %v5004, %v5064
        %v5125 = vmax.bf16 %v5005, %v5065
        %v5126 = vmax.bf16 %v5006, %v5066
        %v5127 = vmax.bf16 %v5007, %v5067
        %v5128 = vmax.bf16 %v5008, %v5068
        %v5129 = vmax.bf16 %v5009, %v5069
        %v5130 = vmax.bf16 %v5010, %v5070
        %v5131 = vmax.bf16 %v5011, %v5071
        %v5132 = vmax.bf16 %v5012, %v5072
        %v5133 = vmax.bf16 %v5013, %v5073
        %v5134 = vmax.bf16 %v5014, %v5074
        %v5135 = vmax.bf16 %v5015, %v5075
        %v5136 = vmax.bf16 %v5016, %v5076
        %v5137 = vmax.bf16 %v5017, %v5077
        %v5138 = vmax.bf16 %v5018, %v5078
        %v5140 = vshrl.u32 %v5079, 16
        %v5142 = vrot.slane %v5140, 4
        %v5143 = vshll.u32 %v5079, 16
        %v5145 = vrot.slane %v5143, 5
        %v5146 = vor.u32 %v5142, %v5145
        %v5147 = vrot.slane %v5146, 4
        %v5149 = vshll.u32 %v5080, 16
        %v5151 = vrot.slane %v5149, 5
        %v5152 = vsel %vm2072, %v5147, %v5151
        %v5153 = vshrl.u32 %v5080, 16
        %v5155 = vrot.slane %v5153, 4
        %v5156 = vor.u32 %v5155, %v5151
        %v5157 = vrot.slane %v5156, 4
        %v5159 = vshll.u32 %v5081, 16
        %v5161 = vrot.slane %v5159, 5
        %v5162 = vsel %vm2072, %v5157, %v5161
        %v5163 = vshrl.u32 %v5081, 16
        %v5165 = vrot.slane %v5163, 4
        %v5166 = vor.u32 %v5165, %v5161
        %v5167 = vrot.slane %v5166, 4
        %v5169 = vshrl.u32 %v5082, 16
        %v5171 = vrot.slane %v5169, 4
        %v5172 = vshll.u32 %v5082, 16
        %v5174 = vrot.slane %v5172, 5
        %v5175 = vor.u32 %v5171, %v5174
        %v5176 = vrot.slane %v5175, 4
        %v5178 = vshll.u32 %v5083, 16
        %v5180 = vrot.slane %v5178, 5
        %v5181 = vsel %vm2072, %v5176, %v5180
        %v5182 = vshrl.u32 %v5083, 16
        %v5184 = vrot.slane %v5182, 4
        %v5185 = vor.u32 %v5184, %v5180
        %v5186 = vrot.slane %v5185, 4
        %v5188 = vshll.u32 %v5084, 16
        %v5190 = vrot.slane %v5188, 5
        %v5191 = vsel %vm2072, %v5186, %v5190
        %v5192 = vshrl.u32 %v5084, 16
        %v5194 = vrot.slane %v5192, 4
        %v5195 = vor.u32 %v5194, %v5190
        %v5196 = vrot.slane %v5195, 4
        %v5198 = vshrl.u32 %v5085, 16
        %v5200 = vrot.slane %v5198, 4
        %v5201 = vshll.u32 %v5085, 16
        %v5203 = vrot.slane %v5201, 5
        %v5204 = vor.u32 %v5200, %v5203
        %v5205 = vrot.slane %v5204, 4
        %v5207 = vshll.u32 %v5086, 16
        %v5209 = vrot.slane %v5207, 5
        %v5210 = vsel %vm2072, %v5205, %v5209
        %v5211 = vshrl.u32 %v5086, 16
        %v5213 = vrot.slane %v5211, 4
        %v5214 = vor.u32 %v5213, %v5209
        %v5215 = vrot.slane %v5214, 4
        %v5217 = vshll.u32 %v5087, 16
        %v5219 = vrot.slane %v5217, 5
        %v5220 = vsel %vm2072, %v5215, %v5219
        %v5221 = vshrl.u32 %v5087, 16
        %v5223 = vrot.slane %v5221, 4
        %v5224 = vor.u32 %v5223, %v5219
        %v5225 = vrot.slane %v5224, 4
        %v5227 = vshrl.u32 %v5088, 16
        %v5229 = vrot.slane %v5227, 4
        %v5230 = vshll.u32 %v5088, 16
        %v5232 = vrot.slane %v5230, 5
        %v5233 = vor.u32 %v5229, %v5232
        %v5234 = vrot.slane %v5233, 4
        %v5236 = vshll.u32 %v5089, 16
        %v5238 = vrot.slane %v5236, 5
        %v5239 = vsel %vm2072, %v5234, %v5238
        %v5240 = vshrl.u32 %v5089, 16
        %v5242 = vrot.slane %v5240, 4
        %v5243 = vor.u32 %v5242, %v5238
        %v5244 = vrot.slane %v5243, 4
        %v5246 = vshll.u32 %v5090, 16
        %v5248 = vrot.slane %v5246, 5
        %v5249 = vsel %vm2072, %v5244, %v5248
        %v5250 = vshrl.u32 %v5090, 16
        %v5252 = vrot.slane %v5250, 4
        %v5253 = vor.u32 %v5252, %v5248
        %v5254 = vrot.slane %v5253, 4
        %v5256 = vshrl.u32 %v5091, 16
        %v5258 = vrot.slane %v5256, 4
        %v5259 = vshll.u32 %v5091, 16
        %v5261 = vrot.slane %v5259, 5
        %v5262 = vor.u32 %v5258, %v5261
        %v5263 = vrot.slane %v5262, 4
        %v5265 = vshll.u32 %v5092, 16
        %v5267 = vrot.slane %v5265, 5
        %v5268 = vsel %vm2072, %v5263, %v5267
        %v5269 = vshrl.u32 %v5092, 16
        %v5271 = vrot.slane %v5269, 4
        %v5272 = vor.u32 %v5271, %v5267
        %v5273 = vrot.slane %v5272, 4
        %v5275 = vshll.u32 %v5093, 16
        %v5277 = vrot.slane %v5275, 5
        %v5278 = vsel %vm2072, %v5273, %v5277
        %v5279 = vshrl.u32 %v5093, 16
        %v5281 = vrot.slane %v5279, 4
        %v5282 = vor.u32 %v5281, %v5277
        %v5283 = vrot.slane %v5282, 4
        %v5285 = vshrl.u32 %v5094, 16
        %v5287 = vrot.slane %v5285, 4
        %v5288 = vshll.u32 %v5094, 16
        %v5290 = vrot.slane %v5288, 5
        %v5291 = vor.u32 %v5287, %v5290
        %v5292 = vrot.slane %v5291, 4
        %v5294 = vshll.u32 %v5095, 16
        %v5296 = vrot.slane %v5294, 5
        %v5297 = vsel %vm2072, %v5292, %v5296
        %v5298 = vshrl.u32 %v5095, 16
        %v5300 = vrot.slane %v5298, 4
        %v5301 = vor.u32 %v5300, %v5296
        %v5302 = vrot.slane %v5301, 4
        %v5304 = vshll.u32 %v5096, 16
        %v5306 = vrot.slane %v5304, 5
        %v5307 = vsel %vm2072, %v5302, %v5306
        %v5308 = vshrl.u32 %v5096, 16
        %v5310 = vrot.slane %v5308, 4
        %v5311 = vor.u32 %v5310, %v5306
        %v5312 = vrot.slane %v5311, 4
        %v5314 = vshrl.u32 %v5097, 16
        %v5316 = vrot.slane %v5314, 4
        %v5317 = vshll.u32 %v5097, 16
        %v5319 = vrot.slane %v5317, 5
        %v5320 = vor.u32 %v5316, %v5319
        %v5321 = vrot.slane %v5320, 4
        %v5323 = vshll.u32 %v5098, 16
        %v5325 = vrot.slane %v5323, 5
        %v5326 = vsel %vm2072, %v5321, %v5325
        %v5327 = vshrl.u32 %v5098, 16
        %v5329 = vrot.slane %v5327, 4
        %v5330 = vor.u32 %v5329, %v5325
        %v5331 = vrot.slane %v5330, 4
        %v5333 = vshll.u32 %v5099, 16
        %v5335 = vrot.slane %v5333, 5
        %v5336 = vsel %vm2072, %v5331, %v5335
        %v5337 = vshrl.u32 %v5099, 16
        %v5339 = vrot.slane %v5337, 4
        %v5340 = vor.u32 %v5339, %v5335
        %v5341 = vrot.slane %v5340, 4
        %v5343 = vshrl.u32 %v5100, 16
        %v5345 = vrot.slane %v5343, 4
        %v5346 = vshll.u32 %v5100, 16
        %v5348 = vrot.slane %v5346, 5
        %v5349 = vor.u32 %v5345, %v5348
        %v5350 = vrot.slane %v5349, 4
        %v5352 = vshll.u32 %v5101, 16
        %v5354 = vrot.slane %v5352, 5
        %v5355 = vsel %vm2072, %v5350, %v5354
        %v5356 = vshrl.u32 %v5101, 16
        %v5358 = vrot.slane %v5356, 4
        %v5359 = vor.u32 %v5358, %v5354
        %v5360 = vrot.slane %v5359, 4
        %v5362 = vshll.u32 %v5102, 16
        %v5364 = vrot.slane %v5362, 5
        %v5365 = vsel %vm2072, %v5360, %v5364
        %v5366 = vshrl.u32 %v5102, 16
        %v5368 = vrot.slane %v5366, 4
        %v5369 = vor.u32 %v5368, %v5364
        %v5370 = vrot.slane %v5369, 4
        %v5372 = vshrl.u32 %v5103, 16
        %v5374 = vrot.slane %v5372, 4
        %v5375 = vshll.u32 %v5103, 16
        %v5377 = vrot.slane %v5375, 5
        %v5378 = vor.u32 %v5374, %v5377
        %v5379 = vrot.slane %v5378, 4
        %v5381 = vshll.u32 %v5104, 16
        %v5383 = vrot.slane %v5381, 5
        %v5384 = vsel %vm2072, %v5379, %v5383
        %v5385 = vshrl.u32 %v5104, 16
        %v5387 = vrot.slane %v5385, 4
        %v5388 = vor.u32 %v5387, %v5383
        %v5389 = vrot.slane %v5388, 4
        %v5391 = vshll.u32 %v5105, 16
        %v5393 = vrot.slane %v5391, 5
        %v5394 = vsel %vm2072, %v5389, %v5393
        %v5395 = vshrl.u32 %v5105, 16
        %v5397 = vrot.slane %v5395, 4
        %v5398 = vor.u32 %v5397, %v5393
        %v5399 = vrot.slane %v5398, 4
        %v5401 = vshrl.u32 %v5106, 16
        %v5403 = vrot.slane %v5401, 4
        %v5404 = vshll.u32 %v5106, 16
        %v5406 = vrot.slane %v5404, 5
        %v5407 = vor.u32 %v5403, %v5406
        %v5408 = vrot.slane %v5407, 4
        %v5410 = vshll.u32 %v5107, 16
        %v5412 = vrot.slane %v5410, 5
        %v5413 = vsel %vm2072, %v5408, %v5412
        %v5414 = vshrl.u32 %v5107, 16
        %v5416 = vrot.slane %v5414, 4
        %v5417 = vor.u32 %v5416, %v5412
        %v5418 = vrot.slane %v5417, 4
        %v5420 = vshll.u32 %v5108, 16
        %v5422 = vrot.slane %v5420, 5
        %v5423 = vsel %vm2072, %v5418, %v5422
        %v5424 = vshrl.u32 %v5108, 16
        %v5426 = vrot.slane %v5424, 4
        %v5427 = vor.u32 %v5426, %v5422
        %v5428 = vrot.slane %v5427, 4
        %v5430 = vshrl.u32 %v5109, 16
        %v5432 = vrot.slane %v5430, 4
        %v5433 = vshll.u32 %v5109, 16
        %v5435 = vrot.slane %v5433, 5
        %v5436 = vor.u32 %v5432, %v5435
        %v5437 = vrot.slane %v5436, 4
        %v5439 = vshll.u32 %v5110, 16
        %v5441 = vrot.slane %v5439, 5
        %v5442 = vsel %vm2072, %v5437, %v5441
        %v5443 = vshrl.u32 %v5110, 16
        %v5445 = vrot.slane %v5443, 4
        %v5446 = vor.u32 %v5445, %v5441
        %v5447 = vrot.slane %v5446, 4
        %v5449 = vshll.u32 %v5111, 16
        %v5451 = vrot.slane %v5449, 5
        %v5452 = vsel %vm2072, %v5447, %v5451
        %v5453 = vshrl.u32 %v5111, 16
        %v5455 = vrot.slane %v5453, 4
        %v5456 = vor.u32 %v5455, %v5451
        %v5457 = vrot.slane %v5456, 4
        %v5459 = vshrl.u32 %v5112, 16
        %v5461 = vrot.slane %v5459, 4
        %v5462 = vshll.u32 %v5112, 16
        %v5464 = vrot.slane %v5462, 5
        %v5465 = vor.u32 %v5461, %v5464
        %v5466 = vrot.slane %v5465, 4
        %v5468 = vshll.u32 %v5113, 16
        %v5470 = vrot.slane %v5468, 5
        %v5471 = vsel %vm2072, %v5466, %v5470
        %v5472 = vshrl.u32 %v5113, 16
        %v5474 = vrot.slane %v5472, 4
        %v5475 = vor.u32 %v5474, %v5470
        %v5476 = vrot.slane %v5475, 4
        %v5478 = vshll.u32 %v5114, 16
        %v5480 = vrot.slane %v5478, 5
        %v5481 = vsel %vm2072, %v5476, %v5480
        %v5482 = vshrl.u32 %v5114, 16
        %v5484 = vrot.slane %v5482, 4
        %v5485 = vor.u32 %v5484, %v5480
        %v5486 = vrot.slane %v5485, 4
        %v5488 = vshrl.u32 %v5115, 16
        %v5490 = vrot.slane %v5488, 4
        %v5491 = vshll.u32 %v5115, 16
        %v5493 = vrot.slane %v5491, 5
        %v5494 = vor.u32 %v5490, %v5493
        %v5495 = vrot.slane %v5494, 4
        %v5497 = vshll.u32 %v5116, 16
        %v5499 = vrot.slane %v5497, 5
        %v5500 = vsel %vm2072, %v5495, %v5499
        %v5501 = vshrl.u32 %v5116, 16
        %v5503 = vrot.slane %v5501, 4
        %v5504 = vor.u32 %v5503, %v5499
        %v5505 = vrot.slane %v5504, 4
        %v5507 = vshll.u32 %v5117, 16
        %v5509 = vrot.slane %v5507, 5
        %v5510 = vsel %vm2072, %v5505, %v5509
        %v5511 = vshrl.u32 %v5117, 16
        %v5513 = vrot.slane %v5511, 4
        %v5514 = vor.u32 %v5513, %v5509
        %v5515 = vrot.slane %v5514, 4
        %v5517 = vshrl.u32 %v5118, 16
        %v5519 = vrot.slane %v5517, 4
        %v5520 = vshll.u32 %v5118, 16
        %v5522 = vrot.slane %v5520, 5
        %v5523 = vor.u32 %v5519, %v5522
        %v5524 = vrot.slane %v5523, 4
        %v5526 = vshll.u32 %v5119, 16
        %v5528 = vrot.slane %v5526, 5
        %v5529 = vsel %vm2072, %v5524, %v5528
        %v5530 = vshrl.u32 %v5119, 16
        %v5532 = vrot.slane %v5530, 4
        %v5533 = vor.u32 %v5532, %v5528
        %v5534 = vrot.slane %v5533, 4
        %v5536 = vshll.u32 %v5120, 16
        %v5538 = vrot.slane %v5536, 5
        %v5539 = vsel %vm2072, %v5534, %v5538
        %v5540 = vshrl.u32 %v5120, 16
        %v5542 = vrot.slane %v5540, 4
        %v5543 = vor.u32 %v5542, %v5538
        %v5544 = vrot.slane %v5543, 4
        %v5546 = vshrl.u32 %v5121, 16
        %v5548 = vrot.slane %v5546, 4
        %v5549 = vshll.u32 %v5121, 16
        %v5551 = vrot.slane %v5549, 5
        %v5552 = vor.u32 %v5548, %v5551
        %v5553 = vrot.slane %v5552, 4
        %v5555 = vshll.u32 %v5122, 16
        %v5557 = vrot.slane %v5555, 5
        %v5558 = vsel %vm2072, %v5553, %v5557
        %v5559 = vshrl.u32 %v5122, 16
        %v5561 = vrot.slane %v5559, 4
        %v5562 = vor.u32 %v5561, %v5557
        %v5563 = vrot.slane %v5562, 4
        %v5565 = vshll.u32 %v5123, 16
        %v5567 = vrot.slane %v5565, 5
        %v5568 = vsel %vm2072, %v5563, %v5567
        %v5569 = vshrl.u32 %v5123, 16
        %v5571 = vrot.slane %v5569, 4
        %v5572 = vor.u32 %v5571, %v5567
        %v5573 = vrot.slane %v5572, 4
        %v5575 = vshrl.u32 %v5124, 16
        %v5577 = vrot.slane %v5575, 4
        %v5578 = vshll.u32 %v5124, 16
        %v5580 = vrot.slane %v5578, 5
        %v5581 = vor.u32 %v5577, %v5580
        %v5582 = vrot.slane %v5581, 4
        %v5584 = vshll.u32 %v5125, 16
        %v5586 = vrot.slane %v5584, 5
        %v5587 = vsel %vm2072, %v5582, %v5586
        %v5588 = vshrl.u32 %v5125, 16
        %v5590 = vrot.slane %v5588, 4
        %v5591 = vor.u32 %v5590, %v5586
        %v5592 = vrot.slane %v5591, 4
        %v5594 = vshll.u32 %v5126, 16
        %v5596 = vrot.slane %v5594, 5
        %v5597 = vsel %vm2072, %v5592, %v5596
        %v5598 = vshrl.u32 %v5126, 16
        %v5600 = vrot.slane %v5598, 4
        %v5601 = vor.u32 %v5600, %v5596
        %v5602 = vrot.slane %v5601, 4
        %v5604 = vshrl.u32 %v5127, 16
        %v5606 = vrot.slane %v5604, 4
        %v5607 = vshll.u32 %v5127, 16
        %v5609 = vrot.slane %v5607, 5
        %v5610 = vor.u32 %v5606, %v5609
        %v5611 = vrot.slane %v5610, 4
        %v5613 = vshll.u32 %v5128, 16
        %v5615 = vrot.slane %v5613, 5
        %v5616 = vsel %vm2072, %v5611, %v5615
        %v5617 = vshrl.u32 %v5128, 16
        %v5619 = vrot.slane %v5617, 4
        %v5620 = vor.u32 %v5619, %v5615
        %v5621 = vrot.slane %v5620, 4
        %v5623 = vshll.u32 %v5129, 16
        %v5625 = vrot.slane %v5623, 5
        %v5626 = vsel %vm2072, %v5621, %v5625
        %v5627 = vshrl.u32 %v5129, 16
        %v5629 = vrot.slane %v5627, 4
        %v5630 = vor.u32 %v5629, %v5625
        %v5631 = vrot.slane %v5630, 4
        %v5633 = vshrl.u32 %v5130, 16
        %v5635 = vrot.slane %v5633, 4
        %v5636 = vshll.u32 %v5130, 16
        %v5638 = vrot.slane %v5636, 5
        %v5639 = vor.u32 %v5635, %v5638
        %v5640 = vrot.slane %v5639, 4
        %v5642 = vshll.u32 %v5131, 16
        %v5644 = vrot.slane %v5642, 5
        %v5645 = vsel %vm2072, %v5640, %v5644
        %v5646 = vshrl.u32 %v5131, 16
        %v5648 = vrot.slane %v5646, 4
        %v5649 = vor.u32 %v5648, %v5644
        %v5650 = vrot.slane %v5649, 4
        %v5652 = vshll.u32 %v5132, 16
        %v5654 = vrot.slane %v5652, 5
        %v5655 = vsel %vm2072, %v5650, %v5654
        %v5656 = vshrl.u32 %v5132, 16
        %v5658 = vrot.slane %v5656, 4
        %v5659 = vor.u32 %v5658, %v5654
        %v5660 = vrot.slane %v5659, 4
        %v5662 = vshrl.u32 %v5133, 16
        %v5664 = vrot.slane %v5662, 4
        %v5665 = vshll.u32 %v5133, 16
        %v5667 = vrot.slane %v5665, 5
        %v5668 = vor.u32 %v5664, %v5667
        %v5669 = vrot.slane %v5668, 4
        %v5671 = vshll.u32 %v5134, 16
        %v5673 = vrot.slane %v5671, 5
        %v5674 = vsel %vm2072, %v5669, %v5673
        %v5675 = vshrl.u32 %v5134, 16
        %v5677 = vrot.slane %v5675, 4
        %v5678 = vor.u32 %v5677, %v5673
        %v5679 = vrot.slane %v5678, 4
        %v5681 = vshll.u32 %v5135, 16
        %v5683 = vrot.slane %v5681, 5
        %v5684 = vsel %vm2072, %v5679, %v5683
        %v5685 = vshrl.u32 %v5135, 16
        %v5687 = vrot.slane %v5685, 4
        %v5688 = vor.u32 %v5687, %v5683
        %v5689 = vrot.slane %v5688, 4
        %v5691 = vshrl.u32 %v5136, 16
        %v5693 = vrot.slane %v5691, 4
        %v5694 = vshll.u32 %v5136, 16
        %v5696 = vrot.slane %v5694, 5
        %v5697 = vor.u32 %v5693, %v5696
        %v5698 = vrot.slane %v5697, 4
        %v5700 = vshll.u32 %v5137, 16
        %v5702 = vrot.slane %v5700, 5
        %v5703 = vsel %vm2072, %v5698, %v5702
        %v5704 = vshrl.u32 %v5137, 16
        %v5706 = vrot.slane %v5704, 4
        %v5707 = vor.u32 %v5706, %v5702
        %v5708 = vrot.slane %v5707, 4
        %v5710 = vshll.u32 %v5138, 16
        %v5712 = vrot.slane %v5710, 5
        %v5713 = vsel %vm2072, %v5708, %v5712
        %v5714 = vshrl.u32 %v5138, 16
        %v5716 = vrot.slane %v5714, 4
        %v5717 = vor.u32 %v5716, %v5712
        %v5718 = vrot.slane %v5717, 4
        %v5779 = vmax.bf16 %v5079, %v5152
        %v5780 = vmax.bf16 %v5080, %v5162
        %v5781 = vmax.bf16 %v5081, %v5167
        %v5782 = vmax.bf16 %v5082, %v5181
        %v5783 = vmax.bf16 %v5083, %v5191
        %v5784 = vmax.bf16 %v5084, %v5196
        %v5785 = vmax.bf16 %v5085, %v5210
        %v5786 = vmax.bf16 %v5086, %v5220
        %v5787 = vmax.bf16 %v5087, %v5225
        %v5788 = vmax.bf16 %v5088, %v5239
        %v5789 = vmax.bf16 %v5089, %v5249
        %v5790 = vmax.bf16 %v5090, %v5254
        %v5791 = vmax.bf16 %v5091, %v5268
        %v5792 = vmax.bf16 %v5092, %v5278
        %v5793 = vmax.bf16 %v5093, %v5283
        %v5794 = vmax.bf16 %v5094, %v5297
        %v5795 = vmax.bf16 %v5095, %v5307
        %v5796 = vmax.bf16 %v5096, %v5312
        %v5797 = vmax.bf16 %v5097, %v5326
        %v5798 = vmax.bf16 %v5098, %v5336
        %v5799 = vmax.bf16 %v5099, %v5341
        %v5800 = vmax.bf16 %v5100, %v5355
        %v5801 = vmax.bf16 %v5101, %v5365
        %v5802 = vmax.bf16 %v5102, %v5370
        %v5803 = vmax.bf16 %v5103, %v5384
        %v5804 = vmax.bf16 %v5104, %v5394
        %v5805 = vmax.bf16 %v5105, %v5399
        %v5806 = vmax.bf16 %v5106, %v5413
        %v5807 = vmax.bf16 %v5107, %v5423
        %v5808 = vmax.bf16 %v5108, %v5428
        %v5809 = vmax.bf16 %v5109, %v5442
        %v5810 = vmax.bf16 %v5110, %v5452
        %v5811 = vmax.bf16 %v5111, %v5457
        %v5812 = vmax.bf16 %v5112, %v5471
        %v5813 = vmax.bf16 %v5113, %v5481
        %v5814 = vmax.bf16 %v5114, %v5486
        %v5815 = vmax.bf16 %v5115, %v5500
        %v5816 = vmax.bf16 %v5116, %v5510
        %v5817 = vmax.bf16 %v5117, %v5515
        %v5818 = vmax.bf16 %v5118, %v5529
        %v5819 = vmax.bf16 %v5119, %v5539
        %v5820 = vmax.bf16 %v5120, %v5544
        %v5821 = vmax.bf16 %v5121, %v5558
        %v5822 = vmax.bf16 %v5122, %v5568
        %v5823 = vmax.bf16 %v5123, %v5573
        %v5824 = vmax.bf16 %v5124, %v5587
        %v5825 = vmax.bf16 %v5125, %v5597
        %v5826 = vmax.bf16 %v5126, %v5602
        %v5827 = vmax.bf16 %v5127, %v5616
        %v5828 = vmax.bf16 %v5128, %v5626
        %v5829 = vmax.bf16 %v5129, %v5631
        %v5830 = vmax.bf16 %v5130, %v5645
        %v5831 = vmax.bf16 %v5131, %v5655
        %v5832 = vmax.bf16 %v5132, %v5660
        %v5833 = vmax.bf16 %v5133, %v5674
        %v5834 = vmax.bf16 %v5134, %v5684
        %v5835 = vmax.bf16 %v5135, %v5689
        %v5836 = vmax.bf16 %v5136, %v5703
        %v5837 = vmax.bf16 %v5137, %v5713
        %v5838 = vmax.bf16 %v5138, %v5718
        %v5899 = vrot.slane %v5079, 5
        %v5900 = vrot.slane %v5899, 4
        %v5901 = vrot.slane %v5080, 5
        %v5902 = vsel %vm1022, %v5900, %v5901
        %v5903 = vrot.slane %v5901, 4
        %v5904 = vrot.slane %v5081, 5
        %v5905 = vsel %vm1022, %v5903, %v5904
        %v5906 = vrot.slane %v5904, 4
        %v5907 = vrot.slane %v5082, 5
        %v5908 = vrot.slane %v5907, 4
        %v5909 = vrot.slane %v5083, 5
        %v5910 = vsel %vm1022, %v5908, %v5909
        %v5911 = vrot.slane %v5909, 4
        %v5912 = vrot.slane %v5084, 5
        %v5913 = vsel %vm1022, %v5911, %v5912
        %v5914 = vrot.slane %v5912, 4
        %v5915 = vrot.slane %v5085, 5
        %v5916 = vrot.slane %v5915, 4
        %v5917 = vrot.slane %v5086, 5
        %v5918 = vsel %vm1022, %v5916, %v5917
        %v5919 = vrot.slane %v5917, 4
        %v5920 = vrot.slane %v5087, 5
        %v5921 = vsel %vm1022, %v5919, %v5920
        %v5922 = vrot.slane %v5920, 4
        %v5923 = vrot.slane %v5088, 5
        %v5924 = vrot.slane %v5923, 4
        %v5925 = vrot.slane %v5089, 5
        %v5926 = vsel %vm1022, %v5924, %v5925
        %v5927 = vrot.slane %v5925, 4
        %v5928 = vrot.slane %v5090, 5
        %v5929 = vsel %vm1022, %v5927, %v5928
        %v5930 = vrot.slane %v5928, 4
        %v5931 = vrot.slane %v5091, 5
        %v5932 = vrot.slane %v5931, 4
        %v5933 = vrot.slane %v5092, 5
        %v5934 = vsel %vm1022, %v5932, %v5933
        %v5935 = vrot.slane %v5933, 4
        %v5936 = vrot.slane %v5093, 5
        %v5937 = vsel %vm1022, %v5935, %v5936
        %v5938 = vrot.slane %v5936, 4
        %v5939 = vrot.slane %v5094, 5
        %v5940 = vrot.slane %v5939, 4
        %v5941 = vrot.slane %v5095, 5
        %v5942 = vsel %vm1022, %v5940, %v5941
        %v5943 = vrot.slane %v5941, 4
        %v5944 = vrot.slane %v5096, 5
        %v5945 = vsel %vm1022, %v5943, %v5944
        %v5946 = vrot.slane %v5944, 4
        %v5947 = vrot.slane %v5097, 5
        %v5948 = vrot.slane %v5947, 4
        %v5949 = vrot.slane %v5098, 5
        %v5950 = vsel %vm1022, %v5948, %v5949
        %v5951 = vrot.slane %v5949, 4
        %v5952 = vrot.slane %v5099, 5
        %v5953 = vsel %vm1022, %v5951, %v5952
        %v5954 = vrot.slane %v5952, 4
        %v5955 = vrot.slane %v5100, 5
        %v5956 = vrot.slane %v5955, 4
        %v5957 = vrot.slane %v5101, 5
        %v5958 = vsel %vm1022, %v5956, %v5957
        %v5959 = vrot.slane %v5957, 4
        %v5960 = vrot.slane %v5102, 5
        %v5961 = vsel %vm1022, %v5959, %v5960
        %v5962 = vrot.slane %v5960, 4
        %v5963 = vrot.slane %v5103, 5
        %v5964 = vrot.slane %v5963, 4
        %v5965 = vrot.slane %v5104, 5
        %v5966 = vsel %vm1022, %v5964, %v5965
        %v5967 = vrot.slane %v5965, 4
        %v5968 = vrot.slane %v5105, 5
        %v5969 = vsel %vm1022, %v5967, %v5968
        %v5970 = vrot.slane %v5968, 4
        %v5971 = vrot.slane %v5106, 5
        %v5972 = vrot.slane %v5971, 4
        %v5973 = vrot.slane %v5107, 5
        %v5974 = vsel %vm1022, %v5972, %v5973
        %v5975 = vrot.slane %v5973, 4
        %v5976 = vrot.slane %v5108, 5
        %v5977 = vsel %vm1022, %v5975, %v5976
        %v5978 = vrot.slane %v5976, 4
        %v5979 = vrot.slane %v5109, 5
        %v5980 = vrot.slane %v5979, 4
        %v5981 = vrot.slane %v5110, 5
        %v5982 = vsel %vm1022, %v5980, %v5981
        %v5983 = vrot.slane %v5981, 4
        %v5984 = vrot.slane %v5111, 5
        %v5985 = vsel %vm1022, %v5983, %v5984
        %v5986 = vrot.slane %v5984, 4
        %v5987 = vrot.slane %v5112, 5
        %v5988 = vrot.slane %v5987, 4
        %v5989 = vrot.slane %v5113, 5
        %v5990 = vsel %vm1022, %v5988, %v5989
        %v5991 = vrot.slane %v5989, 4
        %v5992 = vrot.slane %v5114, 5
        %v5993 = vsel %vm1022, %v5991, %v5992
        %v5994 = vrot.slane %v5992, 4
        %v5995 = vrot.slane %v5115, 5
        %v5996 = vrot.slane %v5995, 4
        %v5997 = vrot.slane %v5116, 5
        %v5998 = vsel %vm1022, %v5996, %v5997
        %v5999 = vrot.slane %v5997, 4
        %v6000 = vrot.slane %v5117, 5
        %v6001 = vsel %vm1022, %v5999, %v6000
        %v6002 = vrot.slane %v6000, 4
        %v6003 = vrot.slane %v5118, 5
        %v6004 = vrot.slane %v6003, 4
        %v6005 = vrot.slane %v5119, 5
        %v6006 = vsel %vm1022, %v6004, %v6005
        %v6007 = vrot.slane %v6005, 4
        %v6008 = vrot.slane %v5120, 5
        %v6009 = vsel %vm1022, %v6007, %v6008
        %v6010 = vrot.slane %v6008, 4
        %v6011 = vrot.slane %v5121, 5
        %v6012 = vrot.slane %v6011, 4
        %v6013 = vrot.slane %v5122, 5
        %v6014 = vsel %vm1022, %v6012, %v6013
        %v6015 = vrot.slane %v6013, 4
        %v6016 = vrot.slane %v5123, 5
        %v6017 = vsel %vm1022, %v6015, %v6016
        %v6018 = vrot.slane %v6016, 4
        %v6019 = vrot.slane %v5124, 5
        %v6020 = vrot.slane %v6019, 4
        %v6021 = vrot.slane %v5125, 5
        %v6022 = vsel %vm1022, %v6020, %v6021
        %v6023 = vrot.slane %v6021, 4
        %v6024 = vrot.slane %v5126, 5
        %v6025 = vsel %vm1022, %v6023, %v6024
        %v6026 = vrot.slane %v6024, 4
        %v6027 = vrot.slane %v5127, 5
        %v6028 = vrot.slane %v6027, 4
        %v6029 = vrot.slane %v5128, 5
        %v6030 = vsel %vm1022, %v6028, %v6029
        %v6031 = vrot.slane %v6029, 4
        %v6032 = vrot.slane %v5129, 5
        %v6033 = vsel %vm1022, %v6031, %v6032
        %v6034 = vrot.slane %v6032, 4
        %v6035 = vrot.slane %v5130, 5
        %v6036 = vrot.slane %v6035, 4
        %v6037 = vrot.slane %v5131, 5
        %v6038 = vsel %vm1022, %v6036, %v6037
        %v6039 = vrot.slane %v6037, 4
        %v6040 = vrot.slane %v5132, 5
        %v6041 = vsel %vm1022, %v6039, %v6040
        %v6042 = vrot.slane %v6040, 4
        %v6043 = vrot.slane %v5133, 5
        %v6044 = vrot.slane %v6043, 4
        %v6045 = vrot.slane %v5134, 5
        %v6046 = vsel %vm1022, %v6044, %v6045
        %v6047 = vrot.slane %v6045, 4
        %v6048 = vrot.slane %v5135, 5
        %v6049 = vsel %vm1022, %v6047, %v6048
        %v6050 = vrot.slane %v6048, 4
        %v6051 = vrot.slane %v5136, 5
        %v6052 = vrot.slane %v6051, 4
        %v6053 = vrot.slane %v5137, 5
        %v6054 = vsel %vm1022, %v6052, %v6053
        %v6055 = vrot.slane %v6053, 4
        %v6056 = vrot.slane %v5138, 5
        %v6057 = vsel %vm1022, %v6055, %v6056
        %v6058 = vrot.slane %v6056, 4
        %v6119 = vmax.bf16 %v5779, %v5902
        %v6120 = vmax.bf16 %v5780, %v5905
        %v6121 = vmax.bf16 %v5781, %v5906
        %v6122 = vmax.bf16 %v5782, %v5910
        %v6123 = vmax.bf16 %v5783, %v5913
        %v6124 = vmax.bf16 %v5784, %v5914
        %v6125 = vmax.bf16 %v5785, %v5918
        %v6126 = vmax.bf16 %v5786, %v5921
        %v6127 = vmax.bf16 %v5787, %v5922
        %v6128 = vmax.bf16 %v5788, %v5926
        %v6129 = vmax.bf16 %v5789, %v5929
        %v6130 = vmax.bf16 %v5790, %v5930
        %v6131 = vmax.bf16 %v5791, %v5934
        %v6132 = vmax.bf16 %v5792, %v5937
        %v6133 = vmax.bf16 %v5793, %v5938
        %v6134 = vmax.bf16 %v5794, %v5942
        %v6135 = vmax.bf16 %v5795, %v5945
        %v6136 = vmax.bf16 %v5796, %v5946
        %v6137 = vmax.bf16 %v5797, %v5950
        %v6138 = vmax.bf16 %v5798, %v5953
        %v6139 = vmax.bf16 %v5799, %v5954
        %v6140 = vmax.bf16 %v5800, %v5958
        %v6141 = vmax.bf16 %v5801, %v5961
        %v6142 = vmax.bf16 %v5802, %v5962
        %v6143 = vmax.bf16 %v5803, %v5966
        %v6144 = vmax.bf16 %v5804, %v5969
        %v6145 = vmax.bf16 %v5805, %v5970
        %v6146 = vmax.bf16 %v5806, %v5974
        %v6147 = vmax.bf16 %v5807, %v5977
        %v6148 = vmax.bf16 %v5808, %v5978
        %v6149 = vmax.bf16 %v5809, %v5982
        %v6150 = vmax.bf16 %v5810, %v5985
        %v6151 = vmax.bf16 %v5811, %v5986
        %v6152 = vmax.bf16 %v5812, %v5990
        %v6153 = vmax.bf16 %v5813, %v5993
        %v6154 = vmax.bf16 %v5814, %v5994
        %v6155 = vmax.bf16 %v5815, %v5998
        %v6156 = vmax.bf16 %v5816, %v6001
        %v6157 = vmax.bf16 %v5817, %v6002
        %v6158 = vmax.bf16 %v5818, %v6006
        %v6159 = vmax.bf16 %v5819, %v6009
        %v6160 = vmax.bf16 %v5820, %v6010
        %v6161 = vmax.bf16 %v5821, %v6014
        %v6162 = vmax.bf16 %v5822, %v6017
        %v6163 = vmax.bf16 %v5823, %v6018
        %v6164 = vmax.bf16 %v5824, %v6022
        %v6165 = vmax.bf16 %v5825, %v6025
        %v6166 = vmax.bf16 %v5826, %v6026
        %v6167 = vmax.bf16 %v5827, %v6030
        %v6168 = vmax.bf16 %v5828, %v6033
        %v6169 = vmax.bf16 %v5829, %v6034
        %v6170 = vmax.bf16 %v5830, %v6038
        %v6171 = vmax.bf16 %v5831, %v6041
        %v6172 = vmax.bf16 %v5832, %v6042
        %v6173 = vmax.bf16 %v5833, %v6046
        %v6174 = vmax.bf16 %v5834, %v6049
        %v6175 = vmax.bf16 %v5835, %v6050
        %v6176 = vmax.bf16 %v5836, %v6054
        %v6177 = vmax.bf16 %v5837, %v6057
        %v6178 = vmax.bf16 %v5838, %v6058
        %v6179 = vrot.slane %v5140, 5
        %v6180 = vrot.slane %v5143, 6
        %v6181 = vor.u32 %v6179, %v6180
        %v6182 = vrot.slane %v6181, 4
        %v6183 = vrot.slane %v5153, 5
        %v6184 = vrot.slane %v5149, 6
        %v6185 = vor.u32 %v6183, %v6184
        %v6186 = vsel %vm3515, %v6182, %v6185
        %v6187 = vrot.slane %v6185, 4
        %v6188 = vrot.slane %v5163, 5
        %v6189 = vrot.slane %v5159, 6
        %v6190 = vor.u32 %v6188, %v6189
        %v6191 = vsel %vm3515, %v6187, %v6190
        %v6192 = vrot.slane %v6190, 4
        %v6193 = vrot.slane %v5169, 5
        %v6194 = vrot.slane %v5172, 6
        %v6195 = vor.u32 %v6193, %v6194
        %v6196 = vrot.slane %v6195, 4
        %v6197 = vrot.slane %v5182, 5
        %v6198 = vrot.slane %v5178, 6
        %v6199 = vor.u32 %v6197, %v6198
        %v6200 = vsel %vm3515, %v6196, %v6199
        %v6201 = vrot.slane %v6199, 4
        %v6202 = vrot.slane %v5192, 5
        %v6203 = vrot.slane %v5188, 6
        %v6204 = vor.u32 %v6202, %v6203
        %v6205 = vsel %vm3515, %v6201, %v6204
        %v6206 = vrot.slane %v6204, 4
        %v6207 = vrot.slane %v5198, 5
        %v6208 = vrot.slane %v5201, 6
        %v6209 = vor.u32 %v6207, %v6208
        %v6210 = vrot.slane %v6209, 4
        %v6211 = vrot.slane %v5211, 5
        %v6212 = vrot.slane %v5207, 6
        %v6213 = vor.u32 %v6211, %v6212
        %v6214 = vsel %vm3515, %v6210, %v6213
        %v6215 = vrot.slane %v6213, 4
        %v6216 = vrot.slane %v5221, 5
        %v6217 = vrot.slane %v5217, 6
        %v6218 = vor.u32 %v6216, %v6217
        %v6219 = vsel %vm3515, %v6215, %v6218
        %v6220 = vrot.slane %v6218, 4
        %v6221 = vrot.slane %v5227, 5
        %v6222 = vrot.slane %v5230, 6
        %v6223 = vor.u32 %v6221, %v6222
        %v6224 = vrot.slane %v6223, 4
        %v6225 = vrot.slane %v5240, 5
        %v6226 = vrot.slane %v5236, 6
        %v6227 = vor.u32 %v6225, %v6226
        %v6228 = vsel %vm3515, %v6224, %v6227
        %v6229 = vrot.slane %v6227, 4
        %v6230 = vrot.slane %v5250, 5
        %v6231 = vrot.slane %v5246, 6
        %v6232 = vor.u32 %v6230, %v6231
        %v6233 = vsel %vm3515, %v6229, %v6232
        %v6234 = vrot.slane %v6232, 4
        %v6235 = vrot.slane %v5256, 5
        %v6236 = vrot.slane %v5259, 6
        %v6237 = vor.u32 %v6235, %v6236
        %v6238 = vrot.slane %v6237, 4
        %v6239 = vrot.slane %v5269, 5
        %v6240 = vrot.slane %v5265, 6
        %v6241 = vor.u32 %v6239, %v6240
        %v6242 = vsel %vm3515, %v6238, %v6241
        %v6243 = vrot.slane %v6241, 4
        %v6244 = vrot.slane %v5279, 5
        %v6245 = vrot.slane %v5275, 6
        %v6246 = vor.u32 %v6244, %v6245
        %v6247 = vsel %vm3515, %v6243, %v6246
        %v6248 = vrot.slane %v6246, 4
        %v6249 = vrot.slane %v5285, 5
        %v6250 = vrot.slane %v5288, 6
        %v6251 = vor.u32 %v6249, %v6250
        %v6252 = vrot.slane %v6251, 4
        %v6253 = vrot.slane %v5298, 5
        %v6254 = vrot.slane %v5294, 6
        %v6255 = vor.u32 %v6253, %v6254
        %v6256 = vsel %vm3515, %v6252, %v6255
        %v6257 = vrot.slane %v6255, 4
        %v6258 = vrot.slane %v5308, 5
        %v6259 = vrot.slane %v5304, 6
        %v6260 = vor.u32 %v6258, %v6259
        %v6261 = vsel %vm3515, %v6257, %v6260
        %v6262 = vrot.slane %v6260, 4
        %v6263 = vrot.slane %v5314, 5
        %v6264 = vrot.slane %v5317, 6
        %v6265 = vor.u32 %v6263, %v6264
        %v6266 = vrot.slane %v6265, 4
        %v6267 = vrot.slane %v5327, 5
        %v6268 = vrot.slane %v5323, 6
        %v6269 = vor.u32 %v6267, %v6268
        %v6270 = vsel %vm3515, %v6266, %v6269
        %v6271 = vrot.slane %v6269, 4
        %v6272 = vrot.slane %v5337, 5
        %v6273 = vrot.slane %v5333, 6
        %v6274 = vor.u32 %v6272, %v6273
        %v6275 = vsel %vm3515, %v6271, %v6274
        %v6276 = vrot.slane %v6274, 4
        %v6277 = vrot.slane %v5343, 5
        %v6278 = vrot.slane %v5346, 6
        %v6279 = vor.u32 %v6277, %v6278
        %v6280 = vrot.slane %v6279, 4
        %v6281 = vrot.slane %v5356, 5
        %v6282 = vrot.slane %v5352, 6
        %v6283 = vor.u32 %v6281, %v6282
        %v6284 = vsel %vm3515, %v6280, %v6283
        %v6285 = vrot.slane %v6283, 4
        %v6286 = vrot.slane %v5366, 5
        %v6287 = vrot.slane %v5362, 6
        %v6288 = vor.u32 %v6286, %v6287
        %v6289 = vsel %vm3515, %v6285, %v6288
        %v6290 = vrot.slane %v6288, 4
        %v6291 = vrot.slane %v5372, 5
        %v6292 = vrot.slane %v5375, 6
        %v6293 = vor.u32 %v6291, %v6292
        %v6294 = vrot.slane %v6293, 4
        %v6295 = vrot.slane %v5385, 5
        %v6296 = vrot.slane %v5381, 6
        %v6297 = vor.u32 %v6295, %v6296
        %v6298 = vsel %vm3515, %v6294, %v6297
        %v6299 = vrot.slane %v6297, 4
        %v6300 = vrot.slane %v5395, 5
        %v6301 = vrot.slane %v5391, 6
        %v6302 = vor.u32 %v6300, %v6301
        %v6303 = vsel %vm3515, %v6299, %v6302
        %v6304 = vrot.slane %v6302, 4
        %v6305 = vrot.slane %v5401, 5
        %v6306 = vrot.slane %v5404, 6
        %v6307 = vor.u32 %v6305, %v6306
        %v6308 = vrot.slane %v6307, 4
        %v6309 = vrot.slane %v5414, 5
        %v6310 = vrot.slane %v5410, 6
        %v6311 = vor.u32 %v6309, %v6310
        %v6312 = vsel %vm3515, %v6308, %v6311
        %v6313 = vrot.slane %v6311, 4
        %v6314 = vrot.slane %v5424, 5
        %v6315 = vrot.slane %v5420, 6
        %v6316 = vor.u32 %v6314, %v6315
        %v6317 = vsel %vm3515, %v6313, %v6316
        %v6318 = vrot.slane %v6316, 4
        %v6319 = vrot.slane %v5430, 5
        %v6320 = vrot.slane %v5433, 6
        %v6321 = vor.u32 %v6319, %v6320
        %v6322 = vrot.slane %v6321, 4
        %v6323 = vrot.slane %v5443, 5
        %v6324 = vrot.slane %v5439, 6
        %v6325 = vor.u32 %v6323, %v6324
        %v6326 = vsel %vm3515, %v6322, %v6325
        %v6327 = vrot.slane %v6325, 4
        %v6328 = vrot.slane %v5453, 5
        %v6329 = vrot.slane %v5449, 6
        %v6330 = vor.u32 %v6328, %v6329
        %v6331 = vsel %vm3515, %v6327, %v6330
        %v6332 = vrot.slane %v6330, 4
        %v6333 = vrot.slane %v5459, 5
        %v6334 = vrot.slane %v5462, 6
        %v6335 = vor.u32 %v6333, %v6334
        %v6336 = vrot.slane %v6335, 4
        %v6337 = vrot.slane %v5472, 5
        %v6338 = vrot.slane %v5468, 6
        %v6339 = vor.u32 %v6337, %v6338
        %v6340 = vsel %vm3515, %v6336, %v6339
        %v6341 = vrot.slane %v6339, 4
        %v6342 = vrot.slane %v5482, 5
        %v6343 = vrot.slane %v5478, 6
        %v6344 = vor.u32 %v6342, %v6343
        %v6345 = vsel %vm3515, %v6341, %v6344
        %v6346 = vrot.slane %v6344, 4
        %v6347 = vrot.slane %v5488, 5
        %v6348 = vrot.slane %v5491, 6
        %v6349 = vor.u32 %v6347, %v6348
        %v6350 = vrot.slane %v6349, 4
        %v6351 = vrot.slane %v5501, 5
        %v6352 = vrot.slane %v5497, 6
        %v6353 = vor.u32 %v6351, %v6352
        %v6354 = vsel %vm3515, %v6350, %v6353
        %v6355 = vrot.slane %v6353, 4
        %v6356 = vrot.slane %v5511, 5
        %v6357 = vrot.slane %v5507, 6
        %v6358 = vor.u32 %v6356, %v6357
        %v6359 = vsel %vm3515, %v6355, %v6358
        %v6360 = vrot.slane %v6358, 4
        %v6361 = vrot.slane %v5517, 5
        %v6362 = vrot.slane %v5520, 6
        %v6363 = vor.u32 %v6361, %v6362
        %v6364 = vrot.slane %v6363, 4
        %v6365 = vrot.slane %v5530, 5
        %v6366 = vrot.slane %v5526, 6
        %v6367 = vor.u32 %v6365, %v6366
        %v6368 = vsel %vm3515, %v6364, %v6367
        %v6369 = vrot.slane %v6367, 4
        %v6370 = vrot.slane %v5540, 5
        %v6371 = vrot.slane %v5536, 6
        %v6372 = vor.u32 %v6370, %v6371
        %v6373 = vsel %vm3515, %v6369, %v6372
        %v6374 = vrot.slane %v6372, 4
        %v6375 = vrot.slane %v5546, 5
        %v6376 = vrot.slane %v5549, 6
        %v6377 = vor.u32 %v6375, %v6376
        %v6378 = vrot.slane %v6377, 4
        %v6379 = vrot.slane %v5559, 5
        %v6380 = vrot.slane %v5555, 6
        %v6381 = vor.u32 %v6379, %v6380
        %v6382 = vsel %vm3515, %v6378, %v6381
        %v6383 = vrot.slane %v6381, 4
        %v6384 = vrot.slane %v5569, 5
        %v6385 = vrot.slane %v5565, 6
        %v6386 = vor.u32 %v6384, %v6385
        %v6387 = vsel %vm3515, %v6383, %v6386
        %v6388 = vrot.slane %v6386, 4
        %v6389 = vrot.slane %v5575, 5
        %v6390 = vrot.slane %v5578, 6
        %v6391 = vor.u32 %v6389, %v6390
        %v6392 = vrot.slane %v6391, 4
        %v6393 = vrot.slane %v5588, 5
        %v6394 = vrot.slane %v5584, 6
        %v6395 = vor.u32 %v6393, %v6394
        %v6396 = vsel %vm3515, %v6392, %v6395
        %v6397 = vrot.slane %v6395, 4
        %v6398 = vrot.slane %v5598, 5
        %v6399 = vrot.slane %v5594, 6
        %v6400 = vor.u32 %v6398, %v6399
        %v6401 = vsel %vm3515, %v6397, %v6400
        %v6402 = vrot.slane %v6400, 4
        %v6403 = vrot.slane %v5604, 5
        %v6404 = vrot.slane %v5607, 6
        %v6405 = vor.u32 %v6403, %v6404
        %v6406 = vrot.slane %v6405, 4
        %v6407 = vrot.slane %v5617, 5
        %v6408 = vrot.slane %v5613, 6
        %v6409 = vor.u32 %v6407, %v6408
        %v6410 = vsel %vm3515, %v6406, %v6409
        %v6411 = vrot.slane %v6409, 4
        %v6412 = vrot.slane %v5627, 5
        %v6413 = vrot.slane %v5623, 6
        %v6414 = vor.u32 %v6412, %v6413
        %v6415 = vsel %vm3515, %v6411, %v6414
        %v6416 = vrot.slane %v6414, 4
        %v6417 = vrot.slane %v5633, 5
        %v6418 = vrot.slane %v5636, 6
        %v6419 = vor.u32 %v6417, %v6418
        %v6420 = vrot.slane %v6419, 4
        %v6421 = vrot.slane %v5646, 5
        %v6422 = vrot.slane %v5642, 6
        %v6423 = vor.u32 %v6421, %v6422
        %v6424 = vsel %vm3515, %v6420, %v6423
        %v6425 = vrot.slane %v6423, 4
        %v6426 = vrot.slane %v5656, 5
        %v6427 = vrot.slane %v5652, 6
        %v6428 = vor.u32 %v6426, %v6427
        %v6429 = vsel %vm3515, %v6425, %v6428
        %v6430 = vrot.slane %v6428, 4
        %v6431 = vrot.slane %v5662, 5
        %v6432 = vrot.slane %v5665, 6
        %v6433 = vor.u32 %v6431, %v6432
        %v6434 = vrot.slane %v6433, 4
        %v6435 = vrot.slane %v5675, 5
        %v6436 = vrot.slane %v5671, 6
        %v6437 = vor.u32 %v6435, %v6436
        %v6438 = vsel %vm3515, %v6434, %v6437
        %v6439 = vrot.slane %v6437, 4
        %v6440 = vrot.slane %v5685, 5
        %v6441 = vrot.slane %v5681, 6
        %v6442 = vor.u32 %v6440, %v6441
        %v6443 = vsel %vm3515, %v6439, %v6442
        %v6444 = vrot.slane %v6442, 4
        %v6445 = vrot.slane %v5691, 5
        %v6446 = vrot.slane %v5694, 6
        %v6447 = vor.u32 %v6445, %v6446
        %v6448 = vrot.slane %v6447, 4
        %v6449 = vrot.slane %v5704, 5
        %v6450 = vrot.slane %v5700, 6
        %v6451 = vor.u32 %v6449, %v6450
        %v6452 = vsel %vm3515, %v6448, %v6451
        %v6453 = vrot.slane %v6451, 4
        %v6454 = vrot.slane %v5714, 5
        %v6455 = vrot.slane %v5710, 6
        %v6456 = vor.u32 %v6454, %v6455
        %v6457 = vsel %vm3515, %v6453, %v6456
        %v6458 = vrot.slane %v6456, 4
        %v6519 = vmax.bf16 %v6119, %v6186
        %v6520 = vmax.bf16 %v6120, %v6191
        %v6521 = vmax.bf16 %v6121, %v6192
        %v6522 = vmax.bf16 %v6122, %v6200
        %v6523 = vmax.bf16 %v6123, %v6205
        %v6524 = vmax.bf16 %v6124, %v6206
        %v6525 = vmax.bf16 %v6125, %v6214
        %v6526 = vmax.bf16 %v6126, %v6219
        %v6527 = vmax.bf16 %v6127, %v6220
        %v6528 = vmax.bf16 %v6128, %v6228
        %v6529 = vmax.bf16 %v6129, %v6233
        %v6530 = vmax.bf16 %v6130, %v6234
        %v6531 = vmax.bf16 %v6131, %v6242
        %v6532 = vmax.bf16 %v6132, %v6247
        %v6533 = vmax.bf16 %v6133, %v6248
        %v6534 = vmax.bf16 %v6134, %v6256
        %v6535 = vmax.bf16 %v6135, %v6261
        %v6536 = vmax.bf16 %v6136, %v6262
        %v6537 = vmax.bf16 %v6137, %v6270
        %v6538 = vmax.bf16 %v6138, %v6275
        %v6539 = vmax.bf16 %v6139, %v6276
        %v6540 = vmax.bf16 %v6140, %v6284
        %v6541 = vmax.bf16 %v6141, %v6289
        %v6542 = vmax.bf16 %v6142, %v6290
        %v6543 = vmax.bf16 %v6143, %v6298
        %v6544 = vmax.bf16 %v6144, %v6303
        %v6545 = vmax.bf16 %v6145, %v6304
        %v6546 = vmax.bf16 %v6146, %v6312
        %v6547 = vmax.bf16 %v6147, %v6317
        %v6548 = vmax.bf16 %v6148, %v6318
        %v6549 = vmax.bf16 %v6149, %v6326
        %v6550 = vmax.bf16 %v6150, %v6331
        %v6551 = vmax.bf16 %v6151, %v6332
        %v6552 = vmax.bf16 %v6152, %v6340
        %v6553 = vmax.bf16 %v6153, %v6345
        %v6554 = vmax.bf16 %v6154, %v6346
        %v6555 = vmax.bf16 %v6155, %v6354
        %v6556 = vmax.bf16 %v6156, %v6359
        %v6557 = vmax.bf16 %v6157, %v6360
        %v6558 = vmax.bf16 %v6158, %v6368
        %v6559 = vmax.bf16 %v6159, %v6373
        %v6560 = vmax.bf16 %v6160, %v6374
        %v6561 = vmax.bf16 %v6161, %v6382
        %v6562 = vmax.bf16 %v6162, %v6387
        %v6563 = vmax.bf16 %v6163, %v6388
        %v6564 = vmax.bf16 %v6164, %v6396
        %v6565 = vmax.bf16 %v6165, %v6401
        %v6566 = vmax.bf16 %v6166, %v6402
        %v6567 = vmax.bf16 %v6167, %v6410
        %v6568 = vmax.bf16 %v6168, %v6415
        %v6569 = vmax.bf16 %v6169, %v6416
        %v6570 = vmax.bf16 %v6170, %v6424
        %v6571 = vmax.bf16 %v6171, %v6429
        %v6572 = vmax.bf16 %v6172, %v6430
        %v6573 = vmax.bf16 %v6173, %v6438
        %v6574 = vmax.bf16 %v6174, %v6443
        %v6575 = vmax.bf16 %v6175, %v6444
        %v6576 = vmax.bf16 %v6176, %v6452
        %v6577 = vmax.bf16 %v6177, %v6457
        %v6578 = vmax.bf16 %v6178, %v6458
        %v6579 = vrot.slane %v5079, 6
        %v6580 = vrot.slane %v6579, 4
        %v6581 = vrot.slane %v5080, 6
        %v6582 = vsel %vm4142, %v6580, %v6581
        %v6583 = vrot.slane %v6581, 4
        %v6584 = vrot.slane %v5081, 6
        %v6585 = vsel %vm4142, %v6583, %v6584
        %v6586 = vrot.slane %v6584, 4
        %v6587 = vrot.slane %v5082, 6
        %v6588 = vrot.slane %v6587, 4
        %v6589 = vrot.slane %v5083, 6
        %v6590 = vsel %vm4142, %v6588, %v6589
        %v6591 = vrot.slane %v6589, 4
        %v6592 = vrot.slane %v5084, 6
        %v6593 = vsel %vm4142, %v6591, %v6592
        %v6594 = vrot.slane %v6592, 4
        %v6595 = vrot.slane %v5085, 6
        %v6596 = vrot.slane %v6595, 4
        %v6597 = vrot.slane %v5086, 6
        %v6598 = vsel %vm4142, %v6596, %v6597
        %v6599 = vrot.slane %v6597, 4
        %v6600 = vrot.slane %v5087, 6
        %v6601 = vsel %vm4142, %v6599, %v6600
        %v6602 = vrot.slane %v6600, 4
        %v6603 = vrot.slane %v5088, 6
        %v6604 = vrot.slane %v6603, 4
        %v6605 = vrot.slane %v5089, 6
        %v6606 = vsel %vm4142, %v6604, %v6605
        %v6607 = vrot.slane %v6605, 4
        %v6608 = vrot.slane %v5090, 6
        %v6609 = vsel %vm4142, %v6607, %v6608
        %v6610 = vrot.slane %v6608, 4
        %v6611 = vrot.slane %v5091, 6
        %v6612 = vrot.slane %v6611, 4
        %v6613 = vrot.slane %v5092, 6
        %v6614 = vsel %vm4142, %v6612, %v6613
        %v6615 = vrot.slane %v6613, 4
        %v6616 = vrot.slane %v5093, 6
        %v6617 = vsel %vm4142, %v6615, %v6616
        %v6618 = vrot.slane %v6616, 4
        %v6619 = vrot.slane %v5094, 6
        %v6620 = vrot.slane %v6619, 4
        %v6621 = vrot.slane %v5095, 6
        %v6622 = vsel %vm4142, %v6620, %v6621
        %v6623 = vrot.slane %v6621, 4
        %v6624 = vrot.slane %v5096, 6
        %v6625 = vsel %vm4142, %v6623, %v6624
        %v6626 = vrot.slane %v6624, 4
        %v6627 = vrot.slane %v5097, 6
        %v6628 = vrot.slane %v6627, 4
        %v6629 = vrot.slane %v5098, 6
        %v6630 = vsel %vm4142, %v6628, %v6629
        %v6631 = vrot.slane %v6629, 4
        %v6632 = vrot.slane %v5099, 6
        %v6633 = vsel %vm4142, %v6631, %v6632
        %v6634 = vrot.slane %v6632, 4
        %v6635 = vrot.slane %v5100, 6
        %v6636 = vrot.slane %v6635, 4
        %v6637 = vrot.slane %v5101, 6
        %v6638 = vsel %vm4142, %v6636, %v6637
        %v6639 = vrot.slane %v6637, 4
        %v6640 = vrot.slane %v5102, 6
        %v6641 = vsel %vm4142, %v6639, %v6640
        %v6642 = vrot.slane %v6640, 4
        %v6643 = vrot.slane %v5103, 6
        %v6644 = vrot.slane %v6643, 4
        %v6645 = vrot.slane %v5104, 6
        %v6646 = vsel %vm4142, %v6644, %v6645
        %v6647 = vrot.slane %v6645, 4
        %v6648 = vrot.slane %v5105, 6
        %v6649 = vsel %vm4142, %v6647, %v6648
        %v6650 = vrot.slane %v6648, 4
        %v6651 = vrot.slane %v5106, 6
        %v6652 = vrot.slane %v6651, 4
        %v6653 = vrot.slane %v5107, 6
        %v6654 = vsel %vm4142, %v6652, %v6653
        %v6655 = vrot.slane %v6653, 4
        %v6656 = vrot.slane %v5108, 6
        %v6657 = vsel %vm4142, %v6655, %v6656
        %v6658 = vrot.slane %v6656, 4
        %v6659 = vrot.slane %v5109, 6
        %v6660 = vrot.slane %v6659, 4
        %v6661 = vrot.slane %v5110, 6
        %v6662 = vsel %vm4142, %v6660, %v6661
        %v6663 = vrot.slane %v6661, 4
        %v6664 = vrot.slane %v5111, 6
        %v6665 = vsel %vm4142, %v6663, %v6664
        %v6666 = vrot.slane %v6664, 4
        %v6667 = vrot.slane %v5112, 6
        %v6668 = vrot.slane %v6667, 4
        %v6669 = vrot.slane %v5113, 6
        %v6670 = vsel %vm4142, %v6668, %v6669
        %v6671 = vrot.slane %v6669, 4
        %v6672 = vrot.slane %v5114, 6
        %v6673 = vsel %vm4142, %v6671, %v6672
        %v6674 = vrot.slane %v6672, 4
        %v6675 = vrot.slane %v5115, 6
        %v6676 = vrot.slane %v6675, 4
        %v6677 = vrot.slane %v5116, 6
        %v6678 = vsel %vm4142, %v6676, %v6677
        %v6679 = vrot.slane %v6677, 4
        %v6680 = vrot.slane %v5117, 6
        %v6681 = vsel %vm4142, %v6679, %v6680
        %v6682 = vrot.slane %v6680, 4
        %v6683 = vrot.slane %v5118, 6
        %v6684 = vrot.slane %v6683, 4
        %v6685 = vrot.slane %v5119, 6
        %v6686 = vsel %vm4142, %v6684, %v6685
        %v6687 = vrot.slane %v6685, 4
        %v6688 = vrot.slane %v5120, 6
        %v6689 = vsel %vm4142, %v6687, %v6688
        %v6690 = vrot.slane %v6688, 4
        %v6691 = vrot.slane %v5121, 6
        %v6692 = vrot.slane %v6691, 4
        %v6693 = vrot.slane %v5122, 6
        %v6694 = vsel %vm4142, %v6692, %v6693
        %v6695 = vrot.slane %v6693, 4
        %v6696 = vrot.slane %v5123, 6
        %v6697 = vsel %vm4142, %v6695, %v6696
        %v6698 = vrot.slane %v6696, 4
        %v6699 = vrot.slane %v5124, 6
        %v6700 = vrot.slane %v6699, 4
        %v6701 = vrot.slane %v5125, 6
        %v6702 = vsel %vm4142, %v6700, %v6701
        %v6703 = vrot.slane %v6701, 4
        %v6704 = vrot.slane %v5126, 6
        %v6705 = vsel %vm4142, %v6703, %v6704
        %v6706 = vrot.slane %v6704, 4
        %v6707 = vrot.slane %v5127, 6
        %v6708 = vrot.slane %v6707, 4
        %v6709 = vrot.slane %v5128, 6
        %v6710 = vsel %vm4142, %v6708, %v6709
        %v6711 = vrot.slane %v6709, 4
        %v6712 = vrot.slane %v5129, 6
        %v6713 = vsel %vm4142, %v6711, %v6712
        %v6714 = vrot.slane %v6712, 4
        %v6715 = vrot.slane %v5130, 6
        %v6716 = vrot.slane %v6715, 4
        %v6717 = vrot.slane %v5131, 6
        %v6718 = vsel %vm4142, %v6716, %v6717
        %v6719 = vrot.slane %v6717, 4
        %v6720 = vrot.slane %v5132, 6
        %v6721 = vsel %vm4142, %v6719, %v6720
        %v6722 = vrot.slane %v6720, 4
        %v6723 = vrot.slane %v5133, 6
        %v6724 = vrot.slane %v6723, 4
        %v6725 = vrot.slane %v5134, 6
        %v6726 = vsel %vm4142, %v6724, %v6725
        %v6727 = vrot.slane %v6725, 4
        %v6728 = vrot.slane %v5135, 6
        %v6729 = vsel %vm4142, %v6727, %v6728
        %v6730 = vrot.slane %v6728, 4
        %v6731 = vrot.slane %v5136, 6
        %v6732 = vrot.slane %v6731, 4
        %v6733 = vrot.slane %v5137, 6
        %v6734 = vsel %vm4142, %v6732, %v6733
        %v6735 = vrot.slane %v6733, 4
        %v6736 = vrot.slane %v5138, 6
        %v6737 = vsel %vm4142, %v6735, %v6736
        %v6738 = vrot.slane %v6736, 4
        %v6799 = vmax.bf16 %v6519, %v6582
        %v6800 = vmax.bf16 %v6520, %v6585
        %v6801 = vmax.bf16 %v6521, %v6586
        %v6802 = vmax.bf16 %v6522, %v6590
        %v6803 = vmax.bf16 %v6523, %v6593
        %v6804 = vmax.bf16 %v6524, %v6594
        %v6805 = vmax.bf16 %v6525, %v6598
        %v6806 = vmax.bf16 %v6526, %v6601
        %v6807 = vmax.bf16 %v6527, %v6602
        %v6808 = vmax.bf16 %v6528, %v6606
        %v6809 = vmax.bf16 %v6529, %v6609
        %v6810 = vmax.bf16 %v6530, %v6610
        %v6811 = vmax.bf16 %v6531, %v6614
        %v6812 = vmax.bf16 %v6532, %v6617
        %v6813 = vmax.bf16 %v6533, %v6618
        %v6814 = vmax.bf16 %v6534, %v6622
        %v6815 = vmax.bf16 %v6535, %v6625
        %v6816 = vmax.bf16 %v6536, %v6626
        %v6817 = vmax.bf16 %v6537, %v6630
        %v6818 = vmax.bf16 %v6538, %v6633
        %v6819 = vmax.bf16 %v6539, %v6634
        %v6820 = vmax.bf16 %v6540, %v6638
        %v6821 = vmax.bf16 %v6541, %v6641
        %v6822 = vmax.bf16 %v6542, %v6642
        %v6823 = vmax.bf16 %v6543, %v6646
        %v6824 = vmax.bf16 %v6544, %v6649
        %v6825 = vmax.bf16 %v6545, %v6650
        %v6826 = vmax.bf16 %v6546, %v6654
        %v6827 = vmax.bf16 %v6547, %v6657
        %v6828 = vmax.bf16 %v6548, %v6658
        %v6829 = vmax.bf16 %v6549, %v6662
        %v6830 = vmax.bf16 %v6550, %v6665
        %v6831 = vmax.bf16 %v6551, %v6666
        %v6832 = vmax.bf16 %v6552, %v6670
        %v6833 = vmax.bf16 %v6553, %v6673
        %v6834 = vmax.bf16 %v6554, %v6674
        %v6835 = vmax.bf16 %v6555, %v6678
        %v6836 = vmax.bf16 %v6556, %v6681
        %v6837 = vmax.bf16 %v6557, %v6682
        %v6838 = vmax.bf16 %v6558, %v6686
        %v6839 = vmax.bf16 %v6559, %v6689
        %v6840 = vmax.bf16 %v6560, %v6690
        %v6841 = vmax.bf16 %v6561, %v6694
        %v6842 = vmax.bf16 %v6562, %v6697
        %v6843 = vmax.bf16 %v6563, %v6698
        %v6844 = vmax.bf16 %v6564, %v6702
        %v6845 = vmax.bf16 %v6565, %v6705
        %v6846 = vmax.bf16 %v6566, %v6706
        %v6847 = vmax.bf16 %v6567, %v6710
        %v6848 = vmax.bf16 %v6568, %v6713
        %v6849 = vmax.bf16 %v6569, %v6714
        %v6850 = vmax.bf16 %v6570, %v6718
        %v6851 = vmax.bf16 %v6571, %v6721
        %v6852 = vmax.bf16 %v6572, %v6722
        %v6853 = vmax.bf16 %v6573, %v6726
        %v6854 = vmax.bf16 %v6574, %v6729
        %v6855 = vmax.bf16 %v6575, %v6730
        %v6856 = vmax.bf16 %v6576, %v6734
        %v6857 = vmax.bf16 %v6577, %v6737
        %v6858 = vmax.bf16 %v6578, %v6738
        %6859 = vst.msk [vmem:[#allocation2] sm:$0xf] %vm826, %v6799
        %6860 = vst.msk [vmem:[#allocation2 + $0x4] sm:$0xf] %vm826, %v6800
        %6861 = vst.msk [vmem:[#allocation2 + $0x8] sm:$0x3] %vm830, %v6801
        %6862 = vst.msk [vmem:[#allocation2 + $0x10] sm:$0xf] %vm826, %v6802
        %6863 = vst.msk [vmem:[#allocation2 + $0x14] sm:$0xf] %vm826, %v6803
        %6864 = vst.msk [vmem:[#allocation2 + $0x18] sm:$0x3] %vm830, %v6804
        %6865 = vst.msk [vmem:[#allocation2 + $0x20] sm:$0xf] %vm826, %v6805
        %6866 = vst.msk [vmem:[#allocation2 + $0x24] sm:$0xf] %vm826, %v6806
        %6867 = vst.msk [vmem:[#allocation2 + $0x28] sm:$0x3] %vm830, %v6807
        %6868 = vst.msk [vmem:[#allocation2 + $0x30] sm:$0xf] %vm826, %v6808
        %6869 = vst.msk [vmem:[#allocation2 + $0x34] sm:$0xf] %vm826, %v6809
        %6870 = vst.msk [vmem:[#allocation2 + $0x38] sm:$0x3] %vm830, %v6810
        %6871 = vst.msk [vmem:[#allocation2 + $0x40] sm:$0xf] %vm826, %v6811
        %6872 = vst.msk [vmem:[#allocation2 + $0x44] sm:$0xf] %vm826, %v6812
        %6873 = vst.msk [vmem:[#allocation2 + $0x48] sm:$0x3] %vm830, %v6813
        %6874 = vst.msk [vmem:[#allocation2 + $0x50] sm:$0xf] %vm826, %v6814
        %6875 = vst.msk [vmem:[#allocation2 + $0x54] sm:$0xf] %vm826, %v6815
        %6876 = vst.msk [vmem:[#allocation2 + $0x58] sm:$0x3] %vm830, %v6816
        %6877 = vst.msk [vmem:[#allocation2 + $0x60] sm:$0xf] %vm826, %v6817
        %6878 = vst.msk [vmem:[#allocation2 + $0x64] sm:$0xf] %vm826, %v6818
        %6879 = vst.msk [vmem:[#allocation2 + $0x68] sm:$0x3] %vm830, %v6819
        %6880 = vst.msk [vmem:[#allocation2 + $0x70] sm:$0xf] %vm826, %v6820
        %6881 = vst.msk [vmem:[#allocation2 + $0x74] sm:$0xf] %vm826, %v6821
        %6882 = vst.msk [vmem:[#allocation2 + $0x78] sm:$0x3] %vm830, %v6822
        %6883 = vst.msk [vmem:[#allocation2 + $0x80] sm:$0xf] %vm826, %v6823
        %6884 = vst.msk [vmem:[#allocation2 + $0x84] sm:$0xf] %vm826, %v6824
        %6885 = vst.msk [vmem:[#allocation2 + $0x88] sm:$0x3] %vm830, %v6825
        %6886 = vst.msk [vmem:[#allocation2 + $0x90] sm:$0xf] %vm826, %v6826
        %6887 = vst.msk [vmem:[#allocation2 + $0x94] sm:$0xf] %vm826, %v6827
        %6888 = vst.msk [vmem:[#allocation2 + $0x98] sm:$0x3] %vm830, %v6828
        %6889 = vst.msk [vmem:[#allocation2 + $0xa0] sm:$0xf] %vm826, %v6829
        %6890 = vst.msk [vmem:[#allocation2 + $0xa4] sm:$0xf] %vm826, %v6830
        %6891 = vst.msk [vmem:[#allocation2 + $0xa8] sm:$0x3] %vm830, %v6831
        %6892 = vst.msk [vmem:[#allocation2 + $0xb0] sm:$0xf] %vm826, %v6832
        %6893 = vst.msk [vmem:[#allocation2 + $0xb4] sm:$0xf] %vm826, %v6833
        %6894 = vst.msk [vmem:[#allocation2 + $0xb8] sm:$0x3] %vm830, %v6834
        %6895 = vst.msk [vmem:[#allocation2 + $0xc0] sm:$0xf] %vm826, %v6835
        %6896 = vst.msk [vmem:[#allocation2 + $0xc4] sm:$0xf] %vm826, %v6836
        %6897 = vst.msk [vmem:[#allocation2 + $0xc8] sm:$0x3] %vm830, %v6837
        %6898 = vst.msk [vmem:[#allocation2 + $0xd0] sm:$0xf] %vm826, %v6838
        %6899 = vst.msk [vmem:[#allocation2 + $0xd4] sm:$0xf] %vm826, %v6839
        %6900 = vst.msk [vmem:[#allocation2 + $0xd8] sm:$0x3] %vm830, %v6840
        %6901 = vst.msk [vmem:[#allocation2 + $0xe0] sm:$0xf] %vm826, %v6841
        %6902 = vst.msk [vmem:[#allocation2 + $0xe4] sm:$0xf] %vm826, %v6842
        %6903 = vst.msk [vmem:[#allocation2 + $0xe8] sm:$0x3] %vm830, %v6843
        %6904 = vst.msk [vmem:[#allocation2 + $0xf0] sm:$0xf] %vm826, %v6844
        %6905 = vst.msk [vmem:[#allocation2 + $0xf4] sm:$0xf] %vm826, %v6845
        %6906 = vst.msk [vmem:[#allocation2 + $0xf8] sm:$0x3] %vm830, %v6846
        %6907 = vst.msk [vmem:[#allocation2 + $0x100] sm:$0xf] %vm826, %v6847
        %6908 = vst.msk [vmem:[#allocation2 + $0x104] sm:$0xf] %vm826, %v6848
        %6909 = vst.msk [vmem:[#allocation2 + $0x108] sm:$0x3] %vm830, %v6849
        %6910 = vst.msk [vmem:[#allocation2 + $0x110] sm:$0xf] %vm826, %v6850
        %6911 = vst.msk [vmem:[#allocation2 + $0x114] sm:$0xf] %vm826, %v6851
        %6912 = vst.msk [vmem:[#allocation2 + $0x118] sm:$0x3] %vm830, %v6852
        %6913 = vst.msk [vmem:[#allocation2 + $0x120] sm:$0xf] %vm826, %v6853
        %6914 = vst.msk [vmem:[#allocation2 + $0x124] sm:$0xf] %vm826, %v6854
        %6915 = vst.msk [vmem:[#allocation2 + $0x128] sm:$0x3] %vm830, %v6855
        %6916 = vst.msk [vmem:[#allocation2 + $0x130] sm:$0xf] %vm826, %v6856
        %6917 = vst.msk [vmem:[#allocation2 + $0x134] sm:$0xf] %vm826, %v6857
        %6918 = vst.msk [vmem:[#allocation2 + $0x138] sm:$0x3] %vm830, %v6858
        %v6919 = vld [vmem:[#allocation2] sm:$0xf]
        %v6920 = vld [vmem:[#allocation2 + $0x4] sm:$0xf]
        %v6921 = vld [vmem:[#allocation2 + $0x8] sm:$0x3]
        %v6922 = vld [vmem:[#allocation2 + $0x10] sm:$0xf]
        %v6923 = vld [vmem:[#allocation2 + $0x14] sm:$0xf]
        %v6924 = vld [vmem:[#allocation2 + $0x18] sm:$0x3]
        %v6925 = vld [vmem:[#allocation2 + $0x20] sm:$0xf]
        %v6926 = vld [vmem:[#allocation2 + $0x24] sm:$0xf]
        %v6927 = vld [vmem:[#allocation2 + $0x28] sm:$0x3]
        %v6928 = vld [vmem:[#allocation2 + $0x30] sm:$0xf]
        %v6929 = vld [vmem:[#allocation2 + $0x34] sm:$0xf]
        %v6930 = vld [vmem:[#allocation2 + $0x38] sm:$0x3]
        %v6931 = vld [vmem:[#allocation2 + $0x40] sm:$0xf]
        %v6932 = vld [vmem:[#allocation2 + $0x44] sm:$0xf]
        %v6933 = vld [vmem:[#allocation2 + $0x48] sm:$0x3]
        %v6934 = vld [vmem:[#allocation2 + $0x50] sm:$0xf]
        %v6935 = vld [vmem:[#allocation2 + $0x54] sm:$0xf]
        %v6936 = vld [vmem:[#allocation2 + $0x58] sm:$0x3]
        %v6937 = vld [vmem:[#allocation2 + $0x60] sm:$0xf]
        %v6938 = vld [vmem:[#allocation2 + $0x64] sm:$0xf]
        %v6939 = vld [vmem:[#allocation2 + $0x68] sm:$0x3]
        %v6940 = vld [vmem:[#allocation2 + $0x70] sm:$0xf]
        %v6941 = vld [vmem:[#allocation2 + $0x74] sm:$0xf]
        %v6942 = vld [vmem:[#allocation2 + $0x78] sm:$0x3]
        %v6943 = vld [vmem:[#allocation2 + $0x80] sm:$0xf]
        %v6944 = vld [vmem:[#allocation2 + $0x84] sm:$0xf]
        %v6945 = vld [vmem:[#allocation2 + $0x88] sm:$0x3]
        %v6946 = vld [vmem:[#allocation2 + $0x90] sm:$0xf]
        %v6947 = vld [vmem:[#allocation2 + $0x94] sm:$0xf]
        %v6948 = vld [vmem:[#allocation2 + $0x98] sm:$0x3]
        %v6949 = vld [vmem:[#allocation2 + $0xa0] sm:$0xf]
        %v6950 = vld [vmem:[#allocation2 + $0xa4] sm:$0xf]
        %v6951 = vld [vmem:[#allocation2 + $0xa8] sm:$0x3]
        %v6952 = vld [vmem:[#allocation2 + $0xb0] sm:$0xf]
        %v6953 = vld [vmem:[#allocation2 + $0xb4] sm:$0xf]
        %v6954 = vld [vmem:[#allocation2 + $0xb8] sm:$0x3]
        %v6955 = vld [vmem:[#allocation2 + $0xc0] sm:$0xf]
        %v6956 = vld [vmem:[#allocation2 + $0xc4] sm:$0xf]
        %v6957 = vld [vmem:[#allocation2 + $0xc8] sm:$0x3]
        %v6958 = vld [vmem:[#allocation2 + $0xd0] sm:$0xf]
        %v6959 = vld [vmem:[#allocation2 + $0xd4] sm:$0xf]
        %v6960 = vld [vmem:[#allocation2 + $0xd8] sm:$0x3]
        %v6961 = vld [vmem:[#allocation2 + $0xe0] sm:$0xf]
        %v6962 = vld [vmem:[#allocation2 + $0xe4] sm:$0xf]
        %v6963 = vld [vmem:[#allocation2 + $0xe8] sm:$0x3]
        %v6964 = vld [vmem:[#allocation2 + $0xf0] sm:$0xf]
        %v6965 = vld [vmem:[#allocation2 + $0xf4] sm:$0xf]
        %v6966 = vld [vmem:[#allocation2 + $0xf8] sm:$0x3]
        %v6967 = vld [vmem:[%s1298] sm:$0xf]
        %v6968 = vld [vmem:[%s1298 + $0x4] sm:$0xf]
        %v6969 = vld [vmem:[%s1298 + $0x8] sm:$0x3]
        %v6970 = vld [vmem:[%s1298 + $0x10] sm:$0xf]
        %v6971 = vld [vmem:[%s1298 + $0x14] sm:$0xf]
        %v6972 = vld [vmem:[%s1298 + $0x18] sm:$0x3]
        %v6973 = vld [vmem:[%s1298 + $0x20] sm:$0xf]
        %v6974 = vld [vmem:[%s1298 + $0x24] sm:$0xf]
        %v6975 = vld [vmem:[%s1298 + $0x28] sm:$0x3]
        %v6976 = vld [vmem:[%s1298 + $0x30] sm:$0xf]
        %v6977 = vld [vmem:[%s1298 + $0x34] sm:$0xf]
        %v6978 = vld [vmem:[%s1298 + $0x38] sm:$0x3]
        %v6979 = vld [vmem:[%s1298 + $0x40] sm:$0xf]
        %v6980 = vld [vmem:[%s1298 + $0x44] sm:$0xf]
        %v6981 = vld [vmem:[%s1298 + $0x48] sm:$0x3]
        %v6982 = vld [vmem:[%s1298 + $0x50] sm:$0xf]
        %v6983 = vld [vmem:[%s1298 + $0x54] sm:$0xf]
        %v6984 = vld [vmem:[%s1298 + $0x58] sm:$0x3]
        %v6985 = vld [vmem:[%s1298 + $0x60] sm:$0xf]
        %v6986 = vld [vmem:[%s1298 + $0x64] sm:$0xf]
        %v6987 = vld [vmem:[%s1298 + $0x68] sm:$0x3]
        %v6988 = vld [vmem:[%s1298 + $0x70] sm:$0xf]
        %v6989 = vld [vmem:[%s1298 + $0x74] sm:$0xf]
        %v6990 = vld [vmem:[%s1298 + $0x78] sm:$0x3]
        %v6991 = vld [vmem:[%s1298 + $0x80] sm:$0xf]
        %v6992 = vld [vmem:[%s1298 + $0x84] sm:$0xf]
        %v6993 = vld [vmem:[%s1298 + $0x88] sm:$0x3]
        %v6994 = vld [vmem:[%s1298 + $0x90] sm:$0xf]
        %v6995 = vld [vmem:[%s1298 + $0x94] sm:$0xf]
        %v6996 = vld [vmem:[%s1298 + $0x98] sm:$0x3]
        %v6997 = vld [vmem:[%s1298 + $0xa0] sm:$0xf]
        %v6998 = vld [vmem:[%s1298 + $0xa4] sm:$0xf]
        %v6999 = vld [vmem:[%s1298 + $0xa8] sm:$0x3]
        %v7000 = vld [vmem:[%s1298 + $0xb0] sm:$0xf]
        %v7001 = vld [vmem:[%s1298 + $0xb4] sm:$0xf]
        %v7002 = vld [vmem:[%s1298 + $0xb8] sm:$0x3]
        %v7003 = vld [vmem:[%s1298 + $0xc0] sm:$0xf]
        %v7004 = vld [vmem:[%s1298 + $0xc4] sm:$0xf]
        %v7005 = vld [vmem:[%s1298 + $0xc8] sm:$0x3]
        %v7006 = vld [vmem:[%s1298 + $0xd0] sm:$0xf]
        %v7007 = vld [vmem:[%s1298 + $0xd4] sm:$0xf]
        %v7008 = vld [vmem:[%s1298 + $0xd8] sm:$0x3]
        %v7009 = vld [vmem:[%s1298 + $0xe0] sm:$0xf]
        %v7010 = vld [vmem:[%s1298 + $0xe4] sm:$0xf]
        %v7011 = vld [vmem:[%s1298 + $0xe8] sm:$0x3]
        %v7012 = vld [vmem:[%s1298 + $0xf0] sm:$0xf]
        %v7013 = vld [vmem:[%s1298 + $0xf4] sm:$0xf]
        %v7014 = vld [vmem:[%s1298 + $0xf8] sm:$0x3]
        %v7015 = vmax.bf16 %v6919, %v6967
        %v7016 = vmax.bf16 %v6920, %v6968
        %v7017 = vmax.bf16 %v6921, %v6969
        %v7018 = vmax.bf16 %v6922, %v6970
        %v7019 = vmax.bf16 %v6923, %v6971
        %v7020 = vmax.bf16 %v6924, %v6972
        %v7021 = vmax.bf16 %v6925, %v6973
        %v7022 = vmax.bf16 %v6926, %v6974
        %v7023 = vmax.bf16 %v6927, %v6975
        %v7024 = vmax.bf16 %v6928, %v6976
        %v7025 = vmax.bf16 %v6929, %v6977
        %v7026 = vmax.bf16 %v6930, %v6978
        %v7027 = vmax.bf16 %v6931, %v6979
        %v7028 = vmax.bf16 %v6932, %v6980
        %v7029 = vmax.bf16 %v6933, %v6981
        %v7030 = vmax.bf16 %v6934, %v6982
        %v7031 = vmax.bf16 %v6935, %v6983
        %v7032 = vmax.bf16 %v6936, %v6984
        %v7033 = vmax.bf16 %v6937, %v6985
        %v7034 = vmax.bf16 %v6938, %v6986
        %v7035 = vmax.bf16 %v6939, %v6987
        %v7036 = vmax.bf16 %v6940, %v6988
        %v7037 = vmax.bf16 %v6941, %v6989
        %v7038 = vmax.bf16 %v6942, %v6990
        %v7039 = vmax.bf16 %v6943, %v6991
        %v7040 = vmax.bf16 %v6944, %v6992
        %v7041 = vmax.bf16 %v6945, %v6993
        %v7042 = vmax.bf16 %v6946, %v6994
        %v7043 = vmax.bf16 %v6947, %v6995
        %v7044 = vmax.bf16 %v6948, %v6996
        %v7045 = vmax.bf16 %v6949, %v6997
        %v7046 = vmax.bf16 %v6950, %v6998
        %v7047 = vmax.bf16 %v6951, %v6999
        %v7048 = vmax.bf16 %v6952, %v7000
        %v7049 = vmax.bf16 %v6953, %v7001
        %v7050 = vmax.bf16 %v6954, %v7002
        %v7051 = vmax.bf16 %v6955, %v7003
        %v7052 = vmax.bf16 %v6956, %v7004
        %v7053 = vmax.bf16 %v6957, %v7005
        %v7054 = vmax.bf16 %v6958, %v7006
        %v7055 = vmax.bf16 %v6959, %v7007
        %v7056 = vmax.bf16 %v6960, %v7008
        %v7057 = vmax.bf16 %v6961, %v7009
        %v7058 = vmax.bf16 %v6962, %v7010
        %v7059 = vmax.bf16 %v6963, %v7011
        %v7060 = vmax.bf16 %v6964, %v7012
        %v7061 = vmax.bf16 %v6965, %v7013
        %v7062 = vmax.bf16 %v6966, %v7014
        %v7063 = vld [vmem:[%s1491] sm:$0xf]
        %v7064 = vld [vmem:[%s1491 + $0x4] sm:$0xf]
        %v7065 = vld [vmem:[%s1491 + $0x8] sm:$0x3]
        %v7066 = vld [vmem:[%s1491 + $0x10] sm:$0xf]
        %v7067 = vld [vmem:[%s1491 + $0x14] sm:$0xf]
        %v7068 = vld [vmem:[%s1491 + $0x18] sm:$0x3]
        %v7069 = vld [vmem:[%s1491 + $0x20] sm:$0xf]
        %v7070 = vld [vmem:[%s1491 + $0x24] sm:$0xf]
        %v7071 = vld [vmem:[%s1491 + $0x28] sm:$0x3]
        %v7072 = vld [vmem:[%s1491 + $0x30] sm:$0xf]
        %v7073 = vld [vmem:[%s1491 + $0x34] sm:$0xf]
        %v7074 = vld [vmem:[%s1491 + $0x38] sm:$0x3]
        %v7075 = vld [vmem:[%s1491 + $0x40] sm:$0xf]
        %v7076 = vld [vmem:[%s1491 + $0x44] sm:$0xf]
        %v7077 = vld [vmem:[%s1491 + $0x48] sm:$0x3]
        %v7078 = vld [vmem:[%s1491 + $0x50] sm:$0xf]
        %v7079 = vld [vmem:[%s1491 + $0x54] sm:$0xf]
        %v7080 = vld [vmem:[%s1491 + $0x58] sm:$0x3]
        %v7081 = vld [vmem:[%s1491 + $0x60] sm:$0xf]
        %v7082 = vld [vmem:[%s1491 + $0x64] sm:$0xf]
        %v7083 = vld [vmem:[%s1491 + $0x68] sm:$0x3]
        %v7084 = vld [vmem:[%s1491 + $0x70] sm:$0xf]
        %v7085 = vld [vmem:[%s1491 + $0x74] sm:$0xf]
        %v7086 = vld [vmem:[%s1491 + $0x78] sm:$0x3]
        %v7087 = vld [vmem:[%s1491 + $0x80] sm:$0xf]
        %v7088 = vld [vmem:[%s1491 + $0x84] sm:$0xf]
        %v7089 = vld [vmem:[%s1491 + $0x88] sm:$0x3]
        %v7090 = vld [vmem:[%s1491 + $0x90] sm:$0xf]
        %v7091 = vld [vmem:[%s1491 + $0x94] sm:$0xf]
        %v7092 = vld [vmem:[%s1491 + $0x98] sm:$0x3]
        %v7093 = vld [vmem:[%s1491 + $0xa0] sm:$0xf]
        %v7094 = vld [vmem:[%s1491 + $0xa4] sm:$0xf]
        %v7095 = vld [vmem:[%s1491 + $0xa8] sm:$0x3]
        %v7096 = vld [vmem:[%s1491 + $0xb0] sm:$0xf]
        %v7097 = vld [vmem:[%s1491 + $0xb4] sm:$0xf]
        %v7098 = vld [vmem:[%s1491 + $0xb8] sm:$0x3]
        %v7099 = vld [vmem:[%s1491 + $0xc0] sm:$0xf]
        %v7100 = vld [vmem:[%s1491 + $0xc4] sm:$0xf]
        %v7101 = vld [vmem:[%s1491 + $0xc8] sm:$0x3]
        %v7102 = vld [vmem:[%s1491 + $0xd0] sm:$0xf]
        %v7103 = vld [vmem:[%s1491 + $0xd4] sm:$0xf]
        %v7104 = vld [vmem:[%s1491 + $0xd8] sm:$0x3]
        %v7105 = vld [vmem:[%s1491 + $0xe0] sm:$0xf]
        %v7106 = vld [vmem:[%s1491 + $0xe4] sm:$0xf]
        %v7107 = vld [vmem:[%s1491 + $0xe8] sm:$0x3]
        %v7108 = vld [vmem:[%s1491 + $0xf0] sm:$0xf]
        %v7109 = vld [vmem:[%s1491 + $0xf4] sm:$0xf]
        %v7110 = vld [vmem:[%s1491 + $0xf8] sm:$0x3]
        %v7111 = vmax.bf16 %v7015, %v7063
        %v7112 = vmax.bf16 %v7016, %v7064
        %v7113 = vmax.bf16 %v7017, %v7065
        %v7114 = vmax.bf16 %v7018, %v7066
        %v7115 = vmax.bf16 %v7019, %v7067
        %v7116 = vmax.bf16 %v7020, %v7068
        %v7117 = vmax.bf16 %v7021, %v7069
        %v7118 = vmax.bf16 %v7022, %v7070
        %v7119 = vmax.bf16 %v7023, %v7071
        %v7120 = vmax.bf16 %v7024, %v7072
        %v7121 = vmax.bf16 %v7025, %v7073
        %v7122 = vmax.bf16 %v7026, %v7074
        %v7123 = vmax.bf16 %v7027, %v7075
        %v7124 = vmax.bf16 %v7028, %v7076
        %v7125 = vmax.bf16 %v7029, %v7077
        %v7126 = vmax.bf16 %v7030, %v7078
        %v7127 = vmax.bf16 %v7031, %v7079
        %v7128 = vmax.bf16 %v7032, %v7080
        %v7129 = vmax.bf16 %v7033, %v7081
        %v7130 = vmax.bf16 %v7034, %v7082
        %v7131 = vmax.bf16 %v7035, %v7083
        %v7132 = vmax.bf16 %v7036, %v7084
        %v7133 = vmax.bf16 %v7037, %v7085
        %v7134 = vmax.bf16 %v7038, %v7086
        %v7135 = vmax.bf16 %v7039, %v7087
        %v7136 = vmax.bf16 %v7040, %v7088
        %v7137 = vmax.bf16 %v7041, %v7089
        %v7138 = vmax.bf16 %v7042, %v7090
        %v7139 = vmax.bf16 %v7043, %v7091
        %v7140 = vmax.bf16 %v7044, %v7092
        %v7141 = vmax.bf16 %v7045, %v7093
        %v7142 = vmax.bf16 %v7046, %v7094
        %v7143 = vmax.bf16 %v7047, %v7095
        %v7144 = vmax.bf16 %v7048, %v7096
        %v7145 = vmax.bf16 %v7049, %v7097
        %v7146 = vmax.bf16 %v7050, %v7098
        %v7147 = vmax.bf16 %v7051, %v7099
        %v7148 = vmax.bf16 %v7052, %v7100
        %v7149 = vmax.bf16 %v7053, %v7101
        %v7150 = vmax.bf16 %v7054, %v7102
        %v7151 = vmax.bf16 %v7055, %v7103
        %v7152 = vmax.bf16 %v7056, %v7104
        %v7153 = vmax.bf16 %v7057, %v7105
        %v7154 = vmax.bf16 %v7058, %v7106
        %v7155 = vmax.bf16 %v7059, %v7107
        %v7156 = vmax.bf16 %v7060, %v7108
        %v7157 = vmax.bf16 %v7061, %v7109
        %v7158 = vmax.bf16 %v7062, %v7110
        %v7159 = vld [vmem:[%s1684] sm:$0xf]
        %v7160 = vld [vmem:[%s1684 + $0x4] sm:$0xf]
        %v7161 = vld [vmem:[%s1684 + $0x8] sm:$0x3]
        %v7162 = vld [vmem:[%s1684 + $0x10] sm:$0xf]
        %v7163 = vld [vmem:[%s1684 + $0x14] sm:$0xf]
        %v7164 = vld [vmem:[%s1684 + $0x18] sm:$0x3]
        %v7165 = vld [vmem:[%s1684 + $0x20] sm:$0xf]
        %v7166 = vld [vmem:[%s1684 + $0x24] sm:$0xf]
        %v7167 = vld [vmem:[%s1684 + $0x28] sm:$0x3]
        %v7168 = vld [vmem:[%s1684 + $0x30] sm:$0xf]
        %v7169 = vld [vmem:[%s1684 + $0x34] sm:$0xf]
        %v7170 = vld [vmem:[%s1684 + $0x38] sm:$0x3]
        %v7171 = vld [vmem:[%s1684 + $0x40] sm:$0xf]
        %v7172 = vld [vmem:[%s1684 + $0x44] sm:$0xf]
        %v7173 = vld [vmem:[%s1684 + $0x48] sm:$0x3]
        %v7174 = vld [vmem:[%s1684 + $0x50] sm:$0xf]
        %v7175 = vld [vmem:[%s1684 + $0x54] sm:$0xf]
        %v7176 = vld [vmem:[%s1684 + $0x58] sm:$0x3]
        %v7177 = vld [vmem:[%s1684 + $0x60] sm:$0xf]
        %v7178 = vld [vmem:[%s1684 + $0x64] sm:$0xf]
        %v7179 = vld [vmem:[%s1684 + $0x68] sm:$0x3]
        %v7180 = vld [vmem:[%s1684 + $0x70] sm:$0xf]
        %v7181 = vld [vmem:[%s1684 + $0x74] sm:$0xf]
        %v7182 = vld [vmem:[%s1684 + $0x78] sm:$0x3]
        %v7183 = vld [vmem:[%s1684 + $0x80] sm:$0xf]
        %v7184 = vld [vmem:[%s1684 + $0x84] sm:$0xf]
        %v7185 = vld [vmem:[%s1684 + $0x88] sm:$0x3]
        %v7186 = vld [vmem:[%s1684 + $0x90] sm:$0xf]
        %v7187 = vld [vmem:[%s1684 + $0x94] sm:$0xf]
        %v7188 = vld [vmem:[%s1684 + $0x98] sm:$0x3]
        %v7189 = vld [vmem:[%s1684 + $0xa0] sm:$0xf]
        %v7190 = vld [vmem:[%s1684 + $0xa4] sm:$0xf]
        %v7191 = vld [vmem:[%s1684 + $0xa8] sm:$0x3]
        %v7192 = vld [vmem:[%s1684 + $0xb0] sm:$0xf]
        %v7193 = vld [vmem:[%s1684 + $0xb4] sm:$0xf]
        %v7194 = vld [vmem:[%s1684 + $0xb8] sm:$0x3]
        %v7195 = vld [vmem:[%s1684 + $0xc0] sm:$0xf]
        %v7196 = vld [vmem:[%s1684 + $0xc4] sm:$0xf]
        %v7197 = vld [vmem:[%s1684 + $0xc8] sm:$0x3]
        %v7198 = vld [vmem:[%s1684 + $0xd0] sm:$0xf]
        %v7199 = vld [vmem:[%s1684 + $0xd4] sm:$0xf]
        %v7200 = vld [vmem:[%s1684 + $0xd8] sm:$0x3]
        %v7201 = vld [vmem:[%s1684 + $0xe0] sm:$0xf]
        %v7202 = vld [vmem:[%s1684 + $0xe4] sm:$0xf]
        %v7203 = vld [vmem:[%s1684 + $0xe8] sm:$0x3]
        %v7204 = vld [vmem:[%s1684 + $0xf0] sm:$0xf]
        %v7205 = vld [vmem:[%s1684 + $0xf4] sm:$0xf]
        %v7206 = vld [vmem:[%s1684 + $0xf8] sm:$0x3]
        %v7207 = vmax.bf16 %v7111, %v7159
        %v7208 = vmax.bf16 %v7112, %v7160
        %v7209 = vmax.bf16 %v7113, %v7161
        %v7210 = vmax.bf16 %v7114, %v7162
        %v7211 = vmax.bf16 %v7115, %v7163
        %v7212 = vmax.bf16 %v7116, %v7164
        %v7213 = vmax.bf16 %v7117, %v7165
        %v7214 = vmax.bf16 %v7118, %v7166
        %v7215 = vmax.bf16 %v7119, %v7167
        %v7216 = vmax.bf16 %v7120, %v7168
        %v7217 = vmax.bf16 %v7121, %v7169
        %v7218 = vmax.bf16 %v7122, %v7170
        %v7219 = vmax.bf16 %v7123, %v7171
        %v7220 = vmax.bf16 %v7124, %v7172
        %v7221 = vmax.bf16 %v7125, %v7173
        %v7222 = vmax.bf16 %v7126, %v7174
        %v7223 = vmax.bf16 %v7127, %v7175
        %v7224 = vmax.bf16 %v7128, %v7176
        %v7225 = vmax.bf16 %v7129, %v7177
        %v7226 = vmax.bf16 %v7130, %v7178
        %v7227 = vmax.bf16 %v7131, %v7179
        %v7228 = vmax.bf16 %v7132, %v7180
        %v7229 = vmax.bf16 %v7133, %v7181
        %v7230 = vmax.bf16 %v7134, %v7182
        %v7231 = vmax.bf16 %v7135, %v7183
        %v7232 = vmax.bf16 %v7136, %v7184
        %v7233 = vmax.bf16 %v7137, %v7185
        %v7234 = vmax.bf16 %v7138, %v7186
        %v7235 = vmax.bf16 %v7139, %v7187
        %v7236 = vmax.bf16 %v7140, %v7188
        %v7237 = vmax.bf16 %v7141, %v7189
        %v7238 = vmax.bf16 %v7142, %v7190
        %v7239 = vmax.bf16 %v7143, %v7191
        %v7240 = vmax.bf16 %v7144, %v7192
        %v7241 = vmax.bf16 %v7145, %v7193
        %v7242 = vmax.bf16 %v7146, %v7194
        %v7243 = vmax.bf16 %v7147, %v7195
        %v7244 = vmax.bf16 %v7148, %v7196
        %v7245 = vmax.bf16 %v7149, %v7197
        %v7246 = vmax.bf16 %v7150, %v7198
        %v7247 = vmax.bf16 %v7151, %v7199
        %v7248 = vmax.bf16 %v7152, %v7200
        %v7249 = vmax.bf16 %v7153, %v7201
        %v7250 = vmax.bf16 %v7154, %v7202
        %v7251 = vmax.bf16 %v7155, %v7203
        %v7252 = vmax.bf16 %v7156, %v7204
        %v7253 = vmax.bf16 %v7157, %v7205
        %v7254 = vmax.bf16 %v7158, %v7206
        %v7255 = vld [vmem:[%s1877] sm:$0xf]
        %v7256 = vld [vmem:[%s1877 + $0x4] sm:$0xf]
        %v7257 = vld [vmem:[%s1877 + $0x8] sm:$0x3]
        %v7258 = vld [vmem:[%s1877 + $0x10] sm:$0xf]
        %v7259 = vld [vmem:[%s1877 + $0x14] sm:$0xf]
        %v7260 = vld [vmem:[%s1877 + $0x18] sm:$0x3]
        %v7261 = vld [vmem:[%s1877 + $0x20] sm:$0xf]
        %v7262 = vld [vmem:[%s1877 + $0x24] sm:$0xf]
        %v7263 = vld [vmem:[%s1877 + $0x28] sm:$0x3]
        %v7264 = vld [vmem:[%s1877 + $0x30] sm:$0xf]
        %v7265 = vld [vmem:[%s1877 + $0x34] sm:$0xf]
        %v7266 = vld [vmem:[%s1877 + $0x38] sm:$0x3]
        %v7267 = vld [vmem:[%s1877 + $0x40] sm:$0xf]
        %v7268 = vld [vmem:[%s1877 + $0x44] sm:$0xf]
        %v7269 = vld [vmem:[%s1877 + $0x48] sm:$0x3]
        %v7270 = vld [vmem:[%s1877 + $0x50] sm:$0xf]
        %v7271 = vld [vmem:[%s1877 + $0x54] sm:$0xf]
        %v7272 = vld [vmem:[%s1877 + $0x58] sm:$0x3]
        %v7273 = vld [vmem:[%s1877 + $0x60] sm:$0xf]
        %v7274 = vld [vmem:[%s1877 + $0x64] sm:$0xf]
        %v7275 = vld [vmem:[%s1877 + $0x68] sm:$0x3]
        %v7276 = vld [vmem:[%s1877 + $0x70] sm:$0xf]
        %v7277 = vld [vmem:[%s1877 + $0x74] sm:$0xf]
        %v7278 = vld [vmem:[%s1877 + $0x78] sm:$0x3]
        %v7279 = vld [vmem:[%s1877 + $0x80] sm:$0xf]
        %v7280 = vld [vmem:[%s1877 + $0x84] sm:$0xf]
        %v7281 = vld [vmem:[%s1877 + $0x88] sm:$0x3]
        %v7282 = vld [vmem:[%s1877 + $0x90] sm:$0xf]
        %v7283 = vld [vmem:[%s1877 + $0x94] sm:$0xf]
        %v7284 = vld [vmem:[%s1877 + $0x98] sm:$0x3]
        %v7285 = vld [vmem:[%s1877 + $0xa0] sm:$0xf]
        %v7286 = vld [vmem:[%s1877 + $0xa4] sm:$0xf]
        %v7287 = vld [vmem:[%s1877 + $0xa8] sm:$0x3]
        %v7288 = vld [vmem:[%s1877 + $0xb0] sm:$0xf]
        %v7289 = vld [vmem:[%s1877 + $0xb4] sm:$0xf]
        %v7290 = vld [vmem:[%s1877 + $0xb8] sm:$0x3]
        %v7291 = vld [vmem:[%s1877 + $0xc0] sm:$0xf]
        %v7292 = vld [vmem:[%s1877 + $0xc4] sm:$0xf]
        %v7293 = vld [vmem:[%s1877 + $0xc8] sm:$0x3]
        %v7294 = vld [vmem:[%s1877 + $0xd0] sm:$0xf]
        %v7295 = vld [vmem:[%s1877 + $0xd4] sm:$0xf]
        %v7296 = vld [vmem:[%s1877 + $0xd8] sm:$0x3]
        %v7297 = vld [vmem:[%s1877 + $0xe0] sm:$0xf]
        %v7298 = vld [vmem:[%s1877 + $0xe4] sm:$0xf]
        %v7299 = vld [vmem:[%s1877 + $0xe8] sm:$0x3]
        %v7300 = vld [vmem:[%s1877 + $0xf0] sm:$0xf]
        %v7301 = vld [vmem:[%s1877 + $0xf4] sm:$0xf]
        %v7302 = vld [vmem:[%s1877 + $0xf8] sm:$0x3]
        %v7303 = vmax.bf16 %v7207, %v7255
        %v7304 = vmax.bf16 %v7208, %v7256
        %v7305 = vmax.bf16 %v7209, %v7257
        %v7306 = vmax.bf16 %v7210, %v7258
        %v7307 = vmax.bf16 %v7211, %v7259
        %v7308 = vmax.bf16 %v7212, %v7260
        %v7309 = vmax.bf16 %v7213, %v7261
        %v7310 = vmax.bf16 %v7214, %v7262
        %v7311 = vmax.bf16 %v7215, %v7263
        %v7312 = vmax.bf16 %v7216, %v7264
        %v7313 = vmax.bf16 %v7217, %v7265
        %v7314 = vmax.bf16 %v7218, %v7266
        %v7315 = vmax.bf16 %v7219, %v7267
        %v7316 = vmax.bf16 %v7220, %v7268
        %v7317 = vmax.bf16 %v7221, %v7269
        %v7318 = vmax.bf16 %v7222, %v7270
        %v7319 = vmax.bf16 %v7223, %v7271
        %v7320 = vmax.bf16 %v7224, %v7272
        %v7321 = vmax.bf16 %v7225, %v7273
        %v7322 = vmax.bf16 %v7226, %v7274
        %v7323 = vmax.bf16 %v7227, %v7275
        %v7324 = vmax.bf16 %v7228, %v7276
        %v7325 = vmax.bf16 %v7229, %v7277
        %v7326 = vmax.bf16 %v7230, %v7278
        %v7327 = vmax.bf16 %v7231, %v7279
        %v7328 = vmax.bf16 %v7232, %v7280
        %v7329 = vmax.bf16 %v7233, %v7281
        %v7330 = vmax.bf16 %v7234, %v7282
        %v7331 = vmax.bf16 %v7235, %v7283
        %v7332 = vmax.bf16 %v7236, %v7284
        %v7333 = vmax.bf16 %v7237, %v7285
        %v7334 = vmax.bf16 %v7238, %v7286
        %v7335 = vmax.bf16 %v7239, %v7287
        %v7336 = vmax.bf16 %v7240, %v7288
        %v7337 = vmax.bf16 %v7241, %v7289
        %v7338 = vmax.bf16 %v7242, %v7290
        %v7339 = vmax.bf16 %v7243, %v7291
        %v7340 = vmax.bf16 %v7244, %v7292
        %v7341 = vmax.bf16 %v7245, %v7293
        %v7342 = vmax.bf16 %v7246, %v7294
        %v7343 = vmax.bf16 %v7247, %v7295
        %v7344 = vmax.bf16 %v7248, %v7296
        %v7345 = vmax.bf16 %v7249, %v7297
        %v7346 = vmax.bf16 %v7250, %v7298
        %v7347 = vmax.bf16 %v7251, %v7299
        %v7348 = vmax.bf16 %v7252, %v7300
        %v7349 = vmax.bf16 %v7253, %v7301
        %v7350 = vmax.bf16 %v7254, %v7302
        %v7352 = vshrl.u32 %v7303, 16
        %v7354 = vrot.slane %v7352, 4
        %v7355 = vshll.u32 %v7303, 16
        %v7357 = vrot.slane %v7355, 5
        %v7358 = vor.u32 %v7354, %v7357
        %v7359 = vrot.slane %v7358, 4
        %v7361 = vshll.u32 %v7304, 16
        %v7363 = vrot.slane %v7361, 5
        %v7364 = vsel %vm2072, %v7359, %v7363
        %v7365 = vshrl.u32 %v7304, 16
        %v7367 = vrot.slane %v7365, 4
        %v7368 = vor.u32 %v7367, %v7363
        %v7369 = vrot.slane %v7368, 4
        %v7371 = vshll.u32 %v7305, 16
        %v7373 = vrot.slane %v7371, 5
        %v7374 = vsel %vm2072, %v7369, %v7373
        %v7376 = vshrl.u32 %v7306, 16
        %v7378 = vrot.slane %v7376, 4
        %v7379 = vshll.u32 %v7306, 16
        %v7381 = vrot.slane %v7379, 5
        %v7382 = vor.u32 %v7378, %v7381
        %v7383 = vrot.slane %v7382, 4
        %v7385 = vshll.u32 %v7307, 16
        %v7387 = vrot.slane %v7385, 5
        %v7388 = vsel %vm2072, %v7383, %v7387
        %v7389 = vshrl.u32 %v7307, 16
        %v7391 = vrot.slane %v7389, 4
        %v7392 = vor.u32 %v7391, %v7387
        %v7393 = vrot.slane %v7392, 4
        %v7395 = vshll.u32 %v7308, 16
        %v7397 = vrot.slane %v7395, 5
        %v7398 = vsel %vm2072, %v7393, %v7397
        %v7400 = vshrl.u32 %v7309, 16
        %v7402 = vrot.slane %v7400, 4
        %v7403 = vshll.u32 %v7309, 16
        %v7405 = vrot.slane %v7403, 5
        %v7406 = vor.u32 %v7402, %v7405
        %v7407 = vrot.slane %v7406, 4
        %v7409 = vshll.u32 %v7310, 16
        %v7411 = vrot.slane %v7409, 5
        %v7412 = vsel %vm2072, %v7407, %v7411
        %v7413 = vshrl.u32 %v7310, 16
        %v7415 = vrot.slane %v7413, 4
        %v7416 = vor.u32 %v7415, %v7411
        %v7417 = vrot.slane %v7416, 4
        %v7419 = vshll.u32 %v7311, 16
        %v7421 = vrot.slane %v7419, 5
        %v7422 = vsel %vm2072, %v7417, %v7421
        %v7424 = vshrl.u32 %v7312, 16
        %v7426 = vrot.slane %v7424, 4
        %v7427 = vshll.u32 %v7312, 16
        %v7429 = vrot.slane %v7427, 5
        %v7430 = vor.u32 %v7426, %v7429
        %v7431 = vrot.slane %v7430, 4
        %v7433 = vshll.u32 %v7313, 16
        %v7435 = vrot.slane %v7433, 5
        %v7436 = vsel %vm2072, %v7431, %v7435
        %v7437 = vshrl.u32 %v7313, 16
        %v7439 = vrot.slane %v7437, 4
        %v7440 = vor.u32 %v7439, %v7435
        %v7441 = vrot.slane %v7440, 4
        %v7443 = vshll.u32 %v7314, 16
        %v7445 = vrot.slane %v7443, 5
        %v7446 = vsel %vm2072, %v7441, %v7445
        %v7448 = vshrl.u32 %v7315, 16
        %v7450 = vrot.slane %v7448, 4
        %v7451 = vshll.u32 %v7315, 16
        %v7453 = vrot.slane %v7451, 5
        %v7454 = vor.u32 %v7450, %v7453
        %v7455 = vrot.slane %v7454, 4
        %v7457 = vshll.u32 %v7316, 16
        %v7459 = vrot.slane %v7457, 5
        %v7460 = vsel %vm2072, %v7455, %v7459
        %v7461 = vshrl.u32 %v7316, 16
        %v7463 = vrot.slane %v7461, 4
        %v7464 = vor.u32 %v7463, %v7459
        %v7465 = vrot.slane %v7464, 4
        %v7467 = vshll.u32 %v7317, 16
        %v7469 = vrot.slane %v7467, 5
        %v7470 = vsel %vm2072, %v7465, %v7469
        %v7472 = vshrl.u32 %v7318, 16
        %v7474 = vrot.slane %v7472, 4
        %v7475 = vshll.u32 %v7318, 16
        %v7477 = vrot.slane %v7475, 5
        %v7478 = vor.u32 %v7474, %v7477
        %v7479 = vrot.slane %v7478, 4
        %v7481 = vshll.u32 %v7319, 16
        %v7483 = vrot.slane %v7481, 5
        %v7484 = vsel %vm2072, %v7479, %v7483
        %v7485 = vshrl.u32 %v7319, 16
        %v7487 = vrot.slane %v7485, 4
        %v7488 = vor.u32 %v7487, %v7483
        %v7489 = vrot.slane %v7488, 4
        %v7491 = vshll.u32 %v7320, 16
        %v7493 = vrot.slane %v7491, 5
        %v7494 = vsel %vm2072, %v7489, %v7493
        %v7496 = vshrl.u32 %v7321, 16
        %v7498 = vrot.slane %v7496, 4
        %v7499 = vshll.u32 %v7321, 16
        %v7501 = vrot.slane %v7499, 5
        %v7502 = vor.u32 %v7498, %v7501
        %v7503 = vrot.slane %v7502, 4
        %v7505 = vshll.u32 %v7322, 16
        %v7507 = vrot.slane %v7505, 5
        %v7508 = vsel %vm2072, %v7503, %v7507
        %v7509 = vshrl.u32 %v7322, 16
        %v7511 = vrot.slane %v7509, 4
        %v7512 = vor.u32 %v7511, %v7507
        %v7513 = vrot.slane %v7512, 4
        %v7515 = vshll.u32 %v7323, 16
        %v7517 = vrot.slane %v7515, 5
        %v7518 = vsel %vm2072, %v7513, %v7517
        %v7520 = vshrl.u32 %v7324, 16
        %v7522 = vrot.slane %v7520, 4
        %v7523 = vshll.u32 %v7324, 16
        %v7525 = vrot.slane %v7523, 5
        %v7526 = vor.u32 %v7522, %v7525
        %v7527 = vrot.slane %v7526, 4
        %v7529 = vshll.u32 %v7325, 16
        %v7531 = vrot.slane %v7529, 5
        %v7532 = vsel %vm2072, %v7527, %v7531
        %v7533 = vshrl.u32 %v7325, 16
        %v7535 = vrot.slane %v7533, 4
        %v7536 = vor.u32 %v7535, %v7531
        %v7537 = vrot.slane %v7536, 4
        %v7539 = vshll.u32 %v7326, 16
        %v7541 = vrot.slane %v7539, 5
        %v7542 = vsel %vm2072, %v7537, %v7541
        %v7544 = vshrl.u32 %v7327, 16
        %v7546 = vrot.slane %v7544, 4
        %v7547 = vshll.u32 %v7327, 16
        %v7549 = vrot.slane %v7547, 5
        %v7550 = vor.u32 %v7546, %v7549
        %v7551 = vrot.slane %v7550, 4
        %v7553 = vshll.u32 %v7328, 16
        %v7555 = vrot.slane %v7553, 5
        %v7556 = vsel %vm2072, %v7551, %v7555
        %v7557 = vshrl.u32 %v7328, 16
        %v7559 = vrot.slane %v7557, 4
        %v7560 = vor.u32 %v7559, %v7555
        %v7561 = vrot.slane %v7560, 4
        %v7563 = vshll.u32 %v7329, 16
        %v7565 = vrot.slane %v7563, 5
        %v7566 = vsel %vm2072, %v7561, %v7565
        %v7568 = vshrl.u32 %v7330, 16
        %v7570 = vrot.slane %v7568, 4
        %v7571 = vshll.u32 %v7330, 16
        %v7573 = vrot.slane %v7571, 5
        %v7574 = vor.u32 %v7570, %v7573
        %v7575 = vrot.slane %v7574, 4
        %v7577 = vshll.u32 %v7331, 16
        %v7579 = vrot.slane %v7577, 5
        %v7580 = vsel %vm2072, %v7575, %v7579
        %v7581 = vshrl.u32 %v7331, 16
        %v7583 = vrot.slane %v7581, 4
        %v7584 = vor.u32 %v7583, %v7579
        %v7585 = vrot.slane %v7584, 4
        %v7587 = vshll.u32 %v7332, 16
        %v7589 = vrot.slane %v7587, 5
        %v7590 = vsel %vm2072, %v7585, %v7589
        %v7592 = vshrl.u32 %v7333, 16
        %v7594 = vrot.slane %v7592, 4
        %v7595 = vshll.u32 %v7333, 16
        %v7597 = vrot.slane %v7595, 5
        %v7598 = vor.u32 %v7594, %v7597
        %v7599 = vrot.slane %v7598, 4
        %v7601 = vshll.u32 %v7334, 16
        %v7603 = vrot.slane %v7601, 5
        %v7604 = vsel %vm2072, %v7599, %v7603
        %v7605 = vshrl.u32 %v7334, 16
        %v7607 = vrot.slane %v7605, 4
        %v7608 = vor.u32 %v7607, %v7603
        %v7609 = vrot.slane %v7608, 4
        %v7611 = vshll.u32 %v7335, 16
        %v7613 = vrot.slane %v7611, 5
        %v7614 = vsel %vm2072, %v7609, %v7613
        %v7616 = vshrl.u32 %v7336, 16
        %v7618 = vrot.slane %v7616, 4
        %v7619 = vshll.u32 %v7336, 16
        %v7621 = vrot.slane %v7619, 5
        %v7622 = vor.u32 %v7618, %v7621
        %v7623 = vrot.slane %v7622, 4
        %v7625 = vshll.u32 %v7337, 16
        %v7627 = vrot.slane %v7625, 5
        %v7628 = vsel %vm2072, %v7623, %v7627
        %v7629 = vshrl.u32 %v7337, 16
        %v7631 = vrot.slane %v7629, 4
        %v7632 = vor.u32 %v7631, %v7627
        %v7633 = vrot.slane %v7632, 4
        %v7635 = vshll.u32 %v7338, 16
        %v7637 = vrot.slane %v7635, 5
        %v7638 = vsel %vm2072, %v7633, %v7637
        %v7640 = vshrl.u32 %v7339, 16
        %v7642 = vrot.slane %v7640, 4
        %v7643 = vshll.u32 %v7339, 16
        %v7645 = vrot.slane %v7643, 5
        %v7646 = vor.u32 %v7642, %v7645
        %v7647 = vrot.slane %v7646, 4
        %v7649 = vshll.u32 %v7340, 16
        %v7651 = vrot.slane %v7649, 5
        %v7652 = vsel %vm2072, %v7647, %v7651
        %v7653 = vshrl.u32 %v7340, 16
        %v7655 = vrot.slane %v7653, 4
        %v7656 = vor.u32 %v7655, %v7651
        %v7657 = vrot.slane %v7656, 4
        %v7659 = vshll.u32 %v7341, 16
        %v7661 = vrot.slane %v7659, 5
        %v7662 = vsel %vm2072, %v7657, %v7661
        %v7664 = vshrl.u32 %v7342, 16
        %v7666 = vrot.slane %v7664, 4
        %v7667 = vshll.u32 %v7342, 16
        %v7669 = vrot.slane %v7667, 5
        %v7670 = vor.u32 %v7666, %v7669
        %v7671 = vrot.slane %v7670, 4
        %v7673 = vshll.u32 %v7343, 16
        %v7675 = vrot.slane %v7673, 5
        %v7676 = vsel %vm2072, %v7671, %v7675
        %v7677 = vshrl.u32 %v7343, 16
        %v7679 = vrot.slane %v7677, 4
        %v7680 = vor.u32 %v7679, %v7675
        %v7681 = vrot.slane %v7680, 4
        %v7683 = vshll.u32 %v7344, 16
        %v7685 = vrot.slane %v7683, 5
        %v7686 = vsel %vm2072, %v7681, %v7685
        %v7688 = vshrl.u32 %v7345, 16
        %v7690 = vrot.slane %v7688, 4
        %v7691 = vshll.u32 %v7345, 16
        %v7693 = vrot.slane %v7691, 5
        %v7694 = vor.u32 %v7690, %v7693
        %v7695 = vrot.slane %v7694, 4
        %v7697 = vshll.u32 %v7346, 16
        %v7699 = vrot.slane %v7697, 5
        %v7700 = vsel %vm2072, %v7695, %v7699
        %v7701 = vshrl.u32 %v7346, 16
        %v7703 = vrot.slane %v7701, 4
        %v7704 = vor.u32 %v7703, %v7699
        %v7705 = vrot.slane %v7704, 4
        %v7707 = vshll.u32 %v7347, 16
        %v7709 = vrot.slane %v7707, 5
        %v7710 = vsel %vm2072, %v7705, %v7709
        %v7712 = vshrl.u32 %v7348, 16
        %v7714 = vrot.slane %v7712, 4
        %v7715 = vshll.u32 %v7348, 16
        %v7717 = vrot.slane %v7715, 5
        %v7718 = vor.u32 %v7714, %v7717
        %v7719 = vrot.slane %v7718, 4
        %v7721 = vshll.u32 %v7349, 16
        %v7723 = vrot.slane %v7721, 5
        %v7724 = vsel %vm2072, %v7719, %v7723
        %v7725 = vshrl.u32 %v7349, 16
        %v7727 = vrot.slane %v7725, 4
        %v7728 = vor.u32 %v7727, %v7723
        %v7729 = vrot.slane %v7728, 4
        %v7731 = vshll.u32 %v7350, 16
        %v7733 = vrot.slane %v7731, 5
        %v7734 = vsel %vm2072, %v7729, %v7733
        %v7767 = vmax.bf16 %v7303, %v7364
        %v7768 = vmax.bf16 %v7304, %v7374
        %v7769 = vmax.bf16 %v7306, %v7388
        %v7770 = vmax.bf16 %v7307, %v7398
        %v7771 = vmax.bf16 %v7309, %v7412
        %v7772 = vmax.bf16 %v7310, %v7422
        %v7773 = vmax.bf16 %v7312, %v7436
        %v7774 = vmax.bf16 %v7313, %v7446
        %v7775 = vmax.bf16 %v7315, %v7460
        %v7776 = vmax.bf16 %v7316, %v7470
        %v7777 = vmax.bf16 %v7318, %v7484
        %v7778 = vmax.bf16 %v7319, %v7494
        %v7779 = vmax.bf16 %v7321, %v7508
        %v7780 = vmax.bf16 %v7322, %v7518
        %v7781 = vmax.bf16 %v7324, %v7532
        %v7782 = vmax.bf16 %v7325, %v7542
        %v7783 = vmax.bf16 %v7327, %v7556
        %v7784 = vmax.bf16 %v7328, %v7566
        %v7785 = vmax.bf16 %v7330, %v7580
        %v7786 = vmax.bf16 %v7331, %v7590
        %v7787 = vmax.bf16 %v7333, %v7604
        %v7788 = vmax.bf16 %v7334, %v7614
        %v7789 = vmax.bf16 %v7336, %v7628
        %v7790 = vmax.bf16 %v7337, %v7638
        %v7791 = vmax.bf16 %v7339, %v7652
        %v7792 = vmax.bf16 %v7340, %v7662
        %v7793 = vmax.bf16 %v7342, %v7676
        %v7794 = vmax.bf16 %v7343, %v7686
        %v7795 = vmax.bf16 %v7345, %v7700
        %v7796 = vmax.bf16 %v7346, %v7710
        %v7797 = vmax.bf16 %v7348, %v7724
        %v7798 = vmax.bf16 %v7349, %v7734
        %v7847 = vrot.slane %v7303, 5
        %v7848 = vrot.slane %v7847, 4
        %v7849 = vrot.slane %v7304, 5
        %v7850 = vsel %vm1022, %v7848, %v7849
        %v7851 = vrot.slane %v7849, 4
        %v7852 = vrot.slane %v7305, 5
        %v7853 = vsel %vm1022, %v7851, %v7852
        %v7854 = vrot.slane %v7306, 5
        %v7855 = vrot.slane %v7854, 4
        %v7856 = vrot.slane %v7307, 5
        %v7857 = vsel %vm1022, %v7855, %v7856
        %v7858 = vrot.slane %v7856, 4
        %v7859 = vrot.slane %v7308, 5
        %v7860 = vsel %vm1022, %v7858, %v7859
        %v7861 = vrot.slane %v7309, 5
        %v7862 = vrot.slane %v7861, 4
        %v7863 = vrot.slane %v7310, 5
        %v7864 = vsel %vm1022, %v7862, %v7863
        %v7865 = vrot.slane %v7863, 4
        %v7866 = vrot.slane %v7311, 5
        %v7867 = vsel %vm1022, %v7865, %v7866
        %v7868 = vrot.slane %v7312, 5
        %v7869 = vrot.slane %v7868, 4
        %v7870 = vrot.slane %v7313, 5
        %v7871 = vsel %vm1022, %v7869, %v7870
        %v7872 = vrot.slane %v7870, 4
        %v7873 = vrot.slane %v7314, 5
        %v7874 = vsel %vm1022, %v7872, %v7873
        %v7875 = vrot.slane %v7315, 5
        %v7876 = vrot.slane %v7875, 4
        %v7877 = vrot.slane %v7316, 5
        %v7878 = vsel %vm1022, %v7876, %v7877
        %v7879 = vrot.slane %v7877, 4
        %v7880 = vrot.slane %v7317, 5
        %v7881 = vsel %vm1022, %v7879, %v7880
        %v7882 = vrot.slane %v7318, 5
        %v7883 = vrot.slane %v7882, 4
        %v7884 = vrot.slane %v7319, 5
        %v7885 = vsel %vm1022, %v7883, %v7884
        %v7886 = vrot.slane %v7884, 4
        %v7887 = vrot.slane %v7320, 5
        %v7888 = vsel %vm1022, %v7886, %v7887
        %v7889 = vrot.slane %v7321, 5
        %v7890 = vrot.slane %v7889, 4
        %v7891 = vrot.slane %v7322, 5
        %v7892 = vsel %vm1022, %v7890, %v7891
        %v7893 = vrot.slane %v7891, 4
        %v7894 = vrot.slane %v7323, 5
        %v7895 = vsel %vm1022, %v7893, %v7894
        %v7896 = vrot.slane %v7324, 5
        %v7897 = vrot.slane %v7896, 4
        %v7898 = vrot.slane %v7325, 5
        %v7899 = vsel %vm1022, %v7897, %v7898
        %v7900 = vrot.slane %v7898, 4
        %v7901 = vrot.slane %v7326, 5
        %v7902 = vsel %vm1022, %v7900, %v7901
        %v7903 = vrot.slane %v7327, 5
        %v7904 = vrot.slane %v7903, 4
        %v7905 = vrot.slane %v7328, 5
        %v7906 = vsel %vm1022, %v7904, %v7905
        %v7907 = vrot.slane %v7905, 4
        %v7908 = vrot.slane %v7329, 5
        %v7909 = vsel %vm1022, %v7907, %v7908
        %v7910 = vrot.slane %v7330, 5
        %v7911 = vrot.slane %v7910, 4
        %v7912 = vrot.slane %v7331, 5
        %v7913 = vsel %vm1022, %v7911, %v7912
        %v7914 = vrot.slane %v7912, 4
        %v7915 = vrot.slane %v7332, 5
        %v7916 = vsel %vm1022, %v7914, %v7915
        %v7917 = vrot.slane %v7333, 5
        %v7918 = vrot.slane %v7917, 4
        %v7919 = vrot.slane %v7334, 5
        %v7920 = vsel %vm1022, %v7918, %v7919
        %v7921 = vrot.slane %v7919, 4
        %v7922 = vrot.slane %v7335, 5
        %v7923 = vsel %vm1022, %v7921, %v7922
        %v7924 = vrot.slane %v7336, 5
        %v7925 = vrot.slane %v7924, 4
        %v7926 = vrot.slane %v7337, 5
        %v7927 = vsel %vm1022, %v7925, %v7926
        %v7928 = vrot.slane %v7926, 4
        %v7929 = vrot.slane %v7338, 5
        %v7930 = vsel %vm1022, %v7928, %v7929
        %v7931 = vrot.slane %v7339, 5
        %v7932 = vrot.slane %v7931, 4
        %v7933 = vrot.slane %v7340, 5
        %v7934 = vsel %vm1022, %v7932, %v7933
        %v7935 = vrot.slane %v7933, 4
        %v7936 = vrot.slane %v7341, 5
        %v7937 = vsel %vm1022, %v7935, %v7936
        %v7938 = vrot.slane %v7342, 5
        %v7939 = vrot.slane %v7938, 4
        %v7940 = vrot.slane %v7343, 5
        %v7941 = vsel %vm1022, %v7939, %v7940
        %v7942 = vrot.slane %v7940, 4
        %v7943 = vrot.slane %v7344, 5
        %v7944 = vsel %vm1022, %v7942, %v7943
        %v7945 = vrot.slane %v7345, 5
        %v7946 = vrot.slane %v7945, 4
        %v7947 = vrot.slane %v7346, 5
        %v7948 = vsel %vm1022, %v7946, %v7947
        %v7949 = vrot.slane %v7947, 4
        %v7950 = vrot.slane %v7347, 5
        %v7951 = vsel %vm1022, %v7949, %v7950
        %v7952 = vrot.slane %v7348, 5
        %v7953 = vrot.slane %v7952, 4
        %v7954 = vrot.slane %v7349, 5
        %v7955 = vsel %vm1022, %v7953, %v7954
        %v7956 = vrot.slane %v7954, 4
        %v7957 = vrot.slane %v7350, 5
        %v7958 = vsel %vm1022, %v7956, %v7957
        %v7991 = vmax.bf16 %v7767, %v7850
        %v7992 = vmax.bf16 %v7768, %v7853
        %v7993 = vmax.bf16 %v7769, %v7857
        %v7994 = vmax.bf16 %v7770, %v7860
        %v7995 = vmax.bf16 %v7771, %v7864
        %v7996 = vmax.bf16 %v7772, %v7867
        %v7997 = vmax.bf16 %v7773, %v7871
        %v7998 = vmax.bf16 %v7774, %v7874
        %v7999 = vmax.bf16 %v7775, %v7878
        %v8000 = vmax.bf16 %v7776, %v7881
        %v8001 = vmax.bf16 %v7777, %v7885
        %v8002 = vmax.bf16 %v7778, %v7888
        %v8003 = vmax.bf16 %v7779, %v7892
        %v8004 = vmax.bf16 %v7780, %v7895
        %v8005 = vmax.bf16 %v7781, %v7899
        %v8006 = vmax.bf16 %v7782, %v7902
        %v8007 = vmax.bf16 %v7783, %v7906
        %v8008 = vmax.bf16 %v7784, %v7909
        %v8009 = vmax.bf16 %v7785, %v7913
        %v8010 = vmax.bf16 %v7786, %v7916
        %v8011 = vmax.bf16 %v7787, %v7920
        %v8012 = vmax.bf16 %v7788, %v7923
        %v8013 = vmax.bf16 %v7789, %v7927
        %v8014 = vmax.bf16 %v7790, %v7930
        %v8015 = vmax.bf16 %v7791, %v7934
        %v8016 = vmax.bf16 %v7792, %v7937
        %v8017 = vmax.bf16 %v7793, %v7941
        %v8018 = vmax.bf16 %v7794, %v7944
        %v8019 = vmax.bf16 %v7795, %v7948
        %v8020 = vmax.bf16 %v7796, %v7951
        %v8021 = vmax.bf16 %v7797, %v7955
        %v8022 = vmax.bf16 %v7798, %v7958
        %v8023 = vrot.slane %v7352, 5
        %v8024 = vrot.slane %v7355, 6
        %v8025 = vor.u32 %v8023, %v8024
        %v8026 = vrot.slane %v8025, 4
        %v8027 = vrot.slane %v7365, 5
        %v8028 = vrot.slane %v7361, 6
        %v8029 = vor.u32 %v8027, %v8028
        %v8030 = vsel %vm3515, %v8026, %v8029
        %v8031 = vrot.slane %v8029, 4
        %v8032 = vshrl.u32 %v7305, 16
        %v8034 = vrot.slane %v8032, 5
        %v8035 = vrot.slane %v7371, 6
        %v8036 = vor.u32 %v8034, %v8035
        %v8037 = vsel %vm3515, %v8031, %v8036
        %v8038 = vrot.slane %v7376, 5
        %v8039 = vrot.slane %v7379, 6
        %v8040 = vor.u32 %v8038, %v8039
        %v8041 = vrot.slane %v8040, 4
        %v8042 = vrot.slane %v7389, 5
        %v8043 = vrot.slane %v7385, 6
        %v8044 = vor.u32 %v8042, %v8043
        %v8045 = vsel %vm3515, %v8041, %v8044
        %v8046 = vrot.slane %v8044, 4
        %v8047 = vshrl.u32 %v7308, 16
        %v8049 = vrot.slane %v8047, 5
        %v8050 = vrot.slane %v7395, 6
        %v8051 = vor.u32 %v8049, %v8050
        %v8052 = vsel %vm3515, %v8046, %v8051
        %v8053 = vrot.slane %v7400, 5
        %v8054 = vrot.slane %v7403, 6
        %v8055 = vor.u32 %v8053, %v8054
        %v8056 = vrot.slane %v8055, 4
        %v8057 = vrot.slane %v7413, 5
        %v8058 = vrot.slane %v7409, 6
        %v8059 = vor.u32 %v8057, %v8058
        %v8060 = vsel %vm3515, %v8056, %v8059
        %v8061 = vrot.slane %v8059, 4
        %v8062 = vshrl.u32 %v7311, 16
        %v8064 = vrot.slane %v8062, 5
        %v8065 = vrot.slane %v7419, 6
        %v8066 = vor.u32 %v8064, %v8065
        %v8067 = vsel %vm3515, %v8061, %v8066
        %v8068 = vrot.slane %v7424, 5
        %v8069 = vrot.slane %v7427, 6
        %v8070 = vor.u32 %v8068, %v8069
        %v8071 = vrot.slane %v8070, 4
        %v8072 = vrot.slane %v7437, 5
        %v8073 = vrot.slane %v7433, 6
        %v8074 = vor.u32 %v8072, %v8073
        %v8075 = vsel %vm3515, %v8071, %v8074
        %v8076 = vrot.slane %v8074, 4
        %v8077 = vshrl.u32 %v7314, 16
        %v8079 = vrot.slane %v8077, 5
        %v8080 = vrot.slane %v7443, 6
        %v8081 = vor.u32 %v8079, %v8080
        %v8082 = vsel %vm3515, %v8076, %v8081
        %v8083 = vrot.slane %v7448, 5
        %v8084 = vrot.slane %v7451, 6
        %v8085 = vor.u32 %v8083, %v8084
        %v8086 = vrot.slane %v8085, 4
        %v8087 = vrot.slane %v7461, 5
        %v8088 = vrot.slane %v7457, 6
        %v8089 = vor.u32 %v8087, %v8088
        %v8090 = vsel %vm3515, %v8086, %v8089
        %v8091 = vrot.slane %v8089, 4
        %v8092 = vshrl.u32 %v7317, 16
        %v8094 = vrot.slane %v8092, 5
        %v8095 = vrot.slane %v7467, 6
        %v8096 = vor.u32 %v8094, %v8095
        %v8097 = vsel %vm3515, %v8091, %v8096
        %v8098 = vrot.slane %v7472, 5
        %v8099 = vrot.slane %v7475, 6
        %v8100 = vor.u32 %v8098, %v8099
        %v8101 = vrot.slane %v8100, 4
        %v8102 = vrot.slane %v7485, 5
        %v8103 = vrot.slane %v7481, 6
        %v8104 = vor.u32 %v8102, %v8103
        %v8105 = vsel %vm3515, %v8101, %v8104
        %v8106 = vrot.slane %v8104, 4
        %v8107 = vshrl.u32 %v7320, 16
        %v8109 = vrot.slane %v8107, 5
        %v8110 = vrot.slane %v7491, 6
        %v8111 = vor.u32 %v8109, %v8110
        %v8112 = vsel %vm3515, %v8106, %v8111
        %v8113 = vrot.slane %v7496, 5
        %v8114 = vrot.slane %v7499, 6
        %v8115 = vor.u32 %v8113, %v8114
        %v8116 = vrot.slane %v8115, 4
        %v8117 = vrot.slane %v7509, 5
        %v8118 = vrot.slane %v7505, 6
        %v8119 = vor.u32 %v8117, %v8118
        %v8120 = vsel %vm3515, %v8116, %v8119
        %v8121 = vrot.slane %v8119, 4
        %v8122 = vshrl.u32 %v7323, 16
        %v8124 = vrot.slane %v8122, 5
        %v8125 = vrot.slane %v7515, 6
        %v8126 = vor.u32 %v8124, %v8125
        %v8127 = vsel %vm3515, %v8121, %v8126
        %v8128 = vrot.slane %v7520, 5
        %v8129 = vrot.slane %v7523, 6
        %v8130 = vor.u32 %v8128, %v8129
        %v8131 = vrot.slane %v8130, 4
        %v8132 = vrot.slane %v7533, 5
        %v8133 = vrot.slane %v7529, 6
        %v8134 = vor.u32 %v8132, %v8133
        %v8135 = vsel %vm3515, %v8131, %v8134
        %v8136 = vrot.slane %v8134, 4
        %v8137 = vshrl.u32 %v7326, 16
        %v8139 = vrot.slane %v8137, 5
        %v8140 = vrot.slane %v7539, 6
        %v8141 = vor.u32 %v8139, %v8140
        %v8142 = vsel %vm3515, %v8136, %v8141
        %v8143 = vrot.slane %v7544, 5
        %v8144 = vrot.slane %v7547, 6
        %v8145 = vor.u32 %v8143, %v8144
        %v8146 = vrot.slane %v8145, 4
        %v8147 = vrot.slane %v7557, 5
        %v8148 = vrot.slane %v7553, 6
        %v8149 = vor.u32 %v8147, %v8148
        %v8150 = vsel %vm3515, %v8146, %v8149
        %v8151 = vrot.slane %v8149, 4
        %v8152 = vshrl.u32 %v7329, 16
        %v8154 = vrot.slane %v8152, 5
        %v8155 = vrot.slane %v7563, 6
        %v8156 = vor.u32 %v8154, %v8155
        %v8157 = vsel %vm3515, %v8151, %v8156
        %v8158 = vrot.slane %v7568, 5
        %v8159 = vrot.slane %v7571, 6
        %v8160 = vor.u32 %v8158, %v8159
        %v8161 = vrot.slane %v8160, 4
        %v8162 = vrot.slane %v7581, 5
        %v8163 = vrot.slane %v7577, 6
        %v8164 = vor.u32 %v8162, %v8163
        %v8165 = vsel %vm3515, %v8161, %v8164
        %v8166 = vrot.slane %v8164, 4
        %v8167 = vshrl.u32 %v7332, 16
        %v8169 = vrot.slane %v8167, 5
        %v8170 = vrot.slane %v7587, 6
        %v8171 = vor.u32 %v8169, %v8170
        %v8172 = vsel %vm3515, %v8166, %v8171
        %v8173 = vrot.slane %v7592, 5
        %v8174 = vrot.slane %v7595, 6
        %v8175 = vor.u32 %v8173, %v8174
        %v8176 = vrot.slane %v8175, 4
        %v8177 = vrot.slane %v7605, 5
        %v8178 = vrot.slane %v7601, 6
        %v8179 = vor.u32 %v8177, %v8178
        %v8180 = vsel %vm3515, %v8176, %v8179
        %v8181 = vrot.slane %v8179, 4
        %v8182 = vshrl.u32 %v7335, 16
        %v8184 = vrot.slane %v8182, 5
        %v8185 = vrot.slane %v7611, 6
        %v8186 = vor.u32 %v8184, %v8185
        %v8187 = vsel %vm3515, %v8181, %v8186
        %v8188 = vrot.slane %v7616, 5
        %v8189 = vrot.slane %v7619, 6
        %v8190 = vor.u32 %v8188, %v8189
        %v8191 = vrot.slane %v8190, 4
        %v8192 = vrot.slane %v7629, 5
        %v8193 = vrot.slane %v7625, 6
        %v8194 = vor.u32 %v8192, %v8193
        %v8195 = vsel %vm3515, %v8191, %v8194
        %v8196 = vrot.slane %v8194, 4
        %v8197 = vshrl.u32 %v7338, 16
        %v8199 = vrot.slane %v8197, 5
        %v8200 = vrot.slane %v7635, 6
        %v8201 = vor.u32 %v8199, %v8200
        %v8202 = vsel %vm3515, %v8196, %v8201
        %v8203 = vrot.slane %v7640, 5
        %v8204 = vrot.slane %v7643, 6
        %v8205 = vor.u32 %v8203, %v8204
        %v8206 = vrot.slane %v8205, 4
        %v8207 = vrot.slane %v7653, 5
        %v8208 = vrot.slane %v7649, 6
        %v8209 = vor.u32 %v8207, %v8208
        %v8210 = vsel %vm3515, %v8206, %v8209
        %v8211 = vrot.slane %v8209, 4
        %v8212 = vshrl.u32 %v7341, 16
        %v8214 = vrot.slane %v8212, 5
        %v8215 = vrot.slane %v7659, 6
        %v8216 = vor.u32 %v8214, %v8215
        %v8217 = vsel %vm3515, %v8211, %v8216
        %v8218 = vrot.slane %v7664, 5
        %v8219 = vrot.slane %v7667, 6
        %v8220 = vor.u32 %v8218, %v8219
        %v8221 = vrot.slane %v8220, 4
        %v8222 = vrot.slane %v7677, 5
        %v8223 = vrot.slane %v7673, 6
        %v8224 = vor.u32 %v8222, %v8223
        %v8225 = vsel %vm3515, %v8221, %v8224
        %v8226 = vrot.slane %v8224, 4
        %v8227 = vshrl.u32 %v7344, 16
        %v8229 = vrot.slane %v8227, 5
        %v8230 = vrot.slane %v7683, 6
        %v8231 = vor.u32 %v8229, %v8230
        %v8232 = vsel %vm3515, %v8226, %v8231
        %v8233 = vrot.slane %v7688, 5
        %v8234 = vrot.slane %v7691, 6
        %v8235 = vor.u32 %v8233, %v8234
        %v8236 = vrot.slane %v8235, 4
        %v8237 = vrot.slane %v7701, 5
        %v8238 = vrot.slane %v7697, 6
        %v8239 = vor.u32 %v8237, %v8238
        %v8240 = vsel %vm3515, %v8236, %v8239
        %v8241 = vrot.slane %v8239, 4
        %v8242 = vshrl.u32 %v7347, 16
        %v8244 = vrot.slane %v8242, 5
        %v8245 = vrot.slane %v7707, 6
        %v8246 = vor.u32 %v8244, %v8245
        %v8247 = vsel %vm3515, %v8241, %v8246
        %v8248 = vrot.slane %v7712, 5
        %v8249 = vrot.slane %v7715, 6
        %v8250 = vor.u32 %v8248, %v8249
        %v8251 = vrot.slane %v8250, 4
        %v8252 = vrot.slane %v7725, 5
        %v8253 = vrot.slane %v7721, 6
        %v8254 = vor.u32 %v8252, %v8253
        %v8255 = vsel %vm3515, %v8251, %v8254
        %v8256 = vrot.slane %v8254, 4
        %v8257 = vshrl.u32 %v7350, 16
        %v8259 = vrot.slane %v8257, 5
        %v8260 = vrot.slane %v7731, 6
        %v8261 = vor.u32 %v8259, %v8260
        %v8262 = vsel %vm3515, %v8256, %v8261
        %v8295 = vmax.bf16 %v7991, %v8030
        %v8296 = vmax.bf16 %v7992, %v8037
        %v8297 = vmax.bf16 %v7993, %v8045
        %v8298 = vmax.bf16 %v7994, %v8052
        %v8299 = vmax.bf16 %v7995, %v8060
        %v8300 = vmax.bf16 %v7996, %v8067
        %v8301 = vmax.bf16 %v7997, %v8075
        %v8302 = vmax.bf16 %v7998, %v8082
        %v8303 = vmax.bf16 %v7999, %v8090
        %v8304 = vmax.bf16 %v8000, %v8097
        %v8305 = vmax.bf16 %v8001, %v8105
        %v8306 = vmax.bf16 %v8002, %v8112
        %v8307 = vmax.bf16 %v8003, %v8120
        %v8308 = vmax.bf16 %v8004, %v8127
        %v8309 = vmax.bf16 %v8005, %v8135
        %v8310 = vmax.bf16 %v8006, %v8142
        %v8311 = vmax.bf16 %v8007, %v8150
        %v8312 = vmax.bf16 %v8008, %v8157
        %v8313 = vmax.bf16 %v8009, %v8165
        %v8314 = vmax.bf16 %v8010, %v8172
        %v8315 = vmax.bf16 %v8011, %v8180
        %v8316 = vmax.bf16 %v8012, %v8187
        %v8317 = vmax.bf16 %v8013, %v8195
        %v8318 = vmax.bf16 %v8014, %v8202
        %v8319 = vmax.bf16 %v8015, %v8210
        %v8320 = vmax.bf16 %v8016, %v8217
        %v8321 = vmax.bf16 %v8017, %v8225
        %v8322 = vmax.bf16 %v8018, %v8232
        %v8323 = vmax.bf16 %v8019, %v8240
        %v8324 = vmax.bf16 %v8020, %v8247
        %v8325 = vmax.bf16 %v8021, %v8255
        %v8326 = vmax.bf16 %v8022, %v8262
        %v8327 = vrot.slane %v7303, 6
        %v8328 = vrot.slane %v8327, 4
        %v8329 = vrot.slane %v7304, 6
        %v8330 = vsel %vm4142, %v8328, %v8329
        %v8331 = vrot.slane %v8329, 4
        %v8332 = vrot.slane %v7305, 6
        %v8333 = vsel %vm4142, %v8331, %v8332
        %v8334 = vrot.slane %v7306, 6
        %v8335 = vrot.slane %v8334, 4
        %v8336 = vrot.slane %v7307, 6
        %v8337 = vsel %vm4142, %v8335, %v8336
        %v8338 = vrot.slane %v8336, 4
        %v8339 = vrot.slane %v7308, 6
        %v8340 = vsel %vm4142, %v8338, %v8339
        %v8341 = vrot.slane %v7309, 6
        %v8342 = vrot.slane %v8341, 4
        %v8343 = vrot.slane %v7310, 6
        %v8344 = vsel %vm4142, %v8342, %v8343
        %v8345 = vrot.slane %v8343, 4
        %v8346 = vrot.slane %v7311, 6
        %v8347 = vsel %vm4142, %v8345, %v8346
        %v8348 = vrot.slane %v7312, 6
        %v8349 = vrot.slane %v8348, 4
        %v8350 = vrot.slane %v7313, 6
        %v8351 = vsel %vm4142, %v8349, %v8350
        %v8352 = vrot.slane %v8350, 4
        %v8353 = vrot.slane %v7314, 6
        %v8354 = vsel %vm4142, %v8352, %v8353
        %v8355 = vrot.slane %v7315, 6
        %v8356 = vrot.slane %v8355, 4
        %v8357 = vrot.slane %v7316, 6
        %v8358 = vsel %vm4142, %v8356, %v8357
        %v8359 = vrot.slane %v8357, 4
        %v8360 = vrot.slane %v7317, 6
        %v8361 = vsel %vm4142, %v8359, %v8360
        %v8362 = vrot.slane %v7318, 6
        %v8363 = vrot.slane %v8362, 4
        %v8364 = vrot.slane %v7319, 6
        %v8365 = vsel %vm4142, %v8363, %v8364
        %v8366 = vrot.slane %v8364, 4
        %v8367 = vrot.slane %v7320, 6
        %v8368 = vsel %vm4142, %v8366, %v8367
        %v8369 = vrot.slane %v7321, 6
        %v8370 = vrot.slane %v8369, 4
        %v8371 = vrot.slane %v7322, 6
        %v8372 = vsel %vm4142, %v8370, %v8371
        %v8373 = vrot.slane %v8371, 4
        %v8374 = vrot.slane %v7323, 6
        %v8375 = vsel %vm4142, %v8373, %v8374
        %v8376 = vrot.slane %v7324, 6
        %v8377 = vrot.slane %v8376, 4
        %v8378 = vrot.slane %v7325, 6
        %v8379 = vsel %vm4142, %v8377, %v8378
        %v8380 = vrot.slane %v8378, 4
        %v8381 = vrot.slane %v7326, 6
        %v8382 = vsel %vm4142, %v8380, %v8381
        %v8383 = vrot.slane %v7327, 6
        %v8384 = vrot.slane %v8383, 4
        %v8385 = vrot.slane %v7328, 6
        %v8386 = vsel %vm4142, %v8384, %v8385
        %v8387 = vrot.slane %v8385, 4
        %v8388 = vrot.slane %v7329, 6
        %v8389 = vsel %vm4142, %v8387, %v8388
        %v8390 = vrot.slane %v7330, 6
        %v8391 = vrot.slane %v8390, 4
        %v8392 = vrot.slane %v7331, 6
        %v8393 = vsel %vm4142, %v8391, %v8392
        %v8394 = vrot.slane %v8392, 4
        %v8395 = vrot.slane %v7332, 6
        %v8396 = vsel %vm4142, %v8394, %v8395
        %v8397 = vrot.slane %v7333, 6
        %v8398 = vrot.slane %v8397, 4
        %v8399 = vrot.slane %v7334, 6
        %v8400 = vsel %vm4142, %v8398, %v8399
        %v8401 = vrot.slane %v8399, 4
        %v8402 = vrot.slane %v7335, 6
        %v8403 = vsel %vm4142, %v8401, %v8402
        %v8404 = vrot.slane %v7336, 6
        %v8405 = vrot.slane %v8404, 4
        %v8406 = vrot.slane %v7337, 6
        %v8407 = vsel %vm4142, %v8405, %v8406
        %v8408 = vrot.slane %v8406, 4
        %v8409 = vrot.slane %v7338, 6
        %v8410 = vsel %vm4142, %v8408, %v8409
        %v8411 = vrot.slane %v7339, 6
        %v8412 = vrot.slane %v8411, 4
        %v8413 = vrot.slane %v7340, 6
        %v8414 = vsel %vm4142, %v8412, %v8413
        %v8415 = vrot.slane %v8413, 4
        %v8416 = vrot.slane %v7341, 6
        %v8417 = vsel %vm4142, %v8415, %v8416
        %v8418 = vrot.slane %v7342, 6
        %v8419 = vrot.slane %v8418, 4
        %v8420 = vrot.slane %v7343, 6
        %v8421 = vsel %vm4142, %v8419, %v8420
        %v8422 = vrot.slane %v8420, 4
        %v8423 = vrot.slane %v7344, 6
        %v8424 = vsel %vm4142, %v8422, %v8423
        %v8425 = vrot.slane %v7345, 6
        %v8426 = vrot.slane %v8425, 4
        %v8427 = vrot.slane %v7346, 6
        %v8428 = vsel %vm4142, %v8426, %v8427
        %v8429 = vrot.slane %v8427, 4
        %v8430 = vrot.slane %v7347, 6
        %v8431 = vsel %vm4142, %v8429, %v8430
        %v8432 = vrot.slane %v7348, 6
        %v8433 = vrot.slane %v8432, 4
        %v8434 = vrot.slane %v7349, 6
        %v8435 = vsel %vm4142, %v8433, %v8434
        %v8436 = vrot.slane %v8434, 4
        %v8437 = vrot.slane %v7350, 6
        %v8438 = vsel %vm4142, %v8436, %v8437
        %v8471 = vmax.bf16 %v8295, %v8330
        %v8472 = vmax.bf16 %v8296, %v8333
        %v8473 = vmax.bf16 %v8297, %v8337
        %v8474 = vmax.bf16 %v8298, %v8340
        %v8475 = vmax.bf16 %v8299, %v8344
        %v8476 = vmax.bf16 %v8300, %v8347
        %v8477 = vmax.bf16 %v8301, %v8351
        %v8478 = vmax.bf16 %v8302, %v8354
        %v8479 = vmax.bf16 %v8303, %v8358
        %v8480 = vmax.bf16 %v8304, %v8361
        %v8481 = vmax.bf16 %v8305, %v8365
        %v8482 = vmax.bf16 %v8306, %v8368
        %v8483 = vmax.bf16 %v8307, %v8372
        %v8484 = vmax.bf16 %v8308, %v8375
        %v8485 = vmax.bf16 %v8309, %v8379
        %v8486 = vmax.bf16 %v8310, %v8382
        %v8487 = vmax.bf16 %v8311, %v8386
        %v8488 = vmax.bf16 %v8312, %v8389
        %v8489 = vmax.bf16 %v8313, %v8393
        %v8490 = vmax.bf16 %v8314, %v8396
        %v8491 = vmax.bf16 %v8315, %v8400
        %v8492 = vmax.bf16 %v8316, %v8403
        %v8493 = vmax.bf16 %v8317, %v8407
        %v8494 = vmax.bf16 %v8318, %v8410
        %v8495 = vmax.bf16 %v8319, %v8414
        %v8496 = vmax.bf16 %v8320, %v8417
        %v8497 = vmax.bf16 %v8321, %v8421
        %v8498 = vmax.bf16 %v8322, %v8424
        %v8499 = vmax.bf16 %v8323, %v8428
        %v8500 = vmax.bf16 %v8324, %v8431
        %v8501 = vmax.bf16 %v8325, %v8435
        %v8502 = vmax.bf16 %v8326, %v8438
        %8535 = vst.msk [vmem:[#allocation3] sm:$0xf] %vm826, %v988
        %8536 = vst.msk [vmem:[#allocation3 + $0x4] sm:$0xf] %vm826, %v989
        %8537 = vst.msk [vmem:[#allocation3 + $0x8] sm:$0xf] %vm826, %v990
        %8538 = vst.msk [vmem:[#allocation3 + $0xc] sm:$0xf] %vm826, %v991
        %8539 = vst.msk [vmem:[#allocation3 + $0x10] sm:$0xf] %vm826, %v992
        %8540 = vst.msk [vmem:[#allocation3 + $0x14] sm:$0xf] %vm826, %v993
        %8541 = vst.msk [vmem:[#allocation3 + $0x18] sm:$0xf] %vm826, %v994
        %8542 = vst.msk [vmem:[#allocation3 + $0x1c] sm:$0xf] %vm826, %v995
        %8543 = vst.msk [vmem:[#allocation3 + $0x20] sm:$0xf] %vm826, %v996
        %8544 = vst.msk [vmem:[#allocation3 + $0x24] sm:$0xf] %vm826, %v997
        %8545 = vst.msk [vmem:[#allocation3 + $0x28] sm:$0xf] %vm826, %v998
        %8546 = vst.msk [vmem:[#allocation3 + $0x2c] sm:$0xf] %vm826, %v999
        %8547 = vst.msk [vmem:[#allocation3 + $0x30] sm:$0xf] %vm826, %v1000
        %8548 = vst.msk [vmem:[#allocation3 + $0x34] sm:$0xf] %vm826, %v1001
        %8549 = vst.msk [vmem:[#allocation3 + $0x38] sm:$0xf] %vm826, %v1002
        %8550 = vst.msk [vmem:[#allocation3 + $0x3c] sm:$0xf] %vm826, %v1003
        %8551 = vst.msk [vmem:[#allocation3 + $0x40] sm:$0xf] %vm826, %v1004
        %8552 = vst.msk [vmem:[#allocation3 + $0x44] sm:$0xf] %vm826, %v1005
        %8553 = vst.msk [vmem:[#allocation3 + $0x48] sm:$0xf] %vm826, %v1006
        %8554 = vst.msk [vmem:[#allocation3 + $0x4c] sm:$0xf] %vm826, %v1007
        %8555 = vst.msk [vmem:[#allocation3 + $0x50] sm:$0xf] %vm826, %v1008
        %8556 = vst.msk [vmem:[#allocation3 + $0x54] sm:$0xf] %vm826, %v1009
        %8557 = vst.msk [vmem:[#allocation3 + $0x58] sm:$0xf] %vm826, %v1010
        %8558 = vst.msk [vmem:[#allocation3 + $0x5c] sm:$0xf] %vm826, %v1011
        %8559 = vst.msk [vmem:[#allocation3 + $0x60] sm:$0xf] %vm826, %v1012
        %8560 = vst.msk [vmem:[#allocation3 + $0x64] sm:$0xf] %vm826, %v1013
        %8561 = vst.msk [vmem:[#allocation3 + $0x68] sm:$0xf] %vm826, %v1014
        %8562 = vst.msk [vmem:[#allocation3 + $0x6c] sm:$0xf] %vm826, %v1015
        %8563 = vst.msk [vmem:[#allocation3 + $0x70] sm:$0xf] %vm826, %v1016
        %8564 = vst.msk [vmem:[#allocation3 + $0x74] sm:$0xf] %vm826, %v1017
        %8565 = vst.msk [vmem:[#allocation3 + $0x78] sm:$0xf] %vm826, %v1018
        %8566 = vst.msk [vmem:[#allocation3 + $0x7c] sm:$0xf] %vm826, %v1019
        %v8615 = vrot.slane %v4467, 6
        %v8616 = vrot.slane %v8615, 4
        %v8617 = vrot.slane %v4468, 6
        %v8618 = vsel %vm4142, %v8616, %v8617
        %v8619 = vrot.slane %v8617, 4
        %v8620 = vrot.slane %v4469, 6
        %v8621 = vsel %vm4142, %v8619, %v8620
        %v8622 = vrot.slane %v4470, 6
        %v8623 = vrot.slane %v8622, 4
        %v8624 = vrot.slane %v4471, 6
        %v8625 = vsel %vm4142, %v8623, %v8624
        %v8626 = vrot.slane %v8624, 4
        %v8627 = vrot.slane %v4472, 6
        %v8628 = vsel %vm4142, %v8626, %v8627
        %v8629 = vrot.slane %v4473, 6
        %v8630 = vrot.slane %v8629, 4
        %v8631 = vrot.slane %v4474, 6
        %v8632 = vsel %vm4142, %v8630, %v8631
        %v8633 = vrot.slane %v8631, 4
        %v8634 = vrot.slane %v4475, 6
        %v8635 = vsel %vm4142, %v8633, %v8634
        %v8636 = vrot.slane %v4476, 6
        %v8637 = vrot.slane %v8636, 4
        %v8638 = vrot.slane %v4477, 6
        %v8639 = vsel %vm4142, %v8637, %v8638
        %v8640 = vrot.slane %v8638, 4
        %v8641 = vrot.slane %v4478, 6
        %v8642 = vsel %vm4142, %v8640, %v8641
        %v8643 = vrot.slane %v4479, 6
        %v8644 = vrot.slane %v8643, 4
        %v8645 = vrot.slane %v4480, 6
        %v8646 = vsel %vm4142, %v8644, %v8645
        %v8647 = vrot.slane %v8645, 4
        %v8648 = vrot.slane %v4481, 6
        %v8649 = vsel %vm4142, %v8647, %v8648
        %v8650 = vrot.slane %v4482, 6
        %v8651 = vrot.slane %v8650, 4
        %v8652 = vrot.slane %v4483, 6
        %v8653 = vsel %vm4142, %v8651, %v8652
        %v8654 = vrot.slane %v8652, 4
        %v8655 = vrot.slane %v4484, 6
        %v8656 = vsel %vm4142, %v8654, %v8655
        %v8657 = vrot.slane %v4485, 6
        %v8658 = vrot.slane %v8657, 4
        %v8659 = vrot.slane %v4486, 6
        %v8660 = vsel %vm4142, %v8658, %v8659
        %v8661 = vrot.slane %v8659, 4
        %v8662 = vrot.slane %v4487, 6
        %v8663 = vsel %vm4142, %v8661, %v8662
        %v8664 = vrot.slane %v4488, 6
        %v8665 = vrot.slane %v8664, 4
        %v8666 = vrot.slane %v4489, 6
        %v8667 = vsel %vm4142, %v8665, %v8666
        %v8668 = vrot.slane %v8666, 4
        %v8669 = vrot.slane %v4490, 6
        %v8670 = vsel %vm4142, %v8668, %v8669
        %v8671 = vrot.slane %v4491, 6
        %v8672 = vrot.slane %v8671, 4
        %v8673 = vrot.slane %v4492, 6
        %v8674 = vsel %vm4142, %v8672, %v8673
        %v8675 = vrot.slane %v8673, 4
        %v8676 = vrot.slane %v4493, 6
        %v8677 = vsel %vm4142, %v8675, %v8676
        %v8678 = vrot.slane %v4494, 6
        %v8679 = vrot.slane %v8678, 4
        %v8680 = vrot.slane %v4495, 6
        %v8681 = vsel %vm4142, %v8679, %v8680
        %v8682 = vrot.slane %v8680, 4
        %v8683 = vrot.slane %v4496, 6
        %v8684 = vsel %vm4142, %v8682, %v8683
        %v8685 = vrot.slane %v4497, 6
        %v8686 = vrot.slane %v8685, 4
        %v8687 = vrot.slane %v4498, 6
        %v8688 = vsel %vm4142, %v8686, %v8687
        %v8689 = vrot.slane %v8687, 4
        %v8690 = vrot.slane %v4499, 6
        %v8691 = vsel %vm4142, %v8689, %v8690
        %v8692 = vrot.slane %v4500, 6
        %v8693 = vrot.slane %v8692, 4
        %v8694 = vrot.slane %v4501, 6
        %v8695 = vsel %vm4142, %v8693, %v8694
        %v8696 = vrot.slane %v8694, 4
        %v8697 = vrot.slane %v4502, 6
        %v8698 = vsel %vm4142, %v8696, %v8697
        %v8699 = vrot.slane %v4503, 6
        %v8700 = vrot.slane %v8699, 4
        %v8701 = vrot.slane %v4504, 6
        %v8702 = vsel %vm4142, %v8700, %v8701
        %v8703 = vrot.slane %v8701, 4
        %v8704 = vrot.slane %v4505, 6
        %v8705 = vsel %vm4142, %v8703, %v8704
        %v8706 = vrot.slane %v4506, 6
        %v8707 = vrot.slane %v8706, 4
        %v8708 = vrot.slane %v4507, 6
        %v8709 = vsel %vm4142, %v8707, %v8708
        %v8710 = vrot.slane %v8708, 4
        %v8711 = vrot.slane %v4508, 6
        %v8712 = vsel %vm4142, %v8710, %v8711
        %v8713 = vrot.slane %v4509, 6
        %v8714 = vrot.slane %v8713, 4
        %v8715 = vrot.slane %v4510, 6
        %v8716 = vsel %vm4142, %v8714, %v8715
        %v8717 = vrot.slane %v8715, 4
        %v8718 = vrot.slane %v4511, 6
        %v8719 = vsel %vm4142, %v8717, %v8718
        %v8720 = vrot.slane %v4512, 6
        %v8721 = vrot.slane %v8720, 4
        %v8722 = vrot.slane %v4513, 6
        %v8723 = vsel %vm4142, %v8721, %v8722
        %v8724 = vrot.slane %v8722, 4
        %v8725 = vrot.slane %v4514, 6
        %v8726 = vsel %vm4142, %v8724, %v8725
        %8727 = vrot.lane.b32.xlu0 %v8618, 32
        %v8728 = vpop.permute.xlu0 %8727
        %8729 = vrot.lane.b32.xlu0 %v8621, 32
        %v8730 = vpop.permute.xlu0 %8729
        %8731 = vrot.lane.b32.xlu0 %v8625, 32
        %v8732 = vpop.permute.xlu0 %8731
        %8733 = vrot.lane.b32.xlu0 %v8628, 32
        %v8734 = vpop.permute.xlu0 %8733
        %8735 = vrot.lane.b32.xlu0 %v8632, 32
        %v8736 = vpop.permute.xlu0 %8735
        %8737 = vrot.lane.b32.xlu0 %v8635, 32
        %v8738 = vpop.permute.xlu0 %8737
        %8739 = vrot.lane.b32.xlu0 %v8639, 32
        %v8740 = vpop.permute.xlu0 %8739
        %8741 = vrot.lane.b32.xlu0 %v8642, 32
        %v8742 = vpop.permute.xlu0 %8741
        %8743 = vrot.lane.b32.xlu0 %v8646, 32
        %v8744 = vpop.permute.xlu0 %8743
        %8745 = vrot.lane.b32.xlu0 %v8649, 32
        %v8746 = vpop.permute.xlu0 %8745
        %8747 = vrot.lane.b32.xlu0 %v8653, 32
        %v8748 = vpop.permute.xlu0 %8747
        %8749 = vrot.lane.b32.xlu0 %v8656, 32
        %v8750 = vpop.permute.xlu0 %8749
        %8751 = vrot.lane.b32.xlu0 %v8660, 32
        %v8752 = vpop.permute.xlu0 %8751
        %8753 = vrot.lane.b32.xlu0 %v8663, 32
        %v8754 = vpop.permute.xlu0 %8753
        %8755 = vrot.lane.b32.xlu0 %v8667, 32
        %v8756 = vpop.permute.xlu0 %8755
        %8757 = vrot.lane.b32.xlu0 %v8670, 32
        %v8758 = vpop.permute.xlu0 %8757
        %8759 = vrot.lane.b32.xlu0 %v8674, 32
        %v8760 = vpop.permute.xlu0 %8759
        %8761 = vrot.lane.b32.xlu0 %v8677, 32
        %v8762 = vpop.permute.xlu0 %8761
        %8763 = vrot.lane.b32.xlu0 %v8681, 32
        %v8764 = vpop.permute.xlu0 %8763
        %8765 = vrot.lane.b32.xlu0 %v8684, 32
        %v8766 = vpop.permute.xlu0 %8765
        %8767 = vrot.lane.b32.xlu0 %v8688, 32
        %v8768 = vpop.permute.xlu0 %8767
        %8769 = vrot.lane.b32.xlu0 %v8691, 32
        %v8770 = vpop.permute.xlu0 %8769
        %8771 = vrot.lane.b32.xlu0 %v8695, 32
        %v8772 = vpop.permute.xlu0 %8771
        %8773 = vrot.lane.b32.xlu0 %v8698, 32
        %v8774 = vpop.permute.xlu0 %8773
        %8775 = vrot.lane.b32.xlu0 %v8702, 32
        %v8776 = vpop.permute.xlu0 %8775
        %8777 = vrot.lane.b32.xlu0 %v8705, 32
        %v8778 = vpop.permute.xlu0 %8777
        %8779 = vrot.lane.b32.xlu0 %v8709, 32
        %v8780 = vpop.permute.xlu0 %8779
        %8781 = vrot.lane.b32.xlu0 %v8712, 32
        %v8782 = vpop.permute.xlu0 %8781
        %8783 = vrot.lane.b32.xlu0 %v8716, 32
        %v8784 = vpop.permute.xlu0 %8783
        %8785 = vrot.lane.b32.xlu0 %v8719, 32
        %v8786 = vpop.permute.xlu0 %8785
        %8787 = vrot.lane.b32.xlu0 %v8723, 32
        %v8788 = vpop.permute.xlu0 %8787
        %8789 = vrot.lane.b32.xlu0 %v8726, 32
        %v8790 = vpop.permute.xlu0 %8789
        %vm8823 = vcmask 519424
        %8824 = vst.msk [vmem:[#allocation3] sm:$0xf] %vm8823, %v8728
        %8825 = vst.msk [vmem:[#allocation3 + $0x4] sm:$0xf] %vm8823, %v8730
        %8826 = vst.msk [vmem:[#allocation3 + $0x8] sm:$0xf] %vm8823, %v8732
        %8827 = vst.msk [vmem:[#allocation3 + $0xc] sm:$0xf] %vm8823, %v8734
        %8828 = vst.msk [vmem:[#allocation3 + $0x10] sm:$0xf] %vm8823, %v8736
        %8829 = vst.msk [vmem:[#allocation3 + $0x14] sm:$0xf] %vm8823, %v8738
        %8830 = vst.msk [vmem:[#allocation3 + $0x18] sm:$0xf] %vm8823, %v8740
        %8831 = vst.msk [vmem:[#allocation3 + $0x1c] sm:$0xf] %vm8823, %v8742
        %8832 = vst.msk [vmem:[#allocation3 + $0x20] sm:$0xf] %vm8823, %v8744
        %8833 = vst.msk [vmem:[#allocation3 + $0x24] sm:$0xf] %vm8823, %v8746
        %8834 = vst.msk [vmem:[#allocation3 + $0x28] sm:$0xf] %vm8823, %v8748
        %8835 = vst.msk [vmem:[#allocation3 + $0x2c] sm:$0xf] %vm8823, %v8750
        %8836 = vst.msk [vmem:[#allocation3 + $0x30] sm:$0xf] %vm8823, %v8752
        %8837 = vst.msk [vmem:[#allocation3 + $0x34] sm:$0xf] %vm8823, %v8754
        %8838 = vst.msk [vmem:[#allocation3 + $0x38] sm:$0xf] %vm8823, %v8756
        %8839 = vst.msk [vmem:[#allocation3 + $0x3c] sm:$0xf] %vm8823, %v8758
        %8840 = vst.msk [vmem:[#allocation3 + $0x40] sm:$0xf] %vm8823, %v8760
        %8841 = vst.msk [vmem:[#allocation3 + $0x44] sm:$0xf] %vm8823, %v8762
        %8842 = vst.msk [vmem:[#allocation3 + $0x48] sm:$0xf] %vm8823, %v8764
        %8843 = vst.msk [vmem:[#allocation3 + $0x4c] sm:$0xf] %vm8823, %v8766
        %8844 = vst.msk [vmem:[#allocation3 + $0x50] sm:$0xf] %vm8823, %v8768
        %8845 = vst.msk [vmem:[#allocation3 + $0x54] sm:$0xf] %vm8823, %v8770
        %8846 = vst.msk [vmem:[#allocation3 + $0x58] sm:$0xf] %vm8823, %v8772
        %8847 = vst.msk [vmem:[#allocation3 + $0x5c] sm:$0xf] %vm8823, %v8774
        %8848 = vst.msk [vmem:[#allocation3 + $0x60] sm:$0xf] %vm8823, %v8776
        %8849 = vst.msk [vmem:[#allocation3 + $0x64] sm:$0xf] %vm8823, %v8778
        %8850 = vst.msk [vmem:[#allocation3 + $0x68] sm:$0xf] %vm8823, %v8780
        %8851 = vst.msk [vmem:[#allocation3 + $0x6c] sm:$0xf] %vm8823, %v8782
        %8852 = vst.msk [vmem:[#allocation3 + $0x70] sm:$0xf] %vm8823, %v8784
        %8853 = vst.msk [vmem:[#allocation3 + $0x74] sm:$0xf] %vm8823, %v8786
        %8854 = vst.msk [vmem:[#allocation3 + $0x78] sm:$0xf] %vm8823, %v8788
        %8855 = vst.msk [vmem:[#allocation3 + $0x7c] sm:$0xf] %vm8823, %v8790
        %v8904 = vrot.slane %v6805, 5
        %v8905 = vrot.slane %v8904, 4
        %v8906 = vrot.slane %v6806, 5
        %v8907 = vsel %vm1022, %v8905, %v8906
        %v8908 = vrot.slane %v8906, 4
        %v8909 = vrot.slane %v6807, 5
        %v8910 = vsel %vm1022, %v8908, %v8909
        %v8911 = vrot.slane %v6808, 5
        %v8912 = vrot.slane %v8911, 4
        %v8913 = vrot.slane %v6809, 5
        %v8914 = vsel %vm1022, %v8912, %v8913
        %v8915 = vrot.slane %v8913, 4
        %v8916 = vrot.slane %v6810, 5
        %v8917 = vsel %vm1022, %v8915, %v8916
        %v8918 = vrot.slane %v6811, 5
        %v8919 = vrot.slane %v8918, 4
        %v8920 = vrot.slane %v6812, 5
        %v8921 = vsel %vm1022, %v8919, %v8920
        %v8922 = vrot.slane %v8920, 4
        %v8923 = vrot.slane %v6813, 5
        %v8924 = vsel %vm1022, %v8922, %v8923
        %v8925 = vrot.slane %v6814, 5
        %v8926 = vrot.slane %v8925, 4
        %v8927 = vrot.slane %v6815, 5
        %v8928 = vsel %vm1022, %v8926, %v8927
        %v8929 = vrot.slane %v8927, 4
        %v8930 = vrot.slane %v6816, 5
        %v8931 = vsel %vm1022, %v8929, %v8930
        %v8932 = vrot.slane %v6817, 5
        %v8933 = vrot.slane %v8932, 4
        %v8934 = vrot.slane %v6818, 5
        %v8935 = vsel %vm1022, %v8933, %v8934
        %v8936 = vrot.slane %v8934, 4
        %v8937 = vrot.slane %v6819, 5
        %v8938 = vsel %vm1022, %v8936, %v8937
        %v8939 = vrot.slane %v6820, 5
        %v8940 = vrot.slane %v8939, 4
        %v8941 = vrot.slane %v6821, 5
        %v8942 = vsel %vm1022, %v8940, %v8941
        %v8943 = vrot.slane %v8941, 4
        %v8944 = vrot.slane %v6822, 5
        %v8945 = vsel %vm1022, %v8943, %v8944
        %v8946 = vrot.slane %v6823, 5
        %v8947 = vrot.slane %v8946, 4
        %v8948 = vrot.slane %v6824, 5
        %v8949 = vsel %vm1022, %v8947, %v8948
        %v8950 = vrot.slane %v8948, 4
        %v8951 = vrot.slane %v6825, 5
        %v8952 = vsel %vm1022, %v8950, %v8951
        %v8953 = vrot.slane %v6826, 5
        %v8954 = vrot.slane %v8953, 4
        %v8955 = vrot.slane %v6827, 5
        %v8956 = vsel %vm1022, %v8954, %v8955
        %v8957 = vrot.slane %v8955, 4
        %v8958 = vrot.slane %v6828, 5
        %v8959 = vsel %vm1022, %v8957, %v8958
        %v8960 = vrot.slane %v6829, 5
        %v8961 = vrot.slane %v8960, 4
        %v8962 = vrot.slane %v6830, 5
        %v8963 = vsel %vm1022, %v8961, %v8962
        %v8964 = vrot.slane %v8962, 4
        %v8965 = vrot.slane %v6831, 5
        %v8966 = vsel %vm1022, %v8964, %v8965
        %v8967 = vrot.slane %v6832, 5
        %v8968 = vrot.slane %v8967, 4
        %v8969 = vrot.slane %v6833, 5
        %v8970 = vsel %vm1022, %v8968, %v8969
        %v8971 = vrot.slane %v8969, 4
        %v8972 = vrot.slane %v6834, 5
        %v8973 = vsel %vm1022, %v8971, %v8972
        %v8974 = vrot.slane %v6835, 5
        %v8975 = vrot.slane %v8974, 4
        %v8976 = vrot.slane %v6836, 5
        %v8977 = vsel %vm1022, %v8975, %v8976
        %v8978 = vrot.slane %v8976, 4
        %v8979 = vrot.slane %v6837, 5
        %v8980 = vsel %vm1022, %v8978, %v8979
        %v8981 = vrot.slane %v6838, 5
        %v8982 = vrot.slane %v8981, 4
        %v8983 = vrot.slane %v6839, 5
        %v8984 = vsel %vm1022, %v8982, %v8983
        %v8985 = vrot.slane %v8983, 4
        %v8986 = vrot.slane %v6840, 5
        %v8987 = vsel %vm1022, %v8985, %v8986
        %v8988 = vrot.slane %v6841, 5
        %v8989 = vrot.slane %v8988, 4
        %v8990 = vrot.slane %v6842, 5
        %v8991 = vsel %vm1022, %v8989, %v8990
        %v8992 = vrot.slane %v8990, 4
        %v8993 = vrot.slane %v6843, 5
        %v8994 = vsel %vm1022, %v8992, %v8993
        %v8995 = vrot.slane %v6844, 5
        %v8996 = vrot.slane %v8995, 4
        %v8997 = vrot.slane %v6845, 5
        %v8998 = vsel %vm1022, %v8996, %v8997
        %v8999 = vrot.slane %v8997, 4
        %v9000 = vrot.slane %v6846, 5
        %v9001 = vsel %vm1022, %v8999, %v9000
        %v9002 = vrot.slane %v6847, 5
        %v9003 = vrot.slane %v9002, 4
        %v9004 = vrot.slane %v6848, 5
        %v9005 = vsel %vm1022, %v9003, %v9004
        %v9006 = vrot.slane %v9004, 4
        %v9007 = vrot.slane %v6849, 5
        %v9008 = vsel %vm1022, %v9006, %v9007
        %v9009 = vrot.slane %v6850, 5
        %v9010 = vrot.slane %v9009, 4
        %v9011 = vrot.slane %v6851, 5
        %v9012 = vsel %vm1022, %v9010, %v9011
        %v9013 = vrot.slane %v9011, 4
        %v9014 = vrot.slane %v6852, 5
        %v9015 = vsel %vm1022, %v9013, %v9014
        %9016 = vrot.lane.b32.xlu0 %v8907, 64
        %v9017 = vpop.permute.xlu0 %9016
        %9018 = vrot.lane.b32.xlu0 %v8910, 64
        %v9019 = vpop.permute.xlu0 %9018
        %9020 = vrot.lane.b32.xlu0 %v8914, 64
        %v9021 = vpop.permute.xlu0 %9020
        %9022 = vrot.lane.b32.xlu0 %v8917, 64
        %v9023 = vpop.permute.xlu0 %9022
        %9024 = vrot.lane.b32.xlu0 %v8921, 64
        %v9025 = vpop.permute.xlu0 %9024
        %9026 = vrot.lane.b32.xlu0 %v8924, 64
        %v9027 = vpop.permute.xlu0 %9026
        %9028 = vrot.lane.b32.xlu0 %v8928, 64
        %v9029 = vpop.permute.xlu0 %9028
        %9030 = vrot.lane.b32.xlu0 %v8931, 64
        %v9031 = vpop.permute.xlu0 %9030
        %9032 = vrot.lane.b32.xlu0 %v8935, 64
        %v9033 = vpop.permute.xlu0 %9032
        %9034 = vrot.lane.b32.xlu0 %v8938, 64
        %v9035 = vpop.permute.xlu0 %9034
        %9036 = vrot.lane.b32.xlu0 %v8942, 64
        %v9037 = vpop.permute.xlu0 %9036
        %9038 = vrot.lane.b32.xlu0 %v8945, 64
        %v9039 = vpop.permute.xlu0 %9038
        %9040 = vrot.lane.b32.xlu0 %v8949, 64
        %v9041 = vpop.permute.xlu0 %9040
        %9042 = vrot.lane.b32.xlu0 %v8952, 64
        %v9043 = vpop.permute.xlu0 %9042
        %9044 = vrot.lane.b32.xlu0 %v8956, 64
        %v9045 = vpop.permute.xlu0 %9044
        %9046 = vrot.lane.b32.xlu0 %v8959, 64
        %v9047 = vpop.permute.xlu0 %9046
        %9048 = vrot.lane.b32.xlu0 %v8963, 64
        %v9049 = vpop.permute.xlu0 %9048
        %9050 = vrot.lane.b32.xlu0 %v8966, 64
        %v9051 = vpop.permute.xlu0 %9050
        %9052 = vrot.lane.b32.xlu0 %v8970, 64
        %v9053 = vpop.permute.xlu0 %9052
        %9054 = vrot.lane.b32.xlu0 %v8973, 64
        %v9055 = vpop.permute.xlu0 %9054
        %9056 = vrot.lane.b32.xlu0 %v8977, 64
        %v9057 = vpop.permute.xlu0 %9056
        %9058 = vrot.lane.b32.xlu0 %v8980, 64
        %v9059 = vpop.permute.xlu0 %9058
        %9060 = vrot.lane.b32.xlu0 %v8984, 64
        %v9061 = vpop.permute.xlu0 %9060
        %9062 = vrot.lane.b32.xlu0 %v8987, 64
        %v9063 = vpop.permute.xlu0 %9062
        %9064 = vrot.lane.b32.xlu0 %v8991, 64
        %v9065 = vpop.permute.xlu0 %9064
        %9066 = vrot.lane.b32.xlu0 %v8994, 64
        %v9067 = vpop.permute.xlu0 %9066
        %9068 = vrot.lane.b32.xlu0 %v8998, 64
        %v9069 = vpop.permute.xlu0 %9068
        %9070 = vrot.lane.b32.xlu0 %v9001, 64
        %v9071 = vpop.permute.xlu0 %9070
        %9072 = vrot.lane.b32.xlu0 %v9005, 64
        %v9073 = vpop.permute.xlu0 %9072
        %9074 = vrot.lane.b32.xlu0 %v9008, 64
        %v9075 = vpop.permute.xlu0 %9074
        %9076 = vrot.lane.b32.xlu0 %v9012, 64
        %v9077 = vpop.permute.xlu0 %9076
        %9078 = vrot.lane.b32.xlu0 %v9015, 64
        %v9079 = vpop.permute.xlu0 %9078
        %vm9112 = vcmask 781824
        %9113 = vst.msk [vmem:[#allocation3] sm:$0xf] %vm9112, %v9017
        %9114 = vst.msk [vmem:[#allocation3 + $0x4] sm:$0xf] %vm9112, %v9019
        %9115 = vst.msk [vmem:[#allocation3 + $0x8] sm:$0xf] %vm9112, %v9021
        %9116 = vst.msk [vmem:[#allocation3 + $0xc] sm:$0xf] %vm9112, %v9023
        %9117 = vst.msk [vmem:[#allocation3 + $0x10] sm:$0xf] %vm9112, %v9025
        %9118 = vst.msk [vmem:[#allocation3 + $0x14] sm:$0xf] %vm9112, %v9027
        %9119 = vst.msk [vmem:[#allocation3 + $0x18] sm:$0xf] %vm9112, %v9029
        %9120 = vst.msk [vmem:[#allocation3 + $0x1c] sm:$0xf] %vm9112, %v9031
        %9121 = vst.msk [vmem:[#allocation3 + $0x20] sm:$0xf] %vm9112, %v9033
        %9122 = vst.msk [vmem:[#allocation3 + $0x24] sm:$0xf] %vm9112, %v9035
        %9123 = vst.msk [vmem:[#allocation3 + $0x28] sm:$0xf] %vm9112, %v9037
        %9124 = vst.msk [vmem:[#allocation3 + $0x2c] sm:$0xf] %vm9112, %v9039
        %9125 = vst.msk [vmem:[#allocation3 + $0x30] sm:$0xf] %vm9112, %v9041
        %9126 = vst.msk [vmem:[#allocation3 + $0x34] sm:$0xf] %vm9112, %v9043
        %9127 = vst.msk [vmem:[#allocation3 + $0x38] sm:$0xf] %vm9112, %v9045
        %9128 = vst.msk [vmem:[#allocation3 + $0x3c] sm:$0xf] %vm9112, %v9047
        %9129 = vst.msk [vmem:[#allocation3 + $0x40] sm:$0xf] %vm9112, %v9049
        %9130 = vst.msk [vmem:[#allocation3 + $0x44] sm:$0xf] %vm9112, %v9051
        %9131 = vst.msk [vmem:[#allocation3 + $0x48] sm:$0xf] %vm9112, %v9053
        %9132 = vst.msk [vmem:[#allocation3 + $0x4c] sm:$0xf] %vm9112, %v9055
        %9133 = vst.msk [vmem:[#allocation3 + $0x50] sm:$0xf] %vm9112, %v9057
        %9134 = vst.msk [vmem:[#allocation3 + $0x54] sm:$0xf] %vm9112, %v9059
        %9135 = vst.msk [vmem:[#allocation3 + $0x58] sm:$0xf] %vm9112, %v9061
        %9136 = vst.msk [vmem:[#allocation3 + $0x5c] sm:$0xf] %vm9112, %v9063
        %9137 = vst.msk [vmem:[#allocation3 + $0x60] sm:$0xf] %vm9112, %v9065
        %9138 = vst.msk [vmem:[#allocation3 + $0x64] sm:$0xf] %vm9112, %v9067
        %9139 = vst.msk [vmem:[#allocation3 + $0x68] sm:$0xf] %vm9112, %v9069
        %9140 = vst.msk [vmem:[#allocation3 + $0x6c] sm:$0xf] %vm9112, %v9071
        %9141 = vst.msk [vmem:[#allocation3 + $0x70] sm:$0xf] %vm9112, %v9073
        %9142 = vst.msk [vmem:[#allocation3 + $0x74] sm:$0xf] %vm9112, %v9075
        %9143 = vst.msk [vmem:[#allocation3 + $0x78] sm:$0xf] %vm9112, %v9077
        %9144 = vst.msk [vmem:[#allocation3 + $0x7c] sm:$0xf] %vm9112, %v9079
        %9177 = vrot.lane.b32.xlu0 %v8471, 96
        %v9178 = vpop.permute.xlu0 %9177
        %9179 = vrot.lane.b32.xlu0 %v8472, 96
        %v9180 = vpop.permute.xlu0 %9179
        %9181 = vrot.lane.b32.xlu0 %v8473, 96
        %v9182 = vpop.permute.xlu0 %9181
        %9183 = vrot.lane.b32.xlu0 %v8474, 96
        %v9184 = vpop.permute.xlu0 %9183
        %9185 = vrot.lane.b32.xlu0 %v8475, 96
        %v9186 = vpop.permute.xlu0 %9185
        %9187 = vrot.lane.b32.xlu0 %v8476, 96
        %v9188 = vpop.permute.xlu0 %9187
        %9189 = vrot.lane.b32.xlu0 %v8477, 96
        %v9190 = vpop.permute.xlu0 %9189
        %9191 = vrot.lane.b32.xlu0 %v8478, 96
        %v9192 = vpop.permute.xlu0 %9191
        %9193 = vrot.lane.b32.xlu0 %v8479, 96
        %v9194 = vpop.permute.xlu0 %9193
        %9195 = vrot.lane.b32.xlu0 %v8480, 96
        %v9196 = vpop.permute.xlu0 %9195
        %9197 = vrot.lane.b32.xlu0 %v8481, 96
        %v9198 = vpop.permute.xlu0 %9197
        %9199 = vrot.lane.b32.xlu0 %v8482, 96
        %v9200 = vpop.permute.xlu0 %9199
        %9201 = vrot.lane.b32.xlu0 %v8483, 96
        %v9202 = vpop.permute.xlu0 %9201
        %9203 = vrot.lane.b32.xlu0 %v8484, 96
        %v9204 = vpop.permute.xlu0 %9203
        %9205 = vrot.lane.b32.xlu0 %v8485, 96
        %v9206 = vpop.permute.xlu0 %9205
        %9207 = vrot.lane.b32.xlu0 %v8486, 96
        %v9208 = vpop.permute.xlu0 %9207
        %9209 = vrot.lane.b32.xlu0 %v8487, 96
        %v9210 = vpop.permute.xlu0 %9209
        %9211 = vrot.lane.b32.xlu0 %v8488, 96
        %v9212 = vpop.permute.xlu0 %9211
        %9213 = vrot.lane.b32.xlu0 %v8489, 96
        %v9214 = vpop.permute.xlu0 %9213
        %9215 = vrot.lane.b32.xlu0 %v8490, 96
        %v9216 = vpop.permute.xlu0 %9215
        %9217 = vrot.lane.b32.xlu0 %v8491, 96
        %v9218 = vpop.permute.xlu0 %9217
        %9219 = vrot.lane.b32.xlu0 %v8492, 96
        %v9220 = vpop.permute.xlu0 %9219
        %9221 = vrot.lane.b32.xlu0 %v8493, 96
        %v9222 = vpop.permute.xlu0 %9221
        %9223 = vrot.lane.b32.xlu0 %v8494, 96
        %v9224 = vpop.permute.xlu0 %9223
        %9225 = vrot.lane.b32.xlu0 %v8495, 96
        %v9226 = vpop.permute.xlu0 %9225
        %9227 = vrot.lane.b32.xlu0 %v8496, 96
        %v9228 = vpop.permute.xlu0 %9227
        %9229 = vrot.lane.b32.xlu0 %v8497, 96
        %v9230 = vpop.permute.xlu0 %9229
        %9231 = vrot.lane.b32.xlu0 %v8498, 96
        %v9232 = vpop.permute.xlu0 %9231
        %9233 = vrot.lane.b32.xlu0 %v8499, 96
        %v9234 = vpop.permute.xlu0 %9233
        %9235 = vrot.lane.b32.xlu0 %v8500, 96
        %v9236 = vpop.permute.xlu0 %9235
        %9237 = vrot.lane.b32.xlu0 %v8501, 96
        %v9238 = vpop.permute.xlu0 %9237
        %9239 = vrot.lane.b32.xlu0 %v8502, 96
        %v9240 = vpop.permute.xlu0 %9239
        %vm9273 = vcmask 1044224
        %9274 = vst.msk [vmem:[#allocation3] sm:$0xf] %vm9273, %v9178
        %9275 = vst.msk [vmem:[#allocation3 + $0x4] sm:$0xf] %vm9273, %v9180
        %9276 = vst.msk [vmem:[#allocation3 + $0x8] sm:$0xf] %vm9273, %v9182
        %9277 = vst.msk [vmem:[#allocation3 + $0xc] sm:$0xf] %vm9273, %v9184
        %9278 = vst.msk [vmem:[#allocation3 + $0x10] sm:$0xf] %vm9273, %v9186
        %9279 = vst.msk [vmem:[#allocation3 + $0x14] sm:$0xf] %vm9273, %v9188
        %9280 = vst.msk [vmem:[#allocation3 + $0x18] sm:$0xf] %vm9273, %v9190
        %9281 = vst.msk [vmem:[#allocation3 + $0x1c] sm:$0xf] %vm9273, %v9192
        %9282 = vst.msk [vmem:[#allocation3 + $0x20] sm:$0xf] %vm9273, %v9194
        %9283 = vst.msk [vmem:[#allocation3 + $0x24] sm:$0xf] %vm9273, %v9196
        %9284 = vst.msk [vmem:[#allocation3 + $0x28] sm:$0xf] %vm9273, %v9198
        %9285 = vst.msk [vmem:[#allocation3 + $0x2c] sm:$0xf] %vm9273, %v9200
        %9286 = vst.msk [vmem:[#allocation3 + $0x30] sm:$0xf] %vm9273, %v9202
        %9287 = vst.msk [vmem:[#allocation3 + $0x34] sm:$0xf] %vm9273, %v9204
        %9288 = vst.msk [vmem:[#allocation3 + $0x38] sm:$0xf] %vm9273, %v9206
        %9289 = vst.msk [vmem:[#allocation3 + $0x3c] sm:$0xf] %vm9273, %v9208
        %9290 = vst.msk [vmem:[#allocation3 + $0x40] sm:$0xf] %vm9273, %v9210
        %9291 = vst.msk [vmem:[#allocation3 + $0x44] sm:$0xf] %vm9273, %v9212
        %9292 = vst.msk [vmem:[#allocation3 + $0x48] sm:$0xf] %vm9273, %v9214
        %9293 = vst.msk [vmem:[#allocation3 + $0x4c] sm:$0xf] %vm9273, %v9216
        %9294 = vst.msk [vmem:[#allocation3 + $0x50] sm:$0xf] %vm9273, %v9218
        %9295 = vst.msk [vmem:[#allocation3 + $0x54] sm:$0xf] %vm9273, %v9220
        %9296 = vst.msk [vmem:[#allocation3 + $0x58] sm:$0xf] %vm9273, %v9222
        %9297 = vst.msk [vmem:[#allocation3 + $0x5c] sm:$0xf] %vm9273, %v9224
        %9298 = vst.msk [vmem:[#allocation3 + $0x60] sm:$0xf] %vm9273, %v9226
        %9299 = vst.msk [vmem:[#allocation3 + $0x64] sm:$0xf] %vm9273, %v9228
        %9300 = vst.msk [vmem:[#allocation3 + $0x68] sm:$0xf] %vm9273, %v9230
        %9301 = vst.msk [vmem:[#allocation3 + $0x6c] sm:$0xf] %vm9273, %v9232
        %9302 = vst.msk [vmem:[#allocation3 + $0x70] sm:$0xf] %vm9273, %v9234
        %9303 = vst.msk [vmem:[#allocation3 + $0x74] sm:$0xf] %vm9273, %v9236
        %9304 = vst.msk [vmem:[#allocation3 + $0x78] sm:$0xf] %vm9273, %v9238
        %9305 = vst.msk [vmem:[#allocation3 + $0x7c] sm:$0xf] %vm9273, %v9240
        %v9306 = vld [vmem:[#allocation3] sm:$0xf]
        %v9307 = vld [vmem:[#allocation3 + $0x4] sm:$0xf]
        %v9308 = vld [vmem:[#allocation3 + $0x8] sm:$0xf]
        %v9309 = vld [vmem:[#allocation3 + $0xc] sm:$0xf]
        %v9310 = vld [vmem:[#allocation3 + $0x10] sm:$0xf]
        %v9311 = vld [vmem:[#allocation3 + $0x14] sm:$0xf]
        %v9312 = vld [vmem:[#allocation3 + $0x18] sm:$0xf]
        %v9313 = vld [vmem:[#allocation3 + $0x1c] sm:$0xf]
        %v9314 = vld [vmem:[#allocation3 + $0x20] sm:$0xf]
        %v9315 = vld [vmem:[#allocation3 + $0x24] sm:$0xf]
        %v9316 = vld [vmem:[#allocation3 + $0x28] sm:$0xf]
        %v9317 = vld [vmem:[#allocation3 + $0x2c] sm:$0xf]
        %v9318 = vld [vmem:[#allocation3 + $0x30] sm:$0xf]
        %v9319 = vld [vmem:[#allocation3 + $0x34] sm:$0xf]
        %v9320 = vld [vmem:[#allocation3 + $0x38] sm:$0xf]
        %v9321 = vld [vmem:[#allocation3 + $0x3c] sm:$0xf]
        %v9322 = vld [vmem:[#allocation3 + $0x40] sm:$0xf]
        %v9323 = vld [vmem:[#allocation3 + $0x44] sm:$0xf]
        %v9324 = vld [vmem:[#allocation3 + $0x48] sm:$0xf]
        %v9325 = vld [vmem:[#allocation3 + $0x4c] sm:$0xf]
        %v9326 = vld [vmem:[#allocation3 + $0x50] sm:$0xf]
        %v9327 = vld [vmem:[#allocation3 + $0x54] sm:$0xf]
        %v9328 = vld [vmem:[#allocation3 + $0x58] sm:$0xf]
        %v9329 = vld [vmem:[#allocation3 + $0x5c] sm:$0xf]
        %v9330 = vld [vmem:[#allocation3 + $0x60] sm:$0xf]
        %v9331 = vld [vmem:[#allocation3 + $0x64] sm:$0xf]
        %v9332 = vld [vmem:[#allocation3 + $0x68] sm:$0xf]
        %v9333 = vld [vmem:[#allocation3 + $0x6c] sm:$0xf]
        %v9334 = vld [vmem:[#allocation3 + $0x70] sm:$0xf]
        %v9335 = vld [vmem:[#allocation3 + $0x74] sm:$0xf]
        %v9336 = vld [vmem:[#allocation3 + $0x78] sm:$0xf]
        %v9337 = vld [vmem:[#allocation3 + $0x7c] sm:$0xf]
        %v9338 = vld [vmem:[%s3] sm:$0xf]
        %v9339 = vld [vmem:[%s3 + $0x4] sm:$0xf]
        %v9340 = vld [vmem:[%s3 + $0x8] sm:$0xf]
        %v9341 = vld [vmem:[%s3 + $0xc] sm:$0xf]
        %v9342 = vld [vmem:[%s3 + $0x10] sm:$0xf]
        %v9343 = vld [vmem:[%s3 + $0x14] sm:$0xf]
        %v9344 = vld [vmem:[%s3 + $0x18] sm:$0xf]
        %v9345 = vld [vmem:[%s3 + $0x1c] sm:$0xf]
        %v9346 = vld [vmem:[%s3 + $0x20] sm:$0xf]
        %v9347 = vld [vmem:[%s3 + $0x24] sm:$0xf]
        %v9348 = vld [vmem:[%s3 + $0x28] sm:$0xf]
        %v9349 = vld [vmem:[%s3 + $0x2c] sm:$0xf]
        %v9350 = vld [vmem:[%s3 + $0x30] sm:$0xf]
        %v9351 = vld [vmem:[%s3 + $0x34] sm:$0xf]
        %v9352 = vld [vmem:[%s3 + $0x38] sm:$0xf]
        %v9353 = vld [vmem:[%s3 + $0x3c] sm:$0xf]
        %v9354 = vld [vmem:[%s4] sm:$0x1]
        %v9356 = vlaneseq
        %v9357 = vshrl.u32 %v9356, 7
        %v9358 = vsub.s32 0, %v9357
        %v9359 = vrot.slane %v9354, %v9358
        %v9393 = vunpack.c.l.b16 %v9306
        %v9394 = vunpack.c.l.b16 %v9307
        %v9395 = vunpack.c.l.b16 %v9308
        %v9396 = vunpack.c.l.b16 %v9309
        %v9397 = vunpack.c.l.b16 %v9310
        %v9398 = vunpack.c.l.b16 %v9311
        %v9399 = vunpack.c.l.b16 %v9312
        %v9400 = vunpack.c.l.b16 %v9313
        %v9401 = vunpack.c.l.b16 %v9314
        %v9402 = vunpack.c.l.b16 %v9315
        %v9403 = vunpack.c.l.b16 %v9316
        %v9404 = vunpack.c.l.b16 %v9317
        %v9405 = vunpack.c.l.b16 %v9318
        %v9406 = vunpack.c.l.b16 %v9319
        %v9407 = vunpack.c.l.b16 %v9320
        %v9408 = vunpack.c.l.b16 %v9321
        %v9409 = vunpack.c.l.b16 %v9322
        %v9410 = vunpack.c.l.b16 %v9323
        %v9411 = vunpack.c.l.b16 %v9324
        %v9412 = vunpack.c.l.b16 %v9325
        %v9413 = vunpack.c.l.b16 %v9326
        %v9414 = vunpack.c.l.b16 %v9327
        %v9415 = vunpack.c.l.b16 %v9328
        %v9416 = vunpack.c.l.b16 %v9329
        %v9417 = vunpack.c.l.b16 %v9330
        %v9418 = vunpack.c.l.b16 %v9331
        %v9419 = vunpack.c.l.b16 %v9332
        %v9420 = vunpack.c.l.b16 %v9333
        %v9421 = vunpack.c.l.b16 %v9334
        %v9422 = vunpack.c.l.b16 %v9335
        %v9423 = vunpack.c.l.b16 %v9336
        %v9424 = vunpack.c.l.b16 %v9337
        %v9425 = vpack.c.b16 %v9394, %v9393
        %v9426 = vpack.c.b16 %v9396, %v9395
        %v9427 = vpack.c.b16 %v9398, %v9397
        %v9428 = vpack.c.b16 %v9400, %v9399
        %v9429 = vpack.c.b16 %v9402, %v9401
        %v9430 = vpack.c.b16 %v9404, %v9403
        %v9431 = vpack.c.b16 %v9406, %v9405
        %v9432 = vpack.c.b16 %v9408, %v9407
        %v9433 = vpack.c.b16 %v9410, %v9409
        %v9434 = vpack.c.b16 %v9412, %v9411
        %v9435 = vpack.c.b16 %v9414, %v9413
        %v9436 = vpack.c.b16 %v9416, %v9415
        %v9437 = vpack.c.b16 %v9418, %v9417
        %v9438 = vpack.c.b16 %v9420, %v9419
        %v9439 = vpack.c.b16 %v9422, %v9421
        %v9440 = vpack.c.b16 %v9424, %v9423
        %v9473 = vunpack.c.l.b16 %v9338
        %v9474 = vunpack.c.l.b16 %v9339
        %v9475 = vunpack.c.l.b16 %v9340
        %v9476 = vunpack.c.l.b16 %v9341
        %v9477 = vunpack.c.l.b16 %v9342
        %v9478 = vunpack.c.l.b16 %v9343
        %v9479 = vunpack.c.l.b16 %v9344
        %v9480 = vunpack.c.l.b16 %v9345
        %v9481 = vunpack.c.l.b16 %v9346
        %v9482 = vunpack.c.l.b16 %v9347
        %v9483 = vunpack.c.l.b16 %v9348
        %v9484 = vunpack.c.l.b16 %v9349
        %v9485 = vunpack.c.l.b16 %v9350
        %v9486 = vunpack.c.l.b16 %v9351
        %v9487 = vunpack.c.l.b16 %v9352
        %v9488 = vunpack.c.l.b16 %v9353
        %v9489 = vpack.c.b16 %v9474, %v9473
        %v9490 = vpack.c.b16 %v9476, %v9475
        %v9491 = vpack.c.b16 %v9478, %v9477
        %v9492 = vpack.c.b16 %v9480, %v9479
        %v9493 = vpack.c.b16 %v9482, %v9481
        %v9494 = vpack.c.b16 %v9484, %v9483
        %v9495 = vpack.c.b16 %v9486, %v9485
        %v9496 = vpack.c.b16 %v9488, %v9487
        %9505 = vmatprep.subr.bf16.mxu0 0
        %9506 = vmatpush1.bf16.msra.mxu0 %v9496
        %9507 = vmatprep.subr.bf16.mxu0 0
        %9508 = vmatpush1.bf16.msra.mxu0 %v9495
        %9509 = vmatprep.subr.bf16.mxu0 0
        %9510 = vmatpush1.bf16.msra.mxu0 %v9494
        %9511 = vmatprep.subr.bf16.mxu0 0
        %9512 = vmatpush1.bf16.msra.mxu0 %v9493
        %9513 = vmatprep.subr.bf16.mxu0 0
        %9514 = vmatpush1.bf16.msra.mxu0 %v9492
        %9515 = vmatprep.subr.bf16.mxu0 0
        %9516 = vmatpush1.bf16.msra.mxu0 %v9491
        %9517 = vmatprep.subr.bf16.mxu0 0
        %9518 = vmatpush1.bf16.msra.mxu0 %v9490
        %9519 = vmatprep.subr.bf16.mxu0 0
        %9520 = vmatpush1.bf16.msra.mxu0 %v9489
        %9521 = vmatprep.subr.bf16.mxu0 0
        %9522 = vmatpush2.bf16.msra.mxu0 0
        %9523 = vmatprep.subr.bf16.mxu0 0
        %9524 = vmatpush2.bf16.msra.mxu0 0
        %9525 = vmatprep.subr.bf16.mxu0 0
        %9526 = vmatpush2.bf16.msra.mxu0 0
        %9527 = vmatprep.subr.bf16.mxu0 0
        %9528 = vmatpush2.bf16.msra.mxu0 0
        %9529 = vmatprep.subr.bf16.mxu0 0
        %9530 = vmatpush2.bf16.msra.mxu0 0
        %9531 = vmatprep.subr.bf16.mxu0 0
        %9532 = vmatpush2.bf16.msra.mxu0 0
        %9533 = vmatprep.subr.bf16.mxu0 0
        %9534 = vmatpush2.bf16.msra.mxu0 0
        %9535 = vmatprep.subr.bf16.mxu0 0
        %9536 = vmatpush2.bf16.msra.mxu0 0
        %9537 = vmatprep.mubr.bf16.mxu0 0
        %9538 = vmatmul.mubr.bf16.gmra.mxu0 %v9425
        %v9539 = vpop.f32.mrf.mxu0
        %v9540 = vadd.f32 %v9359, %v9539
        %v9541 = vpop.f32.mrf.mxu0
        %v9542 = vpop.f32.mrf.mxu0
        %v9543 = vadd.f32 %v9359, %v9542
        %v9544 = vpop.f32.mrf.mxu0
        %9545 = vmatprep.mubr.bf16.mxu0 0
        %9546 = vmatmul.mubr.bf16.gmra.mxu0 %v9426
        %v9547 = vpop.f32.mrf.mxu0
        %v9548 = vadd.f32 %v9359, %v9547
        %v9549 = vpop.f32.mrf.mxu0
        %v9550 = vpop.f32.mrf.mxu0
        %v9551 = vadd.f32 %v9359, %v9550
        %v9552 = vpop.f32.mrf.mxu0
        %9553 = vmatprep.mubr.bf16.mxu0 0
        %9554 = vmatmul.mubr.bf16.gmra.mxu0 %v9427
        %v9555 = vpop.f32.mrf.mxu0
        %v9556 = vadd.f32 %v9359, %v9555
        %v9557 = vpop.f32.mrf.mxu0
        %v9558 = vpop.f32.mrf.mxu0
        %v9559 = vadd.f32 %v9359, %v9558
        %v9560 = vpop.f32.mrf.mxu0
        %9561 = vmatprep.mubr.bf16.mxu0 0
        %9562 = vmatmul.mubr.bf16.gmra.mxu0 %v9428
        %v9563 = vpop.f32.mrf.mxu0
        %v9564 = vadd.f32 %v9359, %v9563
        %v9565 = vpop.f32.mrf.mxu0
        %v9566 = vpop.f32.mrf.mxu0
        %v9567 = vadd.f32 %v9359, %v9566
        %v9568 = vpop.f32.mrf.mxu0
        %9569 = vmatprep.mubr.bf16.mxu0 0
        %9570 = vmatmul.mubr.bf16.gmra.mxu0 %v9429
        %v9571 = vpop.f32.mrf.mxu0
        %v9572 = vadd.f32 %v9359, %v9571
        %v9573 = vpop.f32.mrf.mxu0
        %v9574 = vpop.f32.mrf.mxu0
        %v9575 = vadd.f32 %v9359, %v9574
        %v9576 = vpop.f32.mrf.mxu0
        %9577 = vmatprep.mubr.bf16.mxu0 0
        %9578 = vmatmul.mubr.bf16.gmra.mxu0 %v9430
        %v9579 = vpop.f32.mrf.mxu0
        %v9580 = vadd.f32 %v9359, %v9579
        %v9581 = vpop.f32.mrf.mxu0
        %v9582 = vpop.f32.mrf.mxu0
        %v9583 = vadd.f32 %v9359, %v9582
        %v9584 = vpop.f32.mrf.mxu0
        %9585 = vmatprep.mubr.bf16.mxu0 0
        %9586 = vmatmul.mubr.bf16.gmra.mxu0 %v9431
        %v9587 = vpop.f32.mrf.mxu0
        %v9588 = vadd.f32 %v9359, %v9587
        %v9589 = vpop.f32.mrf.mxu0
        %v9590 = vpop.f32.mrf.mxu0
        %v9591 = vadd.f32 %v9359, %v9590
        %v9592 = vpop.f32.mrf.mxu0
        %9593 = vmatprep.mubr.bf16.mxu0 0
        %9594 = vmatmul.mubr.bf16.gmra.mxu0 %v9432
        %v9595 = vpop.f32.mrf.mxu0
        %v9596 = vadd.f32 %v9359, %v9595
        %v9597 = vpop.f32.mrf.mxu0
        %v9598 = vpop.f32.mrf.mxu0
        %v9599 = vadd.f32 %v9359, %v9598
        %v9600 = vpop.f32.mrf.mxu0
        %9601 = vmatprep.mubr.bf16.mxu0 0
        %9602 = vmatmul.mubr.bf16.gmra.mxu0 %v9433
        %v9603 = vpop.f32.mrf.mxu0
        %v9604 = vadd.f32 %v9359, %v9603
        %v9605 = vpop.f32.mrf.mxu0
        %v9606 = vpop.f32.mrf.mxu0
        %v9607 = vadd.f32 %v9359, %v9606
        %v9608 = vpop.f32.mrf.mxu0
        %9609 = vmatprep.mubr.bf16.mxu0 0
        %9610 = vmatmul.mubr.bf16.gmra.mxu0 %v9434
        %v9611 = vpop.f32.mrf.mxu0
        %v9612 = vadd.f32 %v9359, %v9611
        %v9613 = vpop.f32.mrf.mxu0
        %v9614 = vpop.f32.mrf.mxu0
        %v9615 = vadd.f32 %v9359, %v9614
        %v9616 = vpop.f32.mrf.mxu0
        %9617 = vmatprep.mubr.bf16.mxu0 0
        %9618 = vmatmul.mubr.bf16.gmra.mxu0 %v9435
        %v9619 = vpop.f32.mrf.mxu0
        %v9620 = vadd.f32 %v9359, %v9619
        %v9621 = vpop.f32.mrf.mxu0
        %v9622 = vpop.f32.mrf.mxu0
        %v9623 = vadd.f32 %v9359, %v9622
        %v9624 = vpop.f32.mrf.mxu0
        %9625 = vmatprep.mubr.bf16.mxu0 0
        %9626 = vmatmul.mubr.bf16.gmra.mxu0 %v9436
        %v9627 = vpop.f32.mrf.mxu0
        %v9628 = vadd.f32 %v9359, %v9627
        %v9629 = vpop.f32.mrf.mxu0
        %v9630 = vpop.f32.mrf.mxu0
        %v9631 = vadd.f32 %v9359, %v9630
        %v9632 = vpop.f32.mrf.mxu0
        %9633 = vmatprep.mubr.bf16.mxu0 0
        %9634 = vmatmul.mubr.bf16.gmra.mxu0 %v9437
        %v9635 = vpop.f32.mrf.mxu0
        %v9636 = vadd.f32 %v9359, %v9635
        %v9637 = vpop.f32.mrf.mxu0
        %v9638 = vpop.f32.mrf.mxu0
        %v9639 = vadd.f32 %v9359, %v9638
        %v9640 = vpop.f32.mrf.mxu0
        %9641 = vmatprep.mubr.bf16.mxu0 0
        %9642 = vmatmul.mubr.bf16.gmra.mxu0 %v9438
        %v9643 = vpop.f32.mrf.mxu0
        %v9644 = vadd.f32 %v9359, %v9643
        %v9645 = vpop.f32.mrf.mxu0
        %v9646 = vpop.f32.mrf.mxu0
        %v9647 = vadd.f32 %v9359, %v9646
        %v9648 = vpop.f32.mrf.mxu0
        %9649 = vmatprep.mubr.bf16.mxu0 0
        %9650 = vmatmul.mubr.bf16.gmra.mxu0 %v9439
        %v9651 = vpop.f32.mrf.mxu0
        %v9652 = vadd.f32 %v9359, %v9651
        %v9653 = vpop.f32.mrf.mxu0
        %v9654 = vpop.f32.mrf.mxu0
        %v9655 = vadd.f32 %v9359, %v9654
        %v9656 = vpop.f32.mrf.mxu0
        %9657 = vmatprep.mubr.bf16.mxu0 0
        %9658 = vmatmul.mubr.bf16.gmra.mxu0 %v9440
        %v9659 = vpop.f32.mrf.mxu0
        %v9660 = vadd.f32 %v9359, %v9659
        %v9661 = vpop.f32.mrf.mxu0
        %v9662 = vpop.f32.mrf.mxu0
        %v9663 = vadd.f32 %v9359, %v9662
        %v9664 = vpop.f32.mrf.mxu0
        %9665 = vdwg.mxu0
        %v9666 = vxor.u32 %v9540, 2147483648
        %v9667 = vxor.u32 %v9543, 2147483648
        %v9668 = vxor.u32 %v9548, 2147483648
        %v9669 = vxor.u32 %v9551, 2147483648
        %v9670 = vxor.u32 %v9556, 2147483648
        %v9671 = vxor.u32 %v9559, 2147483648
        %v9672 = vxor.u32 %v9564, 2147483648
        %v9673 = vxor.u32 %v9567, 2147483648
        %v9674 = vxor.u32 %v9572, 2147483648
        %v9675 = vxor.u32 %v9575, 2147483648
        %v9676 = vxor.u32 %v9580, 2147483648
        %v9677 = vxor.u32 %v9583, 2147483648
        %v9678 = vxor.u32 %v9588, 2147483648
        %v9679 = vxor.u32 %v9591, 2147483648
        %v9680 = vxor.u32 %v9596, 2147483648
        %v9681 = vxor.u32 %v9599, 2147483648
        %v9682 = vxor.u32 %v9604, 2147483648
        %v9683 = vxor.u32 %v9607, 2147483648
        %v9684 = vxor.u32 %v9612, 2147483648
        %v9685 = vxor.u32 %v9615, 2147483648
        %v9686 = vxor.u32 %v9620, 2147483648
        %v9687 = vxor.u32 %v9623, 2147483648
        %v9688 = vxor.u32 %v9628, 2147483648
        %v9689 = vxor.u32 %v9631, 2147483648
        %v9690 = vxor.u32 %v9636, 2147483648
        %v9691 = vxor.u32 %v9639, 2147483648
        %v9692 = vxor.u32 %v9644, 2147483648
        %v9693 = vxor.u32 %v9647, 2147483648
        %v9694 = vxor.u32 %v9652, 2147483648
        %v9695 = vxor.u32 %v9655, 2147483648
        %v9696 = vxor.u32 %v9660, 2147483648
        %v9697 = vxor.u32 %v9663, 2147483648
        %v9698 = vmul.f32 %v9666, 1.442695
        %v9699 = vpow.pop %v9698
        %v9700 = vmul.f32 %v9667, 1.442695
        %v9701 = vpow.pop %v9700
        %v9702 = vmul.f32 %v9668, 1.442695
        %v9703 = vpow.pop %v9702
        %v9704 = vmul.f32 %v9669, 1.442695
        %v9705 = vpow.pop %v9704
        %v9706 = vmul.f32 %v9670, 1.442695
        %v9707 = vpow.pop %v9706
        %v9708 = vmul.f32 %v9671, 1.442695
        %v9709 = vpow.pop %v9708
        %v9710 = vmul.f32 %v9672, 1.442695
        %v9711 = vpow.pop %v9710
        %v9712 = vmul.f32 %v9673, 1.442695
        %v9713 = vpow.pop %v9712
        %v9714 = vmul.f32 %v9674, 1.442695
        %v9715 = vpow.pop %v9714
        %v9716 = vmul.f32 %v9675, 1.442695
        %v9717 = vpow.pop %v9716
        %v9718 = vmul.f32 %v9676, 1.442695
        %v9719 = vpow.pop %v9718
        %v9720 = vmul.f32 %v9677, 1.442695
        %v9721 = vpow.pop %v9720
        %v9722 = vmul.f32 %v9678, 1.442695
        %v9723 = vpow.pop %v9722
        %v9724 = vmul.f32 %v9679, 1.442695
        %v9725 = vpow.pop %v9724
        %v9726 = vmul.f32 %v9680, 1.442695
        %v9727 = vpow.pop %v9726
        %v9728 = vmul.f32 %v9681, 1.442695
        %v9729 = vpow.pop %v9728
        %v9730 = vmul.f32 %v9682, 1.442695
        %v9731 = vpow.pop %v9730
        %v9732 = vmul.f32 %v9683, 1.442695
        %v9733 = vpow.pop %v9732
        %v9734 = vmul.f32 %v9684, 1.442695
        %v9735 = vpow.pop %v9734
        %v9736 = vmul.f32 %v9685, 1.442695
        %v9737 = vpow.pop %v9736
        %v9738 = vmul.f32 %v9686, 1.442695
        %v9739 = vpow.pop %v9738
        %v9740 = vmul.f32 %v9687, 1.442695
        %v9741 = vpow.pop %v9740
        %v9742 = vmul.f32 %v9688, 1.442695
        %v9743 = vpow.pop %v9742
        %v9744 = vmul.f32 %v9689, 1.442695
        %v9745 = vpow.pop %v9744
        %v9746 = vmul.f32 %v9690, 1.442695
        %v9747 = vpow.pop %v9746
        %v9748 = vmul.f32 %v9691, 1.442695
        %v9749 = vpow.pop %v9748
        %v9750 = vmul.f32 %v9692, 1.442695
        %v9751 = vpow.pop %v9750
        %v9752 = vmul.f32 %v9693, 1.442695
        %v9753 = vpow.pop %v9752
        %v9754 = vmul.f32 %v9694, 1.442695
        %v9755 = vpow.pop %v9754
        %v9756 = vmul.f32 %v9695, 1.442695
        %v9757 = vpow.pop %v9756
        %v9758 = vmul.f32 %v9696, 1.442695
        %v9759 = vpow.pop %v9758
        %v9760 = vmul.f32 %v9697, 1.442695
        %v9761 = vpow.pop %v9760
        %v9762 = vadd.f32 %v9699, 1.0
        %v9763 = vadd.f32 %v9701, 1.0
        %v9764 = vadd.f32 %v9703, 1.0
        %v9765 = vadd.f32 %v9705, 1.0
        %v9766 = vadd.f32 %v9707, 1.0
        %v9767 = vadd.f32 %v9709, 1.0
        %v9768 = vadd.f32 %v9711, 1.0
        %v9769 = vadd.f32 %v9713, 1.0
        %v9770 = vadd.f32 %v9715, 1.0
        %v9771 = vadd.f32 %v9717, 1.0
        %v9772 = vadd.f32 %v9719, 1.0
        %v9773 = vadd.f32 %v9721, 1.0
        %v9774 = vadd.f32 %v9723, 1.0
        %v9775 = vadd.f32 %v9725, 1.0
        %v9776 = vadd.f32 %v9727, 1.0
        %v9777 = vadd.f32 %v9729, 1.0
        %v9778 = vadd.f32 %v9731, 1.0
        %v9779 = vadd.f32 %v9733, 1.0
        %v9780 = vadd.f32 %v9735, 1.0
        %v9781 = vadd.f32 %v9737, 1.0
        %v9782 = vadd.f32 %v9739, 1.0
        %v9783 = vadd.f32 %v9741, 1.0
        %v9784 = vadd.f32 %v9743, 1.0
        %v9785 = vadd.f32 %v9745, 1.0
        %v9786 = vadd.f32 %v9747, 1.0
        %v9787 = vadd.f32 %v9749, 1.0
        %v9788 = vadd.f32 %v9751, 1.0
        %v9789 = vadd.f32 %v9753, 1.0
        %v9790 = vadd.f32 %v9755, 1.0
        %v9791 = vadd.f32 %v9757, 1.0
        %v9792 = vadd.f32 %v9759, 1.0
        %v9793 = vadd.f32 %v9761, 1.0
        %v9794 = vrcp.pop %v9762
        %v9795 = vmul.f32 1.0, %v9794
        %v9796 = vrcp.pop %v9763
        %v9797 = vmul.f32 1.0, %v9796
        %v9798 = vrcp.pop %v9764
        %v9799 = vmul.f32 1.0, %v9798
        %v9800 = vrcp.pop %v9765
        %v9801 = vmul.f32 1.0, %v9800
        %v9802 = vrcp.pop %v9766
        %v9803 = vmul.f32 1.0, %v9802
        %v9804 = vrcp.pop %v9767
        %v9805 = vmul.f32 1.0, %v9804
        %v9806 = vrcp.pop %v9768
        %v9807 = vmul.f32 1.0, %v9806
        %v9808 = vrcp.pop %v9769
        %v9809 = vmul.f32 1.0, %v9808
        %v9810 = vrcp.pop %v9770
        %v9811 = vmul.f32 1.0, %v9810
        %v9812 = vrcp.pop %v9771
        %v9813 = vmul.f32 1.0, %v9812
        %v9814 = vrcp.pop %v9772
        %v9815 = vmul.f32 1.0, %v9814
        %v9816 = vrcp.pop %v9773
        %v9817 = vmul.f32 1.0, %v9816
        %v9818 = vrcp.pop %v9774
        %v9819 = vmul.f32 1.0, %v9818
        %v9820 = vrcp.pop %v9775
        %v9821 = vmul.f32 1.0, %v9820
        %v9822 = vrcp.pop %v9776
        %v9823 = vmul.f32 1.0, %v9822
        %v9824 = vrcp.pop %v9777
        %v9825 = vmul.f32 1.0, %v9824
        %v9826 = vrcp.pop %v9778
        %v9827 = vmul.f32 1.0, %v9826
        %v9828 = vrcp.pop %v9779
        %v9829 = vmul.f32 1.0, %v9828
        %v9830 = vrcp.pop %v9780
        %v9831 = vmul.f32 1.0, %v9830
        %v9832 = vrcp.pop %v9781
        %v9833 = vmul.f32 1.0, %v9832
        %v9834 = vrcp.pop %v9782
        %v9835 = vmul.f32 1.0, %v9834
        %v9836 = vrcp.pop %v9783
        %v9837 = vmul.f32 1.0, %v9836
        %v9838 = vrcp.pop %v9784
        %v9839 = vmul.f32 1.0, %v9838
        %v9840 = vrcp.pop %v9785
        %v9841 = vmul.f32 1.0, %v9840
        %v9842 = vrcp.pop %v9786
        %v9843 = vmul.f32 1.0, %v9842
        %v9844 = vrcp.pop %v9787
        %v9845 = vmul.f32 1.0, %v9844
        %v9846 = vrcp.pop %v9788
        %v9847 = vmul.f32 1.0, %v9846
        %v9848 = vrcp.pop %v9789
        %v9849 = vmul.f32 1.0, %v9848
        %v9850 = vrcp.pop %v9790
        %v9851 = vmul.f32 1.0, %v9850
        %v9852 = vrcp.pop %v9791
        %v9853 = vmul.f32 1.0, %v9852
        %v9854 = vrcp.pop %v9792
        %v9855 = vmul.f32 1.0, %v9854
        %v9856 = vrcp.pop %v9793
        %v9857 = vmul.f32 1.0, %v9856
        %v9858 = vmul.f32 %v9540, %v9795
        %v9859 = vmul.f32 %v9543, %v9797
        %v9860 = vmul.f32 %v9548, %v9799
        %v9861 = vmul.f32 %v9551, %v9801
        %v9862 = vmul.f32 %v9556, %v9803
        %v9863 = vmul.f32 %v9559, %v9805
        %v9864 = vmul.f32 %v9564, %v9807
        %v9865 = vmul.f32 %v9567, %v9809
        %v9866 = vmul.f32 %v9572, %v9811
        %v9867 = vmul.f32 %v9575, %v9813
        %v9868 = vmul.f32 %v9580, %v9815
        %v9869 = vmul.f32 %v9583, %v9817
        %v9870 = vmul.f32 %v9588, %v9819
        %v9871 = vmul.f32 %v9591, %v9821
        %v9872 = vmul.f32 %v9596, %v9823
        %v9873 = vmul.f32 %v9599, %v9825
        %v9874 = vmul.f32 %v9604, %v9827
        %v9875 = vmul.f32 %v9607, %v9829
        %v9876 = vmul.f32 %v9612, %v9831
        %v9877 = vmul.f32 %v9615, %v9833
        %v9878 = vmul.f32 %v9620, %v9835
        %v9879 = vmul.f32 %v9623, %v9837
        %v9880 = vmul.f32 %v9628, %v9839
        %v9881 = vmul.f32 %v9631, %v9841
        %v9882 = vmul.f32 %v9636, %v9843
        %v9883 = vmul.f32 %v9639, %v9845
        %v9884 = vmul.f32 %v9644, %v9847
        %v9885 = vmul.f32 %v9647, %v9849
        %v9886 = vmul.f32 %v9652, %v9851
        %v9887 = vmul.f32 %v9655, %v9853
        %v9888 = vmul.f32 %v9660, %v9855
        %v9889 = vmul.f32 %v9663, %v9857
        %9890 = vst [vmem:[%s217] sm:$0xff] %v9858
        %9891 = vst [vmem:[%s217 + $0x8] sm:$0xff] %v9859
        %9892 = vst [vmem:[%s217 + $0x10] sm:$0xff] %v9860
        %9893 = vst [vmem:[%s217 + $0x18] sm:$0xff] %v9861
        %9894 = vst [vmem:[%s217 + $0x20] sm:$0xff] %v9862
        %9895 = vst [vmem:[%s217 + $0x28] sm:$0xff] %v9863
        %9896 = vst [vmem:[%s217 + $0x30] sm:$0xff] %v9864
        %9897 = vst [vmem:[%s217 + $0x38] sm:$0xff] %v9865
        %9898 = vst [vmem:[%s217 + $0x40] sm:$0xff] %v9866
        %9899 = vst [vmem:[%s217 + $0x48] sm:$0xff] %v9867
        %9900 = vst [vmem:[%s217 + $0x50] sm:$0xff] %v9868
        %9901 = vst [vmem:[%s217 + $0x58] sm:$0xff] %v9869
        %9902 = vst [vmem:[%s217 + $0x60] sm:$0xff] %v9870
        %9903 = vst [vmem:[%s217 + $0x68] sm:$0xff] %v9871
        %9904 = vst [vmem:[%s217 + $0x70] sm:$0xff] %v9872
        %9905 = vst [vmem:[%s217 + $0x78] sm:$0xff] %v9873
        %9906 = vst [vmem:[%s217 + $0x80] sm:$0xff] %v9874
        %9907 = vst [vmem:[%s217 + $0x88] sm:$0xff] %v9875
        %9908 = vst [vmem:[%s217 + $0x90] sm:$0xff] %v9876
        %9909 = vst [vmem:[%s217 + $0x98] sm:$0xff] %v9877
        %9910 = vst [vmem:[%s217 + $0xa0] sm:$0xff] %v9878
        %9911 = vst [vmem:[%s217 + $0xa8] sm:$0xff] %v9879
        %9912 = vst [vmem:[%s217 + $0xb0] sm:$0xff] %v9880
        %9913 = vst [vmem:[%s217 + $0xb8] sm:$0xff] %v9881
        %9914 = vst [vmem:[%s217 + $0xc0] sm:$0xff] %v9882
        %9915 = vst [vmem:[%s217 + $0xc8] sm:$0xff] %v9883
        %9916 = vst [vmem:[%s217 + $0xd0] sm:$0xff] %v9884
        %9917 = vst [vmem:[%s217 + $0xd8] sm:$0xff] %v9885
        %9918 = vst [vmem:[%s217 + $0xe0] sm:$0xff] %v9886
        %9919 = vst [vmem:[%s217 + $0xe8] sm:$0xff] %v9887
        %9920 = vst [vmem:[%s217 + $0xf0] sm:$0xff] %v9888
        %9921 = vst [vmem:[%s217 + $0xf8] sm:$0xff] %v9889
        %s9922 = sand.u32 %s137, 1
        %s9923 = scalar_lea.sflag [#allocation5], %s9922
        %s9924 = sand.u32 %s137, 1
        %s9925 = smul.addr %s9924, 256
        %s9926 = scalar_lea.vmem [#allocation4], %s9925
        // Predicated region
        $region41: #{sppf.1} parent=39 // pred_check
          %p9927 = pneg %p147
        $region42: #{sppf.1} parent=39 // pred_check_branch
          %9929 = sbr.rel (%p9927) target = $region44
        $region43: #{sppf.1} parent=39 // pred_region
          %s9931 = ssub.s32 4096, 4096
          %9932 = vsyncadd %s9923, %s9931
          %s9933 = smul.addr %s19, 32
          %s9934 = smul.addr %s9933, 128
          %s9935 = scalar_lea.hbm %s5, %s9934
          %s9936 = sshll.u32 %s9926, 4
          %s9937 = int_to_ptr.vmem [resolvable:$true] %s9936
          %9942 = dma.vmem_to_hbm [thread:$0]  %s9937, 4096, %s9935, %s9923, 128, 128, 8
        $region44: #{sppf.1} parent=39 // pred_fallthru
          _
      $region40: #{sppf.1} parent=5 // pred_fallthru
        _
      %p9943 = scmp.le.s32.totalorder 2, %s14
      // Predicated region
      $region45: #{sppf.1} parent=5 // pred_check
        %p9944 = pneg %p9943
      $region46: #{sppf.1} parent=5 // pred_check_branch
        %9946 = sbr.rel (%p9944) target = $region48
      $region47: #{sppf.1} parent=5 // pred_region
        %s9947 = ssub.s32 %s14, 2
        // Predicated region
        $region49: #{sppf.1} parent=47 // pred_check
          %p9948 = pneg %p153
        $region50: #{sppf.1} parent=47 // pred_check_branch
          %9950 = sbr.rel (%p9948) target = $region52
        $region51: #{sppf.1} parent=47 // pred_region
          %s9951 = sand.u32 %s138, 1
          %s9952 = scalar_lea.sflag [#allocation5], %s9951
          %s9953 = sand.u32 %s138, 1
          %s9954 = smul.addr %s9953, 256
          %s9955 = scalar_lea.vmem [#allocation4], %s9954
          %9956 = dma.done %s9952, 4096
        $region52: #{sppf.1} parent=47 // pred_fallthru
          _
      $region48: #{sppf.1} parent=5 // pred_fallthru
        _
    $region6: #{sppf.1} parent=1 // loop_footer
      %s18 = sadd.s32 1, %s14
    $region7: #{sppf.1} parent=1 // loop_footer_branch
      %13 = sbr.rel target = $region3
    $region8: #{sppf.1} parent=1 // loop_exit
      _
    %9957 = vsyncpa [#allocation5], 1
    %s9958 = scalar_lea.sflag [#allocation5], 1
    %9959 = vsyncpa %s9958, 1

</llo_original>
